<compile_context>
chip_gen: v6e
topology: v6e:2x2x1
jax: 0.10.0
libtpu: 0.0.40
codegen_flags: <defaults>
</compile_context>

<pallas_src>
import functools

import jax
import jax.numpy as jnp
from jax import lax
from jax.experimental import pallas as pl
from jax.experimental.pallas import tpu as pltpu

# Scoped-VMEM request for every pallas_call.  Toy shapes need < 1 MiB; this
# raises v5e's 16 MiB default and stays well inside v7x's 64 MiB physical
# VMEM.  Re-derive (with ~20% double-buffer headroom) at real BYOL shapes.
_VMEM_LIMIT = 32 * 1024 * 1024


# ----------------------------------------------------------------------------
# Pallas kernel 1: fused backbone conv path
#   conv1(3x3, SAME) + bias -> ReLU -> conv2(3x3, SAME) + bias
# One grid step per batch block of BB images.  Each conv is a single fat MXU
# dot over an im2col block built in VMEM; conv1's output never touches HBM
# (its zero halo in the ypad scratch supplies conv2's SAME padding).
# ----------------------------------------------------------------------------
def _fused_conv_kernel(x_ref, w1_ref, b1_ref, w2_ref, b2_ref, o_ref,
                       xpad_ref, col1_ref, ypad_ref, col2_ref, *, H, W, BB):
    # x_ref   : (BB, H, W, Cin)        unpadded NHWC batch block
    # w1_ref  : (9*Cin, C1)            taps packed (ky, kx, cin) row-major
    # b1_ref  : (1, C1)
    # w2_ref  : (9*C1, C2)
    # b2_ref  : (1, C2)
    # o_ref   : (BB, H*W, C2)          hooked activation (NHWC flatten order)
    # xpad_ref: (BB*(H+2), W+2, Cin)   zero-haloed conv1 input (per-image rows)
    # col1_ref: (BB*H*W, 9*Cin)        im2col block for conv1
    # ypad_ref: (BB*(H+2), W+2, C1)    zero-haloed ReLU(conv1) output
    # col2_ref: (BB*H*W, 9*C1)         im2col block for conv2
    cin = x_ref.shape[-1]
    c1 = w1_ref.shape[-1]
    c2 = w2_ref.shape[-1]
    HP, WP = H + 2, W + 2
    HW = H * W
    taps = [(dy, dx) for dy in range(3) for dx in range(3)]

    # ---- in-kernel SAME padding: zero ONLY the 1-wide halo strips ----------
    # (interiors are fully overwritten every step; re-zeroing whole scratches
    #  would waste vector stores — biggest cost on v5e's single vst slot).
    for b in range(BB):
        r0 = b * HP
        xpad_ref[pl.ds(r0, 1), :, :] = jnp.zeros((1, WP, cin), jnp.float32)
        xpad_ref[pl.ds(r0 + H + 1, 1), :, :] = jnp.zeros((1, WP, cin), jnp.float32)
        xpad_ref[pl.ds(r0 + 1, H), pl.ds(0, 1), :] = jnp.zeros((H, 1, cin), jnp.float32)
        xpad_ref[pl.ds(r0 + 1, H), pl.ds(W + 1, 1), :] = jnp.zeros((H, 1, cin), jnp.float32)
        # unpadded input tile -> interior of the zero-haloed scratch
        xpad_ref[pl.ds(r0 + 1, H), pl.ds(1, W), :] = x_ref[b]

        ypad_ref[pl.ds(r0, 1), :, :] = jnp.zeros((1, WP, c1), jnp.float32)
        ypad_ref[pl.ds(r0 + H + 1, 1), :, :] = jnp.zeros((1, WP, c1), jnp.float32)
        ypad_ref[pl.ds(r0 + 1, H), pl.ds(0, 1), :] = jnp.zeros((H, 1, c1), jnp.float32)
        ypad_ref[pl.ds(r0 + 1, H), pl.ds(W + 1, 1), :] = jnp.zeros((H, 1, c1), jnp.float32)

    # ---- conv1: build im2col once, then ONE fat MXU dot --------------------
    for b in range(BB):
        for t, (dy, dx) in enumerate(taps):
            col1_ref[pl.ds(b * HW, HW), pl.ds(t * cin, cin)] = (
                xpad_ref[pl.ds(b * HP + dy, H), pl.ds(dx, W), :]
                .reshape(HW, cin))
    y = jnp.maximum(
        jnp.dot(col1_ref[...], w1_ref[...], preferred_element_type=jnp.float32)
        + b1_ref[...], 0.0)                                       # (BB*H*W, C1)

    # conv1 output never touches HBM; zero halo == conv2's SAME zero padding.
    for b in range(BB):
        ypad_ref[pl.ds(b * HP + 1, H), pl.ds(1, W), :] = (
            y[b * HW:(b + 1) * HW, :].reshape(H, W, c1))

    # ---- conv2: im2col + ONE fat MXU dot ------------------------------------
    for b in range(BB):
        for t, (dy, dx) in enumerate(taps):
            col2_ref[pl.ds(b * HW, HW), pl.ds(t * c1, c1)] = (
                ypad_ref[pl.ds(b * HP + dy, H), pl.ds(dx, W), :]
                .reshape(HW, c1))
    out = (jnp.dot(col2_ref[...], w2_ref[...], preferred_element_type=jnp.float32)
           + b2_ref[...])                                         # (BB*H*W, C2)
    o_ref[...] = out.reshape(BB, HW, c2).astype(o_ref.dtype)


def fused_backbone_conv(x, w1, b1, w2, b2, *, H, W, bb=None):
    """x: (B, H, W, Cin) NHWC, unpadded (SAME padding is done in-kernel).

    Returns the hooked activation as (B, H*W, C2) in NHWC-flatten order.
    """
    B, _, _, cin = x.shape
    c1 = w1.shape[-1]
    c2 = w2.shape[-1]
    if bb is None:
        bb = min(B, 4)       # images per grid step; amortizes ~0.35us/step
    assert B % bb == 0

    flops = 2 * B * H * W * 9 * (cin * c1 + c1 * c2)
    bytes_accessed = 4 * (x.size + w1.size + b1.size + w2.size + b2.size
                          + B * H * W * c2)

    kern = functools.partial(_fused_conv_kernel, H=H, W=W, BB=bb)
    return pl.pallas_call(
        kern,
        out_shape=jax.ShapeDtypeStruct((B, H * W, c2), jnp.float32),
        grid=(B // bb,),
        in_specs=[
            pl.BlockSpec((bb, H, W, cin), lambda i: (i, 0, 0, 0)),
            pl.BlockSpec((9 * cin, c1), lambda i: (0, 0)),
            pl.BlockSpec((1, c1), lambda i: (0, 0)),
            pl.BlockSpec((9 * c1, c2), lambda i: (0, 0)),
            pl.BlockSpec((1, c2), lambda i: (0, 0)),
        ],
        out_specs=pl.BlockSpec((bb, H * W, c2), lambda i: (i, 0, 0)),
        scratch_shapes=[
            pltpu.VMEM((bb * (H + 2), W + 2, cin), jnp.float32),   # xpad
            pltpu.VMEM((bb * H * W, 9 * cin), jnp.float32),        # im2col 1
            pltpu.VMEM((bb * (H + 2), W + 2, c1), jnp.float32),    # ypad
            pltpu.VMEM((bb * H * W, 9 * c1), jnp.float32),         # im2col 2
        ],
        compiler_params=pltpu.CompilerParams(
            dimension_semantics=("parallel",),          # megacore on v7x
            vmem_limit_bytes=_VMEM_LIMIT),
        cost_estimate=pl.CostEstimate(flops=flops, transcendentals=0,
                                      bytes_accessed=bytes_accessed),
    )(x, w1, b1.reshape(1, c1), w2, b2.reshape(1, c2))


# ----------------------------------------------------------------------------
# Pallas kernels 2a/2b: projector MLP, two-pass (v7x-safe) BatchNorm
#   pass 1: Linear1 (K-tiled) + per-B-tile sum / sum-of-squares
#   pass 2: folded BatchNorm1d (train-mode batch stats) -> ReLU -> Linear2
# ----------------------------------------------------------------------------
def _proj_linear1_kernel(z_ref, w1_ref, b1_ref, h_ref, stats_ref, acc_ref):
    k = pl.program_id(1)                 # reduction axis (last in the grid)

    @pl.when(k == 0)
    def _():
        acc_ref[...] = jnp.zeros_like(acc_ref)

    acc_ref[...] += jnp.dot(z_ref[...], w1_ref[...],
                            preferred_element_type=jnp.float32)

    @pl.when(k == pl.num_programs(1) - 1)
    def _():
        h = acc_ref[...] + b1_ref[...]                     # (tb, Hd)
        h_ref[...] = h
        # Per-B-tile partial BatchNorm statistics; the tiny cross-tile
        # reduction (Hd-sized vectors) happens in the wrapper.
        stats_ref[pl.ds(0, 1), :] = jnp.sum(h, axis=0, keepdims=True)
        stats_ref[pl.ds(1, 1), :] = jnp.sum(h * h, axis=0, keepdims=True)


def _proj_bn_relu_linear2_kernel(h_ref, scale_ref, shift_ref, w2_ref, b2_ref,
                                 o_ref):
    # BatchNorm1d (train-mode batch stats, pre-folded into scale/shift)
    # -> ReLU -> Linear2.  B axis of the grid is "parallel" (both v7x cores).
    a = jnp.maximum(h_ref[...] * scale_ref[...] + shift_ref[...], 0.0)
    o_ref[...] = (jnp.dot(a, w2_ref[...], preferred_element_type=jnp.float32)
                  + b2_ref[...]).astype(o_ref.dtype)


def projector(z, w1, b1, gamma, beta, w2, b2, *, tk=None, tb=None, eps=1e-5):
    B, D = z.shape
    Hd = w1.shape[1]
    P = w2.shape[1]
    if tk is None:
        tk = min(D, 512)      # v7x 64 MiB VMEM safe; sweep 256-1024 per chip
    if tb is None:
        tb = B if B <= 256 else 256   # at scale pick a multiple of 8
    assert D % tk == 0 and B % tb == 0
    nb, nk = B // tb, D // tk

    # ---- pass 1: K-tiled Linear1 + partial BN stats (W2 not resident) ------
    flops1 = 2 * B * D * Hd
    bytes1 = 4 * (B * D + D * Hd + Hd + B * Hd + nb * 2 * Hd)
    h, stats = pl.pallas_call(
        _proj_linear1_kernel,
        out_shape=(jax.ShapeDtypeStruct((B, Hd), jnp.float32),
                   jax.ShapeDtypeStruct((nb, 2, Hd), jnp.float32)),
        grid=(nb, nk),
        in_specs=[
            pl.BlockSpec((tb, tk), lambda i, k: (i, k)),    # hook activations
            pl.BlockSpec((tk, Hd), lambda i, k: (k, 0)),    # W1 K-tile
            pl.BlockSpec((1, Hd), lambda i, k: (0, 0)),     # b1
        ],
        out_specs=(
            pl.BlockSpec((tb, Hd), lambda i, k: (i, 0)),        # h
            pl.BlockSpec((None, 2, Hd), lambda i, k: (i, 0, 0)),  # stats
        ),
        scratch_shapes=[pltpu.VMEM((tb, Hd), jnp.float32)],
        compiler_params=pltpu.CompilerParams(
            dimension_semantics=("parallel", "arbitrary"),
            vmem_limit_bytes=_VMEM_LIMIT),
        cost_estimate=pl.CostEstimate(flops=flops1, transcendentals=0,
                                      bytes_accessed=bytes1),
    )(z, w1, b1.reshape(1, Hd))

    # Tiny cross-tile reduction + BN coefficient folding in plain XLA:
    # y = gamma*(h-mean)*rsqrt(var+eps)+beta  ==  h*scale + shift.
    sums = jnp.sum(stats[:, 0, :], axis=0)
    sqs = jnp.sum(stats[:, 1, :], axis=0)
    mean = sums / B
    var = sqs / B - mean * mean            # biased variance (train mode)
    scale = gamma * lax.rsqrt(var + eps)
    shift = beta - mean * scale
    # TODO(synk): PyTorch BatchNorm1d also updates running_mean/var (module
    # state) in train mode; the forward output does not depend on it.

    # ---- pass 2: folded BN -> ReLU -> Linear2, B-parallel -------------------
    flops2 = 2 * B * Hd * P
    bytes2 = 4 * (B * Hd + 2 * Hd + Hd * P + P + B * P)
    return pl.pallas_call(
        _proj_bn_relu_linear2_kernel,
        out_shape=jax.ShapeDtypeStruct((B, P), jnp.float32),
        grid=(nb,),
        in_specs=[
            pl.BlockSpec((tb, Hd), lambda i: (i, 0)),
            pl.BlockSpec((1, Hd), lambda i: (0, 0)),
            pl.BlockSpec((1, Hd), lambda i: (0, 0)),
            pl.BlockSpec((Hd, P), lambda i: (0, 0)),
            pl.BlockSpec((1, P), lambda i: (0, 0)),
        ],
        out_specs=pl.BlockSpec((tb, P), lambda i: (i, 0)),
        compiler_params=pltpu.CompilerParams(
            dimension_semantics=("parallel",),
            vmem_limit_bytes=_VMEM_LIMIT),
        cost_estimate=pl.CostEstimate(flops=flops2, transcendentals=0,
                                      bytes_accessed=bytes2),
    )(h, scale.reshape(1, Hd), shift.reshape(1, Hd), w2, b2.reshape(1, P))


# ----------------------------------------------------------------------------
# EncoderWrapper.forward
# ----------------------------------------------------------------------------
def encoder_wrapper_forward(x_nchw, p):
    # Backbone children: [conv1, ReLU, conv2, head]; forward hook sits on
    # children[-2] == conv2.  The backbone head's output is computed and
    # discarded in PyTorch (`_ = self.model(x)`), so it is skipped entirely.
    # TODO(synk): absorb the NCHW->NHWC transpose into the data/param layout
    # (or allow_input_fusion) at real scale; kept as a one-time XLA op here.
    x = jnp.transpose(x_nchw, (0, 2, 3, 1))
    B, H, W, _ = x.shape
    h = fused_backbone_conv(x, p["conv1_w"], p["conv1_b"],
                            p["conv2_w"], p["conv2_b"], H=H, W=W)  # (B,H*W,C2)
    # Hook: output.flatten(start_dim=1).  W1 rows are stored in NHWC-flatten
    # order, so this reshape is a free row-major view of the kernel's output.
    z = h.reshape(B, -1)
    return projector(z, p["w1"], p["b1"], p["gamma"], p["beta"],
                     p["w2"], p["b2"])


# ----------------------------------------------------------------------------
# Deterministic parameter init (synthetic; mirrors the module's shapes)
# ----------------------------------------------------------------------------
def init_params(key, c_in=4, c1=8, c2=8, spatial=16, hidden=32, proj=16):
    ks = jax.random.split(key, 8)
    d = spatial * spatial * c2           # NHWC flatten order (h, w, c)

    def nrm(k, shape, scale=0.05):
        return scale * jax.random.normal(k, shape, dtype=jnp.float32)

    return dict(
        # Conv weights pre-packed for the im2col dot: rows are (tap, cin) in
        # (ky, kx) row-major tap order == flattened HWIO.  A real PyTorch
        # OIHW checkpoint would be permuted once at load time.
        conv1_w=nrm(ks[0], (9 * c_in, c1)),
        conv1_b=nrm(ks[1], (c1,)),
        conv2_w=nrm(ks[2], (9 * c1, c2)),
        conv2_b=nrm(ks[3], (c2,)),
        # W1 rows in NHWC-flatten order (matches the kernel's hook activation
        # layout) — also a one-time load-time permutation for real ckpts.
        w1=nrm(ks[4], (d, hidden)),
        b1=nrm(ks[5], (hidden,)),
        gamma=jnp.ones((hidden,), jnp.float32),   # fresh BatchNorm1d init
        beta=jnp.zeros((hidden,), jnp.float32),
        w2=nrm(ks[6], (hidden, proj)),
        b2=nrm(ks[7], (proj,)),
    )


# ----------------------------------------------------------------------------
# Pure-JAX reference (no Pallas) for validation
# ----------------------------------------------------------------------------
def reference(x_nchw, p):
    x = jnp.transpose(x_nchw, (0, 2, 3, 1))
    dn = ("NHWC", "HWIO", "NHWC")
    c_in = x.shape[-1]
    c1 = p["conv1_w"].shape[-1]
    c2 = p["conv2_w"].shape[-1]
    w1c = p["conv1_w"].reshape(3, 3, c_in, c1)
    y = lax.conv_general_dilated(x, w1c, (1, 1), "SAME",
                                 dimension_numbers=dn) + p["conv1_b"]
    y = jnp.maximum(y, 0.0)
    w2c = p["conv2_w"].reshape(3, 3, c1, c2)
    h = lax.conv_general_dilated(y, w2c, (1, 1), "SAME",
                                 dimension_numbers=dn) + p["conv2_b"]
    z = h.reshape(h.shape[0], -1)             # NHWC flatten (matches w1 rows)
    t = z @ p["w1"] + p["b1"]
    mean = jnp.mean(t, axis=0)
    var = jnp.mean(t * t, axis=0) - mean * mean   # biased batch variance
    a = jnp.maximum((t - mean) * lax.rsqrt(var + 1e-5) * p["gamma"]
                    + p["beta"], 0.0)
    return a @ p["w2"] + p["b2"]


if __name__ == "__main__":
    key = jax.random.PRNGKey(0)
    pkey, xkey = jax.random.split(key)
    params = init_params(pkey)

    # PyTorch-convention NCHW input: batch=2, channels=4, spatial=16x16
    x = jax.random.normal(xkey, (2, 4, 16, 16), dtype=jnp.float32)

    fwd = jax.jit(lambda xx: encoder_wrapper_forward(xx, params))
    out = jax.block_until_ready(fwd(x))

    ref = reference(x, params)
    assert out.shape == (2, 16), out.shape
    assert jnp.allclose(out, ref, atol=1e-3, rtol=1e-3), \
        float(jnp.max(jnp.abs(out - ref)))
    print("KERNEL_OK")
</pallas_src>

<mosaic_0001>
module attributes {stable_mosaic.version = 11 : i64} {
  func.func @_fused_conv_kernel(%arg0: i32, %arg1: memref<2x16x16x4xf32, #tpu.memory_space<vmem>>, %arg2: memref<36x8xf32, #tpu.memory_space<vmem>>, %arg3: memref<1x8xf32, #tpu.memory_space<vmem>>, %arg4: memref<72x8xf32, #tpu.memory_space<vmem>>, %arg5: memref<1x8xf32, #tpu.memory_space<vmem>>, %arg6: memref<2x256x8xf32, #tpu.memory_space<vmem>>, %arg7: memref<36x18x4xf32, #tpu.memory_space<vmem>>, %arg8: memref<512x36xf32, #tpu.memory_space<vmem>>, %arg9: memref<36x18x8xf32, #tpu.memory_space<vmem>>, %arg10: memref<512x72xf32, #tpu.memory_space<vmem>>) attributes {dimension_semantics = [#tpu.dimension_semantics<parallel>], iteration_bounds = array<i64: 1>, scalar_prefetch = 0 : i64, scratch_operands = 4 : i64, tpu.core_type = #tpu.core_type<tc>, window_params = [{transform_indices = @transform_0, window_bounds = array<i64: 2, 16, 16, 4>}, {pipeline_mode = #tpu.pipeline_mode<synchronous>, transform_indices = @transform_1, window_bounds = array<i64: 36, 8>}, {pipeline_mode = #tpu.pipeline_mode<synchronous>, transform_indices = @transform_2, window_bounds = array<i64: 1, 8>}, {pipeline_mode = #tpu.pipeline_mode<synchronous>, transform_indices = @transform_3, window_bounds = array<i64: 72, 8>}, {pipeline_mode = #tpu.pipeline_mode<synchronous>, transform_indices = @transform_4, window_bounds = array<i64: 1, 8>}, {transform_indices = @transform_5, window_bounds = array<i64: 2, 256, 8>}]} {
    %cst = arith.constant 0.000000e+00 : f32
    %0 = vector.broadcast %cst : f32 to vector<1x18x4xf32>
    %c0 = arith.constant 0 : index
    %c0_0 = arith.constant 0 : index
    %c0_1 = arith.constant 0 : index
    %1 = vector.load %arg7[%c0, %c0_0, %c0_1] : memref<36x18x4xf32, #tpu.memory_space<vmem>>, vector<1x18x4xf32>
    tpu.vector_store %arg7[%c0, %c0_0, %c0_1], %0 {strides = array<i32>} : memref<36x18x4xf32, #tpu.memory_space<vmem>>, vector<1x18x4xf32>,
    %cst_2 = arith.constant 0.000000e+00 : f32
    %2 = vector.broadcast %cst_2 : f32 to vector<1x18x4xf32>
    %c17 = arith.constant 17 : index
    %c0_3 = arith.constant 0 : index
    %c0_4 = arith.constant 0 : index
    %3 = vector.load %arg7[%c17, %c0_3, %c0_4] : memref<36x18x4xf32, #tpu.memory_space<vmem>>, vector<1x18x4xf32>
    tpu.vector_store %arg7[%c17, %c0_3, %c0_4], %2 {strides = array<i32>} : memref<36x18x4xf32, #tpu.memory_space<vmem>>, vector<1x18x4xf32>,
    %cst_5 = arith.constant 0.000000e+00 : f32
    %4 = vector.broadcast %cst_5 : f32 to vector<16x1x4xf32>
    %c1 = arith.constant 1 : index
    %c0_6 = arith.constant 0 : index
    %c0_7 = arith.constant 0 : index
    %5 = vector.load %arg7[%c1, %c0_6, %c0_7] : memref<36x18x4xf32, #tpu.memory_space<vmem>>, vector<16x1x4xf32>
    tpu.vector_store %arg7[%c1, %c0_6, %c0_7], %4 {strides = array<i32>} : memref<36x18x4xf32, #tpu.memory_space<vmem>>, vector<16x1x4xf32>,
    %cst_8 = arith.constant 0.000000e+00 : f32
    %6 = vector.broadcast %cst_8 : f32 to vector<16x1x4xf32>
    %c1_9 = arith.constant 1 : index
    %c17_10 = arith.constant 17 : index
    %c0_11 = arith.constant 0 : index
    %7 = vector.load %arg7[%c1_9, %c17_10, %c0_11] : memref<36x18x4xf32, #tpu.memory_space<vmem>>, vector<16x1x4xf32>
    tpu.vector_store %arg7[%c1_9, %c17_10, %c0_11], %6 {strides = array<i32>} : memref<36x18x4xf32, #tpu.memory_space<vmem>>, vector<16x1x4xf32>,
    %c0_12 = arith.constant 0 : index
    %c0_13 = arith.constant 0 : index
    %c0_14 = arith.constant 0 : index
    %c0_15 = arith.constant 0 : index
    %8 = vector.load %arg1[%c0_12, %c0_13, %c0_14, %c0_15] : memref<2x16x16x4xf32, #tpu.memory_space<vmem>>, vector<1x16x16x4xf32>
    %9 = vector.shape_cast %8 : vector<1x16x16x4xf32> to vector<16x16x4xf32>
    %c1_16 = arith.constant 1 : index
    %c1_17 = arith.constant 1 : index
    %c0_18 = arith.constant 0 : index
    %10 = vector.load %arg7[%c1_16, %c1_17, %c0_18] : memref<36x18x4xf32, #tpu.memory_space<vmem>>, vector<16x16x4xf32>
    tpu.vector_store %arg7[%c1_16, %c1_17, %c0_18], %9 {strides = array<i32>} : memref<36x18x4xf32, #tpu.memory_space<vmem>>, vector<16x16x4xf32>,
    %cst_19 = arith.constant 0.000000e+00 : f32
    %11 = vector.broadcast %cst_19 : f32 to vector<1x18x8xf32>
    %c0_20 = arith.constant 0 : index
    %c0_21 = arith.constant 0 : index
    %c0_22 = arith.constant 0 : index
    %12 = vector.load %arg9[%c0_20, %c0_21, %c0_22] : memref<36x18x8xf32, #tpu.memory_space<vmem>>, vector<1x18x8xf32>
    tpu.vector_store %arg9[%c0_20, %c0_21, %c0_22], %11 {strides = array<i32>} : memref<36x18x8xf32, #tpu.memory_space<vmem>>, vector<1x18x8xf32>,
    %cst_23 = arith.constant 0.000000e+00 : f32
    %13 = vector.broadcast %cst_23 : f32 to vector<1x18x8xf32>
    %c17_24 = arith.constant 17 : index
    %c0_25 = arith.constant 0 : index
    %c0_26 = arith.constant 0 : index
    %14 = vector.load %arg9[%c17_24, %c0_25, %c0_26] : memref<36x18x8xf32, #tpu.memory_space<vmem>>, vector<1x18x8xf32>
    tpu.vector_store %arg9[%c17_24, %c0_25, %c0_26], %13 {strides = array<i32>} : memref<36x18x8xf32, #tpu.memory_space<vmem>>, vector<1x18x8xf32>,
    %cst_27 = arith.constant 0.000000e+00 : f32
    %15 = vector.broadcast %cst_27 : f32 to vector<16x1x8xf32>
    %c1_28 = arith.constant 1 : index
    %c0_29 = arith.constant 0 : index
    %c0_30 = arith.constant 0 : index
    %16 = vector.load %arg9[%c1_28, %c0_29, %c0_30] : memref<36x18x8xf32, #tpu.memory_space<vmem>>, vector<16x1x8xf32>
    tpu.vector_store %arg9[%c1_28, %c0_29, %c0_30], %15 {strides = array<i32>} : memref<36x18x8xf32, #tpu.memory_space<vmem>>, vector<16x1x8xf32>,
    %cst_31 = arith.constant 0.000000e+00 : f32
    %17 = vector.broadcast %cst_31 : f32 to vector<16x1x8xf32>
    %c1_32 = arith.constant 1 : index
    %c17_33 = arith.constant 17 : index
    %c0_34 = arith.constant 0 : index
    %18 = vector.load %arg9[%c1_32, %c17_33, %c0_34] : memref<36x18x8xf32, #tpu.memory_space<vmem>>, vector<16x1x8xf32>
    tpu.vector_store %arg9[%c1_32, %c17_33, %c0_34], %17 {strides = array<i32>} : memref<36x18x8xf32, #tpu.memory_space<vmem>>, vector<16x1x8xf32>,
    %cst_35 = arith.constant 0.000000e+00 : f32
    %19 = vector.broadcast %cst_35 : f32 to vector<1x18x4xf32>
    %c18 = arith.constant 18 : index
    %c0_36 = arith.constant 0 : index
    %c0_37 = arith.constant 0 : index
    %20 = vector.load %arg7[%c18, %c0_36, %c0_37] : memref<36x18x4xf32, #tpu.memory_space<vmem>>, vector<1x18x4xf32>
    tpu.vector_store %arg7[%c18, %c0_36, %c0_37], %19 {strides = array<i32>} : memref<36x18x4xf32, #tpu.memory_space<vmem>>, vector<1x18x4xf32>,
    %cst_38 = arith.constant 0.000000e+00 : f32
    %21 = vector.broadcast %cst_38 : f32 to vector<1x18x4xf32>
    %c35 = arith.constant 35 : index
    %c0_39 = arith.constant 0 : index
    %c0_40 = arith.constant 0 : index
    %22 = vector.load %arg7[%c35, %c0_39, %c0_40] : memref<36x18x4xf32, #tpu.memory_space<vmem>>, vector<1x18x4xf32>
    tpu.vector_store %arg7[%c35, %c0_39, %c0_40], %21 {strides = array<i32>} : memref<36x18x4xf32, #tpu.memory_space<vmem>>, vector<1x18x4xf32>,
    %cst_41 = arith.constant 0.000000e+00 : f32
    %23 = vector.broadcast %cst_41 : f32 to vector<16x1x4xf32>
    %c19 = arith.constant 19 : index
    %c0_42 = arith.constant 0 : index
    %c0_43 = arith.constant 0 : index
    %24 = vector.load %arg7[%c19, %c0_42, %c0_43] : memref<36x18x4xf32, #tpu.memory_space<vmem>>, vector<16x1x4xf32>
    tpu.vector_store %arg7[%c19, %c0_42, %c0_43], %23 {strides = array<i32>} : memref<36x18x4xf32, #tpu.memory_space<vmem>>, vector<16x1x4xf32>,
    %cst_44 = arith.constant 0.000000e+00 : f32
    %25 = vector.broadcast %cst_44 : f32 to vector<16x1x4xf32>
    %c19_45 = arith.constant 19 : index
    %c17_46 = arith.constant 17 : index
    %c0_47 = arith.constant 0 : index
    %26 = vector.load %arg7[%c19_45, %c17_46, %c0_47] : memref<36x18x4xf32, #tpu.memory_space<vmem>>, vector<16x1x4xf32>
    tpu.vector_store %arg7[%c19_45, %c17_46, %c0_47], %25 {strides = array<i32>} : memref<36x18x4xf32, #tpu.memory_space<vmem>>, vector<16x1x4xf32>,
    %c1_48 = arith.constant 1 : index
    %c0_49 = arith.constant 0 : index
    %c0_50 = arith.constant 0 : index
    %c0_51 = arith.constant 0 : index
    %27 = vector.load %arg1[%c1_48, %c0_49, %c0_50, %c0_51] : memref<2x16x16x4xf32, #tpu.memory_space<vmem>>, vector<1x16x16x4xf32>
    %28 = vector.shape_cast %27 : vector<1x16x16x4xf32> to vector<16x16x4xf32>
    %c19_52 = arith.constant 19 : index
    %c1_53 = arith.constant 1 : index
    %c0_54 = arith.constant 0 : index
    %29 = vector.load %arg7[%c19_52, %c1_53, %c0_54] : memref<36x18x4xf32, #tpu.memory_space<vmem>>, vector<16x16x4xf32>
    tpu.vector_store %arg7[%c19_52, %c1_53, %c0_54], %28 {strides = array<i32>} : memref<36x18x4xf32, #tpu.memory_space<vmem>>, vector<16x16x4xf32>,
    %cst_55 = arith.constant 0.000000e+00 : f32
    %30 = vector.broadcast %cst_55 : f32 to vector<1x18x8xf32>
    %c18_56 = arith.constant 18 : index
    %c0_57 = arith.constant 0 : index
    %c0_58 = arith.constant 0 : index
    %31 = vector.load %arg9[%c18_56, %c0_57, %c0_58] : memref<36x18x8xf32, #tpu.memory_space<vmem>>, vector<1x18x8xf32>
    tpu.vector_store %arg9[%c18_56, %c0_57, %c0_58], %30 {strides = array<i32>} : memref<36x18x8xf32, #tpu.memory_space<vmem>>, vector<1x18x8xf32>,
    %cst_59 = arith.constant 0.000000e+00 : f32
    %32 = vector.broadcast %cst_59 : f32 to vector<1x18x8xf32>
    %c35_60 = arith.constant 35 : index
    %c0_61 = arith.constant 0 : index
    %c0_62 = arith.constant 0 : index
    %33 = vector.load %arg9[%c35_60, %c0_61, %c0_62] : memref<36x18x8xf32, #tpu.memory_space<vmem>>, vector<1x18x8xf32>
    tpu.vector_store %arg9[%c35_60, %c0_61, %c0_62], %32 {strides = array<i32>} : memref<36x18x8xf32, #tpu.memory_space<vmem>>, vector<1x18x8xf32>,
    %cst_63 = arith.constant 0.000000e+00 : f32
    %34 = vector.broadcast %cst_63 : f32 to vector<16x1x8xf32>
    %c19_64 = arith.constant 19 : index
    %c0_65 = arith.constant 0 : index
    %c0_66 = arith.constant 0 : index
    %35 = vector.load %arg9[%c19_64, %c0_65, %c0_66] : memref<36x18x8xf32, #tpu.memory_space<vmem>>, vector<16x1x8xf32>
    tpu.vector_store %arg9[%c19_64, %c0_65, %c0_66], %34 {strides = array<i32>} : memref<36x18x8xf32, #tpu.memory_space<vmem>>, vector<16x1x8xf32>,
    %cst_67 = arith.constant 0.000000e+00 : f32
    %36 = vector.broadcast %cst_67 : f32 to vector<16x1x8xf32>
    %c19_68 = arith.constant 19 : index
    %c17_69 = arith.constant 17 : index
    %c0_70 = arith.constant 0 : index
    %37 = vector.load %arg9[%c19_68, %c17_69, %c0_70] : memref<36x18x8xf32, #tpu.memory_space<vmem>>, vector<16x1x8xf32>
    tpu.vector_store %arg9[%c19_68, %c17_69, %c0_70], %36 {strides = array<i32>} : memref<36x18x8xf32, #tpu.memory_space<vmem>>, vector<16x1x8xf32>,
    %c0_71 = arith.constant 0 : index
    %c0_72 = arith.constant 0 : index
    %c0_73 = arith.constant 0 : index
    %38 = vector.load %arg7[%c0_71, %c0_72, %c0_73] : memref<36x18x4xf32, #tpu.memory_space<vmem>>, vector<16x16x4xf32>
    %39 = vector.shape_cast %38 : vector<16x16x4xf32> to vector<256x4xf32>
    %c0_74 = arith.constant 0 : index
    %c0_75 = arith.constant 0 : index
    %40 = vector.load %arg8[%c0_74, %c0_75] : memref<512x36xf32, #tpu.memory_space<vmem>>, vector<256x4xf32>
    tpu.vector_store %arg8[%c0_74, %c0_75], %39 {strides = array<i32>} : memref<512x36xf32, #tpu.memory_space<vmem>>, vector<256x4xf32>,
    %c0_76 = arith.constant 0 : index
    %c1_77 = arith.constant 1 : index
    %c0_78 = arith.constant 0 : index
    %41 = vector.load %arg7[%c0_76, %c1_77, %c0_78] : memref<36x18x4xf32, #tpu.memory_space<vmem>>, vector<16x16x4xf32>
    %42 = vector.shape_cast %41 : vector<16x16x4xf32> to vector<256x4xf32>
    %c0_79 = arith.constant 0 : index
    %c4 = arith.constant 4 : index
    %43 = vector.load %arg8[%c0_79, %c4] : memref<512x36xf32, #tpu.memory_space<vmem>>, vector<256x4xf32>
    tpu.vector_store %arg8[%c0_79, %c4], %42 {strides = array<i32>} : memref<512x36xf32, #tpu.memory_space<vmem>>, vector<256x4xf32>,
    %c0_80 = arith.constant 0 : index
    %c2 = arith.constant 2 : index
    %c0_81 = arith.constant 0 : index
    %44 = vector.load %arg7[%c0_80, %c2, %c0_81] : memref<36x18x4xf32, #tpu.memory_space<vmem>>, vector<16x16x4xf32>
    %45 = vector.shape_cast %44 : vector<16x16x4xf32> to vector<256x4xf32>
    %c0_82 = arith.constant 0 : index
    %c8 = arith.constant 8 : index
    %46 = vector.load %arg8[%c0_82, %c8] : memref<512x36xf32, #tpu.memory_space<vmem>>, vector<256x4xf32>
    tpu.vector_store %arg8[%c0_82, %c8], %45 {strides = array<i32>} : memref<512x36xf32, #tpu.memory_space<vmem>>, vector<256x4xf32>,
    %c1_83 = arith.constant 1 : index
    %c0_84 = arith.constant 0 : index
    %c0_85 = arith.constant 0 : index
    %47 = vector.load %arg7[%c1_83, %c0_84, %c0_85] : memref<36x18x4xf32, #tpu.memory_space<vmem>>, vector<16x16x4xf32>
    %48 = vector.shape_cast %47 : vector<16x16x4xf32> to vector<256x4xf32>
    %c0_86 = arith.constant 0 : index
    %c12 = arith.constant 12 : index
    %49 = vector.load %arg8[%c0_86, %c12] : memref<512x36xf32, #tpu.memory_space<vmem>>, vector<256x4xf32>
    tpu.vector_store %arg8[%c0_86, %c12], %48 {strides = array<i32>} : memref<512x36xf32, #tpu.memory_space<vmem>>, vector<256x4xf32>,
    %c1_87 = arith.constant 1 : index
    %c1_88 = arith.constant 1 : index
    %c0_89 = arith.constant 0 : index
    %50 = vector.load %arg7[%c1_87, %c1_88, %c0_89] : memref<36x18x4xf32, #tpu.memory_space<vmem>>, vector<16x16x4xf32>
    %51 = vector.shape_cast %50 : vector<16x16x4xf32> to vector<256x4xf32>
    %c0_90 = arith.constant 0 : index
    %c16 = arith.constant 16 : index
    %52 = vector.load %arg8[%c0_90, %c16] : memref<512x36xf32, #tpu.memory_space<vmem>>, vector<256x4xf32>
    tpu.vector_store %arg8[%c0_90, %c16], %51 {strides = array<i32>} : memref<512x36xf32, #tpu.memory_space<vmem>>, vector<256x4xf32>,
    %c1_91 = arith.constant 1 : index
    %c2_92 = arith.constant 2 : index
    %c0_93 = arith.constant 0 : index
    %53 = vector.load %arg7[%c1_91, %c2_92, %c0_93] : memref<36x18x4xf32, #tpu.memory_space<vmem>>, vector<16x16x4xf32>
    %54 = vector.shape_cast %53 : vector<16x16x4xf32> to vector<256x4xf32>
    %c0_94 = arith.constant 0 : index
    %c20 = arith.constant 20 : index
    %55 = vector.load %arg8[%c0_94, %c20] : memref<512x36xf32, #tpu.memory_space<vmem>>, vector<256x4xf32>
    tpu.vector_store %arg8[%c0_94, %c20], %54 {strides = array<i32>} : memref<512x36xf32, #tpu.memory_space<vmem>>, vector<256x4xf32>,
    %c2_95 = arith.constant 2 : index
    %c0_96 = arith.constant 0 : index
    %c0_97 = arith.constant 0 : index
    %56 = vector.load %arg7[%c2_95, %c0_96, %c0_97] : memref<36x18x4xf32, #tpu.memory_space<vmem>>, vector<16x16x4xf32>
    %57 = vector.shape_cast %56 : vector<16x16x4xf32> to vector<256x4xf32>
    %c0_98 = arith.constant 0 : index
    %c24 = arith.constant 24 : index
    %58 = vector.load %arg8[%c0_98, %c24] : memref<512x36xf32, #tpu.memory_space<vmem>>, vector<256x4xf32>
    tpu.vector_store %arg8[%c0_98, %c24], %57 {strides = array<i32>} : memref<512x36xf32, #tpu.memory_space<vmem>>, vector<256x4xf32>,
    %c2_99 = arith.constant 2 : index
    %c1_100 = arith.constant 1 : index
    %c0_101 = arith.constant 0 : index
    %59 = vector.load %arg7[%c2_99, %c1_100, %c0_101] : memref<36x18x4xf32, #tpu.memory_space<vmem>>, vector<16x16x4xf32>
    %60 = vector.shape_cast %59 : vector<16x16x4xf32> to vector<256x4xf32>
    %c0_102 = arith.constant 0 : index
    %c28 = arith.constant 28 : index
    %61 = vector.load %arg8[%c0_102, %c28] : memref<512x36xf32, #tpu.memory_space<vmem>>, vector<256x4xf32>
    tpu.vector_store %arg8[%c0_102, %c28], %60 {strides = array<i32>} : memref<512x36xf32, #tpu.memory_space<vmem>>, vector<256x4xf32>,
    %c2_103 = arith.constant 2 : index
    %c2_104 = arith.constant 2 : index
    %c0_105 = arith.constant 0 : index
    %62 = vector.load %arg7[%c2_103, %c2_104, %c0_105] : memref<36x18x4xf32, #tpu.memory_space<vmem>>, vector<16x16x4xf32>
    %63 = vector.shape_cast %62 : vector<16x16x4xf32> to vector<256x4xf32>
    %c0_106 = arith.constant 0 : index
    %c32 = arith.constant 32 : index
    %64 = vector.load %arg8[%c0_106, %c32] : memref<512x36xf32, #tpu.memory_space<vmem>>, vector<256x4xf32>
    tpu.vector_store %arg8[%c0_106, %c32], %63 {strides = array<i32>} : memref<512x36xf32, #tpu.memory_space<vmem>>, vector<256x4xf32>,
    %c18_107 = arith.constant 18 : index
    %c0_108 = arith.constant 0 : index
    %c0_109 = arith.constant 0 : index
    %65 = vector.load %arg7[%c18_107, %c0_108, %c0_109] : memref<36x18x4xf32, #tpu.memory_space<vmem>>, vector<16x16x4xf32>
    %66 = vector.shape_cast %65 : vector<16x16x4xf32> to vector<256x4xf32>
    %c256 = arith.constant 256 : index
    %c0_110 = arith.constant 0 : index
    %67 = vector.load %arg8[%c256, %c0_110] : memref<512x36xf32, #tpu.memory_space<vmem>>, vector<256x4xf32>
    tpu.vector_store %arg8[%c256, %c0_110], %66 {strides = array<i32>} : memref<512x36xf32, #tpu.memory_space<vmem>>, vector<256x4xf32>,
    %c18_111 = arith.constant 18 : index
    %c1_112 = arith.constant 1 : index
    %c0_113 = arith.constant 0 : index
    %68 = vector.load %arg7[%c18_111, %c1_112, %c0_113] : memref<36x18x4xf32, #tpu.memory_space<vmem>>, vector<16x16x4xf32>
    %69 = vector.shape_cast %68 : vector<16x16x4xf32> to vector<256x4xf32>
    %c256_114 = arith.constant 256 : index
    %c4_115 = arith.constant 4 : index
    %70 = vector.load %arg8[%c256_114, %c4_115] : memref<512x36xf32, #tpu.memory_space<vmem>>, vector<256x4xf32>
    tpu.vector_store %arg8[%c256_114, %c4_115], %69 {strides = array<i32>} : memref<512x36xf32, #tpu.memory_space<vmem>>, vector<256x4xf32>,
    %c18_116 = arith.constant 18 : index
    %c2_117 = arith.constant 2 : index
    %c0_118 = arith.constant 0 : index
    %71 = vector.load %arg7[%c18_116, %c2_117, %c0_118] : memref<36x18x4xf32, #tpu.memory_space<vmem>>, vector<16x16x4xf32>
    %72 = vector.shape_cast %71 : vector<16x16x4xf32> to vector<256x4xf32>
    %c256_119 = arith.constant 256 : index
    %c8_120 = arith.constant 8 : index
    %73 = vector.load %arg8[%c256_119, %c8_120] : memref<512x36xf32, #tpu.memory_space<vmem>>, vector<256x4xf32>
    tpu.vector_store %arg8[%c256_119, %c8_120], %72 {strides = array<i32>} : memref<512x36xf32, #tpu.memory_space<vmem>>, vector<256x4xf32>,
    %c19_121 = arith.constant 19 : index
    %c0_122 = arith.constant 0 : index
    %c0_123 = arith.constant 0 : index
    %74 = vector.load %arg7[%c19_121, %c0_122, %c0_123] : memref<36x18x4xf32, #tpu.memory_space<vmem>>, vector<16x16x4xf32>
    %75 = vector.shape_cast %74 : vector<16x16x4xf32> to vector<256x4xf32>
    %c256_124 = arith.constant 256 : index
    %c12_125 = arith.constant 12 : index
    %76 = vector.load %arg8[%c256_124, %c12_125] : memref<512x36xf32, #tpu.memory_space<vmem>>, vector<256x4xf32>
    tpu.vector_store %arg8[%c256_124, %c12_125], %75 {strides = array<i32>} : memref<512x36xf32, #tpu.memory_space<vmem>>, vector<256x4xf32>,
    %c19_126 = arith.constant 19 : index
    %c1_127 = arith.constant 1 : index
    %c0_128 = arith.constant 0 : index
    %77 = vector.load %arg7[%c19_126, %c1_127, %c0_128] : memref<36x18x4xf32, #tpu.memory_space<vmem>>, vector<16x16x4xf32>
    %78 = vector.shape_cast %77 : vector<16x16x4xf32> to vector<256x4xf32>
    %c256_129 = arith.constant 256 : index
    %c16_130 = arith.constant 16 : index
    %79 = vector.load %arg8[%c256_129, %c16_130] : memref<512x36xf32, #tpu.memory_space<vmem>>, vector<256x4xf32>
    tpu.vector_store %arg8[%c256_129, %c16_130], %78 {strides = array<i32>} : memref<512x36xf32, #tpu.memory_space<vmem>>, vector<256x4xf32>,
    %c19_131 = arith.constant 19 : index
    %c2_132 = arith.constant 2 : index
    %c0_133 = arith.constant 0 : index
    %80 = vector.load %arg7[%c19_131, %c2_132, %c0_133] : memref<36x18x4xf32, #tpu.memory_space<vmem>>, vector<16x16x4xf32>
    %81 = vector.shape_cast %80 : vector<16x16x4xf32> to vector<256x4xf32>
    %c256_134 = arith.constant 256 : index
    %c20_135 = arith.constant 20 : index
    %82 = vector.load %arg8[%c256_134, %c20_135] : memref<512x36xf32, #tpu.memory_space<vmem>>, vector<256x4xf32>
    tpu.vector_store %arg8[%c256_134, %c20_135], %81 {strides = array<i32>} : memref<512x36xf32, #tpu.memory_space<vmem>>, vector<256x4xf32>,
    %c20_136 = arith.constant 20 : index
    %c0_137 = arith.constant 0 : index
    %c0_138 = arith.constant 0 : index
    %83 = vector.load %arg7[%c20_136, %c0_137, %c0_138] : memref<36x18x4xf32, #tpu.memory_space<vmem>>, vector<16x16x4xf32>
    %84 = vector.shape_cast %83 : vector<16x16x4xf32> to vector<256x4xf32>
    %c256_139 = arith.constant 256 : index
    %c24_140 = arith.constant 24 : index
    %85 = vector.load %arg8[%c256_139, %c24_140] : memref<512x36xf32, #tpu.memory_space<vmem>>, vector<256x4xf32>
    tpu.vector_store %arg8[%c256_139, %c24_140], %84 {strides = array<i32>} : memref<512x36xf32, #tpu.memory_space<vmem>>, vector<256x4xf32>,
    %c20_141 = arith.constant 20 : index
    %c1_142 = arith.constant 1 : index
    %c0_143 = arith.constant 0 : index
    %86 = vector.load %arg7[%c20_141, %c1_142, %c0_143] : memref<36x18x4xf32, #tpu.memory_space<vmem>>, vector<16x16x4xf32>
    %87 = vector.shape_cast %86 : vector<16x16x4xf32> to vector<256x4xf32>
    %c256_144 = arith.constant 256 : index
    %c28_145 = arith.constant 28 : index
    %88 = vector.load %arg8[%c256_144, %c28_145] : memref<512x36xf32, #tpu.memory_space<vmem>>, vector<256x4xf32>
    tpu.vector_store %arg8[%c256_144, %c28_145], %87 {strides = array<i32>} : memref<512x36xf32, #tpu.memory_space<vmem>>, vector<256x4xf32>,
    %c20_146 = arith.constant 20 : index
    %c2_147 = arith.constant 2 : index
    %c0_148 = arith.constant 0 : index
    %89 = vector.load %arg7[%c20_146, %c2_147, %c0_148] : memref<36x18x4xf32, #tpu.memory_space<vmem>>, vector<16x16x4xf32>
    %90 = vector.shape_cast %89 : vector<16x16x4xf32> to vector<256x4xf32>
    %c256_149 = arith.constant 256 : index
    %c32_150 = arith.constant 32 : index
    %91 = vector.load %arg8[%c256_149, %c32_150] : memref<512x36xf32, #tpu.memory_space<vmem>>, vector<256x4xf32>
    tpu.vector_store %arg8[%c256_149, %c32_150], %90 {strides = array<i32>} : memref<512x36xf32, #tpu.memory_space<vmem>>, vector<256x4xf32>,
    %c0_151 = arith.constant 0 : index
    %c0_152 = arith.constant 0 : index
    %92 = vector.load %arg8[%c0_151, %c0_152] : memref<512x36xf32, #tpu.memory_space<vmem>>, vector<512x36xf32>
    %c0_153 = arith.constant 0 : index
    %c0_154 = arith.constant 0 : index
    %93 = vector.load %arg2[%c0_153, %c0_154] : memref<36x8xf32, #tpu.memory_space<vmem>>, vector<36x8xf32>
    %cst_155 = arith.constant dense<0.000000e+00> : vector<512x8xf32>
    %94 = tpu.matmul %92, %93, %cst_155 {dimension_numbers = #tpu.dot_dimension_numbers<[1], [0], [0], [1], [0, 0, 1, 1], [], []>} : vector<512x36xf32>, vector<36x8xf32>, vector<512x8xf32> -> vector<512x8xf32>
    %c0_156 = arith.constant 0 : index
    %c0_157 = arith.constant 0 : index
    %95 = vector.load %arg3[%c0_156, %c0_157] : memref<1x8xf32, #tpu.memory_space<vmem>>, vector<1x8xf32>
    %96 = vector.broadcast %95 : vector<1x8xf32> to vector<512x8xf32>
    %97 = arith.addf %94, %96 : vector<512x8xf32>
    %cst_158 = arith.constant 0.000000e+00 : f32
    %98 = vector.broadcast %cst_158 : f32 to vector<512x8xf32>
    %99 = arith.maximumf %97, %98 : vector<512x8xf32>
    %100 = vector.extract_strided_slice %99 {offsets = [0, 0], sizes = [256, 8], strides = [1, 1]} : vector<512x8xf32> to vector<256x8xf32>
    %101 = vector.shape_cast %100 : vector<256x8xf32> to vector<16x16x8xf32>
    %c1_159 = arith.constant 1 : index
    %c1_160 = arith.constant 1 : index
    %c0_161 = arith.constant 0 : index
    %102 = vector.load %arg9[%c1_159, %c1_160, %c0_161] : memref<36x18x8xf32, #tpu.memory_space<vmem>>, vector<16x16x8xf32>
    tpu.vector_store %arg9[%c1_159, %c1_160, %c0_161], %101 {strides = array<i32>} : memref<36x18x8xf32, #tpu.memory_space<vmem>>, vector<16x16x8xf32>,
    %103 = vector.extract_strided_slice %99 {offsets = [256, 0], sizes = [256, 8], strides = [1, 1]} : vector<512x8xf32> to vector<256x8xf32>
    %104 = vector.shape_cast %103 : vector<256x8xf32> to vector<16x16x8xf32>
    %c19_162 = arith.constant 19 : index
    %c1_163 = arith.constant 1 : index
    %c0_164 = arith.constant 0 : index
    %105 = vector.load %arg9[%c19_162, %c1_163, %c0_164] : memref<36x18x8xf32, #tpu.memory_space<vmem>>, vector<16x16x8xf32>
    tpu.vector_store %arg9[%c19_162, %c1_163, %c0_164], %104 {strides = array<i32>} : memref<36x18x8xf32, #tpu.memory_space<vmem>>, vector<16x16x8xf32>,
    %c0_165 = arith.constant 0 : index
    %c0_166 = arith.constant 0 : index
    %c0_167 = arith.constant 0 : index
    %106 = vector.load %arg9[%c0_165, %c0_166, %c0_167] : memref<36x18x8xf32, #tpu.memory_space<vmem>>, vector<16x16x8xf32>
    %107 = vector.shape_cast %106 : vector<16x16x8xf32> to vector<256x8xf32>
    %c0_168 = arith.constant 0 : index
    %c0_169 = arith.constant 0 : index
    %108 = vector.load %arg10[%c0_168, %c0_169] : memref<512x72xf32, #tpu.memory_space<vmem>>, vector<256x8xf32>
    tpu.vector_store %arg10[%c0_168, %c0_169], %107 {strides = array<i32>} : memref<512x72xf32, #tpu.memory_space<vmem>>, vector<256x8xf32>,
    %c0_170 = arith.constant 0 : index
    %c1_171 = arith.constant 1 : index
    %c0_172 = arith.constant 0 : index
    %109 = vector.load %arg9[%c0_170, %c1_171, %c0_172] : memref<36x18x8xf32, #tpu.memory_space<vmem>>, vector<16x16x8xf32>
    %110 = vector.shape_cast %109 : vector<16x16x8xf32> to vector<256x8xf32>
    %c0_173 = arith.constant 0 : index
    %c8_174 = arith.constant 8 : index
    %111 = vector.load %arg10[%c0_173, %c8_174] : memref<512x72xf32, #tpu.memory_space<vmem>>, vector<256x8xf32>
    tpu.vector_store %arg10[%c0_173, %c8_174], %110 {strides = array<i32>} : memref<512x72xf32, #tpu.memory_space<vmem>>, vector<256x8xf32>,
    %c0_175 = arith.constant 0 : index
    %c2_176 = arith.constant 2 : index
    %c0_177 = arith.constant 0 : index
    %112 = vector.load %arg9[%c0_175, %c2_176, %c0_177] : memref<36x18x8xf32, #tpu.memory_space<vmem>>, vector<16x16x8xf32>
    %113 = vector.shape_cast %112 : vector<16x16x8xf32> to vector<256x8xf32>
    %c0_178 = arith.constant 0 : index
    %c16_179 = arith.constant 16 : index
    %114 = vector.load %arg10[%c0_178, %c16_179] : memref<512x72xf32, #tpu.memory_space<vmem>>, vector<256x8xf32>
    tpu.vector_store %arg10[%c0_178, %c16_179], %113 {strides = array<i32>} : memref<512x72xf32, #tpu.memory_space<vmem>>, vector<256x8xf32>,
    %c1_180 = arith.constant 1 : index
    %c0_181 = arith.constant 0 : index
    %c0_182 = arith.constant 0 : index
    %115 = vector.load %arg9[%c1_180, %c0_181, %c0_182] : memref<36x18x8xf32, #tpu.memory_space<vmem>>, vector<16x16x8xf32>
    %116 = vector.shape_cast %115 : vector<16x16x8xf32> to vector<256x8xf32>
    %c0_183 = arith.constant 0 : index
    %c24_184 = arith.constant 24 : index
    %117 = vector.load %arg10[%c0_183, %c24_184] : memref<512x72xf32, #tpu.memory_space<vmem>>, vector<256x8xf32>
    tpu.vector_store %arg10[%c0_183, %c24_184], %116 {strides = array<i32>} : memref<512x72xf32, #tpu.memory_space<vmem>>, vector<256x8xf32>,
    %c1_185 = arith.constant 1 : index
    %c1_186 = arith.constant 1 : index
    %c0_187 = arith.constant 0 : index
    %118 = vector.load %arg9[%c1_185, %c1_186, %c0_187] : memref<36x18x8xf32, #tpu.memory_space<vmem>>, vector<16x16x8xf32>
    %119 = vector.shape_cast %118 : vector<16x16x8xf32> to vector<256x8xf32>
    %c0_188 = arith.constant 0 : index
    %c32_189 = arith.constant 32 : index
    %120 = vector.load %arg10[%c0_188, %c32_189] : memref<512x72xf32, #tpu.memory_space<vmem>>, vector<256x8xf32>
    tpu.vector_store %arg10[%c0_188, %c32_189], %119 {strides = array<i32>} : memref<512x72xf32, #tpu.memory_space<vmem>>, vector<256x8xf32>,
    %c1_190 = arith.constant 1 : index
    %c2_191 = arith.constant 2 : index
    %c0_192 = arith.constant 0 : index
    %121 = vector.load %arg9[%c1_190, %c2_191, %c0_192] : memref<36x18x8xf32, #tpu.memory_space<vmem>>, vector<16x16x8xf32>
    %122 = vector.shape_cast %121 : vector<16x16x8xf32> to vector<256x8xf32>
    %c0_193 = arith.constant 0 : index
    %c40 = arith.constant 40 : index
    %123 = vector.load %arg10[%c0_193, %c40] : memref<512x72xf32, #tpu.memory_space<vmem>>, vector<256x8xf32>
    tpu.vector_store %arg10[%c0_193, %c40], %122 {strides = array<i32>} : memref<512x72xf32, #tpu.memory_space<vmem>>, vector<256x8xf32>,
    %c2_194 = arith.constant 2 : index
    %c0_195 = arith.constant 0 : index
    %c0_196 = arith.constant 0 : index
    %124 = vector.load %arg9[%c2_194, %c0_195, %c0_196] : memref<36x18x8xf32, #tpu.memory_space<vmem>>, vector<16x16x8xf32>
    %125 = vector.shape_cast %124 : vector<16x16x8xf32> to vector<256x8xf32>
    %c0_197 = arith.constant 0 : index
    %c48 = arith.constant 48 : index
    %126 = vector.load %arg10[%c0_197, %c48] : memref<512x72xf32, #tpu.memory_space<vmem>>, vector<256x8xf32>
    tpu.vector_store %arg10[%c0_197, %c48], %125 {strides = array<i32>} : memref<512x72xf32, #tpu.memory_space<vmem>>, vector<256x8xf32>,
    %c2_198 = arith.constant 2 : index
    %c1_199 = arith.constant 1 : index
    %c0_200 = arith.constant 0 : index
    %127 = vector.load %arg9[%c2_198, %c1_199, %c0_200] : memref<36x18x8xf32, #tpu.memory_space<vmem>>, vector<16x16x8xf32>
    %128 = vector.shape_cast %127 : vector<16x16x8xf32> to vector<256x8xf32>
    %c0_201 = arith.constant 0 : index
    %c56 = arith.constant 56 : index
    %129 = vector.load %arg10[%c0_201, %c56] : memref<512x72xf32, #tpu.memory_space<vmem>>, vector<256x8xf32>
    tpu.vector_store %arg10[%c0_201, %c56], %128 {strides = array<i32>} : memref<512x72xf32, #tpu.memory_space<vmem>>, vector<256x8xf32>,
    %c2_202 = arith.constant 2 : index
    %c2_203 = arith.constant 2 : index
    %c0_204 = arith.constant 0 : index
    %130 = vector.load %arg9[%c2_202, %c2_203, %c0_204] : memref<36x18x8xf32, #tpu.memory_space<vmem>>, vector<16x16x8xf32>
    %131 = vector.shape_cast %130 : vector<16x16x8xf32> to vector<256x8xf32>
    %c0_205 = arith.constant 0 : index
    %c64 = arith.constant 64 : index
    %132 = vector.load %arg10[%c0_205, %c64] : memref<512x72xf32, #tpu.memory_space<vmem>>, vector<256x8xf32>
    tpu.vector_store %arg10[%c0_205, %c64], %131 {strides = array<i32>} : memref<512x72xf32, #tpu.memory_space<vmem>>, vector<256x8xf32>,
    %c18_206 = arith.constant 18 : index
    %c0_207 = arith.constant 0 : index
    %c0_208 = arith.constant 0 : index
    %133 = vector.load %arg9[%c18_206, %c0_207, %c0_208] : memref<36x18x8xf32, #tpu.memory_space<vmem>>, vector<16x16x8xf32>
    %134 = vector.shape_cast %133 : vector<16x16x8xf32> to vector<256x8xf32>
    %c256_209 = arith.constant 256 : index
    %c0_210 = arith.constant 0 : index
    %135 = vector.load %arg10[%c256_209, %c0_210] : memref<512x72xf32, #tpu.memory_space<vmem>>, vector<256x8xf32>
    tpu.vector_store %arg10[%c256_209, %c0_210], %134 {strides = array<i32>} : memref<512x72xf32, #tpu.memory_space<vmem>>, vector<256x8xf32>,
    %c18_211 = arith.constant 18 : index
    %c1_212 = arith.constant 1 : index
    %c0_213 = arith.constant 0 : index
    %136 = vector.load %arg9[%c18_211, %c1_212, %c0_213] : memref<36x18x8xf32, #tpu.memory_space<vmem>>, vector<16x16x8xf32>
    %137 = vector.shape_cast %136 : vector<16x16x8xf32> to vector<256x8xf32>
    %c256_214 = arith.constant 256 : index
    %c8_215 = arith.constant 8 : index
    %138 = vector.load %arg10[%c256_214, %c8_215] : memref<512x72xf32, #tpu.memory_space<vmem>>, vector<256x8xf32>
    tpu.vector_store %arg10[%c256_214, %c8_215], %137 {strides = array<i32>} : memref<512x72xf32, #tpu.memory_space<vmem>>, vector<256x8xf32>,
    %c18_216 = arith.constant 18 : index
    %c2_217 = arith.constant 2 : index
    %c0_218 = arith.constant 0 : index
    %139 = vector.load %arg9[%c18_216, %c2_217, %c0_218] : memref<36x18x8xf32, #tpu.memory_space<vmem>>, vector<16x16x8xf32>
    %140 = vector.shape_cast %139 : vector<16x16x8xf32> to vector<256x8xf32>
    %c256_219 = arith.constant 256 : index
    %c16_220 = arith.constant 16 : index
    %141 = vector.load %arg10[%c256_219, %c16_220] : memref<512x72xf32, #tpu.memory_space<vmem>>, vector<256x8xf32>
    tpu.vector_store %arg10[%c256_219, %c16_220], %140 {strides = array<i32>} : memref<512x72xf32, #tpu.memory_space<vmem>>, vector<256x8xf32>,
    %c19_221 = arith.constant 19 : index
    %c0_222 = arith.constant 0 : index
    %c0_223 = arith.constant 0 : index
    %142 = vector.load %arg9[%c19_221, %c0_222, %c0_223] : memref<36x18x8xf32, #tpu.memory_space<vmem>>, vector<16x16x8xf32>
    %143 = vector.shape_cast %142 : vector<16x16x8xf32> to vector<256x8xf32>
    %c256_224 = arith.constant 256 : index
    %c24_225 = arith.constant 24 : index
    %144 = vector.load %arg10[%c256_224, %c24_225] : memref<512x72xf32, #tpu.memory_space<vmem>>, vector<256x8xf32>
    tpu.vector_store %arg10[%c256_224, %c24_225], %143 {strides = array<i32>} : memref<512x72xf32, #tpu.memory_space<vmem>>, vector<256x8xf32>,
    %c19_226 = arith.constant 19 : index
    %c1_227 = arith.constant 1 : index
    %c0_228 = arith.constant 0 : index
    %145 = vector.load %arg9[%c19_226, %c1_227, %c0_228] : memref<36x18x8xf32, #tpu.memory_space<vmem>>, vector<16x16x8xf32>
    %146 = vector.shape_cast %145 : vector<16x16x8xf32> to vector<256x8xf32>
    %c256_229 = arith.constant 256 : index
    %c32_230 = arith.constant 32 : index
    %147 = vector.load %arg10[%c256_229, %c32_230] : memref<512x72xf32, #tpu.memory_space<vmem>>, vector<256x8xf32>
    tpu.vector_store %arg10[%c256_229, %c32_230], %146 {strides = array<i32>} : memref<512x72xf32, #tpu.memory_space<vmem>>, vector<256x8xf32>,
    %c19_231 = arith.constant 19 : index
    %c2_232 = arith.constant 2 : index
    %c0_233 = arith.constant 0 : index
    %148 = vector.load %arg9[%c19_231, %c2_232, %c0_233] : memref<36x18x8xf32, #tpu.memory_space<vmem>>, vector<16x16x8xf32>
    %149 = vector.shape_cast %148 : vector<16x16x8xf32> to vector<256x8xf32>
    %c256_234 = arith.constant 256 : index
    %c40_235 = arith.constant 40 : index
    %150 = vector.load %arg10[%c256_234, %c40_235] : memref<512x72xf32, #tpu.memory_space<vmem>>, vector<256x8xf32>
    tpu.vector_store %arg10[%c256_234, %c40_235], %149 {strides = array<i32>} : memref<512x72xf32, #tpu.memory_space<vmem>>, vector<256x8xf32>,
    %c20_236 = arith.constant 20 : index
    %c0_237 = arith.constant 0 : index
    %c0_238 = arith.constant 0 : index
    %151 = vector.load %arg9[%c20_236, %c0_237, %c0_238] : memref<36x18x8xf32, #tpu.memory_space<vmem>>, vector<16x16x8xf32>
    %152 = vector.shape_cast %151 : vector<16x16x8xf32> to vector<256x8xf32>
    %c256_239 = arith.constant 256 : index
    %c48_240 = arith.constant 48 : index
    %153 = vector.load %arg10[%c256_239, %c48_240] : memref<512x72xf32, #tpu.memory_space<vmem>>, vector<256x8xf32>
    tpu.vector_store %arg10[%c256_239, %c48_240], %152 {strides = array<i32>} : memref<512x72xf32, #tpu.memory_space<vmem>>, vector<256x8xf32>,
    %c20_241 = arith.constant 20 : index
    %c1_242 = arith.constant 1 : index
    %c0_243 = arith.constant 0 : index
    %154 = vector.load %arg9[%c20_241, %c1_242, %c0_243] : memref<36x18x8xf32, #tpu.memory_space<vmem>>, vector<16x16x8xf32>
    %155 = vector.shape_cast %154 : vector<16x16x8xf32> to vector<256x8xf32>
    %c256_244 = arith.constant 256 : index
    %c56_245 = arith.constant 56 : index
    %156 = vector.load %arg10[%c256_244, %c56_245] : memref<512x72xf32, #tpu.memory_space<vmem>>, vector<256x8xf32>
    tpu.vector_store %arg10[%c256_244, %c56_245], %155 {strides = array<i32>} : memref<512x72xf32, #tpu.memory_space<vmem>>, vector<256x8xf32>,
    %c20_246 = arith.constant 20 : index
    %c2_247 = arith.constant 2 : index
    %c0_248 = arith.constant 0 : index
    %157 = vector.load %arg9[%c20_246, %c2_247, %c0_248] : memref<36x18x8xf32, #tpu.memory_space<vmem>>, vector<16x16x8xf32>
    %158 = vector.shape_cast %157 : vector<16x16x8xf32> to vector<256x8xf32>
    %c256_249 = arith.constant 256 : index
    %c64_250 = arith.constant 64 : index
    %159 = vector.load %arg10[%c256_249, %c64_250] : memref<512x72xf32, #tpu.memory_space<vmem>>, vector<256x8xf32>
    tpu.vector_store %arg10[%c256_249, %c64_250], %158 {strides = array<i32>} : memref<512x72xf32, #tpu.memory_space<vmem>>, vector<256x8xf32>,
    %c0_251 = arith.constant 0 : index
    %c0_252 = arith.constant 0 : index
    %160 = vector.load %arg10[%c0_251, %c0_252] : memref<512x72xf32, #tpu.memory_space<vmem>>, vector<512x72xf32>
    %c0_253 = arith.constant 0 : index
    %c0_254 = arith.constant 0 : index
    %161 = vector.load %arg4[%c0_253, %c0_254] : memref<72x8xf32, #tpu.memory_space<vmem>>, vector<72x8xf32>
    %cst_255 = arith.constant dense<0.000000e+00> : vector<512x8xf32>
    %162 = tpu.matmul %160, %161, %cst_255 {dimension_numbers = #tpu.dot_dimension_numbers<[1], [0], [0], [1], [0, 0, 1, 1], [], []>} : vector<512x72xf32>, vector<72x8xf32>, vector<512x8xf32> -> vector<512x8xf32>
    %c0_256 = arith.constant 0 : index
    %c0_257 = arith.constant 0 : index
    %163 = vector.load %arg5[%c0_256, %c0_257] : memref<1x8xf32, #tpu.memory_space<vmem>>, vector<1x8xf32>
    %164 = vector.broadcast %163 : vector<1x8xf32> to vector<512x8xf32>
    %165 = arith.addf %162, %164 : vector<512x8xf32>
    %166 = vector.shape_cast %165 : vector<512x8xf32> to vector<2x256x8xf32>
    %c0_258 = arith.constant 0 : index
    %c0_259 = arith.constant 0 : index
    %c0_260 = arith.constant 0 : index
    %167 = vector.load %arg6[%c0_258, %c0_259, %c0_260] : memref<2x256x8xf32, #tpu.memory_space<vmem>>, vector<2x256x8xf32>
    tpu.vector_store %arg6[%c0_258, %c0_259, %c0_260], %166 {strides = array<i32>} : memref<2x256x8xf32, #tpu.memory_space<vmem>>, vector<2x256x8xf32>,
    return
  }
  func.func @transform_0(%arg0: i32) -> (i32, i32, i32, i32) {
    %c0_i32 = arith.constant 0 : i32
    %c0_i32_0 = arith.constant 0 : i32
    %c0_i32_1 = arith.constant 0 : i32
    %c0_i32_2 = arith.constant 0 : i32
    return %arg0, %c0_i32, %c0_i32_0, %c0_i32_1 : i32, i32, i32, i32
  }
  func.func @transform_1(%arg0: i32) -> (i32, i32) {
    %c0_i32 = arith.constant 0 : i32
    %c0_i32_0 = arith.constant 0 : i32
    %c0_i32_1 = arith.constant 0 : i32
    return %c0_i32, %c0_i32_0 : i32, i32
  }
  func.func @transform_2(%arg0: i32) -> (i32, i32) {
    %c0_i32 = arith.constant 0 : i32
    %c0_i32_0 = arith.constant 0 : i32
    %c0_i32_1 = arith.constant 0 : i32
    return %c0_i32, %c0_i32_0 : i32, i32
  }
  func.func @transform_3(%arg0: i32) -> (i32, i32) {
    %c0_i32 = arith.constant 0 : i32
    %c0_i32_0 = arith.constant 0 : i32
    %c0_i32_1 = arith.constant 0 : i32
    return %c0_i32, %c0_i32_0 : i32, i32
  }
  func.func @transform_4(%arg0: i32) -> (i32, i32) {
    %c0_i32 = arith.constant 0 : i32
    %c0_i32_0 = arith.constant 0 : i32
    %c0_i32_1 = arith.constant 0 : i32
    return %c0_i32, %c0_i32_0 : i32, i32
  }
  func.func @transform_5(%arg0: i32) -> (i32, i32, i32) {
    %c0_i32 = arith.constant 0 : i32
    %c0_i32_0 = arith.constant 0 : i32
    %c0_i32_1 = arith.constant 0 : i32
    return %arg0, %c0_i32, %c0_i32_0 : i32, i32, i32
  }
}

module attributes {stable_mosaic.version = 11 : i64} {
  func.func @_proj_linear1_kernel(%arg0: i32, %arg1: i32, %arg2: memref<2x512xf32, #tpu.memory_space<vmem>>, %arg3: memref<512x32xf32, #tpu.memory_space<vmem>>, %arg4: memref<1x32xf32, #tpu.memory_space<vmem>>, %arg5: memref<2x32xf32, #tpu.memory_space<vmem>>, %arg6: memref<1x2x32xf32, #tpu.memory_space<vmem>>, %arg7: memref<2x32xf32, #tpu.memory_space<vmem>>) attributes {dimension_semantics = [#tpu.dimension_semantics<parallel>, #tpu.dimension_semantics<arbitrary>], iteration_bounds = array<i64: 1, 4>, scalar_prefetch = 0 : i64, scratch_operands = 1 : i64, tpu.core_type = #tpu.core_type<tc>, window_params = [{transform_indices = @transform_0, window_bounds = array<i64: 2, 512>}, {transform_indices = @transform_1, window_bounds = array<i64: 512, 32>}, {pipeline_mode = #tpu.pipeline_mode<synchronous>, transform_indices = @transform_2, window_bounds = array<i64: 1, 32>}, {transform_indices = @transform_3, window_bounds = array<i64: 2, 32>}, {transform_indices = @transform_4, window_bounds = array<i64: 1, 2, 32>}]} {
    %c0_i32 = arith.constant 0 : i32
    %0 = arith.cmpi eq, %arg1, %c0_i32 : i32
    %1 = arith.extui %0 : i1 to i32
    %c0_i32_0 = arith.constant 0 : i32
    %2 = arith.cmpi ne, %1, %c0_i32_0 : i32
    scf.if %2 {
      %cst_9 = arith.constant 0.000000e+00 : f32
      %12 = vector.broadcast %cst_9 : f32 to vector<2x32xf32>
      %c0_10 = arith.constant 0 : index
      %c0_11 = arith.constant 0 : index
      %13 = vector.load %arg7[%c0_10, %c0_11] : memref<2x32xf32, #tpu.memory_space<vmem>>, vector<2x32xf32>
      tpu.vector_store %arg7[%c0_10, %c0_11], %12 {strides = array<i32>} : memref<2x32xf32, #tpu.memory_space<vmem>>, vector<2x32xf32>,
    } else {
    }
    %c0 = arith.constant 0 : index
    %c0_1 = arith.constant 0 : index
    %3 = vector.load %arg7[%c0, %c0_1] : memref<2x32xf32, #tpu.memory_space<vmem>>, vector<2x32xf32>
    %c0_2 = arith.constant 0 : index
    %c0_3 = arith.constant 0 : index
    %4 = vector.load %arg2[%c0_2, %c0_3] : memref<2x512xf32, #tpu.memory_space<vmem>>, vector<2x512xf32>
    %c0_4 = arith.constant 0 : index
    %c0_5 = arith.constant 0 : index
    %5 = vector.load %arg3[%c0_4, %c0_5] : memref<512x32xf32, #tpu.memory_space<vmem>>, vector<512x32xf32>
    %cst = arith.constant dense<0.000000e+00> : vector<2x32xf32>
    %6 = tpu.matmul %4, %5, %cst {dimension_numbers = #tpu.dot_dimension_numbers<[1], [0], [0], [1], [0, 0, 1, 1], [], []>} : vector<2x512xf32>, vector<512x32xf32>, vector<2x32xf32> -> vector<2x32xf32>
    %7 = arith.addf %3, %6 : vector<2x32xf32>
    %c0_6 = arith.constant 0 : index
    %c0_7 = arith.constant 0 : index
    %8 = vector.load %arg7[%c0_6, %c0_7] : memref<2x32xf32, #tpu.memory_space<vmem>>, vector<2x32xf32>
    tpu.vector_store %arg7[%c0_6, %c0_7], %7 {strides = array<i32>} : memref<2x32xf32, #tpu.memory_space<vmem>>, vector<2x32xf32>,
    %c3_i32 = arith.constant 3 : i32
    %9 = arith.cmpi eq, %arg1, %c3_i32 : i32
    %10 = arith.extui %9 : i1 to i32
    %c0_i32_8 = arith.constant 0 : i32
    %11 = arith.cmpi ne, %10, %c0_i32_8 : i32
    scf.if %11 {
      %c0_9 = arith.constant 0 : index
      %c0_10 = arith.constant 0 : index
      %12 = vector.load %arg7[%c0_9, %c0_10] : memref<2x32xf32, #tpu.memory_space<vmem>>, vector<2x32xf32>
      %c0_11 = arith.constant 0 : index
      %c0_12 = arith.constant 0 : index
      %13 = vector.load %arg4[%c0_11, %c0_12] : memref<1x32xf32, #tpu.memory_space<vmem>>, vector<1x32xf32>
      %14 = vector.broadcast %13 : vector<1x32xf32> to vector<2x32xf32>
      %15 = arith.addf %12, %14 : vector<2x32xf32>
      %c0_13 = arith.constant 0 : index
      %c0_14 = arith.constant 0 : index
      %16 = vector.load %arg5[%c0_13, %c0_14] : memref<2x32xf32, #tpu.memory_space<vmem>>, vector<2x32xf32>
      tpu.vector_store %arg5[%c0_13, %c0_14], %15 {strides = array<i32>} : memref<2x32xf32, #tpu.memory_space<vmem>>, vector<2x32xf32>,
      %cst_15 = arith.constant dense<0.000000e+00> : vector<32xf32>
      %17 = vector.multi_reduction <add>, %15, %cst_15 [0] : vector<2x32xf32> to vector<32xf32>
      %18 = vector.shape_cast %17 : vector<32xf32> to vector<1x32xf32>
      %c0_16 = arith.constant 0 : index
      %c0_17 = arith.constant 0 : index
      %c0_18 = arith.constant 0 : index
      %19 = vector.load %arg6[%c0_16, %c0_17, %c0_18] : memref<1x2x32xf32, #tpu.memory_space<vmem>>, vector<1x1x32xf32>
      %20 = vector.shape_cast %19 : vector<1x1x32xf32> to vector<1x32xf32>
      %21 = vector.shape_cast %18 : vector<1x32xf32> to vector<1x1x32xf32>
      tpu.vector_store %arg6[%c0_16, %c0_17, %c0_18], %21 {strides = array<i32>} : memref<1x2x32xf32, #tpu.memory_space<vmem>>, vector<1x1x32xf32>,
      %22 = arith.mulf %15, %15 : vector<2x32xf32>
      %cst_19 = arith.constant dense<0.000000e+00> : vector<32xf32>
      %23 = vector.multi_reduction <add>, %22, %cst_19 [0] : vector<2x32xf32> to vector<32xf32>
      %24 = vector.shape_cast %23 : vector<32xf32> to vector<1x32xf32>
      %c0_20 = arith.constant 0 : index
      %c1 = arith.constant 1 : index
      %c0_21 = arith.constant 0 : index
      %25 = vector.load %arg6[%c0_20, %c1, %c0_21] : memref<1x2x32xf32, #tpu.memory_space<vmem>>, vector<1x1x32xf32>
      %26 = vector.shape_cast %25 : vector<1x1x32xf32> to vector<1x32xf32>
      %27 = vector.shape_cast %24 : vector<1x32xf32> to vector<1x1x32xf32>
      tpu.vector_store %arg6[%c0_20, %c1, %c0_21], %27 {strides = array<i32>} : memref<1x2x32xf32, #tpu.memory_space<vmem>>, vector<1x1x32xf32>,
    } else {
    }
    return
  }
  func.func @transform_0(%arg0: i32, %arg1: i32) -> (i32, i32) {
    %c0_i32 = arith.constant 0 : i32
    return %arg0, %arg1 : i32, i32
  }
  func.func @transform_1(%arg0: i32, %arg1: i32) -> (i32, i32) {
    %c0_i32 = arith.constant 0 : i32
    %c0_i32_0 = arith.constant 0 : i32
    return %arg1, %c0_i32 : i32, i32
  }
  func.func @transform_2(%arg0: i32, %arg1: i32) -> (i32, i32) {
    %c0_i32 = arith.constant 0 : i32
    %c0_i32_0 = arith.constant 0 : i32
    %c0_i32_1 = arith.constant 0 : i32
    return %c0_i32, %c0_i32_0 : i32, i32
  }
  func.func @transform_3(%arg0: i32, %arg1: i32) -> (i32, i32) {
    %c0_i32 = arith.constant 0 : i32
    %c0_i32_0 = arith.constant 0 : i32
    return %arg0, %c0_i32 : i32, i32
  }
  func.func @transform_4(%arg0: i32, %arg1: i32) -> (i32, i32, i32) {
    %c0_i32 = arith.constant 0 : i32
    %c0_i32_0 = arith.constant 0 : i32
    %c0_i32_1 = arith.constant 0 : i32
    return %arg0, %c0_i32, %c0_i32_0 : i32, i32, i32
  }
}

module attributes {stable_mosaic.version = 11 : i64} {
  func.func @_proj_bn_relu_linear2_kernel(%arg0: i32, %arg1: memref<2x32xf32, #tpu.memory_space<vmem>>, %arg2: memref<1x32xf32, #tpu.memory_space<vmem>>, %arg3: memref<1x32xf32, #tpu.memory_space<vmem>>, %arg4: memref<32x16xf32, #tpu.memory_space<vmem>>, %arg5: memref<1x16xf32, #tpu.memory_space<vmem>>, %arg6: memref<2x16xf32, #tpu.memory_space<vmem>>) attributes {dimension_semantics = [#tpu.dimension_semantics<parallel>], iteration_bounds = array<i64: 1>, scalar_prefetch = 0 : i64, scratch_operands = 0 : i64, tpu.core_type = #tpu.core_type<tc>, window_params = [{transform_indices = @transform_0, window_bounds = array<i64: 2, 32>}, {pipeline_mode = #tpu.pipeline_mode<synchronous>, transform_indices = @transform_1, window_bounds = array<i64: 1, 32>}, {pipeline_mode = #tpu.pipeline_mode<synchronous>, transform_indices = @transform_2, window_bounds = array<i64: 1, 32>}, {pipeline_mode = #tpu.pipeline_mode<synchronous>, transform_indices = @transform_3, window_bounds = array<i64: 32, 16>}, {pipeline_mode = #tpu.pipeline_mode<synchronous>, transform_indices = @transform_4, window_bounds = array<i64: 1, 16>}, {transform_indices = @transform_5, window_bounds = array<i64: 2, 16>}]} {
    %c0 = arith.constant 0 : index
    %c0_0 = arith.constant 0 : index
    %0 = vector.load %arg1[%c0, %c0_0] : memref<2x32xf32, #tpu.memory_space<vmem>>, vector<2x32xf32>
    %c0_1 = arith.constant 0 : index
    %c0_2 = arith.constant 0 : index
    %1 = vector.load %arg2[%c0_1, %c0_2] : memref<1x32xf32, #tpu.memory_space<vmem>>, vector<1x32xf32>
    %2 = vector.broadcast %1 : vector<1x32xf32> to vector<2x32xf32>
    %3 = arith.mulf %0, %2 : vector<2x32xf32>
    %c0_3 = arith.constant 0 : index
    %c0_4 = arith.constant 0 : index
    %4 = vector.load %arg3[%c0_3, %c0_4] : memref<1x32xf32, #tpu.memory_space<vmem>>, vector<1x32xf32>
    %5 = vector.broadcast %4 : vector<1x32xf32> to vector<2x32xf32>
    %6 = arith.addf %3, %5 : vector<2x32xf32>
    %cst = arith.constant 0.000000e+00 : f32
    %7 = vector.broadcast %cst : f32 to vector<2x32xf32>
    %8 = arith.maximumf %6, %7 : vector<2x32xf32>
    %c0_5 = arith.constant 0 : index
    %c0_6 = arith.constant 0 : index
    %9 = vector.load %arg4[%c0_5, %c0_6] : memref<32x16xf32, #tpu.memory_space<vmem>>, vector<32x16xf32>
    %cst_7 = arith.constant dense<0.000000e+00> : vector<2x16xf32>
    %10 = tpu.matmul %8, %9, %cst_7 {dimension_numbers = #tpu.dot_dimension_numbers<[1], [0], [0], [1], [0, 0, 1, 1], [], []>} : vector<2x32xf32>, vector<32x16xf32>, vector<2x16xf32> -> vector<2x16xf32>
    %c0_8 = arith.constant 0 : index
    %c0_9 = arith.constant 0 : index
    %11 = vector.load %arg5[%c0_8, %c0_9] : memref<1x16xf32, #tpu.memory_space<vmem>>, vector<1x16xf32>
    %12 = vector.broadcast %11 : vector<1x16xf32> to vector<2x16xf32>
    %13 = arith.addf %10, %12 : vector<2x16xf32>
    %c0_10 = arith.constant 0 : index
    %c0_11 = arith.constant 0 : index
    %14 = vector.load %arg6[%c0_10, %c0_11] : memref<2x16xf32, #tpu.memory_space<vmem>>, vector<2x16xf32>
    tpu.vector_store %arg6[%c0_10, %c0_11], %13 {strides = array<i32>} : memref<2x16xf32, #tpu.memory_space<vmem>>, vector<2x16xf32>,
    return
  }
  func.func @transform_0(%arg0: i32) -> (i32, i32) {
    %c0_i32 = arith.constant 0 : i32
    %c0_i32_0 = arith.constant 0 : i32
    return %arg0, %c0_i32 : i32, i32
  }
  func.func @transform_1(%arg0: i32) -> (i32, i32) {
    %c0_i32 = arith.constant 0 : i32
    %c0_i32_0 = arith.constant 0 : i32
    %c0_i32_1 = arith.constant 0 : i32
    return %c0_i32, %c0_i32_0 : i32, i32
  }
  func.func @transform_2(%arg0: i32) -> (i32, i32) {
    %c0_i32 = arith.constant 0 : i32
    %c0_i32_0 = arith.constant 0 : i32
    %c0_i32_1 = arith.constant 0 : i32
    return %c0_i32, %c0_i32_0 : i32, i32
  }
  func.func @transform_3(%arg0: i32) -> (i32, i32) {
    %c0_i32 = arith.constant 0 : i32
    %c0_i32_0 = arith.constant 0 : i32
    %c0_i32_1 = arith.constant 0 : i32
    return %c0_i32, %c0_i32_0 : i32, i32
  }
  func.func @transform_4(%arg0: i32) -> (i32, i32) {
    %c0_i32 = arith.constant 0 : i32
    %c0_i32_0 = arith.constant 0 : i32
    %c0_i32_1 = arith.constant 0 : i32
    return %c0_i32, %c0_i32_0 : i32, i32
  }
  func.func @transform_5(%arg0: i32) -> (i32, i32) {
    %c0_i32 = arith.constant 0 : i32
    %c0_i32_0 = arith.constant 0 : i32
    return %arg0, %c0_i32 : i32, i32
  }
}

</mosaic_0001>

<llo_original>
// kernel: _lambda_.4
$region0: #{_lambda_.4}
  #allocation0 [shape = 'u32[]', space=smem, size = 0x4, offset = 0x4, fixed_abs, tag = 'smem constant byte address 0x4 - core index']
  #allocation1 [shape = 'u32[144,128]{1,0:T(1,128)}', space=vmem, size = 0x12000, scoped, tag = 'internal scratch']
  #allocation2 [shape = 'f32[2,32]{1,0:T(2,128)}', space=vmem, size = 0x400, scoped, tag = 'scratch operand']
  %s0 = inlined_call_operand.vmem [shape: f32[2,2048], index: 0, kind: input, shape index: {}]
  %s1 = inlined_call_operand.vmem [shape: f32[2048,32], index: 1, kind: input, shape index: {}]
  %s2 = inlined_call_operand.vmem [shape: f32[1,32], index: 2, kind: input, shape index: {}]
  %s3 = inlined_call_operand.vmem [shape: f32[2,32], index: 3, kind: output, shape index: {0}]
  %s4 = inlined_call_operand.vmem [shape: f32[1,2,32], index: 4, kind: output, shape index: {1}]
  %5 = xla_tuple %s3, %s4
  %s6 = sld [smem:[#allocation0]]
  $region61: #{_lambda_.4} parent=0
    _
  %s8 = ssub.s32 1, %s6
  %s9 = scalar_select 0, %s8, %s6
  loop: start=0, step=1, limit=6
  $region2: #{_lambda_.4} parent=0 // loop_pre_header
    _
  $region3: #{_lambda_.4} parent=0 // loop_header
    %s11 = sphi 0, %s15
    %p12 = scmp.ge.s32.totalorder %s11, 6
    %s18 = sphi 0, %s30
    %s19 = sphi 0, %s26
    %s20 = sphi 0, %s18
    %s21 = sphi 0, %s19
    %s22 = sphi 0, %s20
    %s23 = sphi 0, %s21
    %s35 = sphi 0, %s37
    %s38 = sphi 0, %s35
    %s39 = sphi 0, %s38
    %s55 = sphi 0, %s39
    %s61 = sphi 0, %s63
    %s64 = sphi 0, %s61
    %s65 = sphi 0, %s64
    %s81 = sphi 0, %s65
    %s85 = sphi 0, %s85
    %s87 = sphi 0, %s85
    %s88 = sphi 0, %s87
    %s102 = sphi 0, %s88
    %s108 = sphi 0, %s110
    %s111 = sphi 0, %s108
    %s112 = sphi 0, %s111
    %s128 = sphi 0, %s112
    %s134 = sphi 0, %s136
    %s137 = sphi 0, %s134
    %s138 = sphi 0, %s137
    %s154 = sphi 0, %s138
  $region4: #{_lambda_.4} parent=0 // loop_header_branch
    %14 = sbr.rel (%p12) target = $region8
  $region5: #{_lambda_.4} parent=0 // loop_body
    %s16 = ssub.s32 %s11, 1
    %s17 = ssub.s32 %s11, 2
    %s24 = sadd.s32 1, %s19
    %p25 = scmp.ge.s32.totalorder %s24, 4
    %s26 = scalar_select %p25, 0, %s24
    %s27 = sadd.s32 1, %s18
    %s28 = scalar_select %p25, %s27, %s18
    %p29 = scmp.ge.s32.totalorder %s28, 1
    %s30 = scalar_select %p29, 0, %s28
    %s31 = ssub.s32 %s18, %s30
    %s32 = ssub.s32 %s19, %s26
    %s33 = sor.u32 %s31, %s32
    %p34 = scmp.eq.s32.totalorder %s33, 0
    %s36 = sadd.s32 %s35, 1
    %s37 = scalar_select %p34, %s35, %s36
    %p40 = pneg %p34
    %p41 = scmp.eq.s32.totalorder %s11, 3
    %p42 = por %p40, %p41
    %p43 = scmp.ne.s32.totalorder %s35, %s38
    %p44 = scmp.eq.s32.totalorder %s11, 0
    %p45 = por %p43, %p44
    %p46 = scmp.ne.s32.totalorder %s35, %s38
    %p47 = scmp.eq.s32.totalorder %s16, 3
    %p48 = por %p46, %p47
    %p49 = scmp.ne.s32.totalorder %s38, %s39
    %p50 = scmp.eq.s32.totalorder %s16, 0
    %p51 = por %p49, %p50
    %p52 = scmp.ne.s32.totalorder %s38, %s39
    %p53 = scmp.eq.s32.totalorder %s17, 3
    %p54 = por %p52, %p53
    %p56 = scmp.ne.s32.totalorder %s39, %s55
    %p57 = scmp.eq.s32.totalorder %s17, 0
    %p58 = por %p56, %p57
    %s59 = ssub.s32 %s19, %s26
    %p60 = scmp.eq.s32.totalorder %s59, 0
    %s62 = sadd.s32 %s61, 1
    %s63 = scalar_select %p60, %s61, %s62
    %p66 = pneg %p60
    %p67 = scmp.eq.s32.totalorder %s11, 3
    %p68 = por %p66, %p67
    %p69 = scmp.ne.s32.totalorder %s61, %s64
    %p70 = scmp.eq.s32.totalorder %s11, 0
    %p71 = por %p69, %p70
    %p72 = scmp.ne.s32.totalorder %s61, %s64
    %p73 = scmp.eq.s32.totalorder %s16, 3
    %p74 = por %p72, %p73
    %p75 = scmp.ne.s32.totalorder %s64, %s65
    %p76 = scmp.eq.s32.totalorder %s16, 0
    %p77 = por %p75, %p76
    %p78 = scmp.ne.s32.totalorder %s64, %s65
    %p79 = scmp.eq.s32.totalorder %s17, 3
    %p80 = por %p78, %p79
    %p82 = scmp.ne.s32.totalorder %s65, %s81
    %p83 = scmp.eq.s32.totalorder %s17, 0
    %p84 = por %p82, %p83
    %s86 = sadd.s32 %s85, 1
    %p89 = scmp.eq.s32.totalorder %s11, 3
    %p90 = scmp.ne.s32.totalorder %s85, %s87
    %p91 = scmp.eq.s32.totalorder %s11, 0
    %p92 = por %p90, %p91
    %p93 = scmp.ne.s32.totalorder %s85, %s87
    %p94 = scmp.eq.s32.totalorder %s16, 3
    %p95 = por %p93, %p94
    %p96 = scmp.ne.s32.totalorder %s87, %s88
    %p97 = scmp.eq.s32.totalorder %s16, 0
    %p98 = por %p96, %p97
    %p99 = scmp.ne.s32.totalorder %s87, %s88
    %p100 = scmp.eq.s32.totalorder %s17, 3
    %p101 = por %p99, %p100
    %p103 = scmp.ne.s32.totalorder %s88, %s102
    %p104 = scmp.eq.s32.totalorder %s17, 0
    %p105 = por %p103, %p104
    %s106 = ssub.s32 %s18, %s30
    %p107 = scmp.eq.s32.totalorder %s106, 0
    %s109 = sadd.s32 %s108, 1
    %s110 = scalar_select %p107, %s108, %s109
    %p113 = pneg %p107
    %p114 = scmp.eq.s32.totalorder %s11, 3
    %p115 = por %p113, %p114
    %p116 = scmp.ne.s32.totalorder %s108, %s111
    %p117 = scmp.eq.s32.totalorder %s11, 0
    %p118 = por %p116, %p117
    %p119 = scmp.ne.s32.totalorder %s108, %s111
    %p120 = scmp.eq.s32.totalorder %s16, 3
    %p121 = por %p119, %p120
    %p122 = scmp.ne.s32.totalorder %s111, %s112
    %p123 = scmp.eq.s32.totalorder %s16, 0
    %p124 = por %p122, %p123
    %p125 = scmp.ne.s32.totalorder %s111, %s112
    %p126 = scmp.eq.s32.totalorder %s17, 3
    %p127 = por %p125, %p126
    %p129 = scmp.ne.s32.totalorder %s112, %s128
    %p130 = scmp.eq.s32.totalorder %s17, 0
    %p131 = por %p129, %p130
    %s132 = ssub.s32 %s18, %s30
    %p133 = scmp.eq.s32.totalorder %s132, 0
    %s135 = sadd.s32 %s134, 1
    %s136 = scalar_select %p133, %s134, %s135
    %p139 = pneg %p133
    %p140 = scmp.eq.s32.totalorder %s11, 3
    %p141 = por %p139, %p140
    %p142 = scmp.ne.s32.totalorder %s134, %s137
    %p143 = scmp.eq.s32.totalorder %s11, 0
    %p144 = por %p142, %p143
    %p145 = scmp.ne.s32.totalorder %s134, %s137
    %p146 = scmp.eq.s32.totalorder %s16, 3
    %p147 = por %p145, %p146
    %p148 = scmp.ne.s32.totalorder %s137, %s138
    %p149 = scmp.eq.s32.totalorder %s16, 0
    %p150 = por %p148, %p149
    %p151 = scmp.ne.s32.totalorder %s137, %s138
    %p152 = scmp.eq.s32.totalorder %s17, 3
    %p153 = por %p151, %p152
    %p155 = scmp.ne.s32.totalorder %s138, %s154
    %p156 = scmp.eq.s32.totalorder %s17, 0
    %p157 = por %p155, %p156
    %p158 = scmp.le.s32.totalorder 1, %s11
    %p159 = scmp.lt.s32.totalorder %s11, 5
    %p160 = pnand %p158, %p159
    %p161 = pneg %p160
    // Predicated region
    $region9: #{_lambda_.4} parent=5 // pred_check
      _
    $region10: #{_lambda_.4} parent=5 // pred_check_branch
      %163 = sbr.rel (%p160) target = $region12
    $region11: #{_lambda_.4} parent=5 // pred_region
      %s164 = ssub.s32 %s11, 1
      // Predicated region
      $region13: #{_lambda_.4} parent=11 // pred_check
        %p165 = pneg %p98
      $region14: #{_lambda_.4} parent=11 // pred_check_branch
        %167 = sbr.rel (%p165) target = $region16
      $region15: #{_lambda_.4} parent=11 // pred_region
        _
      $region16: #{_lambda_.4} parent=11 // pred_fallthru
        _
    $region12: #{_lambda_.4} parent=5 // pred_fallthru
      _
    %p168 = scmp.lt.s32.totalorder %s11, 4
    // Predicated region
    $region17: #{_lambda_.4} parent=5 // pred_check
      %p169 = pneg %p168
    $region18: #{_lambda_.4} parent=5 // pred_check_branch
      %171 = sbr.rel (%p169) target = $region20
    $region19: #{_lambda_.4} parent=5 // pred_region
      // Predicated region
      $region21: #{_lambda_.4} parent=19 // pred_check
        %p172 = pneg %p45
      $region22: #{_lambda_.4} parent=19 // pred_check_branch
        %174 = sbr.rel (%p172) target = $region24
      $region23: #{_lambda_.4} parent=19 // pred_region
        %s175 = smul.u32 4, %s19
        %p176 = scmp.lt.s32.totalorder %s18, 0
        %s177 = scalar_select %p176, %s18, 0
        %p178 = scmp.lt.s32.totalorder %s175, 15
        %s179 = scalar_select %p178, %s175, 15
        %s180 = smul.addr %s177, 16
        %s181 = sadd.s32 %s179, %s180
        %s182 = smul.addr %s181, 2
        %s183 = scalar_lea.vmem %s0, %s182
        %s184 = smul.u32 4, %s19
      $region24: #{_lambda_.4} parent=19 // pred_fallthru
        _
      // Predicated region
      $region25: #{_lambda_.4} parent=19 // pred_check
        %p185 = pneg %p71
      $region26: #{_lambda_.4} parent=19 // pred_check_branch
        %187 = sbr.rel (%p185) target = $region28
      $region27: #{_lambda_.4} parent=19 // pred_region
        %s188 = smul.u32 64, %s19
        %p189 = scmp.lt.s32.totalorder %s188, 255
        %s190 = scalar_select %p189, %s188, 255
        %s191 = smul.addr %s190, 8
        %s192 = scalar_lea.vmem %s1, %s191
        %s193 = smul.u32 64, %s19
      $region28: #{_lambda_.4} parent=19 // pred_fallthru
        _
    $region20: #{_lambda_.4} parent=5 // pred_fallthru
      _
    %p194 = scmp.le.s32.totalorder 1, %s11
    %p195 = scmp.lt.s32.totalorder %s11, 5
    %p196 = pnand %p194, %p195
    %p197 = pneg %p196
    // Predicated region
    $region29: #{_lambda_.4} parent=5 // pred_check
      _
    $region30: #{_lambda_.4} parent=5 // pred_check_branch
      %199 = sbr.rel (%p196) target = $region32
    $region31: #{_lambda_.4} parent=5 // pred_region
      %s200 = ssub.s32 %s11, 1
      %s201 = smul.u32 4, %s21
      %p202 = scmp.lt.s32.totalorder %s20, 0
      %s203 = scalar_select %p202, %s20, 0
      %p204 = scmp.lt.s32.totalorder %s201, 15
      %s205 = scalar_select %p204, %s201, 15
      %s206 = smul.addr %s203, 16
      %s207 = sadd.s32 %s205, %s206
      %s208 = smul.addr %s207, 2
      %s209 = scalar_lea.vmem %s0, %s208
      %p210 = pneg %p51
      %p211 = pneg %p48
      %s212 = smul.u32 64, %s21
      %p213 = scmp.lt.s32.totalorder %s212, 255
      %s214 = scalar_select %p213, %s212, 255
      %s215 = smul.addr %s214, 8
      %s216 = scalar_lea.vmem %s1, %s215
      %p217 = pneg %p77
      %p218 = pneg %p74
      %p219 = pneg %p98
      %p220 = pneg %p95
      %p221 = pneg %p124
      %p222 = pneg %p121
      %p223 = scmp.lt.s32.totalorder %s20, 0
      %s224 = scalar_select %p223, %s20, 0
      %s225 = smul.addr %s224, 2
      %s226 = scalar_lea.vmem %s3, %s225
      %p227 = pneg %p150
      %p228 = pneg %p147
      %p229 = scmp.lt.s32.totalorder %s20, 0
      %s230 = scalar_select %p229, %s20, 0
      %s231 = smul.addr %s230, 2
      %s232 = scalar_lea.vmem %s4, %s231
      %s233 = smul.u32 4, %s21
      %p234 = scmp.lt.s32.totalorder %s20, 0
      %s235 = scalar_select %p234, %s20, 0
      %p236 = scmp.lt.s32.totalorder %s233, 15
      %s237 = scalar_select %p236, %s233, 15
      %s238 = smul.addr %s235, 16
      %s239 = sadd.s32 %s237, %s238
      %s240 = smul.addr %s239, 2
      %s241 = scalar_lea.vmem %s0, %s240
      %s242 = smul.u32 4, %s21
      %s243 = smul.u32 64, %s21
      %p244 = scmp.lt.s32.totalorder %s243, 255
      %s245 = scalar_select %p244, %s243, 255
      %s246 = smul.addr %s245, 8
      %s247 = scalar_lea.vmem %s1, %s246
      %s248 = smul.u32 64, %s21
      %p249 = scmp.lt.s32.totalorder %s20, 0
      %s250 = scalar_select %p249, %s20, 0
      %s251 = smul.addr %s250, 2
      %s252 = scalar_lea.vmem %s3, %s251
      %p253 = scmp.lt.s32.totalorder %s20, 0
      %s254 = scalar_select %p253, %s20, 0
      %s255 = smul.addr %s254, 2
      %s256 = scalar_lea.vmem %s4, %s255
      %p257 = scmp.eq.s32.totalorder %s21, 0
      // Predicated region
      $region33: #{_lambda_.4} parent=31 // pred_check
        %p258 = pneg %p257
      $region34: #{_lambda_.4} parent=31 // pred_check_branch
        %260 = sbr.rel (%p258) target = $region36
      $region35: #{_lambda_.4} parent=31 // pred_region
        %vm261 = vcmask 254976
        %262 = vst.msk [vmem:[#allocation2] sm:$0x3] %vm261, 0.0
      $region36: #{_lambda_.4} parent=31 // pred_fallthru
        _
      %v263 = vld [vmem:[#allocation2] sm:$0x3]
      %v264 = vld [vmem:[%s241] sm:$0xff]
      %v265 = vld [vmem:[%s247] sm:$0xff]
      %v266 = vld [vmem:[%s247 + $0x8] sm:$0xff]
      %v267 = vld [vmem:[%s247 + $0x10] sm:$0xff]
      %v268 = vld [vmem:[%s247 + $0x18] sm:$0xff]
      %v269 = vld [vmem:[%s247 + $0x20] sm:$0xff]
      %v270 = vld [vmem:[%s247 + $0x28] sm:$0xff]
      %v271 = vld [vmem:[%s247 + $0x30] sm:$0xff]
      %v272 = vld [vmem:[%s247 + $0x38] sm:$0xff]
      %v273 = vld [vmem:[%s247 + $0x40] sm:$0xff]
      %v274 = vld [vmem:[%s247 + $0x48] sm:$0xff]
      %v275 = vld [vmem:[%s247 + $0x50] sm:$0xff]
      %v276 = vld [vmem:[%s247 + $0x58] sm:$0xff]
      %v277 = vld [vmem:[%s247 + $0x60] sm:$0xff]
      %v278 = vld [vmem:[%s247 + $0x68] sm:$0xff]
      %v279 = vld [vmem:[%s247 + $0x70] sm:$0xff]
      %v280 = vld [vmem:[%s247 + $0x78] sm:$0xff]
      %v281 = vld [vmem:[%s247 + $0x80] sm:$0xff]
      %v282 = vld [vmem:[%s247 + $0x88] sm:$0xff]
      %v283 = vld [vmem:[%s247 + $0x90] sm:$0xff]
      %v284 = vld [vmem:[%s247 + $0x98] sm:$0xff]
      %v285 = vld [vmem:[%s247 + $0xa0] sm:$0xff]
      %v286 = vld [vmem:[%s247 + $0xa8] sm:$0xff]
      %v287 = vld [vmem:[%s247 + $0xb0] sm:$0xff]
      %v288 = vld [vmem:[%s247 + $0xb8] sm:$0xff]
      %v289 = vld [vmem:[%s247 + $0xc0] sm:$0xff]
      %v290 = vld [vmem:[%s247 + $0xc8] sm:$0xff]
      %v291 = vld [vmem:[%s247 + $0xd0] sm:$0xff]
      %v292 = vld [vmem:[%s247 + $0xd8] sm:$0xff]
      %v293 = vld [vmem:[%s247 + $0xe0] sm:$0xff]
      %v294 = vld [vmem:[%s247 + $0xe8] sm:$0xff]
      %v295 = vld [vmem:[%s247 + $0xf0] sm:$0xff]
      %v296 = vld [vmem:[%s247 + $0xf8] sm:$0xff]
      %v297 = vld [vmem:[%s247 + $0x100] sm:$0xff]
      %v298 = vld [vmem:[%s247 + $0x108] sm:$0xff]
      %v299 = vld [vmem:[%s247 + $0x110] sm:$0xff]
      %v300 = vld [vmem:[%s247 + $0x118] sm:$0xff]
      %v301 = vld [vmem:[%s247 + $0x120] sm:$0xff]
      %v302 = vld [vmem:[%s247 + $0x128] sm:$0xff]
      %v303 = vld [vmem:[%s247 + $0x130] sm:$0xff]
      %v304 = vld [vmem:[%s247 + $0x138] sm:$0xff]
      %v305 = vld [vmem:[%s247 + $0x140] sm:$0xff]
      %v306 = vld [vmem:[%s247 + $0x148] sm:$0xff]
      %v307 = vld [vmem:[%s247 + $0x150] sm:$0xff]
      %v308 = vld [vmem:[%s247 + $0x158] sm:$0xff]
      %v309 = vld [vmem:[%s247 + $0x160] sm:$0xff]
      %v310 = vld [vmem:[%s247 + $0x168] sm:$0xff]
      %v311 = vld [vmem:[%s247 + $0x170] sm:$0xff]
      %v312 = vld [vmem:[%s247 + $0x178] sm:$0xff]
      %v313 = vld [vmem:[%s247 + $0x180] sm:$0xff]
      %v314 = vld [vmem:[%s247 + $0x188] sm:$0xff]
      %v315 = vld [vmem:[%s247 + $0x190] sm:$0xff]
      %v316 = vld [vmem:[%s247 + $0x198] sm:$0xff]
      %v317 = vld [vmem:[%s247 + $0x1a0] sm:$0xff]
      %v318 = vld [vmem:[%s247 + $0x1a8] sm:$0xff]
      %v319 = vld [vmem:[%s247 + $0x1b0] sm:$0xff]
      %v320 = vld [vmem:[%s247 + $0x1b8] sm:$0xff]
      %v321 = vld [vmem:[%s247 + $0x1c0] sm:$0xff]
      %v322 = vld [vmem:[%s247 + $0x1c8] sm:$0xff]
      %v323 = vld [vmem:[%s247 + $0x1d0] sm:$0xff]
      %v324 = vld [vmem:[%s247 + $0x1d8] sm:$0xff]
      %v325 = vld [vmem:[%s247 + $0x1e0] sm:$0xff]
      %v326 = vld [vmem:[%s247 + $0x1e8] sm:$0xff]
      %v327 = vld [vmem:[%s247 + $0x1f0] sm:$0xff]
      %v328 = vld [vmem:[%s247 + $0x1f8] sm:$0xff]
      %v330 = vcombine.high %v264, %v264
      %v332 = vunpack.c.l.s4 1983009808
      %v333 = vunpack.c.0.s8 %v332
      %v334 = vlaneseq
      %v335 = vshrl.u32 %v334, 7
      %v336 = vsub.s32 %v333, %v335
      %v337 = vrot.slane %v264, %v336
      %v339 = vunpack.c.l.s4 1983009808
      %v340 = vunpack.c.0.s8 %v339
      %v341 = vlaneseq
      %v342 = vshrl.u32 %v341, 7
      %v343 = vsub.s32 %v340, %v342
      %v344 = vrot.slane %v330, %v343
      %v345 = vcombine.high %v337, %v337
      %v346 = vcombine.high %v344, %v344
      %351 = vmatprep.subr.mxu0 0.0
      %352 = vmatpush1.msra.mxu0 %v280
      %353 = vmatprep.subr.mxu0 0.0
      %354 = vmatpush1.msra.mxu0 %v279
      %355 = vmatprep.subr.mxu0 0.0
      %356 = vmatpush1.msra.mxu0 %v278
      %357 = vmatprep.subr.mxu0 0.0
      %358 = vmatpush1.msra.mxu0 %v277
      %359 = vmatprep.subr.mxu0 0.0
      %360 = vmatpush1.msra.mxu0 %v276
      %361 = vmatprep.subr.mxu0 0.0
      %362 = vmatpush1.msra.mxu0 %v275
      %363 = vmatprep.subr.mxu0 0.0
      %364 = vmatpush1.msra.mxu0 %v274
      %365 = vmatprep.subr.mxu0 0.0
      %366 = vmatpush1.msra.mxu0 %v273
      %367 = vmatprep.subr.mxu0 0.0
      %368 = vmatpush1.msra.mxu0 %v272
      %369 = vmatprep.subr.mxu0 0.0
      %370 = vmatpush1.msra.mxu0 %v271
      %371 = vmatprep.subr.mxu0 0.0
      %372 = vmatpush1.msra.mxu0 %v270
      %373 = vmatprep.subr.mxu0 0.0
      %374 = vmatpush1.msra.mxu0 %v269
      %375 = vmatprep.subr.mxu0 0.0
      %376 = vmatpush1.msra.mxu0 %v268
      %377 = vmatprep.subr.mxu0 0.0
      %378 = vmatpush1.msra.mxu0 %v267
      %379 = vmatprep.subr.mxu0 0.0
      %380 = vmatpush1.msra.mxu0 %v266
      %381 = vmatprep.subr.mxu0 0.0
      %382 = vmatpush1.msra.mxu0 %v265
      %383 = vmatprep.subr.mxu0 0.0
      %384 = vmatpush2.msra.mxu0 %v296
      %385 = vmatprep.subr.mxu0 0.0
      %386 = vmatpush2.msra.mxu0 %v295
      %387 = vmatprep.subr.mxu0 0.0
      %388 = vmatpush2.msra.mxu0 %v294
      %389 = vmatprep.subr.mxu0 0.0
      %390 = vmatpush2.msra.mxu0 %v293
      %391 = vmatprep.subr.mxu0 0.0
      %392 = vmatpush2.msra.mxu0 %v292
      %393 = vmatprep.subr.mxu0 0.0
      %394 = vmatpush2.msra.mxu0 %v291
      %395 = vmatprep.subr.mxu0 0.0
      %396 = vmatpush2.msra.mxu0 %v290
      %397 = vmatprep.subr.mxu0 0.0
      %398 = vmatpush2.msra.mxu0 %v289
      %399 = vmatprep.subr.mxu0 0.0
      %400 = vmatpush2.msra.mxu0 %v288
      %401 = vmatprep.subr.mxu0 0.0
      %402 = vmatpush2.msra.mxu0 %v287
      %403 = vmatprep.subr.mxu0 0.0
      %404 = vmatpush2.msra.mxu0 %v286
      %405 = vmatprep.subr.mxu0 0.0
      %406 = vmatpush2.msra.mxu0 %v285
      %407 = vmatprep.subr.mxu0 0.0
      %408 = vmatpush2.msra.mxu0 %v284
      %409 = vmatprep.subr.mxu0 0.0
      %410 = vmatpush2.msra.mxu0 %v283
      %411 = vmatprep.subr.mxu0 0.0
      %412 = vmatpush2.msra.mxu0 %v282
      %413 = vmatprep.subr.mxu0 0.0
      %414 = vmatpush2.msra.mxu0 %v281
      %415 = vmatprep.mubr.f32.mxu0 %v345
      %416 = vmatmul.mubr.f32.gmra.mxu0 %v337
      %v417 = vpop.f32.mrf.mxu0
      %v418 = vadd.f32 0.0, %v417
      %v419 = vpop.f32.mrf.mxu0
      %420 = vdwg.mxu0
      %421 = vmatprep.subr.mxu0 0.0
      %422 = vmatpush1.msra.mxu0 %v312
      %423 = vmatprep.subr.mxu0 0.0
      %424 = vmatpush1.msra.mxu0 %v311
      %425 = vmatprep.subr.mxu0 0.0
      %426 = vmatpush1.msra.mxu0 %v310
      %427 = vmatprep.subr.mxu0 0.0
      %428 = vmatpush1.msra.mxu0 %v309
      %429 = vmatprep.subr.mxu0 0.0
      %430 = vmatpush1.msra.mxu0 %v308
      %431 = vmatprep.subr.mxu0 0.0
      %432 = vmatpush1.msra.mxu0 %v307
      %433 = vmatprep.subr.mxu0 0.0
      %434 = vmatpush1.msra.mxu0 %v306
      %435 = vmatprep.subr.mxu0 0.0
      %436 = vmatpush1.msra.mxu0 %v305
      %437 = vmatprep.subr.mxu0 0.0
      %438 = vmatpush1.msra.mxu0 %v304
      %439 = vmatprep.subr.mxu0 0.0
      %440 = vmatpush1.msra.mxu0 %v303
      %441 = vmatprep.subr.mxu0 0.0
      %442 = vmatpush1.msra.mxu0 %v302
      %443 = vmatprep.subr.mxu0 0.0
      %444 = vmatpush1.msra.mxu0 %v301
      %445 = vmatprep.subr.mxu0 0.0
      %446 = vmatpush1.msra.mxu0 %v300
      %447 = vmatprep.subr.mxu0 0.0
      %448 = vmatpush1.msra.mxu0 %v299
      %449 = vmatprep.subr.mxu0 0.0
      %450 = vmatpush1.msra.mxu0 %v298
      %451 = vmatprep.subr.mxu0 0.0
      %452 = vmatpush1.msra.mxu0 %v297
      %453 = vmatprep.subr.mxu0 0.0
      %454 = vmatpush2.msra.mxu0 %v328
      %455 = vmatprep.subr.mxu0 0.0
      %456 = vmatpush2.msra.mxu0 %v327
      %457 = vmatprep.subr.mxu0 0.0
      %458 = vmatpush2.msra.mxu0 %v326
      %459 = vmatprep.subr.mxu0 0.0
      %460 = vmatpush2.msra.mxu0 %v325
      %461 = vmatprep.subr.mxu0 0.0
      %462 = vmatpush2.msra.mxu0 %v324
      %463 = vmatprep.subr.mxu0 0.0
      %464 = vmatpush2.msra.mxu0 %v323
      %465 = vmatprep.subr.mxu0 0.0
      %466 = vmatpush2.msra.mxu0 %v322
      %467 = vmatprep.subr.mxu0 0.0
      %468 = vmatpush2.msra.mxu0 %v321
      %469 = vmatprep.subr.mxu0 0.0
      %470 = vmatpush2.msra.mxu0 %v320
      %471 = vmatprep.subr.mxu0 0.0
      %472 = vmatpush2.msra.mxu0 %v319
      %473 = vmatprep.subr.mxu0 0.0
      %474 = vmatpush2.msra.mxu0 %v318
      %475 = vmatprep.subr.mxu0 0.0
      %476 = vmatpush2.msra.mxu0 %v317
      %477 = vmatprep.subr.mxu0 0.0
      %478 = vmatpush2.msra.mxu0 %v316
      %479 = vmatprep.subr.mxu0 0.0
      %480 = vmatpush2.msra.mxu0 %v315
      %481 = vmatprep.subr.mxu0 0.0
      %482 = vmatpush2.msra.mxu0 %v314
      %483 = vmatprep.subr.mxu0 0.0
      %484 = vmatpush2.msra.mxu0 %v313
      %485 = vmatprep.mubr.f32.mxu0 %v346
      %486 = vmatmul.mubr.f32.gmra.mxu0 %v344
      %v487 = vpop.f32.mrf.mxu0
      %v488 = vadd.f32 %v418, %v487
      %v489 = vpop.f32.mrf.mxu0
      %490 = vdwg.mxu0
      %v491 = vadd.f32 %v263, %v488
      %vm492 = vcmask 254976
      %493 = vst.msk [vmem:[#allocation2] sm:$0x3] %vm492, %v491
      %p494 = scmp.eq.s32.totalorder %s21, 3
      // Predicated region
      $region37: #{_lambda_.4} parent=31 // pred_check
        %p495 = pneg %p494
      $region38: #{_lambda_.4} parent=31 // pred_check_branch
        %497 = sbr.rel (%p495) target = $region40
      $region39: #{_lambda_.4} parent=31 // pred_region
        %v498 = vld [vmem:[#allocation2] sm:$0x3]
        %v499 = vld [vmem:[%s2] sm:$0x1]
        %v501 = vlaneseq
        %v502 = vshrl.u32 %v501, 7
        %v503 = vsub.s32 0, %v502
        %v504 = vrot.slane %v499, %v503
        %v506 = vadd.f32 %v498, %v504
        %507 = vst.msk [vmem:[%s252] sm:$0x3] %vm492, %v506
        %v508 = vsel %vm492, %v506, 0.0
        %v509 = vrot.slane %v508, 4
        %v510 = vadd.f32 %v508, %v509
        %v511 = vrot.slane %v510, 2
        %v512 = vadd.f32 %v510, %v511
        %v513 = vrot.slane %v512, 1
        %v514 = vadd.f32 %v512, %v513
        %vm515 = vcmask 253952
        %516 = vst.msk [vmem:[%s256] sm:$0x1] %vm515, %v514
        %v517 = vmul.f32 %v506, %v506
        %v518 = vsel %vm492, %v517, 0.0
        %v519 = vrot.slane %v518, 4
        %v520 = vadd.f32 %v518, %v519
        %v521 = vrot.slane %v520, 2
        %v522 = vadd.f32 %v520, %v521
        %v523 = vrot.slane %v522, 1
        %v524 = vadd.f32 %v522, %v523
        %525 = vst.msk [vmem:[%s256 + $0x1] sm:$0x1] %vm515, %v524
      $region40: #{_lambda_.4} parent=31 // pred_fallthru
        _
      %p526 = scmp.lt.s32.totalorder %s20, 0
      %s527 = scalar_select %p526, %s20, 0
      %s528 = smul.addr %s527, 2
      %s529 = scalar_lea.vmem %s3, %s528
      %p530 = scmp.lt.s32.totalorder %s20, 0
      %s531 = scalar_select %p530, %s20, 0
      %s532 = smul.addr %s531, 2
      %s533 = scalar_lea.vmem %s4, %s532
      // Predicated region
      $region41: #{_lambda_.4} parent=31 // pred_check
        %p534 = pneg %p121
      $region42: #{_lambda_.4} parent=31 // pred_check_branch
        %536 = sbr.rel (%p534) target = $region44
      $region43: #{_lambda_.4} parent=31 // pred_region
        _
      $region44: #{_lambda_.4} parent=31 // pred_fallthru
        _
      // Predicated region
      $region45: #{_lambda_.4} parent=31 // pred_check
        %p537 = pneg %p147
      $region46: #{_lambda_.4} parent=31 // pred_check_branch
        %539 = sbr.rel (%p537) target = $region48
      $region47: #{_lambda_.4} parent=31 // pred_region
        _
      $region48: #{_lambda_.4} parent=31 // pred_fallthru
        _
      // Predicated region
      $region49: #{_lambda_.4} parent=31 // pred_check
        %p540 = pneg %p121
      $region50: #{_lambda_.4} parent=31 // pred_check_branch
        %542 = sbr.rel (%p540) target = $region52
      $region51: #{_lambda_.4} parent=31 // pred_region
        %p543 = scmp.lt.s32.totalorder %s20, 0
        %s544 = scalar_select %p543, %s20, 0
        %s545 = smul.addr %s544, 2
        %s546 = scalar_lea.vmem %s3, %s545
      $region52: #{_lambda_.4} parent=31 // pred_fallthru
        _
      // Predicated region
      $region53: #{_lambda_.4} parent=31 // pred_check
        %p547 = pneg %p147
      $region54: #{_lambda_.4} parent=31 // pred_check_branch
        %549 = sbr.rel (%p547) target = $region56
      $region55: #{_lambda_.4} parent=31 // pred_region
        %p550 = scmp.lt.s32.totalorder %s20, 0
        %s551 = scalar_select %p550, %s20, 0
        %s552 = smul.addr %s551, 2
        %s553 = scalar_lea.vmem %s4, %s552
      $region56: #{_lambda_.4} parent=31 // pred_fallthru
        _
    $region32: #{_lambda_.4} parent=5 // pred_fallthru
      _
    %p554 = scmp.le.s32.totalorder 2, %s11
    // Predicated region
    $region57: #{_lambda_.4} parent=5 // pred_check
      %p555 = pneg %p554
    $region58: #{_lambda_.4} parent=5 // pred_check_branch
      %557 = sbr.rel (%p555) target = $region60
    $region59: #{_lambda_.4} parent=5 // pred_region
      %s558 = ssub.s32 %s11, 2
    $region60: #{_lambda_.4} parent=5 // pred_fallthru
      _
  $region6: #{_lambda_.4} parent=0 // loop_footer
    %s15 = sadd.s32 1, %s11
  $region7: #{_lambda_.4} parent=0 // loop_footer_branch
    %10 = sbr.rel target = $region3
  $region8: #{_lambda_.4} parent=0 // loop_exit
    _

// kernel: _lambda_.5
$region0: #{_lambda_.5}
  #allocation0 [shape = 'u32[]', space=smem, size = 0x4, offset = 0x4, fixed_abs, tag = 'smem constant byte address 0x4 - core index']
  #allocation1 [shape = 'u32[144,128]{1,0:T(1,128)}', space=vmem, size = 0x12000, scoped, tag = 'internal scratch']
  %s0 = inlined_call_operand.vmem [shape: f32[2,32], index: 0, kind: input, shape index: {}]
  %s1 = inlined_call_operand.vmem [shape: f32[1,32], index: 1, kind: input, shape index: {}]
  %s2 = inlined_call_operand.vmem [shape: f32[1,32], index: 2, kind: input, shape index: {}]
  %s3 = inlined_call_operand.vmem [shape: f32[32,16], index: 3, kind: input, shape index: {}]
  %s4 = inlined_call_operand.vmem [shape: f32[1,16], index: 4, kind: input, shape index: {}]
  %s5 = inlined_call_operand.hbm [shape: f32[2,16], index: 5, kind: output, shape index: {}]
  %s6 = sld [smem:[#allocation0]]
  $region30: #{_lambda_.5} parent=0
    _
  %s8 = ssub.s32 1, %s6
  %s9 = scalar_select 0, %s8, %s6
  $region1: #{_lambda_.5} parent=0
    #allocation2 [shape = 'u8[1024]{0}', space=vmem, size = 0x400, scoped, tag = 'output window, operand 0, single buffered']
    #allocation3 [shape = 's32[1]{0}', space=sflag, size = 0x4, scoped, tag = 'scoped memory for _lambda_.5']
    %10 = vsyncpa [#allocation3], 0
    // Predicated region
    $region2: #{_lambda_.5} parent=1 // pred_check
      _
    $region3: #{_lambda_.5} parent=1 // pred_check_branch
      %12 = sbr.rel (0) target = $region5
    $region4: #{_lambda_.5} parent=1 // pred_region
      _
    $region5: #{_lambda_.5} parent=1 // pred_fallthru
      _
    // Predicated region
    $region6: #{_lambda_.5} parent=1 // pred_check
      _
    $region7: #{_lambda_.5} parent=1 // pred_check_branch
      %14 = sbr.rel (0) target = $region9
    $region8: #{_lambda_.5} parent=1 // pred_region
      _
    $region9: #{_lambda_.5} parent=1 // pred_fallthru
      _
    // Predicated region
    $region10: #{_lambda_.5} parent=1 // pred_check
      _
    $region11: #{_lambda_.5} parent=1 // pred_check_branch
      %16 = sbr.rel (0) target = $region13
    $region12: #{_lambda_.5} parent=1 // pred_region
      _
    $region13: #{_lambda_.5} parent=1 // pred_fallthru
      _
    // Predicated region
    $region14: #{_lambda_.5} parent=1 // pred_check
      _
    $region15: #{_lambda_.5} parent=1 // pred_check_branch
      %18 = sbr.rel (0) target = $region17
    $region16: #{_lambda_.5} parent=1 // pred_region
      _
    $region17: #{_lambda_.5} parent=1 // pred_fallthru
      _
    // Predicated region
    $region18: #{_lambda_.5} parent=1 // pred_check
      _
    $region19: #{_lambda_.5} parent=1 // pred_check_branch
      %20 = sbr.rel (0) target = $region21
    $region20: #{_lambda_.5} parent=1 // pred_region
      _
    $region21: #{_lambda_.5} parent=1 // pred_fallthru
      _
    %v21 = vld [vmem:[%s0] sm:$0x3]
    %v22 = vld [vmem:[%s1] sm:$0x1]
    %v24 = vlaneseq
    %v25 = vshrl.u32 %v24, 7
    %v26 = vsub.s32 0, %v25
    %v27 = vrot.slane %v22, %v26
    %v29 = vmul.f32 %v21, %v27
    %v30 = vld [vmem:[%s2] sm:$0x1]
    %v32 = vlaneseq
    %v33 = vshrl.u32 %v32, 7
    %v34 = vsub.s32 0, %v33
    %v35 = vrot.slane %v30, %v34
    %v37 = vadd.f32 %v29, %v35
    %v38 = vmax.f32 %v37, 0.0
    %v39 = vld [vmem:[%s3] sm:$0xff]
    %v40 = vld [vmem:[%s3 + $0x8] sm:$0xff]
    %v41 = vld [vmem:[%s3 + $0x10] sm:$0xff]
    %v42 = vld [vmem:[%s3 + $0x18] sm:$0xff]
    %v43 = vld [vmem:[%s4] sm:$0x1]
    %v45 = vlaneseq
    %v46 = vshrl.u32 %v45, 7
    %v47 = vsub.s32 0, %v46
    %v48 = vrot.slane %v43, %v47
    %vm50 = vcmask 261120
    %v52 = vsel %vm50, %v38, 0
    %54 = vmatprep.subr.mxu0 0.0
    %55 = vmatpush1.msra.mxu0 0.0
    %56 = vmatprep.subr.mxu0 0.0
    %57 = vmatpush1.msra.mxu0 0.0
    %58 = vmatprep.subr.mxu0 0.0
    %59 = vmatpush1.msra.mxu0 0.0
    %60 = vmatprep.subr.mxu0 0.0
    %61 = vmatpush1.msra.mxu0 0.0
    %62 = vmatprep.subr.mxu0 0.0
    %63 = vmatpush1.msra.mxu0 0.0
    %64 = vmatprep.subr.mxu0 0.0
    %65 = vmatpush1.msra.mxu0 0.0
    %66 = vmatprep.subr.mxu0 0.0
    %67 = vmatpush1.msra.mxu0 0.0
    %68 = vmatprep.subr.mxu0 0.0
    %69 = vmatpush1.msra.mxu0 0.0
    %70 = vmatprep.subr.mxu0 0.0
    %71 = vmatpush1.msra.mxu0 0.0
    %72 = vmatprep.subr.mxu0 0.0
    %73 = vmatpush1.msra.mxu0 0.0
    %74 = vmatprep.subr.mxu0 0.0
    %75 = vmatpush1.msra.mxu0 0.0
    %76 = vmatprep.subr.mxu0 0.0
    %77 = vmatpush1.msra.mxu0 0.0
    %78 = vmatprep.subr.mxu0 0.0
    %79 = vmatpush1.msra.mxu0 %v42
    %80 = vmatprep.subr.mxu0 0.0
    %81 = vmatpush1.msra.mxu0 %v41
    %82 = vmatprep.subr.mxu0 0.0
    %83 = vmatpush1.msra.mxu0 %v40
    %84 = vmatprep.subr.mxu0 0.0
    %85 = vmatpush1.msra.mxu0 %v39
    %86 = vmatprep.subr.mxu0 0.0
    %87 = vmatpush2.msra.mxu0 0.0
    %88 = vmatprep.subr.mxu0 0.0
    %89 = vmatpush2.msra.mxu0 0.0
    %90 = vmatprep.subr.mxu0 0.0
    %91 = vmatpush2.msra.mxu0 0.0
    %92 = vmatprep.subr.mxu0 0.0
    %93 = vmatpush2.msra.mxu0 0.0
    %94 = vmatprep.subr.mxu0 0.0
    %95 = vmatpush2.msra.mxu0 0.0
    %96 = vmatprep.subr.mxu0 0.0
    %97 = vmatpush2.msra.mxu0 0.0
    %98 = vmatprep.subr.mxu0 0.0
    %99 = vmatpush2.msra.mxu0 0.0
    %100 = vmatprep.subr.mxu0 0.0
    %101 = vmatpush2.msra.mxu0 0.0
    %102 = vmatprep.subr.mxu0 0.0
    %103 = vmatpush2.msra.mxu0 0.0
    %104 = vmatprep.subr.mxu0 0.0
    %105 = vmatpush2.msra.mxu0 0.0
    %106 = vmatprep.subr.mxu0 0.0
    %107 = vmatpush2.msra.mxu0 0.0
    %108 = vmatprep.subr.mxu0 0.0
    %109 = vmatpush2.msra.mxu0 0.0
    %110 = vmatprep.subr.mxu0 0.0
    %111 = vmatpush2.msra.mxu0 0.0
    %112 = vmatprep.subr.mxu0 0.0
    %113 = vmatpush2.msra.mxu0 0.0
    %114 = vmatprep.subr.mxu0 0.0
    %115 = vmatpush2.msra.mxu0 0.0
    %116 = vmatprep.subr.mxu0 0.0
    %117 = vmatpush2.msra.mxu0 0.0
    %118 = vmatprep.mubr.f32.mxu0 0.0
    %119 = vmatmul.mubr.f32.gmra.mxu0 %v52
    %v120 = vpop.f32.mrf.mxu0
    %v121 = vadd.f32 %v48, %v120
    %v122 = vpop.f32.mrf.mxu0
    %123 = vdwg.mxu0
    %vm124 = vcmask 123904
    %125 = vst.msk [vmem:[#allocation2] sm:$0x3] %vm124, %v121
    // Predicated region
    $region22: #{_lambda_.5} parent=1 // pred_check
      _
    $region23: #{_lambda_.5} parent=1 // pred_check_branch
      %127 = sbr.rel (0) target = $region25
    $region24: #{_lambda_.5} parent=1 // pred_region
      %s129 = ssub.s32 32, 32
      %130 = vsyncadd [#allocation3], %s129
      %s132 = sshll.u32 [#allocation2], 4
      %s133 = int_to_ptr.vmem [resolvable:$true] %s132
      %135 = dma.vmem_to_hbm [thread:$0]  %s133, 32, %s5, [#allocation3]
    $region25: #{_lambda_.5} parent=1 // pred_fallthru
      _
    // Predicated region
    $region26: #{_lambda_.5} parent=1 // pred_check
      _
    $region27: #{_lambda_.5} parent=1 // pred_check_branch
      %137 = sbr.rel (0) target = $region29
    $region28: #{_lambda_.5} parent=1 // pred_region
      %138 = dma.done [#allocation3], 32
    $region29: #{_lambda_.5} parent=1 // pred_fallthru
      _
    %139 = vsyncpa [#allocation3], 1

// kernel: _lambda_.3
$region0: #{_lambda_.3}
  #allocation0 [shape = 'u32[]', space=smem, size = 0x4, offset = 0x4, fixed_abs, tag = 'smem constant byte address 0x4 - core index']
  #allocation1 [shape = 'u32[144,128]{1,0:T(1,128)}', space=vmem, size = 0x12000, scoped, tag = 'internal scratch']
  #allocation2 [shape = 'f32[36,18,4]{2,1,0:T(8,128)}', space=vmem, size = 0x6c000, scoped, tag = 'scratch operand']
  #allocation3 [shape = 'f32[512,36]{1,0:T(8,128)}', space=vmem, size = 0x40000, scoped, tag = 'scratch operand']
  #allocation4 [shape = 'f32[36,18,8]{2,1,0:T(8,128)}', space=vmem, size = 0x6c000, scoped, tag = 'scratch operand']
  #allocation5 [shape = 'f32[512,72]{1,0:T(8,128)}', space=vmem, size = 0x40000, scoped, tag = 'scratch operand']
  %s0 = inlined_call_operand.vmem [shape: f32[2,16,16,4], index: 0, kind: input, shape index: {}]
  %s1 = inlined_call_operand.hbm [shape: f32[36,8], index: 1, kind: input, shape index: {}]
  %s2 = inlined_call_operand.hbm [shape: f32[1,8], index: 2, kind: input, shape index: {}]
  %s3 = inlined_call_operand.vmem [shape: f32[72,8], index: 3, kind: input, shape index: {}]
  %s4 = inlined_call_operand.hbm [shape: f32[1,8], index: 4, kind: input, shape index: {}]
  %s5 = inlined_call_operand.vmem [shape: f32[2,256,8], index: 5, kind: output, shape index: {}]
  %s6 = sld [smem:[#allocation0]]
  $region42: #{_lambda_.3} parent=0
    _
  %s8 = ssub.s32 1, %s6
  %s9 = scalar_select 0, %s8, %s6
  $region1: #{_lambda_.3} parent=0
    #allocation6 [shape = 'u8[20480]{0}', space=vmem, size = 0x5000, scoped, tag = 'input window, operand 1, single buffered']
    #allocation7 [shape = 's32[1]{0}', space=sflag, size = 0x4, scoped, tag = 'scoped memory for _lambda_.3']
    #allocation8 [shape = 'u8[512]{0}', space=vmem, size = 0x400, scoped, tag = 'input window, operand 2, single buffered']
    #allocation9 [shape = 's32[1]{0}', space=sflag, size = 0x4, scoped, tag = 'scoped memory for _lambda_.3']
    #allocation10 [shape = 'u8[512]{0}', space=vmem, size = 0x400, scoped, tag = 'input window, operand 4, single buffered']
    %10 = vsyncpa [#allocation7], 0
    %11 = vsyncpa [#allocation9], 0
    // Predicated region
    $region2: #{_lambda_.3} parent=1 // pred_check
      _
    $region3: #{_lambda_.3} parent=1 // pred_check_branch
      %13 = sbr.rel (0) target = $region5
    $region4: #{_lambda_.3} parent=1 // pred_region
      _
    $region5: #{_lambda_.3} parent=1 // pred_fallthru
      _
    // Predicated region
    $region6: #{_lambda_.3} parent=1 // pred_check
      _
    $region7: #{_lambda_.3} parent=1 // pred_check_branch
      %15 = sbr.rel (0) target = $region9
    $region8: #{_lambda_.3} parent=1 // pred_region
      %s17 = ssub.s32 640, 640
      %18 = vsyncadd [#allocation7], %s17
      %s19 = sshll.u32 [#allocation6], 4
      %s20 = int_to_ptr.vmem [resolvable:$true] %s19
      %25 = dma.hbm_to_vmem [thread:$0]  %s1, 640, %s20, [#allocation7], 128, 128, 8
    $region9: #{_lambda_.3} parent=1 // pred_fallthru
      _
    // Predicated region
    $region10: #{_lambda_.3} parent=1 // pred_check
      _
    $region11: #{_lambda_.3} parent=1 // pred_check_branch
      %27 = sbr.rel (0) target = $region13
    $region12: #{_lambda_.3} parent=1 // pred_region
      %s29 = ssub.s32 16, 16
      %30 = vsyncadd [#allocation9], %s29
      %s32 = sshll.u32 [#allocation8], 4
      %s33 = int_to_ptr.vmem [resolvable:$true] %s32
      %35 = dma.hbm_to_vmem [thread:$0]  %s2, 16, %s33, [#allocation9]
    $region13: #{_lambda_.3} parent=1 // pred_fallthru
      _
    // Predicated region
    $region14: #{_lambda_.3} parent=1 // pred_check
      _
    $region15: #{_lambda_.3} parent=1 // pred_check_branch
      %37 = sbr.rel (0) target = $region17
    $region16: #{_lambda_.3} parent=1 // pred_region
      _
    $region17: #{_lambda_.3} parent=1 // pred_fallthru
      _
    // Predicated region
    $region18: #{_lambda_.3} parent=1 // pred_check
      _
    $region19: #{_lambda_.3} parent=1 // pred_check_branch
      %39 = sbr.rel (0) target = $region21
    $region20: #{_lambda_.3} parent=1 // pred_region
      %s41 = ssub.s32 16, 16
      %42 = vsyncadd [#allocation9], %s41
      %s44 = sshll.u32 [#allocation10], 4
      %s45 = int_to_ptr.vmem [resolvable:$true] %s44
      %47 = dma.hbm_to_vmem [thread:$0]  %s4, 16, %s45, [#allocation9]
    $region21: #{_lambda_.3} parent=1 // pred_fallthru
      _
    // Predicated region
    $region22: #{_lambda_.3} parent=1 // pred_check
      _
    $region23: #{_lambda_.3} parent=1 // pred_check_branch
      %49 = sbr.rel (0) target = $region25
    $region24: #{_lambda_.3} parent=1 // pred_region
      %50 = dma.done [#allocation7], 640
    $region25: #{_lambda_.3} parent=1 // pred_fallthru
      _
    // Predicated region
    $region26: #{_lambda_.3} parent=1 // pred_check
      _
    $region27: #{_lambda_.3} parent=1 // pred_check_branch
      %52 = sbr.rel (0) target = $region29
    $region28: #{_lambda_.3} parent=1 // pred_region
      %53 = dma.done [#allocation9], 16
    $region29: #{_lambda_.3} parent=1 // pred_fallthru
      _
    // Predicated region
    $region30: #{_lambda_.3} parent=1 // pred_check
      _
    $region31: #{_lambda_.3} parent=1 // pred_check_branch
      %55 = sbr.rel (0) target = $region33
    $region32: #{_lambda_.3} parent=1 // pred_region
      %56 = dma.done [#allocation9], 16
    $region33: #{_lambda_.3} parent=1 // pred_fallthru
      _
    %vm57 = vcmask 31744
    %58 = vst.msk [vmem:[#allocation2] sm:$0xff] %vm57, 0.0
    %59 = vst.msk [vmem:[#allocation2 + $0x8] sm:$0xff] %vm57, 0.0
    %vm60 = vcmask 25600
    %61 = vst.msk [vmem:[#allocation2 + $0x10] sm:$0x3] %vm60, 0.0
    %s62 = scalar_lea.vmem [#allocation2], 408
    %63 = vst.msk [vmem:[%s62] sm:$0xff] %vm57, 0.0
    %64 = vst.msk [vmem:[%s62 + $0x8] sm:$0xff] %vm57, 0.0
    %65 = vst.msk [vmem:[%s62 + $0x10] sm:$0x3] %vm60, 0.0
    %s66 = scalar_lea.vmem [#allocation2], 24
    %vm67 = vcmask 24576
    %68 = vst.msk [vmem:[%s66] sm:$0x1] %vm67, 0.0
    %69 = vst.msk [vmem:[%s66 + $0x18] sm:$0x1] %vm67, 0.0
    %70 = vst.msk [vmem:[%s66 + $0x30] sm:$0x1] %vm67, 0.0
    %71 = vst.msk [vmem:[%s66 + $0x48] sm:$0x1] %vm67, 0.0
    %72 = vst.msk [vmem:[%s66 + $0x60] sm:$0x1] %vm67, 0.0
    %73 = vst.msk [vmem:[%s66 + $0x78] sm:$0x1] %vm67, 0.0
    %74 = vst.msk [vmem:[%s66 + $0x90] sm:$0x1] %vm67, 0.0
    %75 = vst.msk [vmem:[%s66 + $0xa8] sm:$0x1] %vm67, 0.0
    %76 = vst.msk [vmem:[%s66 + $0xc0] sm:$0x1] %vm67, 0.0
    %77 = vst.msk [vmem:[%s66 + $0xd8] sm:$0x1] %vm67, 0.0
    %78 = vst.msk [vmem:[%s66 + $0xf0] sm:$0x1] %vm67, 0.0
    %79 = vst.msk [vmem:[%s66 + $0x108] sm:$0x1] %vm67, 0.0
    %80 = vst.msk [vmem:[%s66 + $0x120] sm:$0x1] %vm67, 0.0
    %81 = vst.msk [vmem:[%s66 + $0x138] sm:$0x1] %vm67, 0.0
    %82 = vst.msk [vmem:[%s66 + $0x150] sm:$0x1] %vm67, 0.0
    %83 = vst.msk [vmem:[%s66 + $0x168] sm:$0x1] %vm67, 0.0
    %84 = vst.msk [vmem:[%s66 + $0x11] sm:$0x1] %vm67, 0.0
    %85 = vst.msk [vmem:[%s66 + $0x29] sm:$0x1] %vm67, 0.0
    %86 = vst.msk [vmem:[%s66 + $0x41] sm:$0x1] %vm67, 0.0
    %87 = vst.msk [vmem:[%s66 + $0x59] sm:$0x1] %vm67, 0.0
    %88 = vst.msk [vmem:[%s66 + $0x71] sm:$0x1] %vm67, 0.0
    %89 = vst.msk [vmem:[%s66 + $0x89] sm:$0x1] %vm67, 0.0
    %90 = vst.msk [vmem:[%s66 + $0xa1] sm:$0x1] %vm67, 0.0
    %91 = vst.msk [vmem:[%s66 + $0xb9] sm:$0x1] %vm67, 0.0
    %92 = vst.msk [vmem:[%s66 + $0xd1] sm:$0x1] %vm67, 0.0
    %93 = vst.msk [vmem:[%s66 + $0xe9] sm:$0x1] %vm67, 0.0
    %94 = vst.msk [vmem:[%s66 + $0x101] sm:$0x1] %vm67, 0.0
    %95 = vst.msk [vmem:[%s66 + $0x119] sm:$0x1] %vm67, 0.0
    %96 = vst.msk [vmem:[%s66 + $0x131] sm:$0x1] %vm67, 0.0
    %97 = vst.msk [vmem:[%s66 + $0x149] sm:$0x1] %vm67, 0.0
    %98 = vst.msk [vmem:[%s66 + $0x161] sm:$0x1] %vm67, 0.0
    %99 = vst.msk [vmem:[%s66 + $0x179] sm:$0x1] %vm67, 0.0
    %v100 = vld [vmem:[%s0] sm:$0xff]
    %v101 = vld [vmem:[%s0 + $0x8] sm:$0xff]
    %v102 = vld [vmem:[%s0 + $0x10] sm:$0xff]
    %v103 = vld [vmem:[%s0 + $0x18] sm:$0xff]
    %v104 = vld [vmem:[%s0 + $0x20] sm:$0xff]
    %v105 = vld [vmem:[%s0 + $0x28] sm:$0xff]
    %v106 = vld [vmem:[%s0 + $0x30] sm:$0xff]
    %v107 = vld [vmem:[%s0 + $0x38] sm:$0xff]
    %v108 = vld [vmem:[%s0 + $0x40] sm:$0xff]
    %v109 = vld [vmem:[%s0 + $0x48] sm:$0xff]
    %v110 = vld [vmem:[%s0 + $0x50] sm:$0xff]
    %v111 = vld [vmem:[%s0 + $0x58] sm:$0xff]
    %v112 = vld [vmem:[%s0 + $0x60] sm:$0xff]
    %v113 = vld [vmem:[%s0 + $0x68] sm:$0xff]
    %v114 = vld [vmem:[%s0 + $0x70] sm:$0xff]
    %v115 = vld [vmem:[%s0 + $0x78] sm:$0xff]
    %v116 = vld [vmem:[%s0 + $0x80] sm:$0xff]
    %v117 = vld [vmem:[%s0 + $0x88] sm:$0xff]
    %v118 = vld [vmem:[%s0 + $0x90] sm:$0xff]
    %v119 = vld [vmem:[%s0 + $0x98] sm:$0xff]
    %v120 = vld [vmem:[%s0 + $0xa0] sm:$0xff]
    %v121 = vld [vmem:[%s0 + $0xa8] sm:$0xff]
    %v122 = vld [vmem:[%s0 + $0xb0] sm:$0xff]
    %v123 = vld [vmem:[%s0 + $0xb8] sm:$0xff]
    %v124 = vld [vmem:[%s0 + $0xc0] sm:$0xff]
    %v125 = vld [vmem:[%s0 + $0xc8] sm:$0xff]
    %v126 = vld [vmem:[%s0 + $0xd0] sm:$0xff]
    %v127 = vld [vmem:[%s0 + $0xd8] sm:$0xff]
    %v128 = vld [vmem:[%s0 + $0xe0] sm:$0xff]
    %v129 = vld [vmem:[%s0 + $0xe8] sm:$0xff]
    %v130 = vld [vmem:[%s0 + $0xf0] sm:$0xff]
    %v131 = vld [vmem:[%s0 + $0xf8] sm:$0xff]
    %132 = vst.msk [vmem:[%s66 + $0x1] sm:$0xff] %vm57, %v100
    %133 = vst.msk [vmem:[%s66 + $0x9] sm:$0xff] %vm57, %v101
    %134 = vst.msk [vmem:[%s66 + $0x19] sm:$0xff] %vm57, %v102
    %135 = vst.msk [vmem:[%s66 + $0x21] sm:$0xff] %vm57, %v103
    %136 = vst.msk [vmem:[%s66 + $0x31] sm:$0xff] %vm57, %v104
    %137 = vst.msk [vmem:[%s66 + $0x39] sm:$0xff] %vm57, %v105
    %138 = vst.msk [vmem:[%s66 + $0x49] sm:$0xff] %vm57, %v106
    %139 = vst.msk [vmem:[%s66 + $0x51] sm:$0xff] %vm57, %v107
    %140 = vst.msk [vmem:[%s66 + $0x61] sm:$0xff] %vm57, %v108
    %141 = vst.msk [vmem:[%s66 + $0x69] sm:$0xff] %vm57, %v109
    %142 = vst.msk [vmem:[%s66 + $0x79] sm:$0xff] %vm57, %v110
    %143 = vst.msk [vmem:[%s66 + $0x81] sm:$0xff] %vm57, %v111
    %144 = vst.msk [vmem:[%s66 + $0x91] sm:$0xff] %vm57, %v112
    %145 = vst.msk [vmem:[%s66 + $0x99] sm:$0xff] %vm57, %v113
    %146 = vst.msk [vmem:[%s66 + $0xa9] sm:$0xff] %vm57, %v114
    %147 = vst.msk [vmem:[%s66 + $0xb1] sm:$0xff] %vm57, %v115
    %148 = vst.msk [vmem:[%s66 + $0xc1] sm:$0xff] %vm57, %v116
    %149 = vst.msk [vmem:[%s66 + $0xc9] sm:$0xff] %vm57, %v117
    %150 = vst.msk [vmem:[%s66 + $0xd9] sm:$0xff] %vm57, %v118
    %151 = vst.msk [vmem:[%s66 + $0xe1] sm:$0xff] %vm57, %v119
    %152 = vst.msk [vmem:[%s66 + $0xf1] sm:$0xff] %vm57, %v120
    %153 = vst.msk [vmem:[%s66 + $0xf9] sm:$0xff] %vm57, %v121
    %154 = vst.msk [vmem:[%s66 + $0x109] sm:$0xff] %vm57, %v122
    %155 = vst.msk [vmem:[%s66 + $0x111] sm:$0xff] %vm57, %v123
    %156 = vst.msk [vmem:[%s66 + $0x121] sm:$0xff] %vm57, %v124
    %157 = vst.msk [vmem:[%s66 + $0x129] sm:$0xff] %vm57, %v125
    %158 = vst.msk [vmem:[%s66 + $0x139] sm:$0xff] %vm57, %v126
    %159 = vst.msk [vmem:[%s66 + $0x141] sm:$0xff] %vm57, %v127
    %160 = vst.msk [vmem:[%s66 + $0x151] sm:$0xff] %vm57, %v128
    %161 = vst.msk [vmem:[%s66 + $0x159] sm:$0xff] %vm57, %v129
    %162 = vst.msk [vmem:[%s66 + $0x169] sm:$0xff] %vm57, %v130
    %163 = vst.msk [vmem:[%s66 + $0x171] sm:$0xff] %vm57, %v131
    %vm164 = vcmask 64512
    %165 = vst.msk [vmem:[#allocation4] sm:$0xff] %vm164, 0.0
    %166 = vst.msk [vmem:[#allocation4 + $0x8] sm:$0xff] %vm164, 0.0
    %vm167 = vcmask 58368
    %168 = vst.msk [vmem:[#allocation4 + $0x10] sm:$0x3] %vm167, 0.0
    %s169 = scalar_lea.vmem [#allocation4], 408
    %170 = vst.msk [vmem:[%s169] sm:$0xff] %vm164, 0.0
    %171 = vst.msk [vmem:[%s169 + $0x8] sm:$0xff] %vm164, 0.0
    %172 = vst.msk [vmem:[%s169 + $0x10] sm:$0x3] %vm167, 0.0
    %s173 = scalar_lea.vmem [#allocation4], 24
    %vm174 = vcmask 57344
    %175 = vst.msk [vmem:[%s173] sm:$0x1] %vm174, 0.0
    %176 = vst.msk [vmem:[%s173 + $0x18] sm:$0x1] %vm174, 0.0
    %177 = vst.msk [vmem:[%s173 + $0x30] sm:$0x1] %vm174, 0.0
    %178 = vst.msk [vmem:[%s173 + $0x48] sm:$0x1] %vm174, 0.0
    %179 = vst.msk [vmem:[%s173 + $0x60] sm:$0x1] %vm174, 0.0
    %180 = vst.msk [vmem:[%s173 + $0x78] sm:$0x1] %vm174, 0.0
    %181 = vst.msk [vmem:[%s173 + $0x90] sm:$0x1] %vm174, 0.0
    %182 = vst.msk [vmem:[%s173 + $0xa8] sm:$0x1] %vm174, 0.0
    %183 = vst.msk [vmem:[%s173 + $0xc0] sm:$0x1] %vm174, 0.0
    %184 = vst.msk [vmem:[%s173 + $0xd8] sm:$0x1] %vm174, 0.0
    %185 = vst.msk [vmem:[%s173 + $0xf0] sm:$0x1] %vm174, 0.0
    %186 = vst.msk [vmem:[%s173 + $0x108] sm:$0x1] %vm174, 0.0
    %187 = vst.msk [vmem:[%s173 + $0x120] sm:$0x1] %vm174, 0.0
    %188 = vst.msk [vmem:[%s173 + $0x138] sm:$0x1] %vm174, 0.0
    %189 = vst.msk [vmem:[%s173 + $0x150] sm:$0x1] %vm174, 0.0
    %190 = vst.msk [vmem:[%s173 + $0x168] sm:$0x1] %vm174, 0.0
    %191 = vst.msk [vmem:[%s173 + $0x11] sm:$0x1] %vm174, 0.0
    %192 = vst.msk [vmem:[%s173 + $0x29] sm:$0x1] %vm174, 0.0
    %193 = vst.msk [vmem:[%s173 + $0x41] sm:$0x1] %vm174, 0.0
    %194 = vst.msk [vmem:[%s173 + $0x59] sm:$0x1] %vm174, 0.0
    %195 = vst.msk [vmem:[%s173 + $0x71] sm:$0x1] %vm174, 0.0
    %196 = vst.msk [vmem:[%s173 + $0x89] sm:$0x1] %vm174, 0.0
    %197 = vst.msk [vmem:[%s173 + $0xa1] sm:$0x1] %vm174, 0.0
    %198 = vst.msk [vmem:[%s173 + $0xb9] sm:$0x1] %vm174, 0.0
    %199 = vst.msk [vmem:[%s173 + $0xd1] sm:$0x1] %vm174, 0.0
    %200 = vst.msk [vmem:[%s173 + $0xe9] sm:$0x1] %vm174, 0.0
    %201 = vst.msk [vmem:[%s173 + $0x101] sm:$0x1] %vm174, 0.0
    %202 = vst.msk [vmem:[%s173 + $0x119] sm:$0x1] %vm174, 0.0
    %203 = vst.msk [vmem:[%s173 + $0x131] sm:$0x1] %vm174, 0.0
    %204 = vst.msk [vmem:[%s173 + $0x149] sm:$0x1] %vm174, 0.0
    %205 = vst.msk [vmem:[%s173 + $0x161] sm:$0x1] %vm174, 0.0
    %206 = vst.msk [vmem:[%s173 + $0x179] sm:$0x1] %vm174, 0.0
    %s207 = scalar_lea.vmem [#allocation2], 432
    %208 = vst.msk [vmem:[%s207] sm:$0xff] %vm57, 0.0
    %209 = vst.msk [vmem:[%s207 + $0x8] sm:$0xff] %vm57, 0.0
    %210 = vst.msk [vmem:[%s207 + $0x10] sm:$0x3] %vm60, 0.0
    %s211 = scalar_lea.vmem [#allocation2], 840
    %212 = vst.msk [vmem:[%s211] sm:$0xff] %vm57, 0.0
    %213 = vst.msk [vmem:[%s211 + $0x8] sm:$0xff] %vm57, 0.0
    %214 = vst.msk [vmem:[%s211 + $0x10] sm:$0x3] %vm60, 0.0
    %s215 = scalar_lea.vmem [#allocation2], 456
    %216 = vst.msk [vmem:[%s215] sm:$0x1] %vm67, 0.0
    %217 = vst.msk [vmem:[%s215 + $0x18] sm:$0x1] %vm67, 0.0
    %218 = vst.msk [vmem:[%s215 + $0x30] sm:$0x1] %vm67, 0.0
    %219 = vst.msk [vmem:[%s215 + $0x48] sm:$0x1] %vm67, 0.0
    %220 = vst.msk [vmem:[%s215 + $0x60] sm:$0x1] %vm67, 0.0
    %221 = vst.msk [vmem:[%s215 + $0x78] sm:$0x1] %vm67, 0.0
    %222 = vst.msk [vmem:[%s215 + $0x90] sm:$0x1] %vm67, 0.0
    %223 = vst.msk [vmem:[%s215 + $0xa8] sm:$0x1] %vm67, 0.0
    %224 = vst.msk [vmem:[%s215 + $0xc0] sm:$0x1] %vm67, 0.0
    %225 = vst.msk [vmem:[%s215 + $0xd8] sm:$0x1] %vm67, 0.0
    %226 = vst.msk [vmem:[%s215 + $0xf0] sm:$0x1] %vm67, 0.0
    %227 = vst.msk [vmem:[%s215 + $0x108] sm:$0x1] %vm67, 0.0
    %228 = vst.msk [vmem:[%s215 + $0x120] sm:$0x1] %vm67, 0.0
    %229 = vst.msk [vmem:[%s215 + $0x138] sm:$0x1] %vm67, 0.0
    %230 = vst.msk [vmem:[%s215 + $0x150] sm:$0x1] %vm67, 0.0
    %231 = vst.msk [vmem:[%s215 + $0x168] sm:$0x1] %vm67, 0.0
    %232 = vst.msk [vmem:[%s215 + $0x11] sm:$0x1] %vm67, 0.0
    %233 = vst.msk [vmem:[%s215 + $0x29] sm:$0x1] %vm67, 0.0
    %234 = vst.msk [vmem:[%s215 + $0x41] sm:$0x1] %vm67, 0.0
    %235 = vst.msk [vmem:[%s215 + $0x59] sm:$0x1] %vm67, 0.0
    %236 = vst.msk [vmem:[%s215 + $0x71] sm:$0x1] %vm67, 0.0
    %237 = vst.msk [vmem:[%s215 + $0x89] sm:$0x1] %vm67, 0.0
    %238 = vst.msk [vmem:[%s215 + $0xa1] sm:$0x1] %vm67, 0.0
    %239 = vst.msk [vmem:[%s215 + $0xb9] sm:$0x1] %vm67, 0.0
    %240 = vst.msk [vmem:[%s215 + $0xd1] sm:$0x1] %vm67, 0.0
    %241 = vst.msk [vmem:[%s215 + $0xe9] sm:$0x1] %vm67, 0.0
    %242 = vst.msk [vmem:[%s215 + $0x101] sm:$0x1] %vm67, 0.0
    %243 = vst.msk [vmem:[%s215 + $0x119] sm:$0x1] %vm67, 0.0
    %244 = vst.msk [vmem:[%s215 + $0x131] sm:$0x1] %vm67, 0.0
    %245 = vst.msk [vmem:[%s215 + $0x149] sm:$0x1] %vm67, 0.0
    %246 = vst.msk [vmem:[%s215 + $0x161] sm:$0x1] %vm67, 0.0
    %247 = vst.msk [vmem:[%s215 + $0x179] sm:$0x1] %vm67, 0.0
    %s248 = scalar_lea.vmem %s0, 256
    %v249 = vld [vmem:[%s248] sm:$0xff]
    %v250 = vld [vmem:[%s248 + $0x8] sm:$0xff]
    %v251 = vld [vmem:[%s248 + $0x10] sm:$0xff]
    %v252 = vld [vmem:[%s248 + $0x18] sm:$0xff]
    %v253 = vld [vmem:[%s248 + $0x20] sm:$0xff]
    %v254 = vld [vmem:[%s248 + $0x28] sm:$0xff]
    %v255 = vld [vmem:[%s248 + $0x30] sm:$0xff]
    %v256 = vld [vmem:[%s248 + $0x38] sm:$0xff]
    %v257 = vld [vmem:[%s248 + $0x40] sm:$0xff]
    %v258 = vld [vmem:[%s248 + $0x48] sm:$0xff]
    %v259 = vld [vmem:[%s248 + $0x50] sm:$0xff]
    %v260 = vld [vmem:[%s248 + $0x58] sm:$0xff]
    %v261 = vld [vmem:[%s248 + $0x60] sm:$0xff]
    %v262 = vld [vmem:[%s248 + $0x68] sm:$0xff]
    %v263 = vld [vmem:[%s248 + $0x70] sm:$0xff]
    %v264 = vld [vmem:[%s248 + $0x78] sm:$0xff]
    %v265 = vld [vmem:[%s248 + $0x80] sm:$0xff]
    %v266 = vld [vmem:[%s248 + $0x88] sm:$0xff]
    %v267 = vld [vmem:[%s248 + $0x90] sm:$0xff]
    %v268 = vld [vmem:[%s248 + $0x98] sm:$0xff]
    %v269 = vld [vmem:[%s248 + $0xa0] sm:$0xff]
    %v270 = vld [vmem:[%s248 + $0xa8] sm:$0xff]
    %v271 = vld [vmem:[%s248 + $0xb0] sm:$0xff]
    %v272 = vld [vmem:[%s248 + $0xb8] sm:$0xff]
    %v273 = vld [vmem:[%s248 + $0xc0] sm:$0xff]
    %v274 = vld [vmem:[%s248 + $0xc8] sm:$0xff]
    %v275 = vld [vmem:[%s248 + $0xd0] sm:$0xff]
    %v276 = vld [vmem:[%s248 + $0xd8] sm:$0xff]
    %v277 = vld [vmem:[%s248 + $0xe0] sm:$0xff]
    %v278 = vld [vmem:[%s248 + $0xe8] sm:$0xff]
    %v279 = vld [vmem:[%s248 + $0xf0] sm:$0xff]
    %v280 = vld [vmem:[%s248 + $0xf8] sm:$0xff]
    %281 = vst.msk [vmem:[%s215 + $0x1] sm:$0xff] %vm57, %v249
    %282 = vst.msk [vmem:[%s215 + $0x9] sm:$0xff] %vm57, %v250
    %283 = vst.msk [vmem:[%s215 + $0x19] sm:$0xff] %vm57, %v251
    %284 = vst.msk [vmem:[%s215 + $0x21] sm:$0xff] %vm57, %v252
    %285 = vst.msk [vmem:[%s215 + $0x31] sm:$0xff] %vm57, %v253
    %286 = vst.msk [vmem:[%s215 + $0x39] sm:$0xff] %vm57, %v254
    %287 = vst.msk [vmem:[%s215 + $0x49] sm:$0xff] %vm57, %v255
    %288 = vst.msk [vmem:[%s215 + $0x51] sm:$0xff] %vm57, %v256
    %289 = vst.msk [vmem:[%s215 + $0x61] sm:$0xff] %vm57, %v257
    %290 = vst.msk [vmem:[%s215 + $0x69] sm:$0xff] %vm57, %v258
    %291 = vst.msk [vmem:[%s215 + $0x79] sm:$0xff] %vm57, %v259
    %292 = vst.msk [vmem:[%s215 + $0x81] sm:$0xff] %vm57, %v260
    %293 = vst.msk [vmem:[%s215 + $0x91] sm:$0xff] %vm57, %v261
    %294 = vst.msk [vmem:[%s215 + $0x99] sm:$0xff] %vm57, %v262
    %295 = vst.msk [vmem:[%s215 + $0xa9] sm:$0xff] %vm57, %v263
    %296 = vst.msk [vmem:[%s215 + $0xb1] sm:$0xff] %vm57, %v264
    %297 = vst.msk [vmem:[%s215 + $0xc1] sm:$0xff] %vm57, %v265
    %298 = vst.msk [vmem:[%s215 + $0xc9] sm:$0xff] %vm57, %v266
    %299 = vst.msk [vmem:[%s215 + $0xd9] sm:$0xff] %vm57, %v267
    %300 = vst.msk [vmem:[%s215 + $0xe1] sm:$0xff] %vm57, %v268
    %301 = vst.msk [vmem:[%s215 + $0xf1] sm:$0xff] %vm57, %v269
    %302 = vst.msk [vmem:[%s215 + $0xf9] sm:$0xff] %vm57, %v270
    %303 = vst.msk [vmem:[%s215 + $0x109] sm:$0xff] %vm57, %v271
    %304 = vst.msk [vmem:[%s215 + $0x111] sm:$0xff] %vm57, %v272
    %305 = vst.msk [vmem:[%s215 + $0x121] sm:$0xff] %vm57, %v273
    %306 = vst.msk [vmem:[%s215 + $0x129] sm:$0xff] %vm57, %v274
    %307 = vst.msk [vmem:[%s215 + $0x139] sm:$0xff] %vm57, %v275
    %308 = vst.msk [vmem:[%s215 + $0x141] sm:$0xff] %vm57, %v276
    %309 = vst.msk [vmem:[%s215 + $0x151] sm:$0xff] %vm57, %v277
    %310 = vst.msk [vmem:[%s215 + $0x159] sm:$0xff] %vm57, %v278
    %311 = vst.msk [vmem:[%s215 + $0x169] sm:$0xff] %vm57, %v279
    %312 = vst.msk [vmem:[%s215 + $0x171] sm:$0xff] %vm57, %v280
    %s313 = scalar_lea.vmem [#allocation4], 432
    %314 = vst.msk [vmem:[%s313] sm:$0xff] %vm164, 0.0
    %315 = vst.msk [vmem:[%s313 + $0x8] sm:$0xff] %vm164, 0.0
    %316 = vst.msk [vmem:[%s313 + $0x10] sm:$0x3] %vm167, 0.0
    %s317 = scalar_lea.vmem [#allocation4], 840
    %318 = vst.msk [vmem:[%s317] sm:$0xff] %vm164, 0.0
    %319 = vst.msk [vmem:[%s317 + $0x8] sm:$0xff] %vm164, 0.0
    %320 = vst.msk [vmem:[%s317 + $0x10] sm:$0x3] %vm167, 0.0
    %s321 = scalar_lea.vmem [#allocation4], 456
    %322 = vst.msk [vmem:[%s321] sm:$0x1] %vm174, 0.0
    %323 = vst.msk [vmem:[%s321 + $0x18] sm:$0x1] %vm174, 0.0
    %324 = vst.msk [vmem:[%s321 + $0x30] sm:$0x1] %vm174, 0.0
    %325 = vst.msk [vmem:[%s321 + $0x48] sm:$0x1] %vm174, 0.0
    %326 = vst.msk [vmem:[%s321 + $0x60] sm:$0x1] %vm174, 0.0
    %327 = vst.msk [vmem:[%s321 + $0x78] sm:$0x1] %vm174, 0.0
    %328 = vst.msk [vmem:[%s321 + $0x90] sm:$0x1] %vm174, 0.0
    %329 = vst.msk [vmem:[%s321 + $0xa8] sm:$0x1] %vm174, 0.0
    %330 = vst.msk [vmem:[%s321 + $0xc0] sm:$0x1] %vm174, 0.0
    %331 = vst.msk [vmem:[%s321 + $0xd8] sm:$0x1] %vm174, 0.0
    %332 = vst.msk [vmem:[%s321 + $0xf0] sm:$0x1] %vm174, 0.0
    %333 = vst.msk [vmem:[%s321 + $0x108] sm:$0x1] %vm174, 0.0
    %334 = vst.msk [vmem:[%s321 + $0x120] sm:$0x1] %vm174, 0.0
    %335 = vst.msk [vmem:[%s321 + $0x138] sm:$0x1] %vm174, 0.0
    %336 = vst.msk [vmem:[%s321 + $0x150] sm:$0x1] %vm174, 0.0
    %337 = vst.msk [vmem:[%s321 + $0x168] sm:$0x1] %vm174, 0.0
    %338 = vst.msk [vmem:[%s321 + $0x11] sm:$0x1] %vm174, 0.0
    %339 = vst.msk [vmem:[%s321 + $0x29] sm:$0x1] %vm174, 0.0
    %340 = vst.msk [vmem:[%s321 + $0x41] sm:$0x1] %vm174, 0.0
    %341 = vst.msk [vmem:[%s321 + $0x59] sm:$0x1] %vm174, 0.0
    %342 = vst.msk [vmem:[%s321 + $0x71] sm:$0x1] %vm174, 0.0
    %343 = vst.msk [vmem:[%s321 + $0x89] sm:$0x1] %vm174, 0.0
    %344 = vst.msk [vmem:[%s321 + $0xa1] sm:$0x1] %vm174, 0.0
    %345 = vst.msk [vmem:[%s321 + $0xb9] sm:$0x1] %vm174, 0.0
    %346 = vst.msk [vmem:[%s321 + $0xd1] sm:$0x1] %vm174, 0.0
    %347 = vst.msk [vmem:[%s321 + $0xe9] sm:$0x1] %vm174, 0.0
    %348 = vst.msk [vmem:[%s321 + $0x101] sm:$0x1] %vm174, 0.0
    %349 = vst.msk [vmem:[%s321 + $0x119] sm:$0x1] %vm174, 0.0
    %350 = vst.msk [vmem:[%s321 + $0x131] sm:$0x1] %vm174, 0.0
    %351 = vst.msk [vmem:[%s321 + $0x149] sm:$0x1] %vm174, 0.0
    %352 = vst.msk [vmem:[%s321 + $0x161] sm:$0x1] %vm174, 0.0
    %353 = vst.msk [vmem:[%s321 + $0x179] sm:$0x1] %vm174, 0.0
    %v354 = vld [vmem:[#allocation2] sm:$0xff]
    %v355 = vld [vmem:[#allocation2 + $0x8] sm:$0xff]
    %v356 = vld [vmem:[#allocation2 + $0x18] sm:$0xff]
    %v357 = vld [vmem:[#allocation2 + $0x20] sm:$0xff]
    %v358 = vld [vmem:[#allocation2 + $0x30] sm:$0xff]
    %v359 = vld [vmem:[#allocation2 + $0x38] sm:$0xff]
    %v360 = vld [vmem:[#allocation2 + $0x48] sm:$0xff]
    %v361 = vld [vmem:[#allocation2 + $0x50] sm:$0xff]
    %v362 = vld [vmem:[#allocation2 + $0x60] sm:$0xff]
    %v363 = vld [vmem:[#allocation2 + $0x68] sm:$0xff]
    %v364 = vld [vmem:[#allocation2 + $0x78] sm:$0xff]
    %v365 = vld [vmem:[#allocation2 + $0x80] sm:$0xff]
    %v366 = vld [vmem:[#allocation2 + $0x90] sm:$0xff]
    %v367 = vld [vmem:[#allocation2 + $0x98] sm:$0xff]
    %v368 = vld [vmem:[#allocation2 + $0xa8] sm:$0xff]
    %v369 = vld [vmem:[#allocation2 + $0xb0] sm:$0xff]
    %v370 = vld [vmem:[#allocation2 + $0xc0] sm:$0xff]
    %v371 = vld [vmem:[#allocation2 + $0xc8] sm:$0xff]
    %v372 = vld [vmem:[#allocation2 + $0xd8] sm:$0xff]
    %v373 = vld [vmem:[#allocation2 + $0xe0] sm:$0xff]
    %v374 = vld [vmem:[#allocation2 + $0xf0] sm:$0xff]
    %v375 = vld [vmem:[#allocation2 + $0xf8] sm:$0xff]
    %v376 = vld [vmem:[#allocation2 + $0x108] sm:$0xff]
    %v377 = vld [vmem:[#allocation2 + $0x110] sm:$0xff]
    %v378 = vld [vmem:[#allocation2 + $0x120] sm:$0xff]
    %v379 = vld [vmem:[#allocation2 + $0x128] sm:$0xff]
    %v380 = vld [vmem:[#allocation2 + $0x138] sm:$0xff]
    %v381 = vld [vmem:[#allocation2 + $0x140] sm:$0xff]
    %v382 = vld [vmem:[#allocation2 + $0x150] sm:$0xff]
    %v383 = vld [vmem:[#allocation2 + $0x158] sm:$0xff]
    %v384 = vld [vmem:[#allocation2 + $0x168] sm:$0xff]
    %v385 = vld [vmem:[#allocation2 + $0x170] sm:$0xff]
    %386 = vst.msk [vmem:[#allocation3] sm:$0xff] %vm57, %v354
    %387 = vst.msk [vmem:[#allocation3 + $0x8] sm:$0xff] %vm57, %v355
    %388 = vst.msk [vmem:[#allocation3 + $0x10] sm:$0xff] %vm57, %v356
    %389 = vst.msk [vmem:[#allocation3 + $0x18] sm:$0xff] %vm57, %v357
    %390 = vst.msk [vmem:[#allocation3 + $0x20] sm:$0xff] %vm57, %v358
    %391 = vst.msk [vmem:[#allocation3 + $0x28] sm:$0xff] %vm57, %v359
    %392 = vst.msk [vmem:[#allocation3 + $0x30] sm:$0xff] %vm57, %v360
    %393 = vst.msk [vmem:[#allocation3 + $0x38] sm:$0xff] %vm57, %v361
    %394 = vst.msk [vmem:[#allocation3 + $0x40] sm:$0xff] %vm57, %v362
    %395 = vst.msk [vmem:[#allocation3 + $0x48] sm:$0xff] %vm57, %v363
    %396 = vst.msk [vmem:[#allocation3 + $0x50] sm:$0xff] %vm57, %v364
    %397 = vst.msk [vmem:[#allocation3 + $0x58] sm:$0xff] %vm57, %v365
    %398 = vst.msk [vmem:[#allocation3 + $0x60] sm:$0xff] %vm57, %v366
    %399 = vst.msk [vmem:[#allocation3 + $0x68] sm:$0xff] %vm57, %v367
    %400 = vst.msk [vmem:[#allocation3 + $0x70] sm:$0xff] %vm57, %v368
    %401 = vst.msk [vmem:[#allocation3 + $0x78] sm:$0xff] %vm57, %v369
    %402 = vst.msk [vmem:[#allocation3 + $0x80] sm:$0xff] %vm57, %v370
    %403 = vst.msk [vmem:[#allocation3 + $0x88] sm:$0xff] %vm57, %v371
    %404 = vst.msk [vmem:[#allocation3 + $0x90] sm:$0xff] %vm57, %v372
    %405 = vst.msk [vmem:[#allocation3 + $0x98] sm:$0xff] %vm57, %v373
    %406 = vst.msk [vmem:[#allocation3 + $0xa0] sm:$0xff] %vm57, %v374
    %407 = vst.msk [vmem:[#allocation3 + $0xa8] sm:$0xff] %vm57, %v375
    %408 = vst.msk [vmem:[#allocation3 + $0xb0] sm:$0xff] %vm57, %v376
    %409 = vst.msk [vmem:[#allocation3 + $0xb8] sm:$0xff] %vm57, %v377
    %410 = vst.msk [vmem:[#allocation3 + $0xc0] sm:$0xff] %vm57, %v378
    %411 = vst.msk [vmem:[#allocation3 + $0xc8] sm:$0xff] %vm57, %v379
    %412 = vst.msk [vmem:[#allocation3 + $0xd0] sm:$0xff] %vm57, %v380
    %413 = vst.msk [vmem:[#allocation3 + $0xd8] sm:$0xff] %vm57, %v381
    %414 = vst.msk [vmem:[#allocation3 + $0xe0] sm:$0xff] %vm57, %v382
    %415 = vst.msk [vmem:[#allocation3 + $0xe8] sm:$0xff] %vm57, %v383
    %416 = vst.msk [vmem:[#allocation3 + $0xf0] sm:$0xff] %vm57, %v384
    %417 = vst.msk [vmem:[#allocation3 + $0xf8] sm:$0xff] %vm57, %v385
    %v418 = vld [vmem:[#allocation2 + $0x1] sm:$0xff]
    %v419 = vld [vmem:[#allocation2 + $0x9] sm:$0xff]
    %v420 = vld [vmem:[#allocation2 + $0x19] sm:$0xff]
    %v421 = vld [vmem:[#allocation2 + $0x21] sm:$0xff]
    %v422 = vld [vmem:[#allocation2 + $0x31] sm:$0xff]
    %v423 = vld [vmem:[#allocation2 + $0x39] sm:$0xff]
    %v424 = vld [vmem:[#allocation2 + $0x49] sm:$0xff]
    %v425 = vld [vmem:[#allocation2 + $0x51] sm:$0xff]
    %v426 = vld [vmem:[#allocation2 + $0x61] sm:$0xff]
    %v427 = vld [vmem:[#allocation2 + $0x69] sm:$0xff]
    %v428 = vld [vmem:[#allocation2 + $0x79] sm:$0xff]
    %v429 = vld [vmem:[#allocation2 + $0x81] sm:$0xff]
    %v430 = vld [vmem:[#allocation2 + $0x91] sm:$0xff]
    %v431 = vld [vmem:[#allocation2 + $0x99] sm:$0xff]
    %v432 = vld [vmem:[#allocation2 + $0xa9] sm:$0xff]
    %v433 = vld [vmem:[#allocation2 + $0xb1] sm:$0xff]
    %v434 = vld [vmem:[#allocation2 + $0xc1] sm:$0xff]
    %v435 = vld [vmem:[#allocation2 + $0xc9] sm:$0xff]
    %v436 = vld [vmem:[#allocation2 + $0xd9] sm:$0xff]
    %v437 = vld [vmem:[#allocation2 + $0xe1] sm:$0xff]
    %v438 = vld [vmem:[#allocation2 + $0xf1] sm:$0xff]
    %v439 = vld [vmem:[#allocation2 + $0xf9] sm:$0xff]
    %v440 = vld [vmem:[#allocation2 + $0x109] sm:$0xff]
    %v441 = vld [vmem:[#allocation2 + $0x111] sm:$0xff]
    %v442 = vld [vmem:[#allocation2 + $0x121] sm:$0xff]
    %v443 = vld [vmem:[#allocation2 + $0x129] sm:$0xff]
    %v444 = vld [vmem:[#allocation2 + $0x139] sm:$0xff]
    %v445 = vld [vmem:[#allocation2 + $0x141] sm:$0xff]
    %v446 = vld [vmem:[#allocation2 + $0x151] sm:$0xff]
    %v447 = vld [vmem:[#allocation2 + $0x159] sm:$0xff]
    %v448 = vld [vmem:[#allocation2 + $0x169] sm:$0xff]
    %v449 = vld [vmem:[#allocation2 + $0x171] sm:$0xff]
    %482 = vrot.lane.b32.xlu0 %v418, 4
    %v483 = vpop.permute.xlu0 %482
    %484 = vrot.lane.b32.xlu0 %v419, 4
    %v485 = vpop.permute.xlu0 %484
    %486 = vrot.lane.b32.xlu0 %v420, 4
    %v487 = vpop.permute.xlu0 %486
    %488 = vrot.lane.b32.xlu0 %v421, 4
    %v489 = vpop.permute.xlu0 %488
    %490 = vrot.lane.b32.xlu0 %v422, 4
    %v491 = vpop.permute.xlu0 %490
    %492 = vrot.lane.b32.xlu0 %v423, 4
    %v493 = vpop.permute.xlu0 %492
    %494 = vrot.lane.b32.xlu0 %v424, 4
    %v495 = vpop.permute.xlu0 %494
    %496 = vrot.lane.b32.xlu0 %v425, 4
    %v497 = vpop.permute.xlu0 %496
    %498 = vrot.lane.b32.xlu0 %v426, 4
    %v499 = vpop.permute.xlu0 %498
    %500 = vrot.lane.b32.xlu0 %v427, 4
    %v501 = vpop.permute.xlu0 %500
    %502 = vrot.lane.b32.xlu0 %v428, 4
    %v503 = vpop.permute.xlu0 %502
    %504 = vrot.lane.b32.xlu0 %v429, 4
    %v505 = vpop.permute.xlu0 %504
    %506 = vrot.lane.b32.xlu0 %v430, 4
    %v507 = vpop.permute.xlu0 %506
    %508 = vrot.lane.b32.xlu0 %v431, 4
    %v509 = vpop.permute.xlu0 %508
    %510 = vrot.lane.b32.xlu0 %v432, 4
    %v511 = vpop.permute.xlu0 %510
    %512 = vrot.lane.b32.xlu0 %v433, 4
    %v513 = vpop.permute.xlu0 %512
    %514 = vrot.lane.b32.xlu0 %v434, 4
    %v515 = vpop.permute.xlu0 %514
    %516 = vrot.lane.b32.xlu0 %v435, 4
    %v517 = vpop.permute.xlu0 %516
    %518 = vrot.lane.b32.xlu0 %v436, 4
    %v519 = vpop.permute.xlu0 %518
    %520 = vrot.lane.b32.xlu0 %v437, 4
    %v521 = vpop.permute.xlu0 %520
    %522 = vrot.lane.b32.xlu0 %v438, 4
    %v523 = vpop.permute.xlu0 %522
    %524 = vrot.lane.b32.xlu0 %v439, 4
    %v525 = vpop.permute.xlu0 %524
    %526 = vrot.lane.b32.xlu0 %v440, 4
    %v527 = vpop.permute.xlu0 %526
    %528 = vrot.lane.b32.xlu0 %v441, 4
    %v529 = vpop.permute.xlu0 %528
    %530 = vrot.lane.b32.xlu0 %v442, 4
    %v531 = vpop.permute.xlu0 %530
    %532 = vrot.lane.b32.xlu0 %v443, 4
    %v533 = vpop.permute.xlu0 %532
    %534 = vrot.lane.b32.xlu0 %v444, 4
    %v535 = vpop.permute.xlu0 %534
    %536 = vrot.lane.b32.xlu0 %v445, 4
    %v537 = vpop.permute.xlu0 %536
    %538 = vrot.lane.b32.xlu0 %v446, 4
    %v539 = vpop.permute.xlu0 %538
    %540 = vrot.lane.b32.xlu0 %v447, 4
    %v541 = vpop.permute.xlu0 %540
    %542 = vrot.lane.b32.xlu0 %v448, 4
    %v543 = vpop.permute.xlu0 %542
    %544 = vrot.lane.b32.xlu0 %v449, 4
    %v545 = vpop.permute.xlu0 %544
    %vm578 = vcmask 64544
    %579 = vst.msk [vmem:[#allocation3] sm:$0xff] %vm578, %v483
    %580 = vst.msk [vmem:[#allocation3 + $0x8] sm:$0xff] %vm578, %v485
    %581 = vst.msk [vmem:[#allocation3 + $0x10] sm:$0xff] %vm578, %v487
    %582 = vst.msk [vmem:[#allocation3 + $0x18] sm:$0xff] %vm578, %v489
    %583 = vst.msk [vmem:[#allocation3 + $0x20] sm:$0xff] %vm578, %v491
    %584 = vst.msk [vmem:[#allocation3 + $0x28] sm:$0xff] %vm578, %v493
    %585 = vst.msk [vmem:[#allocation3 + $0x30] sm:$0xff] %vm578, %v495
    %586 = vst.msk [vmem:[#allocation3 + $0x38] sm:$0xff] %vm578, %v497
    %587 = vst.msk [vmem:[#allocation3 + $0x40] sm:$0xff] %vm578, %v499
    %588 = vst.msk [vmem:[#allocation3 + $0x48] sm:$0xff] %vm578, %v501
    %589 = vst.msk [vmem:[#allocation3 + $0x50] sm:$0xff] %vm578, %v503
    %590 = vst.msk [vmem:[#allocation3 + $0x58] sm:$0xff] %vm578, %v505
    %591 = vst.msk [vmem:[#allocation3 + $0x60] sm:$0xff] %vm578, %v507
    %592 = vst.msk [vmem:[#allocation3 + $0x68] sm:$0xff] %vm578, %v509
    %593 = vst.msk [vmem:[#allocation3 + $0x70] sm:$0xff] %vm578, %v511
    %594 = vst.msk [vmem:[#allocation3 + $0x78] sm:$0xff] %vm578, %v513
    %595 = vst.msk [vmem:[#allocation3 + $0x80] sm:$0xff] %vm578, %v515
    %596 = vst.msk [vmem:[#allocation3 + $0x88] sm:$0xff] %vm578, %v517
    %597 = vst.msk [vmem:[#allocation3 + $0x90] sm:$0xff] %vm578, %v519
    %598 = vst.msk [vmem:[#allocation3 + $0x98] sm:$0xff] %vm578, %v521
    %599 = vst.msk [vmem:[#allocation3 + $0xa0] sm:$0xff] %vm578, %v523
    %600 = vst.msk [vmem:[#allocation3 + $0xa8] sm:$0xff] %vm578, %v525
    %601 = vst.msk [vmem:[#allocation3 + $0xb0] sm:$0xff] %vm578, %v527
    %602 = vst.msk [vmem:[#allocation3 + $0xb8] sm:$0xff] %vm578, %v529
    %603 = vst.msk [vmem:[#allocation3 + $0xc0] sm:$0xff] %vm578, %v531
    %604 = vst.msk [vmem:[#allocation3 + $0xc8] sm:$0xff] %vm578, %v533
    %605 = vst.msk [vmem:[#allocation3 + $0xd0] sm:$0xff] %vm578, %v535
    %606 = vst.msk [vmem:[#allocation3 + $0xd8] sm:$0xff] %vm578, %v537
    %607 = vst.msk [vmem:[#allocation3 + $0xe0] sm:$0xff] %vm578, %v539
    %608 = vst.msk [vmem:[#allocation3 + $0xe8] sm:$0xff] %vm578, %v541
    %609 = vst.msk [vmem:[#allocation3 + $0xf0] sm:$0xff] %vm578, %v543
    %610 = vst.msk [vmem:[#allocation3 + $0xf8] sm:$0xff] %vm578, %v545
    %v611 = vld [vmem:[#allocation2 + $0x2] sm:$0xff]
    %v612 = vld [vmem:[#allocation2 + $0xa] sm:$0xff]
    %v613 = vld [vmem:[#allocation2 + $0x1a] sm:$0xff]
    %v614 = vld [vmem:[#allocation2 + $0x22] sm:$0xff]
    %v615 = vld [vmem:[#allocation2 + $0x32] sm:$0xff]
    %v616 = vld [vmem:[#allocation2 + $0x3a] sm:$0xff]
    %v617 = vld [vmem:[#allocation2 + $0x4a] sm:$0xff]
    %v618 = vld [vmem:[#allocation2 + $0x52] sm:$0xff]
    %v619 = vld [vmem:[#allocation2 + $0x62] sm:$0xff]
    %v620 = vld [vmem:[#allocation2 + $0x6a] sm:$0xff]
    %v621 = vld [vmem:[#allocation2 + $0x7a] sm:$0xff]
    %v622 = vld [vmem:[#allocation2 + $0x82] sm:$0xff]
    %v623 = vld [vmem:[#allocation2 + $0x92] sm:$0xff]
    %v624 = vld [vmem:[#allocation2 + $0x9a] sm:$0xff]
    %v625 = vld [vmem:[#allocation2 + $0xaa] sm:$0xff]
    %v626 = vld [vmem:[#allocation2 + $0xb2] sm:$0xff]
    %v627 = vld [vmem:[#allocation2 + $0xc2] sm:$0xff]
    %v628 = vld [vmem:[#allocation2 + $0xca] sm:$0xff]
    %v629 = vld [vmem:[#allocation2 + $0xda] sm:$0xff]
    %v630 = vld [vmem:[#allocation2 + $0xe2] sm:$0xff]
    %v631 = vld [vmem:[#allocation2 + $0xf2] sm:$0xff]
    %v632 = vld [vmem:[#allocation2 + $0xfa] sm:$0xff]
    %v633 = vld [vmem:[#allocation2 + $0x10a] sm:$0xff]
    %v634 = vld [vmem:[#allocation2 + $0x112] sm:$0xff]
    %v635 = vld [vmem:[#allocation2 + $0x122] sm:$0xff]
    %v636 = vld [vmem:[#allocation2 + $0x12a] sm:$0xff]
    %v637 = vld [vmem:[#allocation2 + $0x13a] sm:$0xff]
    %v638 = vld [vmem:[#allocation2 + $0x142] sm:$0xff]
    %v639 = vld [vmem:[#allocation2 + $0x152] sm:$0xff]
    %v640 = vld [vmem:[#allocation2 + $0x15a] sm:$0xff]
    %v641 = vld [vmem:[#allocation2 + $0x16a] sm:$0xff]
    %v642 = vld [vmem:[#allocation2 + $0x172] sm:$0xff]
    %675 = vrot.lane.b32.xlu0 %v611, 8
    %v676 = vpop.permute.xlu0 %675
    %677 = vrot.lane.b32.xlu0 %v612, 8
    %v678 = vpop.permute.xlu0 %677
    %679 = vrot.lane.b32.xlu0 %v613, 8
    %v680 = vpop.permute.xlu0 %679
    %681 = vrot.lane.b32.xlu0 %v614, 8
    %v682 = vpop.permute.xlu0 %681
    %683 = vrot.lane.b32.xlu0 %v615, 8
    %v684 = vpop.permute.xlu0 %683
    %685 = vrot.lane.b32.xlu0 %v616, 8
    %v686 = vpop.permute.xlu0 %685
    %687 = vrot.lane.b32.xlu0 %v617, 8
    %v688 = vpop.permute.xlu0 %687
    %689 = vrot.lane.b32.xlu0 %v618, 8
    %v690 = vpop.permute.xlu0 %689
    %691 = vrot.lane.b32.xlu0 %v619, 8
    %v692 = vpop.permute.xlu0 %691
    %693 = vrot.lane.b32.xlu0 %v620, 8
    %v694 = vpop.permute.xlu0 %693
    %695 = vrot.lane.b32.xlu0 %v621, 8
    %v696 = vpop.permute.xlu0 %695
    %697 = vrot.lane.b32.xlu0 %v622, 8
    %v698 = vpop.permute.xlu0 %697
    %699 = vrot.lane.b32.xlu0 %v623, 8
    %v700 = vpop.permute.xlu0 %699
    %701 = vrot.lane.b32.xlu0 %v624, 8
    %v702 = vpop.permute.xlu0 %701
    %703 = vrot.lane.b32.xlu0 %v625, 8
    %v704 = vpop.permute.xlu0 %703
    %705 = vrot.lane.b32.xlu0 %v626, 8
    %v706 = vpop.permute.xlu0 %705
    %707 = vrot.lane.b32.xlu0 %v627, 8
    %v708 = vpop.permute.xlu0 %707
    %709 = vrot.lane.b32.xlu0 %v628, 8
    %v710 = vpop.permute.xlu0 %709
    %711 = vrot.lane.b32.xlu0 %v629, 8
    %v712 = vpop.permute.xlu0 %711
    %713 = vrot.lane.b32.xlu0 %v630, 8
    %v714 = vpop.permute.xlu0 %713
    %715 = vrot.lane.b32.xlu0 %v631, 8
    %v716 = vpop.permute.xlu0 %715
    %717 = vrot.lane.b32.xlu0 %v632, 8
    %v718 = vpop.permute.xlu0 %717
    %719 = vrot.lane.b32.xlu0 %v633, 8
    %v720 = vpop.permute.xlu0 %719
    %721 = vrot.lane.b32.xlu0 %v634, 8
    %v722 = vpop.permute.xlu0 %721
    %723 = vrot.lane.b32.xlu0 %v635, 8
    %v724 = vpop.permute.xlu0 %723
    %725 = vrot.lane.b32.xlu0 %v636, 8
    %v726 = vpop.permute.xlu0 %725
    %727 = vrot.lane.b32.xlu0 %v637, 8
    %v728 = vpop.permute.xlu0 %727
    %729 = vrot.lane.b32.xlu0 %v638, 8
    %v730 = vpop.permute.xlu0 %729
    %731 = vrot.lane.b32.xlu0 %v639, 8
    %v732 = vpop.permute.xlu0 %731
    %733 = vrot.lane.b32.xlu0 %v640, 8
    %v734 = vpop.permute.xlu0 %733
    %735 = vrot.lane.b32.xlu0 %v641, 8
    %v736 = vpop.permute.xlu0 %735
    %737 = vrot.lane.b32.xlu0 %v642, 8
    %v738 = vpop.permute.xlu0 %737
    %vm771 = vcmask 97344
    %772 = vst.msk [vmem:[#allocation3] sm:$0xff] %vm771, %v676
    %773 = vst.msk [vmem:[#allocation3 + $0x8] sm:$0xff] %vm771, %v678
    %774 = vst.msk [vmem:[#allocation3 + $0x10] sm:$0xff] %vm771, %v680
    %775 = vst.msk [vmem:[#allocation3 + $0x18] sm:$0xff] %vm771, %v682
    %776 = vst.msk [vmem:[#allocation3 + $0x20] sm:$0xff] %vm771, %v684
    %777 = vst.msk [vmem:[#allocation3 + $0x28] sm:$0xff] %vm771, %v686
    %778 = vst.msk [vmem:[#allocation3 + $0x30] sm:$0xff] %vm771, %v688
    %779 = vst.msk [vmem:[#allocation3 + $0x38] sm:$0xff] %vm771, %v690
    %780 = vst.msk [vmem:[#allocation3 + $0x40] sm:$0xff] %vm771, %v692
    %781 = vst.msk [vmem:[#allocation3 + $0x48] sm:$0xff] %vm771, %v694
    %782 = vst.msk [vmem:[#allocation3 + $0x50] sm:$0xff] %vm771, %v696
    %783 = vst.msk [vmem:[#allocation3 + $0x58] sm:$0xff] %vm771, %v698
    %784 = vst.msk [vmem:[#allocation3 + $0x60] sm:$0xff] %vm771, %v700
    %785 = vst.msk [vmem:[#allocation3 + $0x68] sm:$0xff] %vm771, %v702
    %786 = vst.msk [vmem:[#allocation3 + $0x70] sm:$0xff] %vm771, %v704
    %787 = vst.msk [vmem:[#allocation3 + $0x78] sm:$0xff] %vm771, %v706
    %788 = vst.msk [vmem:[#allocation3 + $0x80] sm:$0xff] %vm771, %v708
    %789 = vst.msk [vmem:[#allocation3 + $0x88] sm:$0xff] %vm771, %v710
    %790 = vst.msk [vmem:[#allocation3 + $0x90] sm:$0xff] %vm771, %v712
    %791 = vst.msk [vmem:[#allocation3 + $0x98] sm:$0xff] %vm771, %v714
    %792 = vst.msk [vmem:[#allocation3 + $0xa0] sm:$0xff] %vm771, %v716
    %793 = vst.msk [vmem:[#allocation3 + $0xa8] sm:$0xff] %vm771, %v718
    %794 = vst.msk [vmem:[#allocation3 + $0xb0] sm:$0xff] %vm771, %v720
    %795 = vst.msk [vmem:[#allocation3 + $0xb8] sm:$0xff] %vm771, %v722
    %796 = vst.msk [vmem:[#allocation3 + $0xc0] sm:$0xff] %vm771, %v724
    %797 = vst.msk [vmem:[#allocation3 + $0xc8] sm:$0xff] %vm771, %v726
    %798 = vst.msk [vmem:[#allocation3 + $0xd0] sm:$0xff] %vm771, %v728
    %799 = vst.msk [vmem:[#allocation3 + $0xd8] sm:$0xff] %vm771, %v730
    %800 = vst.msk [vmem:[#allocation3 + $0xe0] sm:$0xff] %vm771, %v732
    %801 = vst.msk [vmem:[#allocation3 + $0xe8] sm:$0xff] %vm771, %v734
    %802 = vst.msk [vmem:[#allocation3 + $0xf0] sm:$0xff] %vm771, %v736
    %803 = vst.msk [vmem:[#allocation3 + $0xf8] sm:$0xff] %vm771, %v738
    %v804 = vld [vmem:[%s66] sm:$0xff]
    %v805 = vld [vmem:[%s66 + $0x8] sm:$0xff]
    %v806 = vld [vmem:[%s66 + $0x18] sm:$0xff]
    %v807 = vld [vmem:[%s66 + $0x20] sm:$0xff]
    %v808 = vld [vmem:[%s66 + $0x30] sm:$0xff]
    %v809 = vld [vmem:[%s66 + $0x38] sm:$0xff]
    %v810 = vld [vmem:[%s66 + $0x48] sm:$0xff]
    %v811 = vld [vmem:[%s66 + $0x50] sm:$0xff]
    %v812 = vld [vmem:[%s66 + $0x60] sm:$0xff]
    %v813 = vld [vmem:[%s66 + $0x68] sm:$0xff]
    %v814 = vld [vmem:[%s66 + $0x78] sm:$0xff]
    %v815 = vld [vmem:[%s66 + $0x80] sm:$0xff]
    %v816 = vld [vmem:[%s66 + $0x90] sm:$0xff]
    %v817 = vld [vmem:[%s66 + $0x98] sm:$0xff]
    %v818 = vld [vmem:[%s66 + $0xa8] sm:$0xff]
    %v819 = vld [vmem:[%s66 + $0xb0] sm:$0xff]
    %v820 = vld [vmem:[%s66 + $0xc0] sm:$0xff]
    %v821 = vld [vmem:[%s66 + $0xc8] sm:$0xff]
    %v822 = vld [vmem:[%s66 + $0xd8] sm:$0xff]
    %v823 = vld [vmem:[%s66 + $0xe0] sm:$0xff]
    %v824 = vld [vmem:[%s66 + $0xf0] sm:$0xff]
    %v825 = vld [vmem:[%s66 + $0xf8] sm:$0xff]
    %v826 = vld [vmem:[%s66 + $0x108] sm:$0xff]
    %v827 = vld [vmem:[%s66 + $0x110] sm:$0xff]
    %v828 = vld [vmem:[%s66 + $0x120] sm:$0xff]
    %v829 = vld [vmem:[%s66 + $0x128] sm:$0xff]
    %v830 = vld [vmem:[%s66 + $0x138] sm:$0xff]
    %v831 = vld [vmem:[%s66 + $0x140] sm:$0xff]
    %v832 = vld [vmem:[%s66 + $0x150] sm:$0xff]
    %v833 = vld [vmem:[%s66 + $0x158] sm:$0xff]
    %v834 = vld [vmem:[%s66 + $0x168] sm:$0xff]
    %v835 = vld [vmem:[%s66 + $0x170] sm:$0xff]
    %868 = vrot.lane.b32.xlu0 %v804, 12
    %v869 = vpop.permute.xlu0 %868
    %870 = vrot.lane.b32.xlu0 %v805, 12
    %v871 = vpop.permute.xlu0 %870
    %872 = vrot.lane.b32.xlu0 %v806, 12
    %v873 = vpop.permute.xlu0 %872
    %874 = vrot.lane.b32.xlu0 %v807, 12
    %v875 = vpop.permute.xlu0 %874
    %876 = vrot.lane.b32.xlu0 %v808, 12
    %v877 = vpop.permute.xlu0 %876
    %878 = vrot.lane.b32.xlu0 %v809, 12
    %v879 = vpop.permute.xlu0 %878
    %880 = vrot.lane.b32.xlu0 %v810, 12
    %v881 = vpop.permute.xlu0 %880
    %882 = vrot.lane.b32.xlu0 %v811, 12
    %v883 = vpop.permute.xlu0 %882
    %884 = vrot.lane.b32.xlu0 %v812, 12
    %v885 = vpop.permute.xlu0 %884
    %886 = vrot.lane.b32.xlu0 %v813, 12
    %v887 = vpop.permute.xlu0 %886
    %888 = vrot.lane.b32.xlu0 %v814, 12
    %v889 = vpop.permute.xlu0 %888
    %890 = vrot.lane.b32.xlu0 %v815, 12
    %v891 = vpop.permute.xlu0 %890
    %892 = vrot.lane.b32.xlu0 %v816, 12
    %v893 = vpop.permute.xlu0 %892
    %894 = vrot.lane.b32.xlu0 %v817, 12
    %v895 = vpop.permute.xlu0 %894
    %896 = vrot.lane.b32.xlu0 %v818, 12
    %v897 = vpop.permute.xlu0 %896
    %898 = vrot.lane.b32.xlu0 %v819, 12
    %v899 = vpop.permute.xlu0 %898
    %900 = vrot.lane.b32.xlu0 %v820, 12
    %v901 = vpop.permute.xlu0 %900
    %902 = vrot.lane.b32.xlu0 %v821, 12
    %v903 = vpop.permute.xlu0 %902
    %904 = vrot.lane.b32.xlu0 %v822, 12
    %v905 = vpop.permute.xlu0 %904
    %906 = vrot.lane.b32.xlu0 %v823, 12
    %v907 = vpop.permute.xlu0 %906
    %908 = vrot.lane.b32.xlu0 %v824, 12
    %v909 = vpop.permute.xlu0 %908
    %910 = vrot.lane.b32.xlu0 %v825, 12
    %v911 = vpop.permute.xlu0 %910
    %912 = vrot.lane.b32.xlu0 %v826, 12
    %v913 = vpop.permute.xlu0 %912
    %914 = vrot.lane.b32.xlu0 %v827, 12
    %v915 = vpop.permute.xlu0 %914
    %916 = vrot.lane.b32.xlu0 %v828, 12
    %v917 = vpop.permute.xlu0 %916
    %918 = vrot.lane.b32.xlu0 %v829, 12
    %v919 = vpop.permute.xlu0 %918
    %920 = vrot.lane.b32.xlu0 %v830, 12
    %v921 = vpop.permute.xlu0 %920
    %922 = vrot.lane.b32.xlu0 %v831, 12
    %v923 = vpop.permute.xlu0 %922
    %924 = vrot.lane.b32.xlu0 %v832, 12
    %v925 = vpop.permute.xlu0 %924
    %926 = vrot.lane.b32.xlu0 %v833, 12
    %v927 = vpop.permute.xlu0 %926
    %928 = vrot.lane.b32.xlu0 %v834, 12
    %v929 = vpop.permute.xlu0 %928
    %930 = vrot.lane.b32.xlu0 %v835, 12
    %v931 = vpop.permute.xlu0 %930
    %vm964 = vcmask 130144
    %965 = vst.msk [vmem:[#allocation3] sm:$0xff] %vm964, %v869
    %966 = vst.msk [vmem:[#allocation3 + $0x8] sm:$0xff] %vm964, %v871
    %967 = vst.msk [vmem:[#allocation3 + $0x10] sm:$0xff] %vm964, %v873
    %968 = vst.msk [vmem:[#allocation3 + $0x18] sm:$0xff] %vm964, %v875
    %969 = vst.msk [vmem:[#allocation3 + $0x20] sm:$0xff] %vm964, %v877
    %970 = vst.msk [vmem:[#allocation3 + $0x28] sm:$0xff] %vm964, %v879
    %971 = vst.msk [vmem:[#allocation3 + $0x30] sm:$0xff] %vm964, %v881
    %972 = vst.msk [vmem:[#allocation3 + $0x38] sm:$0xff] %vm964, %v883
    %973 = vst.msk [vmem:[#allocation3 + $0x40] sm:$0xff] %vm964, %v885
    %974 = vst.msk [vmem:[#allocation3 + $0x48] sm:$0xff] %vm964, %v887
    %975 = vst.msk [vmem:[#allocation3 + $0x50] sm:$0xff] %vm964, %v889
    %976 = vst.msk [vmem:[#allocation3 + $0x58] sm:$0xff] %vm964, %v891
    %977 = vst.msk [vmem:[#allocation3 + $0x60] sm:$0xff] %vm964, %v893
    %978 = vst.msk [vmem:[#allocation3 + $0x68] sm:$0xff] %vm964, %v895
    %979 = vst.msk [vmem:[#allocation3 + $0x70] sm:$0xff] %vm964, %v897
    %980 = vst.msk [vmem:[#allocation3 + $0x78] sm:$0xff] %vm964, %v899
    %981 = vst.msk [vmem:[#allocation3 + $0x80] sm:$0xff] %vm964, %v901
    %982 = vst.msk [vmem:[#allocation3 + $0x88] sm:$0xff] %vm964, %v903
    %983 = vst.msk [vmem:[#allocation3 + $0x90] sm:$0xff] %vm964, %v905
    %984 = vst.msk [vmem:[#allocation3 + $0x98] sm:$0xff] %vm964, %v907
    %985 = vst.msk [vmem:[#allocation3 + $0xa0] sm:$0xff] %vm964, %v909
    %986 = vst.msk [vmem:[#allocation3 + $0xa8] sm:$0xff] %vm964, %v911
    %987 = vst.msk [vmem:[#allocation3 + $0xb0] sm:$0xff] %vm964, %v913
    %988 = vst.msk [vmem:[#allocation3 + $0xb8] sm:$0xff] %vm964, %v915
    %989 = vst.msk [vmem:[#allocation3 + $0xc0] sm:$0xff] %vm964, %v917
    %990 = vst.msk [vmem:[#allocation3 + $0xc8] sm:$0xff] %vm964, %v919
    %991 = vst.msk [vmem:[#allocation3 + $0xd0] sm:$0xff] %vm964, %v921
    %992 = vst.msk [vmem:[#allocation3 + $0xd8] sm:$0xff] %vm964, %v923
    %993 = vst.msk [vmem:[#allocation3 + $0xe0] sm:$0xff] %vm964, %v925
    %994 = vst.msk [vmem:[#allocation3 + $0xe8] sm:$0xff] %vm964, %v927
    %995 = vst.msk [vmem:[#allocation3 + $0xf0] sm:$0xff] %vm964, %v929
    %996 = vst.msk [vmem:[#allocation3 + $0xf8] sm:$0xff] %vm964, %v931
    %v997 = vld [vmem:[%s66 + $0x1] sm:$0xff]
    %v998 = vld [vmem:[%s66 + $0x9] sm:$0xff]
    %v999 = vld [vmem:[%s66 + $0x19] sm:$0xff]
    %v1000 = vld [vmem:[%s66 + $0x21] sm:$0xff]
    %v1001 = vld [vmem:[%s66 + $0x31] sm:$0xff]
    %v1002 = vld [vmem:[%s66 + $0x39] sm:$0xff]
    %v1003 = vld [vmem:[%s66 + $0x49] sm:$0xff]
    %v1004 = vld [vmem:[%s66 + $0x51] sm:$0xff]
    %v1005 = vld [vmem:[%s66 + $0x61] sm:$0xff]
    %v1006 = vld [vmem:[%s66 + $0x69] sm:$0xff]
    %v1007 = vld [vmem:[%s66 + $0x79] sm:$0xff]
    %v1008 = vld [vmem:[%s66 + $0x81] sm:$0xff]
    %v1009 = vld [vmem:[%s66 + $0x91] sm:$0xff]
    %v1010 = vld [vmem:[%s66 + $0x99] sm:$0xff]
    %v1011 = vld [vmem:[%s66 + $0xa9] sm:$0xff]
    %v1012 = vld [vmem:[%s66 + $0xb1] sm:$0xff]
    %v1013 = vld [vmem:[%s66 + $0xc1] sm:$0xff]
    %v1014 = vld [vmem:[%s66 + $0xc9] sm:$0xff]
    %v1015 = vld [vmem:[%s66 + $0xd9] sm:$0xff]
    %v1016 = vld [vmem:[%s66 + $0xe1] sm:$0xff]
    %v1017 = vld [vmem:[%s66 + $0xf1] sm:$0xff]
    %v1018 = vld [vmem:[%s66 + $0xf9] sm:$0xff]
    %v1019 = vld [vmem:[%s66 + $0x109] sm:$0xff]
    %v1020 = vld [vmem:[%s66 + $0x111] sm:$0xff]
    %v1021 = vld [vmem:[%s66 + $0x121] sm:$0xff]
    %v1022 = vld [vmem:[%s66 + $0x129] sm:$0xff]
    %v1023 = vld [vmem:[%s66 + $0x139] sm:$0xff]
    %v1024 = vld [vmem:[%s66 + $0x141] sm:$0xff]
    %v1025 = vld [vmem:[%s66 + $0x151] sm:$0xff]
    %v1026 = vld [vmem:[%s66 + $0x159] sm:$0xff]
    %v1027 = vld [vmem:[%s66 + $0x169] sm:$0xff]
    %v1028 = vld [vmem:[%s66 + $0x171] sm:$0xff]
    %1061 = vrot.lane.b32.xlu0 %v997, 16
    %v1062 = vpop.permute.xlu0 %1061
    %1063 = vrot.lane.b32.xlu0 %v998, 16
    %v1064 = vpop.permute.xlu0 %1063
    %1065 = vrot.lane.b32.xlu0 %v999, 16
    %v1066 = vpop.permute.xlu0 %1065
    %1067 = vrot.lane.b32.xlu0 %v1000, 16
    %v1068 = vpop.permute.xlu0 %1067
    %1069 = vrot.lane.b32.xlu0 %v1001, 16
    %v1070 = vpop.permute.xlu0 %1069
    %1071 = vrot.lane.b32.xlu0 %v1002, 16
    %v1072 = vpop.permute.xlu0 %1071
    %1073 = vrot.lane.b32.xlu0 %v1003, 16
    %v1074 = vpop.permute.xlu0 %1073
    %1075 = vrot.lane.b32.xlu0 %v1004, 16
    %v1076 = vpop.permute.xlu0 %1075
    %1077 = vrot.lane.b32.xlu0 %v1005, 16
    %v1078 = vpop.permute.xlu0 %1077
    %1079 = vrot.lane.b32.xlu0 %v1006, 16
    %v1080 = vpop.permute.xlu0 %1079
    %1081 = vrot.lane.b32.xlu0 %v1007, 16
    %v1082 = vpop.permute.xlu0 %1081
    %1083 = vrot.lane.b32.xlu0 %v1008, 16
    %v1084 = vpop.permute.xlu0 %1083
    %1085 = vrot.lane.b32.xlu0 %v1009, 16
    %v1086 = vpop.permute.xlu0 %1085
    %1087 = vrot.lane.b32.xlu0 %v1010, 16
    %v1088 = vpop.permute.xlu0 %1087
    %1089 = vrot.lane.b32.xlu0 %v1011, 16
    %v1090 = vpop.permute.xlu0 %1089
    %1091 = vrot.lane.b32.xlu0 %v1012, 16
    %v1092 = vpop.permute.xlu0 %1091
    %1093 = vrot.lane.b32.xlu0 %v1013, 16
    %v1094 = vpop.permute.xlu0 %1093
    %1095 = vrot.lane.b32.xlu0 %v1014, 16
    %v1096 = vpop.permute.xlu0 %1095
    %1097 = vrot.lane.b32.xlu0 %v1015, 16
    %v1098 = vpop.permute.xlu0 %1097
    %1099 = vrot.lane.b32.xlu0 %v1016, 16
    %v1100 = vpop.permute.xlu0 %1099
    %1101 = vrot.lane.b32.xlu0 %v1017, 16
    %v1102 = vpop.permute.xlu0 %1101
    %1103 = vrot.lane.b32.xlu0 %v1018, 16
    %v1104 = vpop.permute.xlu0 %1103
    %1105 = vrot.lane.b32.xlu0 %v1019, 16
    %v1106 = vpop.permute.xlu0 %1105
    %1107 = vrot.lane.b32.xlu0 %v1020, 16
    %v1108 = vpop.permute.xlu0 %1107
    %1109 = vrot.lane.b32.xlu0 %v1021, 16
    %v1110 = vpop.permute.xlu0 %1109
    %1111 = vrot.lane.b32.xlu0 %v1022, 16
    %v1112 = vpop.permute.xlu0 %1111
    %1113 = vrot.lane.b32.xlu0 %v1023, 16
    %v1114 = vpop.permute.xlu0 %1113
    %1115 = vrot.lane.b32.xlu0 %v1024, 16
    %v1116 = vpop.permute.xlu0 %1115
    %1117 = vrot.lane.b32.xlu0 %v1025, 16
    %v1118 = vpop.permute.xlu0 %1117
    %1119 = vrot.lane.b32.xlu0 %v1026, 16
    %v1120 = vpop.permute.xlu0 %1119
    %1121 = vrot.lane.b32.xlu0 %v1027, 16
    %v1122 = vpop.permute.xlu0 %1121
    %1123 = vrot.lane.b32.xlu0 %v1028, 16
    %v1124 = vpop.permute.xlu0 %1123
    %vm1157 = vcmask 162944
    %1158 = vst.msk [vmem:[#allocation3] sm:$0xff] %vm1157, %v1062
    %1159 = vst.msk [vmem:[#allocation3 + $0x8] sm:$0xff] %vm1157, %v1064
    %1160 = vst.msk [vmem:[#allocation3 + $0x10] sm:$0xff] %vm1157, %v1066
    %1161 = vst.msk [vmem:[#allocation3 + $0x18] sm:$0xff] %vm1157, %v1068
    %1162 = vst.msk [vmem:[#allocation3 + $0x20] sm:$0xff] %vm1157, %v1070
    %1163 = vst.msk [vmem:[#allocation3 + $0x28] sm:$0xff] %vm1157, %v1072
    %1164 = vst.msk [vmem:[#allocation3 + $0x30] sm:$0xff] %vm1157, %v1074
    %1165 = vst.msk [vmem:[#allocation3 + $0x38] sm:$0xff] %vm1157, %v1076
    %1166 = vst.msk [vmem:[#allocation3 + $0x40] sm:$0xff] %vm1157, %v1078
    %1167 = vst.msk [vmem:[#allocation3 + $0x48] sm:$0xff] %vm1157, %v1080
    %1168 = vst.msk [vmem:[#allocation3 + $0x50] sm:$0xff] %vm1157, %v1082
    %1169 = vst.msk [vmem:[#allocation3 + $0x58] sm:$0xff] %vm1157, %v1084
    %1170 = vst.msk [vmem:[#allocation3 + $0x60] sm:$0xff] %vm1157, %v1086
    %1171 = vst.msk [vmem:[#allocation3 + $0x68] sm:$0xff] %vm1157, %v1088
    %1172 = vst.msk [vmem:[#allocation3 + $0x70] sm:$0xff] %vm1157, %v1090
    %1173 = vst.msk [vmem:[#allocation3 + $0x78] sm:$0xff] %vm1157, %v1092
    %1174 = vst.msk [vmem:[#allocation3 + $0x80] sm:$0xff] %vm1157, %v1094
    %1175 = vst.msk [vmem:[#allocation3 + $0x88] sm:$0xff] %vm1157, %v1096
    %1176 = vst.msk [vmem:[#allocation3 + $0x90] sm:$0xff] %vm1157, %v1098
    %1177 = vst.msk [vmem:[#allocation3 + $0x98] sm:$0xff] %vm1157, %v1100
    %1178 = vst.msk [vmem:[#allocation3 + $0xa0] sm:$0xff] %vm1157, %v1102
    %1179 = vst.msk [vmem:[#allocation3 + $0xa8] sm:$0xff] %vm1157, %v1104
    %1180 = vst.msk [vmem:[#allocation3 + $0xb0] sm:$0xff] %vm1157, %v1106
    %1181 = vst.msk [vmem:[#allocation3 + $0xb8] sm:$0xff] %vm1157, %v1108
    %1182 = vst.msk [vmem:[#allocation3 + $0xc0] sm:$0xff] %vm1157, %v1110
    %1183 = vst.msk [vmem:[#allocation3 + $0xc8] sm:$0xff] %vm1157, %v1112
    %1184 = vst.msk [vmem:[#allocation3 + $0xd0] sm:$0xff] %vm1157, %v1114
    %1185 = vst.msk [vmem:[#allocation3 + $0xd8] sm:$0xff] %vm1157, %v1116
    %1186 = vst.msk [vmem:[#allocation3 + $0xe0] sm:$0xff] %vm1157, %v1118
    %1187 = vst.msk [vmem:[#allocation3 + $0xe8] sm:$0xff] %vm1157, %v1120
    %1188 = vst.msk [vmem:[#allocation3 + $0xf0] sm:$0xff] %vm1157, %v1122
    %1189 = vst.msk [vmem:[#allocation3 + $0xf8] sm:$0xff] %vm1157, %v1124
    %v1190 = vld [vmem:[%s66 + $0x2] sm:$0xff]
    %v1191 = vld [vmem:[%s66 + $0xa] sm:$0xff]
    %v1192 = vld [vmem:[%s66 + $0x1a] sm:$0xff]
    %v1193 = vld [vmem:[%s66 + $0x22] sm:$0xff]
    %v1194 = vld [vmem:[%s66 + $0x32] sm:$0xff]
    %v1195 = vld [vmem:[%s66 + $0x3a] sm:$0xff]
    %v1196 = vld [vmem:[%s66 + $0x4a] sm:$0xff]
    %v1197 = vld [vmem:[%s66 + $0x52] sm:$0xff]
    %v1198 = vld [vmem:[%s66 + $0x62] sm:$0xff]
    %v1199 = vld [vmem:[%s66 + $0x6a] sm:$0xff]
    %v1200 = vld [vmem:[%s66 + $0x7a] sm:$0xff]
    %v1201 = vld [vmem:[%s66 + $0x82] sm:$0xff]
    %v1202 = vld [vmem:[%s66 + $0x92] sm:$0xff]
    %v1203 = vld [vmem:[%s66 + $0x9a] sm:$0xff]
    %v1204 = vld [vmem:[%s66 + $0xaa] sm:$0xff]
    %v1205 = vld [vmem:[%s66 + $0xb2] sm:$0xff]
    %v1206 = vld [vmem:[%s66 + $0xc2] sm:$0xff]
    %v1207 = vld [vmem:[%s66 + $0xca] sm:$0xff]
    %v1208 = vld [vmem:[%s66 + $0xda] sm:$0xff]
    %v1209 = vld [vmem:[%s66 + $0xe2] sm:$0xff]
    %v1210 = vld [vmem:[%s66 + $0xf2] sm:$0xff]
    %v1211 = vld [vmem:[%s66 + $0xfa] sm:$0xff]
    %v1212 = vld [vmem:[%s66 + $0x10a] sm:$0xff]
    %v1213 = vld [vmem:[%s66 + $0x112] sm:$0xff]
    %v1214 = vld [vmem:[%s66 + $0x122] sm:$0xff]
    %v1215 = vld [vmem:[%s66 + $0x12a] sm:$0xff]
    %v1216 = vld [vmem:[%s66 + $0x13a] sm:$0xff]
    %v1217 = vld [vmem:[%s66 + $0x142] sm:$0xff]
    %v1218 = vld [vmem:[%s66 + $0x152] sm:$0xff]
    %v1219 = vld [vmem:[%s66 + $0x15a] sm:$0xff]
    %v1220 = vld [vmem:[%s66 + $0x16a] sm:$0xff]
    %v1221 = vld [vmem:[%s66 + $0x172] sm:$0xff]
    %1254 = vrot.lane.b32.xlu0 %v1190, 20
    %v1255 = vpop.permute.xlu0 %1254
    %1256 = vrot.lane.b32.xlu0 %v1191, 20
    %v1257 = vpop.permute.xlu0 %1256
    %1258 = vrot.lane.b32.xlu0 %v1192, 20
    %v1259 = vpop.permute.xlu0 %1258
    %1260 = vrot.lane.b32.xlu0 %v1193, 20
    %v1261 = vpop.permute.xlu0 %1260
    %1262 = vrot.lane.b32.xlu0 %v1194, 20
    %v1263 = vpop.permute.xlu0 %1262
    %1264 = vrot.lane.b32.xlu0 %v1195, 20
    %v1265 = vpop.permute.xlu0 %1264
    %1266 = vrot.lane.b32.xlu0 %v1196, 20
    %v1267 = vpop.permute.xlu0 %1266
    %1268 = vrot.lane.b32.xlu0 %v1197, 20
    %v1269 = vpop.permute.xlu0 %1268
    %1270 = vrot.lane.b32.xlu0 %v1198, 20
    %v1271 = vpop.permute.xlu0 %1270
    %1272 = vrot.lane.b32.xlu0 %v1199, 20
    %v1273 = vpop.permute.xlu0 %1272
    %1274 = vrot.lane.b32.xlu0 %v1200, 20
    %v1275 = vpop.permute.xlu0 %1274
    %1276 = vrot.lane.b32.xlu0 %v1201, 20
    %v1277 = vpop.permute.xlu0 %1276
    %1278 = vrot.lane.b32.xlu0 %v1202, 20
    %v1279 = vpop.permute.xlu0 %1278
    %1280 = vrot.lane.b32.xlu0 %v1203, 20
    %v1281 = vpop.permute.xlu0 %1280
    %1282 = vrot.lane.b32.xlu0 %v1204, 20
    %v1283 = vpop.permute.xlu0 %1282
    %1284 = vrot.lane.b32.xlu0 %v1205, 20
    %v1285 = vpop.permute.xlu0 %1284
    %1286 = vrot.lane.b32.xlu0 %v1206, 20
    %v1287 = vpop.permute.xlu0 %1286
    %1288 = vrot.lane.b32.xlu0 %v1207, 20
    %v1289 = vpop.permute.xlu0 %1288
    %1290 = vrot.lane.b32.xlu0 %v1208, 20
    %v1291 = vpop.permute.xlu0 %1290
    %1292 = vrot.lane.b32.xlu0 %v1209, 20
    %v1293 = vpop.permute.xlu0 %1292
    %1294 = vrot.lane.b32.xlu0 %v1210, 20
    %v1295 = vpop.permute.xlu0 %1294
    %1296 = vrot.lane.b32.xlu0 %v1211, 20
    %v1297 = vpop.permute.xlu0 %1296
    %1298 = vrot.lane.b32.xlu0 %v1212, 20
    %v1299 = vpop.permute.xlu0 %1298
    %1300 = vrot.lane.b32.xlu0 %v1213, 20
    %v1301 = vpop.permute.xlu0 %1300
    %1302 = vrot.lane.b32.xlu0 %v1214, 20
    %v1303 = vpop.permute.xlu0 %1302
    %1304 = vrot.lane.b32.xlu0 %v1215, 20
    %v1305 = vpop.permute.xlu0 %1304
    %1306 = vrot.lane.b32.xlu0 %v1216, 20
    %v1307 = vpop.permute.xlu0 %1306
    %1308 = vrot.lane.b32.xlu0 %v1217, 20
    %v1309 = vpop.permute.xlu0 %1308
    %1310 = vrot.lane.b32.xlu0 %v1218, 20
    %v1311 = vpop.permute.xlu0 %1310
    %1312 = vrot.lane.b32.xlu0 %v1219, 20
    %v1313 = vpop.permute.xlu0 %1312
    %1314 = vrot.lane.b32.xlu0 %v1220, 20
    %v1315 = vpop.permute.xlu0 %1314
    %1316 = vrot.lane.b32.xlu0 %v1221, 20
    %v1317 = vpop.permute.xlu0 %1316
    %vm1350 = vcmask 195744
    %1351 = vst.msk [vmem:[#allocation3] sm:$0xff] %vm1350, %v1255
    %1352 = vst.msk [vmem:[#allocation3 + $0x8] sm:$0xff] %vm1350, %v1257
    %1353 = vst.msk [vmem:[#allocation3 + $0x10] sm:$0xff] %vm1350, %v1259
    %1354 = vst.msk [vmem:[#allocation3 + $0x18] sm:$0xff] %vm1350, %v1261
    %1355 = vst.msk [vmem:[#allocation3 + $0x20] sm:$0xff] %vm1350, %v1263
    %1356 = vst.msk [vmem:[#allocation3 + $0x28] sm:$0xff] %vm1350, %v1265
    %1357 = vst.msk [vmem:[#allocation3 + $0x30] sm:$0xff] %vm1350, %v1267
    %1358 = vst.msk [vmem:[#allocation3 + $0x38] sm:$0xff] %vm1350, %v1269
    %1359 = vst.msk [vmem:[#allocation3 + $0x40] sm:$0xff] %vm1350, %v1271
    %1360 = vst.msk [vmem:[#allocation3 + $0x48] sm:$0xff] %vm1350, %v1273
    %1361 = vst.msk [vmem:[#allocation3 + $0x50] sm:$0xff] %vm1350, %v1275
    %1362 = vst.msk [vmem:[#allocation3 + $0x58] sm:$0xff] %vm1350, %v1277
    %1363 = vst.msk [vmem:[#allocation3 + $0x60] sm:$0xff] %vm1350, %v1279
    %1364 = vst.msk [vmem:[#allocation3 + $0x68] sm:$0xff] %vm1350, %v1281
    %1365 = vst.msk [vmem:[#allocation3 + $0x70] sm:$0xff] %vm1350, %v1283
    %1366 = vst.msk [vmem:[#allocation3 + $0x78] sm:$0xff] %vm1350, %v1285
    %1367 = vst.msk [vmem:[#allocation3 + $0x80] sm:$0xff] %vm1350, %v1287
    %1368 = vst.msk [vmem:[#allocation3 + $0x88] sm:$0xff] %vm1350, %v1289
    %1369 = vst.msk [vmem:[#allocation3 + $0x90] sm:$0xff] %vm1350, %v1291
    %1370 = vst.msk [vmem:[#allocation3 + $0x98] sm:$0xff] %vm1350, %v1293
    %1371 = vst.msk [vmem:[#allocation3 + $0xa0] sm:$0xff] %vm1350, %v1295
    %1372 = vst.msk [vmem:[#allocation3 + $0xa8] sm:$0xff] %vm1350, %v1297
    %1373 = vst.msk [vmem:[#allocation3 + $0xb0] sm:$0xff] %vm1350, %v1299
    %1374 = vst.msk [vmem:[#allocation3 + $0xb8] sm:$0xff] %vm1350, %v1301
    %1375 = vst.msk [vmem:[#allocation3 + $0xc0] sm:$0xff] %vm1350, %v1303
    %1376 = vst.msk [vmem:[#allocation3 + $0xc8] sm:$0xff] %vm1350, %v1305
    %1377 = vst.msk [vmem:[#allocation3 + $0xd0] sm:$0xff] %vm1350, %v1307
    %1378 = vst.msk [vmem:[#allocation3 + $0xd8] sm:$0xff] %vm1350, %v1309
    %1379 = vst.msk [vmem:[#allocation3 + $0xe0] sm:$0xff] %vm1350, %v1311
    %1380 = vst.msk [vmem:[#allocation3 + $0xe8] sm:$0xff] %vm1350, %v1313
    %1381 = vst.msk [vmem:[#allocation3 + $0xf0] sm:$0xff] %vm1350, %v1315
    %1382 = vst.msk [vmem:[#allocation3 + $0xf8] sm:$0xff] %vm1350, %v1317
    %s1383 = scalar_lea.vmem [#allocation2], 48
    %v1384 = vld [vmem:[%s1383] sm:$0xff]
    %v1385 = vld [vmem:[%s1383 + $0x8] sm:$0xff]
    %v1386 = vld [vmem:[%s1383 + $0x18] sm:$0xff]
    %v1387 = vld [vmem:[%s1383 + $0x20] sm:$0xff]
    %v1388 = vld [vmem:[%s1383 + $0x30] sm:$0xff]
    %v1389 = vld [vmem:[%s1383 + $0x38] sm:$0xff]
    %v1390 = vld [vmem:[%s1383 + $0x48] sm:$0xff]
    %v1391 = vld [vmem:[%s1383 + $0x50] sm:$0xff]
    %v1392 = vld [vmem:[%s1383 + $0x60] sm:$0xff]
    %v1393 = vld [vmem:[%s1383 + $0x68] sm:$0xff]
    %v1394 = vld [vmem:[%s1383 + $0x78] sm:$0xff]
    %v1395 = vld [vmem:[%s1383 + $0x80] sm:$0xff]
    %v1396 = vld [vmem:[%s1383 + $0x90] sm:$0xff]
    %v1397 = vld [vmem:[%s1383 + $0x98] sm:$0xff]
    %v1398 = vld [vmem:[%s1383 + $0xa8] sm:$0xff]
    %v1399 = vld [vmem:[%s1383 + $0xb0] sm:$0xff]
    %v1400 = vld [vmem:[%s1383 + $0xc0] sm:$0xff]
    %v1401 = vld [vmem:[%s1383 + $0xc8] sm:$0xff]
    %v1402 = vld [vmem:[%s1383 + $0xd8] sm:$0xff]
    %v1403 = vld [vmem:[%s1383 + $0xe0] sm:$0xff]
    %v1404 = vld [vmem:[%s1383 + $0xf0] sm:$0xff]
    %v1405 = vld [vmem:[%s1383 + $0xf8] sm:$0xff]
    %v1406 = vld [vmem:[%s1383 + $0x108] sm:$0xff]
    %v1407 = vld [vmem:[%s1383 + $0x110] sm:$0xff]
    %v1408 = vld [vmem:[%s1383 + $0x120] sm:$0xff]
    %v1409 = vld [vmem:[%s1383 + $0x128] sm:$0xff]
    %v1410 = vld [vmem:[%s1383 + $0x138] sm:$0xff]
    %v1411 = vld [vmem:[%s1383 + $0x140] sm:$0xff]
    %v1412 = vld [vmem:[%s1383 + $0x150] sm:$0xff]
    %v1413 = vld [vmem:[%s1383 + $0x158] sm:$0xff]
    %v1414 = vld [vmem:[%s1383 + $0x168] sm:$0xff]
    %v1415 = vld [vmem:[%s1383 + $0x170] sm:$0xff]
    %1448 = vrot.lane.b32.xlu0 %v1384, 24
    %v1449 = vpop.permute.xlu0 %1448
    %1450 = vrot.lane.b32.xlu0 %v1385, 24
    %v1451 = vpop.permute.xlu0 %1450
    %1452 = vrot.lane.b32.xlu0 %v1386, 24
    %v1453 = vpop.permute.xlu0 %1452
    %1454 = vrot.lane.b32.xlu0 %v1387, 24
    %v1455 = vpop.permute.xlu0 %1454
    %1456 = vrot.lane.b32.xlu0 %v1388, 24
    %v1457 = vpop.permute.xlu0 %1456
    %1458 = vrot.lane.b32.xlu0 %v1389, 24
    %v1459 = vpop.permute.xlu0 %1458
    %1460 = vrot.lane.b32.xlu0 %v1390, 24
    %v1461 = vpop.permute.xlu0 %1460
    %1462 = vrot.lane.b32.xlu0 %v1391, 24
    %v1463 = vpop.permute.xlu0 %1462
    %1464 = vrot.lane.b32.xlu0 %v1392, 24
    %v1465 = vpop.permute.xlu0 %1464
    %1466 = vrot.lane.b32.xlu0 %v1393, 24
    %v1467 = vpop.permute.xlu0 %1466
    %1468 = vrot.lane.b32.xlu0 %v1394, 24
    %v1469 = vpop.permute.xlu0 %1468
    %1470 = vrot.lane.b32.xlu0 %v1395, 24
    %v1471 = vpop.permute.xlu0 %1470
    %1472 = vrot.lane.b32.xlu0 %v1396, 24
    %v1473 = vpop.permute.xlu0 %1472
    %1474 = vrot.lane.b32.xlu0 %v1397, 24
    %v1475 = vpop.permute.xlu0 %1474
    %1476 = vrot.lane.b32.xlu0 %v1398, 24
    %v1477 = vpop.permute.xlu0 %1476
    %1478 = vrot.lane.b32.xlu0 %v1399, 24
    %v1479 = vpop.permute.xlu0 %1478
    %1480 = vrot.lane.b32.xlu0 %v1400, 24
    %v1481 = vpop.permute.xlu0 %1480
    %1482 = vrot.lane.b32.xlu0 %v1401, 24
    %v1483 = vpop.permute.xlu0 %1482
    %1484 = vrot.lane.b32.xlu0 %v1402, 24
    %v1485 = vpop.permute.xlu0 %1484
    %1486 = vrot.lane.b32.xlu0 %v1403, 24
    %v1487 = vpop.permute.xlu0 %1486
    %1488 = vrot.lane.b32.xlu0 %v1404, 24
    %v1489 = vpop.permute.xlu0 %1488
    %1490 = vrot.lane.b32.xlu0 %v1405, 24
    %v1491 = vpop.permute.xlu0 %1490
    %1492 = vrot.lane.b32.xlu0 %v1406, 24
    %v1493 = vpop.permute.xlu0 %1492
    %1494 = vrot.lane.b32.xlu0 %v1407, 24
    %v1495 = vpop.permute.xlu0 %1494
    %1496 = vrot.lane.b32.xlu0 %v1408, 24
    %v1497 = vpop.permute.xlu0 %1496
    %1498 = vrot.lane.b32.xlu0 %v1409, 24
    %v1499 = vpop.permute.xlu0 %1498
    %1500 = vrot.lane.b32.xlu0 %v1410, 24
    %v1501 = vpop.permute.xlu0 %1500
    %1502 = vrot.lane.b32.xlu0 %v1411, 24
    %v1503 = vpop.permute.xlu0 %1502
    %1504 = vrot.lane.b32.xlu0 %v1412, 24
    %v1505 = vpop.permute.xlu0 %1504
    %1506 = vrot.lane.b32.xlu0 %v1413, 24
    %v1507 = vpop.permute.xlu0 %1506
    %1508 = vrot.lane.b32.xlu0 %v1414, 24
    %v1509 = vpop.permute.xlu0 %1508
    %1510 = vrot.lane.b32.xlu0 %v1415, 24
    %v1511 = vpop.permute.xlu0 %1510
    %vm1544 = vcmask 228544
    %1545 = vst.msk [vmem:[#allocation3] sm:$0xff] %vm1544, %v1449
    %1546 = vst.msk [vmem:[#allocation3 + $0x8] sm:$0xff] %vm1544, %v1451
    %1547 = vst.msk [vmem:[#allocation3 + $0x10] sm:$0xff] %vm1544, %v1453
    %1548 = vst.msk [vmem:[#allocation3 + $0x18] sm:$0xff] %vm1544, %v1455
    %1549 = vst.msk [vmem:[#allocation3 + $0x20] sm:$0xff] %vm1544, %v1457
    %1550 = vst.msk [vmem:[#allocation3 + $0x28] sm:$0xff] %vm1544, %v1459
    %1551 = vst.msk [vmem:[#allocation3 + $0x30] sm:$0xff] %vm1544, %v1461
    %1552 = vst.msk [vmem:[#allocation3 + $0x38] sm:$0xff] %vm1544, %v1463
    %1553 = vst.msk [vmem:[#allocation3 + $0x40] sm:$0xff] %vm1544, %v1465
    %1554 = vst.msk [vmem:[#allocation3 + $0x48] sm:$0xff] %vm1544, %v1467
    %1555 = vst.msk [vmem:[#allocation3 + $0x50] sm:$0xff] %vm1544, %v1469
    %1556 = vst.msk [vmem:[#allocation3 + $0x58] sm:$0xff] %vm1544, %v1471
    %1557 = vst.msk [vmem:[#allocation3 + $0x60] sm:$0xff] %vm1544, %v1473
    %1558 = vst.msk [vmem:[#allocation3 + $0x68] sm:$0xff] %vm1544, %v1475
    %1559 = vst.msk [vmem:[#allocation3 + $0x70] sm:$0xff] %vm1544, %v1477
    %1560 = vst.msk [vmem:[#allocation3 + $0x78] sm:$0xff] %vm1544, %v1479
    %1561 = vst.msk [vmem:[#allocation3 + $0x80] sm:$0xff] %vm1544, %v1481
    %1562 = vst.msk [vmem:[#allocation3 + $0x88] sm:$0xff] %vm1544, %v1483
    %1563 = vst.msk [vmem:[#allocation3 + $0x90] sm:$0xff] %vm1544, %v1485
    %1564 = vst.msk [vmem:[#allocation3 + $0x98] sm:$0xff] %vm1544, %v1487
    %1565 = vst.msk [vmem:[#allocation3 + $0xa0] sm:$0xff] %vm1544, %v1489
    %1566 = vst.msk [vmem:[#allocation3 + $0xa8] sm:$0xff] %vm1544, %v1491
    %1567 = vst.msk [vmem:[#allocation3 + $0xb0] sm:$0xff] %vm1544, %v1493
    %1568 = vst.msk [vmem:[#allocation3 + $0xb8] sm:$0xff] %vm1544, %v1495
    %1569 = vst.msk [vmem:[#allocation3 + $0xc0] sm:$0xff] %vm1544, %v1497
    %1570 = vst.msk [vmem:[#allocation3 + $0xc8] sm:$0xff] %vm1544, %v1499
    %1571 = vst.msk [vmem:[#allocation3 + $0xd0] sm:$0xff] %vm1544, %v1501
    %1572 = vst.msk [vmem:[#allocation3 + $0xd8] sm:$0xff] %vm1544, %v1503
    %1573 = vst.msk [vmem:[#allocation3 + $0xe0] sm:$0xff] %vm1544, %v1505
    %1574 = vst.msk [vmem:[#allocation3 + $0xe8] sm:$0xff] %vm1544, %v1507
    %1575 = vst.msk [vmem:[#allocation3 + $0xf0] sm:$0xff] %vm1544, %v1509
    %1576 = vst.msk [vmem:[#allocation3 + $0xf8] sm:$0xff] %vm1544, %v1511
    %v1577 = vld [vmem:[%s1383 + $0x1] sm:$0xff]
    %v1578 = vld [vmem:[%s1383 + $0x9] sm:$0xff]
    %v1579 = vld [vmem:[%s1383 + $0x19] sm:$0xff]
    %v1580 = vld [vmem:[%s1383 + $0x21] sm:$0xff]
    %v1581 = vld [vmem:[%s1383 + $0x31] sm:$0xff]
    %v1582 = vld [vmem:[%s1383 + $0x39] sm:$0xff]
    %v1583 = vld [vmem:[%s1383 + $0x49] sm:$0xff]
    %v1584 = vld [vmem:[%s1383 + $0x51] sm:$0xff]
    %v1585 = vld [vmem:[%s1383 + $0x61] sm:$0xff]
    %v1586 = vld [vmem:[%s1383 + $0x69] sm:$0xff]
    %v1587 = vld [vmem:[%s1383 + $0x79] sm:$0xff]
    %v1588 = vld [vmem:[%s1383 + $0x81] sm:$0xff]
    %v1589 = vld [vmem:[%s1383 + $0x91] sm:$0xff]
    %v1590 = vld [vmem:[%s1383 + $0x99] sm:$0xff]
    %v1591 = vld [vmem:[%s1383 + $0xa9] sm:$0xff]
    %v1592 = vld [vmem:[%s1383 + $0xb1] sm:$0xff]
    %v1593 = vld [vmem:[%s1383 + $0xc1] sm:$0xff]
    %v1594 = vld [vmem:[%s1383 + $0xc9] sm:$0xff]
    %v1595 = vld [vmem:[%s1383 + $0xd9] sm:$0xff]
    %v1596 = vld [vmem:[%s1383 + $0xe1] sm:$0xff]
    %v1597 = vld [vmem:[%s1383 + $0xf1] sm:$0xff]
    %v1598 = vld [vmem:[%s1383 + $0xf9] sm:$0xff]
    %v1599 = vld [vmem:[%s1383 + $0x109] sm:$0xff]
    %v1600 = vld [vmem:[%s1383 + $0x111] sm:$0xff]
    %v1601 = vld [vmem:[%s1383 + $0x121] sm:$0xff]
    %v1602 = vld [vmem:[%s1383 + $0x129] sm:$0xff]
    %v1603 = vld [vmem:[%s1383 + $0x139] sm:$0xff]
    %v1604 = vld [vmem:[%s1383 + $0x141] sm:$0xff]
    %v1605 = vld [vmem:[%s1383 + $0x151] sm:$0xff]
    %v1606 = vld [vmem:[%s1383 + $0x159] sm:$0xff]
    %v1607 = vld [vmem:[%s1383 + $0x169] sm:$0xff]
    %v1608 = vld [vmem:[%s1383 + $0x171] sm:$0xff]
    %1641 = vrot.lane.b32.xlu0 %v1577, 28
    %v1642 = vpop.permute.xlu0 %1641
    %1643 = vrot.lane.b32.xlu0 %v1578, 28
    %v1644 = vpop.permute.xlu0 %1643
    %1645 = vrot.lane.b32.xlu0 %v1579, 28
    %v1646 = vpop.permute.xlu0 %1645
    %1647 = vrot.lane.b32.xlu0 %v1580, 28
    %v1648 = vpop.permute.xlu0 %1647
    %1649 = vrot.lane.b32.xlu0 %v1581, 28
    %v1650 = vpop.permute.xlu0 %1649
    %1651 = vrot.lane.b32.xlu0 %v1582, 28
    %v1652 = vpop.permute.xlu0 %1651
    %1653 = vrot.lane.b32.xlu0 %v1583, 28
    %v1654 = vpop.permute.xlu0 %1653
    %1655 = vrot.lane.b32.xlu0 %v1584, 28
    %v1656 = vpop.permute.xlu0 %1655
    %1657 = vrot.lane.b32.xlu0 %v1585, 28
    %v1658 = vpop.permute.xlu0 %1657
    %1659 = vrot.lane.b32.xlu0 %v1586, 28
    %v1660 = vpop.permute.xlu0 %1659
    %1661 = vrot.lane.b32.xlu0 %v1587, 28
    %v1662 = vpop.permute.xlu0 %1661
    %1663 = vrot.lane.b32.xlu0 %v1588, 28
    %v1664 = vpop.permute.xlu0 %1663
    %1665 = vrot.lane.b32.xlu0 %v1589, 28
    %v1666 = vpop.permute.xlu0 %1665
    %1667 = vrot.lane.b32.xlu0 %v1590, 28
    %v1668 = vpop.permute.xlu0 %1667
    %1669 = vrot.lane.b32.xlu0 %v1591, 28
    %v1670 = vpop.permute.xlu0 %1669
    %1671 = vrot.lane.b32.xlu0 %v1592, 28
    %v1672 = vpop.permute.xlu0 %1671
    %1673 = vrot.lane.b32.xlu0 %v1593, 28
    %v1674 = vpop.permute.xlu0 %1673
    %1675 = vrot.lane.b32.xlu0 %v1594, 28
    %v1676 = vpop.permute.xlu0 %1675
    %1677 = vrot.lane.b32.xlu0 %v1595, 28
    %v1678 = vpop.permute.xlu0 %1677
    %1679 = vrot.lane.b32.xlu0 %v1596, 28
    %v1680 = vpop.permute.xlu0 %1679
    %1681 = vrot.lane.b32.xlu0 %v1597, 28
    %v1682 = vpop.permute.xlu0 %1681
    %1683 = vrot.lane.b32.xlu0 %v1598, 28
    %v1684 = vpop.permute.xlu0 %1683
    %1685 = vrot.lane.b32.xlu0 %v1599, 28
    %v1686 = vpop.permute.xlu0 %1685
    %1687 = vrot.lane.b32.xlu0 %v1600, 28
    %v1688 = vpop.permute.xlu0 %1687
    %1689 = vrot.lane.b32.xlu0 %v1601, 28
    %v1690 = vpop.permute.xlu0 %1689
    %1691 = vrot.lane.b32.xlu0 %v1602, 28
    %v1692 = vpop.permute.xlu0 %1691
    %1693 = vrot.lane.b32.xlu0 %v1603, 28
    %v1694 = vpop.permute.xlu0 %1693
    %1695 = vrot.lane.b32.xlu0 %v1604, 28
    %v1696 = vpop.permute.xlu0 %1695
    %1697 = vrot.lane.b32.xlu0 %v1605, 28
    %v1698 = vpop.permute.xlu0 %1697
    %1699 = vrot.lane.b32.xlu0 %v1606, 28
    %v1700 = vpop.permute.xlu0 %1699
    %1701 = vrot.lane.b32.xlu0 %v1607, 28
    %v1702 = vpop.permute.xlu0 %1701
    %1703 = vrot.lane.b32.xlu0 %v1608, 28
    %v1704 = vpop.permute.xlu0 %1703
    %vm1737 = vcmask 261344
    %1738 = vst.msk [vmem:[#allocation3] sm:$0xff] %vm1737, %v1642
    %1739 = vst.msk [vmem:[#allocation3 + $0x8] sm:$0xff] %vm1737, %v1644
    %1740 = vst.msk [vmem:[#allocation3 + $0x10] sm:$0xff] %vm1737, %v1646
    %1741 = vst.msk [vmem:[#allocation3 + $0x18] sm:$0xff] %vm1737, %v1648
    %1742 = vst.msk [vmem:[#allocation3 + $0x20] sm:$0xff] %vm1737, %v1650
    %1743 = vst.msk [vmem:[#allocation3 + $0x28] sm:$0xff] %vm1737, %v1652
    %1744 = vst.msk [vmem:[#allocation3 + $0x30] sm:$0xff] %vm1737, %v1654
    %1745 = vst.msk [vmem:[#allocation3 + $0x38] sm:$0xff] %vm1737, %v1656
    %1746 = vst.msk [vmem:[#allocation3 + $0x40] sm:$0xff] %vm1737, %v1658
    %1747 = vst.msk [vmem:[#allocation3 + $0x48] sm:$0xff] %vm1737, %v1660
    %1748 = vst.msk [vmem:[#allocation3 + $0x50] sm:$0xff] %vm1737, %v1662
    %1749 = vst.msk [vmem:[#allocation3 + $0x58] sm:$0xff] %vm1737, %v1664
    %1750 = vst.msk [vmem:[#allocation3 + $0x60] sm:$0xff] %vm1737, %v1666
    %1751 = vst.msk [vmem:[#allocation3 + $0x68] sm:$0xff] %vm1737, %v1668
    %1752 = vst.msk [vmem:[#allocation3 + $0x70] sm:$0xff] %vm1737, %v1670
    %1753 = vst.msk [vmem:[#allocation3 + $0x78] sm:$0xff] %vm1737, %v1672
    %1754 = vst.msk [vmem:[#allocation3 + $0x80] sm:$0xff] %vm1737, %v1674
    %1755 = vst.msk [vmem:[#allocation3 + $0x88] sm:$0xff] %vm1737, %v1676
    %1756 = vst.msk [vmem:[#allocation3 + $0x90] sm:$0xff] %vm1737, %v1678
    %1757 = vst.msk [vmem:[#allocation3 + $0x98] sm:$0xff] %vm1737, %v1680
    %1758 = vst.msk [vmem:[#allocation3 + $0xa0] sm:$0xff] %vm1737, %v1682
    %1759 = vst.msk [vmem:[#allocation3 + $0xa8] sm:$0xff] %vm1737, %v1684
    %1760 = vst.msk [vmem:[#allocation3 + $0xb0] sm:$0xff] %vm1737, %v1686
    %1761 = vst.msk [vmem:[#allocation3 + $0xb8] sm:$0xff] %vm1737, %v1688
    %1762 = vst.msk [vmem:[#allocation3 + $0xc0] sm:$0xff] %vm1737, %v1690
    %1763 = vst.msk [vmem:[#allocation3 + $0xc8] sm:$0xff] %vm1737, %v1692
    %1764 = vst.msk [vmem:[#allocation3 + $0xd0] sm:$0xff] %vm1737, %v1694
    %1765 = vst.msk [vmem:[#allocation3 + $0xd8] sm:$0xff] %vm1737, %v1696
    %1766 = vst.msk [vmem:[#allocation3 + $0xe0] sm:$0xff] %vm1737, %v1698
    %1767 = vst.msk [vmem:[#allocation3 + $0xe8] sm:$0xff] %vm1737, %v1700
    %1768 = vst.msk [vmem:[#allocation3 + $0xf0] sm:$0xff] %vm1737, %v1702
    %1769 = vst.msk [vmem:[#allocation3 + $0xf8] sm:$0xff] %vm1737, %v1704
    %v1770 = vld [vmem:[%s1383 + $0x2] sm:$0xff]
    %v1771 = vld [vmem:[%s1383 + $0xa] sm:$0xff]
    %v1772 = vld [vmem:[%s1383 + $0x1a] sm:$0xff]
    %v1773 = vld [vmem:[%s1383 + $0x22] sm:$0xff]
    %v1774 = vld [vmem:[%s1383 + $0x32] sm:$0xff]
    %v1775 = vld [vmem:[%s1383 + $0x3a] sm:$0xff]
    %v1776 = vld [vmem:[%s1383 + $0x4a] sm:$0xff]
    %v1777 = vld [vmem:[%s1383 + $0x52] sm:$0xff]
    %v1778 = vld [vmem:[%s1383 + $0x62] sm:$0xff]
    %v1779 = vld [vmem:[%s1383 + $0x6a] sm:$0xff]
    %v1780 = vld [vmem:[%s1383 + $0x7a] sm:$0xff]
    %v1781 = vld [vmem:[%s1383 + $0x82] sm:$0xff]
    %v1782 = vld [vmem:[%s1383 + $0x92] sm:$0xff]
    %v1783 = vld [vmem:[%s1383 + $0x9a] sm:$0xff]
    %v1784 = vld [vmem:[%s1383 + $0xaa] sm:$0xff]
    %v1785 = vld [vmem:[%s1383 + $0xb2] sm:$0xff]
    %v1786 = vld [vmem:[%s1383 + $0xc2] sm:$0xff]
    %v1787 = vld [vmem:[%s1383 + $0xca] sm:$0xff]
    %v1788 = vld [vmem:[%s1383 + $0xda] sm:$0xff]
    %v1789 = vld [vmem:[%s1383 + $0xe2] sm:$0xff]
    %v1790 = vld [vmem:[%s1383 + $0xf2] sm:$0xff]
    %v1791 = vld [vmem:[%s1383 + $0xfa] sm:$0xff]
    %v1792 = vld [vmem:[%s1383 + $0x10a] sm:$0xff]
    %v1793 = vld [vmem:[%s1383 + $0x112] sm:$0xff]
    %v1794 = vld [vmem:[%s1383 + $0x122] sm:$0xff]
    %v1795 = vld [vmem:[%s1383 + $0x12a] sm:$0xff]
    %v1796 = vld [vmem:[%s1383 + $0x13a] sm:$0xff]
    %v1797 = vld [vmem:[%s1383 + $0x142] sm:$0xff]
    %v1798 = vld [vmem:[%s1383 + $0x152] sm:$0xff]
    %v1799 = vld [vmem:[%s1383 + $0x15a] sm:$0xff]
    %v1800 = vld [vmem:[%s1383 + $0x16a] sm:$0xff]
    %v1801 = vld [vmem:[%s1383 + $0x172] sm:$0xff]
    %1834 = vrot.lane.b32.xlu0 %v1770, 32
    %v1835 = vpop.permute.xlu0 %1834
    %1836 = vrot.lane.b32.xlu0 %v1771, 32
    %v1837 = vpop.permute.xlu0 %1836
    %1838 = vrot.lane.b32.xlu0 %v1772, 32
    %v1839 = vpop.permute.xlu0 %1838
    %1840 = vrot.lane.b32.xlu0 %v1773, 32
    %v1841 = vpop.permute.xlu0 %1840
    %1842 = vrot.lane.b32.xlu0 %v1774, 32
    %v1843 = vpop.permute.xlu0 %1842
    %1844 = vrot.lane.b32.xlu0 %v1775, 32
    %v1845 = vpop.permute.xlu0 %1844
    %1846 = vrot.lane.b32.xlu0 %v1776, 32
    %v1847 = vpop.permute.xlu0 %1846
    %1848 = vrot.lane.b32.xlu0 %v1777, 32
    %v1849 = vpop.permute.xlu0 %1848
    %1850 = vrot.lane.b32.xlu0 %v1778, 32
    %v1851 = vpop.permute.xlu0 %1850
    %1852 = vrot.lane.b32.xlu0 %v1779, 32
    %v1853 = vpop.permute.xlu0 %1852
    %1854 = vrot.lane.b32.xlu0 %v1780, 32
    %v1855 = vpop.permute.xlu0 %1854
    %1856 = vrot.lane.b32.xlu0 %v1781, 32
    %v1857 = vpop.permute.xlu0 %1856
    %1858 = vrot.lane.b32.xlu0 %v1782, 32
    %v1859 = vpop.permute.xlu0 %1858
    %1860 = vrot.lane.b32.xlu0 %v1783, 32
    %v1861 = vpop.permute.xlu0 %1860
    %1862 = vrot.lane.b32.xlu0 %v1784, 32
    %v1863 = vpop.permute.xlu0 %1862
    %1864 = vrot.lane.b32.xlu0 %v1785, 32
    %v1865 = vpop.permute.xlu0 %1864
    %1866 = vrot.lane.b32.xlu0 %v1786, 32
    %v1867 = vpop.permute.xlu0 %1866
    %1868 = vrot.lane.b32.xlu0 %v1787, 32
    %v1869 = vpop.permute.xlu0 %1868
    %1870 = vrot.lane.b32.xlu0 %v1788, 32
    %v1871 = vpop.permute.xlu0 %1870
    %1872 = vrot.lane.b32.xlu0 %v1789, 32
    %v1873 = vpop.permute.xlu0 %1872
    %1874 = vrot.lane.b32.xlu0 %v1790, 32
    %v1875 = vpop.permute.xlu0 %1874
    %1876 = vrot.lane.b32.xlu0 %v1791, 32
    %v1877 = vpop.permute.xlu0 %1876
    %1878 = vrot.lane.b32.xlu0 %v1792, 32
    %v1879 = vpop.permute.xlu0 %1878
    %1880 = vrot.lane.b32.xlu0 %v1793, 32
    %v1881 = vpop.permute.xlu0 %1880
    %1882 = vrot.lane.b32.xlu0 %v1794, 32
    %v1883 = vpop.permute.xlu0 %1882
    %1884 = vrot.lane.b32.xlu0 %v1795, 32
    %v1885 = vpop.permute.xlu0 %1884
    %1886 = vrot.lane.b32.xlu0 %v1796, 32
    %v1887 = vpop.permute.xlu0 %1886
    %1888 = vrot.lane.b32.xlu0 %v1797, 32
    %v1889 = vpop.permute.xlu0 %1888
    %1890 = vrot.lane.b32.xlu0 %v1798, 32
    %v1891 = vpop.permute.xlu0 %1890
    %1892 = vrot.lane.b32.xlu0 %v1799, 32
    %v1893 = vpop.permute.xlu0 %1892
    %1894 = vrot.lane.b32.xlu0 %v1800, 32
    %v1895 = vpop.permute.xlu0 %1894
    %1896 = vrot.lane.b32.xlu0 %v1801, 32
    %v1897 = vpop.permute.xlu0 %1896
    %vm1930 = vcmask 294144
    %1931 = vst.msk [vmem:[#allocation3] sm:$0xff] %vm1930, %v1835
    %1932 = vst.msk [vmem:[#allocation3 + $0x8] sm:$0xff] %vm1930, %v1837
    %1933 = vst.msk [vmem:[#allocation3 + $0x10] sm:$0xff] %vm1930, %v1839
    %1934 = vst.msk [vmem:[#allocation3 + $0x18] sm:$0xff] %vm1930, %v1841
    %1935 = vst.msk [vmem:[#allocation3 + $0x20] sm:$0xff] %vm1930, %v1843
    %1936 = vst.msk [vmem:[#allocation3 + $0x28] sm:$0xff] %vm1930, %v1845
    %1937 = vst.msk [vmem:[#allocation3 + $0x30] sm:$0xff] %vm1930, %v1847
    %1938 = vst.msk [vmem:[#allocation3 + $0x38] sm:$0xff] %vm1930, %v1849
    %1939 = vst.msk [vmem:[#allocation3 + $0x40] sm:$0xff] %vm1930, %v1851
    %1940 = vst.msk [vmem:[#allocation3 + $0x48] sm:$0xff] %vm1930, %v1853
    %1941 = vst.msk [vmem:[#allocation3 + $0x50] sm:$0xff] %vm1930, %v1855
    %1942 = vst.msk [vmem:[#allocation3 + $0x58] sm:$0xff] %vm1930, %v1857
    %1943 = vst.msk [vmem:[#allocation3 + $0x60] sm:$0xff] %vm1930, %v1859
    %1944 = vst.msk [vmem:[#allocation3 + $0x68] sm:$0xff] %vm1930, %v1861
    %1945 = vst.msk [vmem:[#allocation3 + $0x70] sm:$0xff] %vm1930, %v1863
    %1946 = vst.msk [vmem:[#allocation3 + $0x78] sm:$0xff] %vm1930, %v1865
    %1947 = vst.msk [vmem:[#allocation3 + $0x80] sm:$0xff] %vm1930, %v1867
    %1948 = vst.msk [vmem:[#allocation3 + $0x88] sm:$0xff] %vm1930, %v1869
    %1949 = vst.msk [vmem:[#allocation3 + $0x90] sm:$0xff] %vm1930, %v1871
    %1950 = vst.msk [vmem:[#allocation3 + $0x98] sm:$0xff] %vm1930, %v1873
    %1951 = vst.msk [vmem:[#allocation3 + $0xa0] sm:$0xff] %vm1930, %v1875
    %1952 = vst.msk [vmem:[#allocation3 + $0xa8] sm:$0xff] %vm1930, %v1877
    %1953 = vst.msk [vmem:[#allocation3 + $0xb0] sm:$0xff] %vm1930, %v1879
    %1954 = vst.msk [vmem:[#allocation3 + $0xb8] sm:$0xff] %vm1930, %v1881
    %1955 = vst.msk [vmem:[#allocation3 + $0xc0] sm:$0xff] %vm1930, %v1883
    %1956 = vst.msk [vmem:[#allocation3 + $0xc8] sm:$0xff] %vm1930, %v1885
    %1957 = vst.msk [vmem:[#allocation3 + $0xd0] sm:$0xff] %vm1930, %v1887
    %1958 = vst.msk [vmem:[#allocation3 + $0xd8] sm:$0xff] %vm1930, %v1889
    %1959 = vst.msk [vmem:[#allocation3 + $0xe0] sm:$0xff] %vm1930, %v1891
    %1960 = vst.msk [vmem:[#allocation3 + $0xe8] sm:$0xff] %vm1930, %v1893
    %1961 = vst.msk [vmem:[#allocation3 + $0xf0] sm:$0xff] %vm1930, %v1895
    %1962 = vst.msk [vmem:[#allocation3 + $0xf8] sm:$0xff] %vm1930, %v1897
    %v1963 = vld [vmem:[%s207] sm:$0xff]
    %v1964 = vld [vmem:[%s207 + $0x8] sm:$0xff]
    %v1965 = vld [vmem:[%s207 + $0x18] sm:$0xff]
    %v1966 = vld [vmem:[%s207 + $0x20] sm:$0xff]
    %v1967 = vld [vmem:[%s207 + $0x30] sm:$0xff]
    %v1968 = vld [vmem:[%s207 + $0x38] sm:$0xff]
    %v1969 = vld [vmem:[%s207 + $0x48] sm:$0xff]
    %v1970 = vld [vmem:[%s207 + $0x50] sm:$0xff]
    %v1971 = vld [vmem:[%s207 + $0x60] sm:$0xff]
    %v1972 = vld [vmem:[%s207 + $0x68] sm:$0xff]
    %v1973 = vld [vmem:[%s207 + $0x78] sm:$0xff]
    %v1974 = vld [vmem:[%s207 + $0x80] sm:$0xff]
    %v1975 = vld [vmem:[%s207 + $0x90] sm:$0xff]
    %v1976 = vld [vmem:[%s207 + $0x98] sm:$0xff]
    %v1977 = vld [vmem:[%s207 + $0xa8] sm:$0xff]
    %v1978 = vld [vmem:[%s207 + $0xb0] sm:$0xff]
    %v1979 = vld [vmem:[%s207 + $0xc0] sm:$0xff]
    %v1980 = vld [vmem:[%s207 + $0xc8] sm:$0xff]
    %v1981 = vld [vmem:[%s207 + $0xd8] sm:$0xff]
    %v1982 = vld [vmem:[%s207 + $0xe0] sm:$0xff]
    %v1983 = vld [vmem:[%s207 + $0xf0] sm:$0xff]
    %v1984 = vld [vmem:[%s207 + $0xf8] sm:$0xff]
    %v1985 = vld [vmem:[%s207 + $0x108] sm:$0xff]
    %v1986 = vld [vmem:[%s207 + $0x110] sm:$0xff]
    %v1987 = vld [vmem:[%s207 + $0x120] sm:$0xff]
    %v1988 = vld [vmem:[%s207 + $0x128] sm:$0xff]
    %v1989 = vld [vmem:[%s207 + $0x138] sm:$0xff]
    %v1990 = vld [vmem:[%s207 + $0x140] sm:$0xff]
    %v1991 = vld [vmem:[%s207 + $0x150] sm:$0xff]
    %v1992 = vld [vmem:[%s207 + $0x158] sm:$0xff]
    %v1993 = vld [vmem:[%s207 + $0x168] sm:$0xff]
    %v1994 = vld [vmem:[%s207 + $0x170] sm:$0xff]
    %1995 = vst.msk [vmem:[#allocation3 + $0x100] sm:$0xff] %vm57, %v1963
    %1996 = vst.msk [vmem:[#allocation3 + $0x108] sm:$0xff] %vm57, %v1964
    %1997 = vst.msk [vmem:[#allocation3 + $0x110] sm:$0xff] %vm57, %v1965
    %1998 = vst.msk [vmem:[#allocation3 + $0x118] sm:$0xff] %vm57, %v1966
    %1999 = vst.msk [vmem:[#allocation3 + $0x120] sm:$0xff] %vm57, %v1967
    %2000 = vst.msk [vmem:[#allocation3 + $0x128] sm:$0xff] %vm57, %v1968
    %2001 = vst.msk [vmem:[#allocation3 + $0x130] sm:$0xff] %vm57, %v1969
    %2002 = vst.msk [vmem:[#allocation3 + $0x138] sm:$0xff] %vm57, %v1970
    %2003 = vst.msk [vmem:[#allocation3 + $0x140] sm:$0xff] %vm57, %v1971
    %2004 = vst.msk [vmem:[#allocation3 + $0x148] sm:$0xff] %vm57, %v1972
    %2005 = vst.msk [vmem:[#allocation3 + $0x150] sm:$0xff] %vm57, %v1973
    %2006 = vst.msk [vmem:[#allocation3 + $0x158] sm:$0xff] %vm57, %v1974
    %2007 = vst.msk [vmem:[#allocation3 + $0x160] sm:$0xff] %vm57, %v1975
    %2008 = vst.msk [vmem:[#allocation3 + $0x168] sm:$0xff] %vm57, %v1976
    %2009 = vst.msk [vmem:[#allocation3 + $0x170] sm:$0xff] %vm57, %v1977
    %2010 = vst.msk [vmem:[#allocation3 + $0x178] sm:$0xff] %vm57, %v1978
    %2011 = vst.msk [vmem:[#allocation3 + $0x180] sm:$0xff] %vm57, %v1979
    %2012 = vst.msk [vmem:[#allocation3 + $0x188] sm:$0xff] %vm57, %v1980
    %2013 = vst.msk [vmem:[#allocation3 + $0x190] sm:$0xff] %vm57, %v1981
    %2014 = vst.msk [vmem:[#allocation3 + $0x198] sm:$0xff] %vm57, %v1982
    %2015 = vst.msk [vmem:[#allocation3 + $0x1a0] sm:$0xff] %vm57, %v1983
    %2016 = vst.msk [vmem:[#allocation3 + $0x1a8] sm:$0xff] %vm57, %v1984
    %2017 = vst.msk [vmem:[#allocation3 + $0x1b0] sm:$0xff] %vm57, %v1985
    %2018 = vst.msk [vmem:[#allocation3 + $0x1b8] sm:$0xff] %vm57, %v1986
    %2019 = vst.msk [vmem:[#allocation3 + $0x1c0] sm:$0xff] %vm57, %v1987
    %2020 = vst.msk [vmem:[#allocation3 + $0x1c8] sm:$0xff] %vm57, %v1988
    %2021 = vst.msk [vmem:[#allocation3 + $0x1d0] sm:$0xff] %vm57, %v1989
    %2022 = vst.msk [vmem:[#allocation3 + $0x1d8] sm:$0xff] %vm57, %v1990
    %2023 = vst.msk [vmem:[#allocation3 + $0x1e0] sm:$0xff] %vm57, %v1991
    %2024 = vst.msk [vmem:[#allocation3 + $0x1e8] sm:$0xff] %vm57, %v1992
    %2025 = vst.msk [vmem:[#allocation3 + $0x1f0] sm:$0xff] %vm57, %v1993
    %2026 = vst.msk [vmem:[#allocation3 + $0x1f8] sm:$0xff] %vm57, %v1994
    %v2027 = vld [vmem:[%s207 + $0x1] sm:$0xff]
    %v2028 = vld [vmem:[%s207 + $0x9] sm:$0xff]
    %v2029 = vld [vmem:[%s207 + $0x19] sm:$0xff]
    %v2030 = vld [vmem:[%s207 + $0x21] sm:$0xff]
    %v2031 = vld [vmem:[%s207 + $0x31] sm:$0xff]
    %v2032 = vld [vmem:[%s207 + $0x39] sm:$0xff]
    %v2033 = vld [vmem:[%s207 + $0x49] sm:$0xff]
    %v2034 = vld [vmem:[%s207 + $0x51] sm:$0xff]
    %v2035 = vld [vmem:[%s207 + $0x61] sm:$0xff]
    %v2036 = vld [vmem:[%s207 + $0x69] sm:$0xff]
    %v2037 = vld [vmem:[%s207 + $0x79] sm:$0xff]
    %v2038 = vld [vmem:[%s207 + $0x81] sm:$0xff]
    %v2039 = vld [vmem:[%s207 + $0x91] sm:$0xff]
    %v2040 = vld [vmem:[%s207 + $0x99] sm:$0xff]
    %v2041 = vld [vmem:[%s207 + $0xa9] sm:$0xff]
    %v2042 = vld [vmem:[%s207 + $0xb1] sm:$0xff]
    %v2043 = vld [vmem:[%s207 + $0xc1] sm:$0xff]
    %v2044 = vld [vmem:[%s207 + $0xc9] sm:$0xff]
    %v2045 = vld [vmem:[%s207 + $0xd9] sm:$0xff]
    %v2046 = vld [vmem:[%s207 + $0xe1] sm:$0xff]
    %v2047 = vld [vmem:[%s207 + $0xf1] sm:$0xff]
    %v2048 = vld [vmem:[%s207 + $0xf9] sm:$0xff]
    %v2049 = vld [vmem:[%s207 + $0x109] sm:$0xff]
    %v2050 = vld [vmem:[%s207 + $0x111] sm:$0xff]
    %v2051 = vld [vmem:[%s207 + $0x121] sm:$0xff]
    %v2052 = vld [vmem:[%s207 + $0x129] sm:$0xff]
    %v2053 = vld [vmem:[%s207 + $0x139] sm:$0xff]
    %v2054 = vld [vmem:[%s207 + $0x141] sm:$0xff]
    %v2055 = vld [vmem:[%s207 + $0x151] sm:$0xff]
    %v2056 = vld [vmem:[%s207 + $0x159] sm:$0xff]
    %v2057 = vld [vmem:[%s207 + $0x169] sm:$0xff]
    %v2058 = vld [vmem:[%s207 + $0x171] sm:$0xff]
    %2091 = vrot.lane.b32.xlu0 %v2027, 4
    %v2092 = vpop.permute.xlu0 %2091
    %2093 = vrot.lane.b32.xlu0 %v2028, 4
    %v2094 = vpop.permute.xlu0 %2093
    %2095 = vrot.lane.b32.xlu0 %v2029, 4
    %v2096 = vpop.permute.xlu0 %2095
    %2097 = vrot.lane.b32.xlu0 %v2030, 4
    %v2098 = vpop.permute.xlu0 %2097
    %2099 = vrot.lane.b32.xlu0 %v2031, 4
    %v2100 = vpop.permute.xlu0 %2099
    %2101 = vrot.lane.b32.xlu0 %v2032, 4
    %v2102 = vpop.permute.xlu0 %2101
    %2103 = vrot.lane.b32.xlu0 %v2033, 4
    %v2104 = vpop.permute.xlu0 %2103
    %2105 = vrot.lane.b32.xlu0 %v2034, 4
    %v2106 = vpop.permute.xlu0 %2105
    %2107 = vrot.lane.b32.xlu0 %v2035, 4
    %v2108 = vpop.permute.xlu0 %2107
    %2109 = vrot.lane.b32.xlu0 %v2036, 4
    %v2110 = vpop.permute.xlu0 %2109
    %2111 = vrot.lane.b32.xlu0 %v2037, 4
    %v2112 = vpop.permute.xlu0 %2111
    %2113 = vrot.lane.b32.xlu0 %v2038, 4
    %v2114 = vpop.permute.xlu0 %2113
    %2115 = vrot.lane.b32.xlu0 %v2039, 4
    %v2116 = vpop.permute.xlu0 %2115
    %2117 = vrot.lane.b32.xlu0 %v2040, 4
    %v2118 = vpop.permute.xlu0 %2117
    %2119 = vrot.lane.b32.xlu0 %v2041, 4
    %v2120 = vpop.permute.xlu0 %2119
    %2121 = vrot.lane.b32.xlu0 %v2042, 4
    %v2122 = vpop.permute.xlu0 %2121
    %2123 = vrot.lane.b32.xlu0 %v2043, 4
    %v2124 = vpop.permute.xlu0 %2123
    %2125 = vrot.lane.b32.xlu0 %v2044, 4
    %v2126 = vpop.permute.xlu0 %2125
    %2127 = vrot.lane.b32.xlu0 %v2045, 4
    %v2128 = vpop.permute.xlu0 %2127
    %2129 = vrot.lane.b32.xlu0 %v2046, 4
    %v2130 = vpop.permute.xlu0 %2129
    %2131 = vrot.lane.b32.xlu0 %v2047, 4
    %v2132 = vpop.permute.xlu0 %2131
    %2133 = vrot.lane.b32.xlu0 %v2048, 4
    %v2134 = vpop.permute.xlu0 %2133
    %2135 = vrot.lane.b32.xlu0 %v2049, 4
    %v2136 = vpop.permute.xlu0 %2135
    %2137 = vrot.lane.b32.xlu0 %v2050, 4
    %v2138 = vpop.permute.xlu0 %2137
    %2139 = vrot.lane.b32.xlu0 %v2051, 4
    %v2140 = vpop.permute.xlu0 %2139
    %2141 = vrot.lane.b32.xlu0 %v2052, 4
    %v2142 = vpop.permute.xlu0 %2141
    %2143 = vrot.lane.b32.xlu0 %v2053, 4
    %v2144 = vpop.permute.xlu0 %2143
    %2145 = vrot.lane.b32.xlu0 %v2054, 4
    %v2146 = vpop.permute.xlu0 %2145
    %2147 = vrot.lane.b32.xlu0 %v2055, 4
    %v2148 = vpop.permute.xlu0 %2147
    %2149 = vrot.lane.b32.xlu0 %v2056, 4
    %v2150 = vpop.permute.xlu0 %2149
    %2151 = vrot.lane.b32.xlu0 %v2057, 4
    %v2152 = vpop.permute.xlu0 %2151
    %2153 = vrot.lane.b32.xlu0 %v2058, 4
    %v2154 = vpop.permute.xlu0 %2153
    %2187 = vst.msk [vmem:[#allocation3 + $0x100] sm:$0xff] %vm578, %v2092
    %2188 = vst.msk [vmem:[#allocation3 + $0x108] sm:$0xff] %vm578, %v2094
    %2189 = vst.msk [vmem:[#allocation3 + $0x110] sm:$0xff] %vm578, %v2096
    %2190 = vst.msk [vmem:[#allocation3 + $0x118] sm:$0xff] %vm578, %v2098
    %2191 = vst.msk [vmem:[#allocation3 + $0x120] sm:$0xff] %vm578, %v2100
    %2192 = vst.msk [vmem:[#allocation3 + $0x128] sm:$0xff] %vm578, %v2102
    %2193 = vst.msk [vmem:[#allocation3 + $0x130] sm:$0xff] %vm578, %v2104
    %2194 = vst.msk [vmem:[#allocation3 + $0x138] sm:$0xff] %vm578, %v2106
    %2195 = vst.msk [vmem:[#allocation3 + $0x140] sm:$0xff] %vm578, %v2108
    %2196 = vst.msk [vmem:[#allocation3 + $0x148] sm:$0xff] %vm578, %v2110
    %2197 = vst.msk [vmem:[#allocation3 + $0x150] sm:$0xff] %vm578, %v2112
    %2198 = vst.msk [vmem:[#allocation3 + $0x158] sm:$0xff] %vm578, %v2114
    %2199 = vst.msk [vmem:[#allocation3 + $0x160] sm:$0xff] %vm578, %v2116
    %2200 = vst.msk [vmem:[#allocation3 + $0x168] sm:$0xff] %vm578, %v2118
    %2201 = vst.msk [vmem:[#allocation3 + $0x170] sm:$0xff] %vm578, %v2120
    %2202 = vst.msk [vmem:[#allocation3 + $0x178] sm:$0xff] %vm578, %v2122
    %2203 = vst.msk [vmem:[#allocation3 + $0x180] sm:$0xff] %vm578, %v2124
    %2204 = vst.msk [vmem:[#allocation3 + $0x188] sm:$0xff] %vm578, %v2126
    %2205 = vst.msk [vmem:[#allocation3 + $0x190] sm:$0xff] %vm578, %v2128
    %2206 = vst.msk [vmem:[#allocation3 + $0x198] sm:$0xff] %vm578, %v2130
    %2207 = vst.msk [vmem:[#allocation3 + $0x1a0] sm:$0xff] %vm578, %v2132
    %2208 = vst.msk [vmem:[#allocation3 + $0x1a8] sm:$0xff] %vm578, %v2134
    %2209 = vst.msk [vmem:[#allocation3 + $0x1b0] sm:$0xff] %vm578, %v2136
    %2210 = vst.msk [vmem:[#allocation3 + $0x1b8] sm:$0xff] %vm578, %v2138
    %2211 = vst.msk [vmem:[#allocation3 + $0x1c0] sm:$0xff] %vm578, %v2140
    %2212 = vst.msk [vmem:[#allocation3 + $0x1c8] sm:$0xff] %vm578, %v2142
    %2213 = vst.msk [vmem:[#allocation3 + $0x1d0] sm:$0xff] %vm578, %v2144
    %2214 = vst.msk [vmem:[#allocation3 + $0x1d8] sm:$0xff] %vm578, %v2146
    %2215 = vst.msk [vmem:[#allocation3 + $0x1e0] sm:$0xff] %vm578, %v2148
    %2216 = vst.msk [vmem:[#allocation3 + $0x1e8] sm:$0xff] %vm578, %v2150
    %2217 = vst.msk [vmem:[#allocation3 + $0x1f0] sm:$0xff] %vm578, %v2152
    %2218 = vst.msk [vmem:[#allocation3 + $0x1f8] sm:$0xff] %vm578, %v2154
    %v2219 = vld [vmem:[%s207 + $0x2] sm:$0xff]
    %v2220 = vld [vmem:[%s207 + $0xa] sm:$0xff]
    %v2221 = vld [vmem:[%s207 + $0x1a] sm:$0xff]
    %v2222 = vld [vmem:[%s207 + $0x22] sm:$0xff]
    %v2223 = vld [vmem:[%s207 + $0x32] sm:$0xff]
    %v2224 = vld [vmem:[%s207 + $0x3a] sm:$0xff]
    %v2225 = vld [vmem:[%s207 + $0x4a] sm:$0xff]
    %v2226 = vld [vmem:[%s207 + $0x52] sm:$0xff]
    %v2227 = vld [vmem:[%s207 + $0x62] sm:$0xff]
    %v2228 = vld [vmem:[%s207 + $0x6a] sm:$0xff]
    %v2229 = vld [vmem:[%s207 + $0x7a] sm:$0xff]
    %v2230 = vld [vmem:[%s207 + $0x82] sm:$0xff]
    %v2231 = vld [vmem:[%s207 + $0x92] sm:$0xff]
    %v2232 = vld [vmem:[%s207 + $0x9a] sm:$0xff]
    %v2233 = vld [vmem:[%s207 + $0xaa] sm:$0xff]
    %v2234 = vld [vmem:[%s207 + $0xb2] sm:$0xff]
    %v2235 = vld [vmem:[%s207 + $0xc2] sm:$0xff]
    %v2236 = vld [vmem:[%s207 + $0xca] sm:$0xff]
    %v2237 = vld [vmem:[%s207 + $0xda] sm:$0xff]
    %v2238 = vld [vmem:[%s207 + $0xe2] sm:$0xff]
    %v2239 = vld [vmem:[%s207 + $0xf2] sm:$0xff]
    %v2240 = vld [vmem:[%s207 + $0xfa] sm:$0xff]
    %v2241 = vld [vmem:[%s207 + $0x10a] sm:$0xff]
    %v2242 = vld [vmem:[%s207 + $0x112] sm:$0xff]
    %v2243 = vld [vmem:[%s207 + $0x122] sm:$0xff]
    %v2244 = vld [vmem:[%s207 + $0x12a] sm:$0xff]
    %v2245 = vld [vmem:[%s207 + $0x13a] sm:$0xff]
    %v2246 = vld [vmem:[%s207 + $0x142] sm:$0xff]
    %v2247 = vld [vmem:[%s207 + $0x152] sm:$0xff]
    %v2248 = vld [vmem:[%s207 + $0x15a] sm:$0xff]
    %v2249 = vld [vmem:[%s207 + $0x16a] sm:$0xff]
    %v2250 = vld [vmem:[%s207 + $0x172] sm:$0xff]
    %2283 = vrot.lane.b32.xlu0 %v2219, 8
    %v2284 = vpop.permute.xlu0 %2283
    %2285 = vrot.lane.b32.xlu0 %v2220, 8
    %v2286 = vpop.permute.xlu0 %2285
    %2287 = vrot.lane.b32.xlu0 %v2221, 8
    %v2288 = vpop.permute.xlu0 %2287
    %2289 = vrot.lane.b32.xlu0 %v2222, 8
    %v2290 = vpop.permute.xlu0 %2289
    %2291 = vrot.lane.b32.xlu0 %v2223, 8
    %v2292 = vpop.permute.xlu0 %2291
    %2293 = vrot.lane.b32.xlu0 %v2224, 8
    %v2294 = vpop.permute.xlu0 %2293
    %2295 = vrot.lane.b32.xlu0 %v2225, 8
    %v2296 = vpop.permute.xlu0 %2295
    %2297 = vrot.lane.b32.xlu0 %v2226, 8
    %v2298 = vpop.permute.xlu0 %2297
    %2299 = vrot.lane.b32.xlu0 %v2227, 8
    %v2300 = vpop.permute.xlu0 %2299
    %2301 = vrot.lane.b32.xlu0 %v2228, 8
    %v2302 = vpop.permute.xlu0 %2301
    %2303 = vrot.lane.b32.xlu0 %v2229, 8
    %v2304 = vpop.permute.xlu0 %2303
    %2305 = vrot.lane.b32.xlu0 %v2230, 8
    %v2306 = vpop.permute.xlu0 %2305
    %2307 = vrot.lane.b32.xlu0 %v2231, 8
    %v2308 = vpop.permute.xlu0 %2307
    %2309 = vrot.lane.b32.xlu0 %v2232, 8
    %v2310 = vpop.permute.xlu0 %2309
    %2311 = vrot.lane.b32.xlu0 %v2233, 8
    %v2312 = vpop.permute.xlu0 %2311
    %2313 = vrot.lane.b32.xlu0 %v2234, 8
    %v2314 = vpop.permute.xlu0 %2313
    %2315 = vrot.lane.b32.xlu0 %v2235, 8
    %v2316 = vpop.permute.xlu0 %2315
    %2317 = vrot.lane.b32.xlu0 %v2236, 8
    %v2318 = vpop.permute.xlu0 %2317
    %2319 = vrot.lane.b32.xlu0 %v2237, 8
    %v2320 = vpop.permute.xlu0 %2319
    %2321 = vrot.lane.b32.xlu0 %v2238, 8
    %v2322 = vpop.permute.xlu0 %2321
    %2323 = vrot.lane.b32.xlu0 %v2239, 8
    %v2324 = vpop.permute.xlu0 %2323
    %2325 = vrot.lane.b32.xlu0 %v2240, 8
    %v2326 = vpop.permute.xlu0 %2325
    %2327 = vrot.lane.b32.xlu0 %v2241, 8
    %v2328 = vpop.permute.xlu0 %2327
    %2329 = vrot.lane.b32.xlu0 %v2242, 8
    %v2330 = vpop.permute.xlu0 %2329
    %2331 = vrot.lane.b32.xlu0 %v2243, 8
    %v2332 = vpop.permute.xlu0 %2331
    %2333 = vrot.lane.b32.xlu0 %v2244, 8
    %v2334 = vpop.permute.xlu0 %2333
    %2335 = vrot.lane.b32.xlu0 %v2245, 8
    %v2336 = vpop.permute.xlu0 %2335
    %2337 = vrot.lane.b32.xlu0 %v2246, 8
    %v2338 = vpop.permute.xlu0 %2337
    %2339 = vrot.lane.b32.xlu0 %v2247, 8
    %v2340 = vpop.permute.xlu0 %2339
    %2341 = vrot.lane.b32.xlu0 %v2248, 8
    %v2342 = vpop.permute.xlu0 %2341
    %2343 = vrot.lane.b32.xlu0 %v2249, 8
    %v2344 = vpop.permute.xlu0 %2343
    %2345 = vrot.lane.b32.xlu0 %v2250, 8
    %v2346 = vpop.permute.xlu0 %2345
    %2379 = vst.msk [vmem:[#allocation3 + $0x100] sm:$0xff] %vm771, %v2284
    %2380 = vst.msk [vmem:[#allocation3 + $0x108] sm:$0xff] %vm771, %v2286
    %2381 = vst.msk [vmem:[#allocation3 + $0x110] sm:$0xff] %vm771, %v2288
    %2382 = vst.msk [vmem:[#allocation3 + $0x118] sm:$0xff] %vm771, %v2290
    %2383 = vst.msk [vmem:[#allocation3 + $0x120] sm:$0xff] %vm771, %v2292
    %2384 = vst.msk [vmem:[#allocation3 + $0x128] sm:$0xff] %vm771, %v2294
    %2385 = vst.msk [vmem:[#allocation3 + $0x130] sm:$0xff] %vm771, %v2296
    %2386 = vst.msk [vmem:[#allocation3 + $0x138] sm:$0xff] %vm771, %v2298
    %2387 = vst.msk [vmem:[#allocation3 + $0x140] sm:$0xff] %vm771, %v2300
    %2388 = vst.msk [vmem:[#allocation3 + $0x148] sm:$0xff] %vm771, %v2302
    %2389 = vst.msk [vmem:[#allocation3 + $0x150] sm:$0xff] %vm771, %v2304
    %2390 = vst.msk [vmem:[#allocation3 + $0x158] sm:$0xff] %vm771, %v2306
    %2391 = vst.msk [vmem:[#allocation3 + $0x160] sm:$0xff] %vm771, %v2308
    %2392 = vst.msk [vmem:[#allocation3 + $0x168] sm:$0xff] %vm771, %v2310
    %2393 = vst.msk [vmem:[#allocation3 + $0x170] sm:$0xff] %vm771, %v2312
    %2394 = vst.msk [vmem:[#allocation3 + $0x178] sm:$0xff] %vm771, %v2314
    %2395 = vst.msk [vmem:[#allocation3 + $0x180] sm:$0xff] %vm771, %v2316
    %2396 = vst.msk [vmem:[#allocation3 + $0x188] sm:$0xff] %vm771, %v2318
    %2397 = vst.msk [vmem:[#allocation3 + $0x190] sm:$0xff] %vm771, %v2320
    %2398 = vst.msk [vmem:[#allocation3 + $0x198] sm:$0xff] %vm771, %v2322
    %2399 = vst.msk [vmem:[#allocation3 + $0x1a0] sm:$0xff] %vm771, %v2324
    %2400 = vst.msk [vmem:[#allocation3 + $0x1a8] sm:$0xff] %vm771, %v2326
    %2401 = vst.msk [vmem:[#allocation3 + $0x1b0] sm:$0xff] %vm771, %v2328
    %2402 = vst.msk [vmem:[#allocation3 + $0x1b8] sm:$0xff] %vm771, %v2330
    %2403 = vst.msk [vmem:[#allocation3 + $0x1c0] sm:$0xff] %vm771, %v2332
    %2404 = vst.msk [vmem:[#allocation3 + $0x1c8] sm:$0xff] %vm771, %v2334
    %2405 = vst.msk [vmem:[#allocation3 + $0x1d0] sm:$0xff] %vm771, %v2336
    %2406 = vst.msk [vmem:[#allocation3 + $0x1d8] sm:$0xff] %vm771, %v2338
    %2407 = vst.msk [vmem:[#allocation3 + $0x1e0] sm:$0xff] %vm771, %v2340
    %2408 = vst.msk [vmem:[#allocation3 + $0x1e8] sm:$0xff] %vm771, %v2342
    %2409 = vst.msk [vmem:[#allocation3 + $0x1f0] sm:$0xff] %vm771, %v2344
    %2410 = vst.msk [vmem:[#allocation3 + $0x1f8] sm:$0xff] %vm771, %v2346
    %v2411 = vld [vmem:[%s215] sm:$0xff]
    %v2412 = vld [vmem:[%s215 + $0x8] sm:$0xff]
    %v2413 = vld [vmem:[%s215 + $0x18] sm:$0xff]
    %v2414 = vld [vmem:[%s215 + $0x20] sm:$0xff]
    %v2415 = vld [vmem:[%s215 + $0x30] sm:$0xff]
    %v2416 = vld [vmem:[%s215 + $0x38] sm:$0xff]
    %v2417 = vld [vmem:[%s215 + $0x48] sm:$0xff]
    %v2418 = vld [vmem:[%s215 + $0x50] sm:$0xff]
    %v2419 = vld [vmem:[%s215 + $0x60] sm:$0xff]
    %v2420 = vld [vmem:[%s215 + $0x68] sm:$0xff]
    %v2421 = vld [vmem:[%s215 + $0x78] sm:$0xff]
    %v2422 = vld [vmem:[%s215 + $0x80] sm:$0xff]
    %v2423 = vld [vmem:[%s215 + $0x90] sm:$0xff]
    %v2424 = vld [vmem:[%s215 + $0x98] sm:$0xff]
    %v2425 = vld [vmem:[%s215 + $0xa8] sm:$0xff]
    %v2426 = vld [vmem:[%s215 + $0xb0] sm:$0xff]
    %v2427 = vld [vmem:[%s215 + $0xc0] sm:$0xff]
    %v2428 = vld [vmem:[%s215 + $0xc8] sm:$0xff]
    %v2429 = vld [vmem:[%s215 + $0xd8] sm:$0xff]
    %v2430 = vld [vmem:[%s215 + $0xe0] sm:$0xff]
    %v2431 = vld [vmem:[%s215 + $0xf0] sm:$0xff]
    %v2432 = vld [vmem:[%s215 + $0xf8] sm:$0xff]
    %v2433 = vld [vmem:[%s215 + $0x108] sm:$0xff]
    %v2434 = vld [vmem:[%s215 + $0x110] sm:$0xff]
    %v2435 = vld [vmem:[%s215 + $0x120] sm:$0xff]
    %v2436 = vld [vmem:[%s215 + $0x128] sm:$0xff]
    %v2437 = vld [vmem:[%s215 + $0x138] sm:$0xff]
    %v2438 = vld [vmem:[%s215 + $0x140] sm:$0xff]
    %v2439 = vld [vmem:[%s215 + $0x150] sm:$0xff]
    %v2440 = vld [vmem:[%s215 + $0x158] sm:$0xff]
    %v2441 = vld [vmem:[%s215 + $0x168] sm:$0xff]
    %v2442 = vld [vmem:[%s215 + $0x170] sm:$0xff]
    %2475 = vrot.lane.b32.xlu0 %v2411, 12
    %v2476 = vpop.permute.xlu0 %2475
    %2477 = vrot.lane.b32.xlu0 %v2412, 12
    %v2478 = vpop.permute.xlu0 %2477
    %2479 = vrot.lane.b32.xlu0 %v2413, 12
    %v2480 = vpop.permute.xlu0 %2479
    %2481 = vrot.lane.b32.xlu0 %v2414, 12
    %v2482 = vpop.permute.xlu0 %2481
    %2483 = vrot.lane.b32.xlu0 %v2415, 12
    %v2484 = vpop.permute.xlu0 %2483
    %2485 = vrot.lane.b32.xlu0 %v2416, 12
    %v2486 = vpop.permute.xlu0 %2485
    %2487 = vrot.lane.b32.xlu0 %v2417, 12
    %v2488 = vpop.permute.xlu0 %2487
    %2489 = vrot.lane.b32.xlu0 %v2418, 12
    %v2490 = vpop.permute.xlu0 %2489
    %2491 = vrot.lane.b32.xlu0 %v2419, 12
    %v2492 = vpop.permute.xlu0 %2491
    %2493 = vrot.lane.b32.xlu0 %v2420, 12
    %v2494 = vpop.permute.xlu0 %2493
    %2495 = vrot.lane.b32.xlu0 %v2421, 12
    %v2496 = vpop.permute.xlu0 %2495
    %2497 = vrot.lane.b32.xlu0 %v2422, 12
    %v2498 = vpop.permute.xlu0 %2497
    %2499 = vrot.lane.b32.xlu0 %v2423, 12
    %v2500 = vpop.permute.xlu0 %2499
    %2501 = vrot.lane.b32.xlu0 %v2424, 12
    %v2502 = vpop.permute.xlu0 %2501
    %2503 = vrot.lane.b32.xlu0 %v2425, 12
    %v2504 = vpop.permute.xlu0 %2503
    %2505 = vrot.lane.b32.xlu0 %v2426, 12
    %v2506 = vpop.permute.xlu0 %2505
    %2507 = vrot.lane.b32.xlu0 %v2427, 12
    %v2508 = vpop.permute.xlu0 %2507
    %2509 = vrot.lane.b32.xlu0 %v2428, 12
    %v2510 = vpop.permute.xlu0 %2509
    %2511 = vrot.lane.b32.xlu0 %v2429, 12
    %v2512 = vpop.permute.xlu0 %2511
    %2513 = vrot.lane.b32.xlu0 %v2430, 12
    %v2514 = vpop.permute.xlu0 %2513
    %2515 = vrot.lane.b32.xlu0 %v2431, 12
    %v2516 = vpop.permute.xlu0 %2515
    %2517 = vrot.lane.b32.xlu0 %v2432, 12
    %v2518 = vpop.permute.xlu0 %2517
    %2519 = vrot.lane.b32.xlu0 %v2433, 12
    %v2520 = vpop.permute.xlu0 %2519
    %2521 = vrot.lane.b32.xlu0 %v2434, 12
    %v2522 = vpop.permute.xlu0 %2521
    %2523 = vrot.lane.b32.xlu0 %v2435, 12
    %v2524 = vpop.permute.xlu0 %2523
    %2525 = vrot.lane.b32.xlu0 %v2436, 12
    %v2526 = vpop.permute.xlu0 %2525
    %2527 = vrot.lane.b32.xlu0 %v2437, 12
    %v2528 = vpop.permute.xlu0 %2527
    %2529 = vrot.lane.b32.xlu0 %v2438, 12
    %v2530 = vpop.permute.xlu0 %2529
    %2531 = vrot.lane.b32.xlu0 %v2439, 12
    %v2532 = vpop.permute.xlu0 %2531
    %2533 = vrot.lane.b32.xlu0 %v2440, 12
    %v2534 = vpop.permute.xlu0 %2533
    %2535 = vrot.lane.b32.xlu0 %v2441, 12
    %v2536 = vpop.permute.xlu0 %2535
    %2537 = vrot.lane.b32.xlu0 %v2442, 12
    %v2538 = vpop.permute.xlu0 %2537
    %2571 = vst.msk [vmem:[#allocation3 + $0x100] sm:$0xff] %vm964, %v2476
    %2572 = vst.msk [vmem:[#allocation3 + $0x108] sm:$0xff] %vm964, %v2478
    %2573 = vst.msk [vmem:[#allocation3 + $0x110] sm:$0xff] %vm964, %v2480
    %2574 = vst.msk [vmem:[#allocation3 + $0x118] sm:$0xff] %vm964, %v2482
    %2575 = vst.msk [vmem:[#allocation3 + $0x120] sm:$0xff] %vm964, %v2484
    %2576 = vst.msk [vmem:[#allocation3 + $0x128] sm:$0xff] %vm964, %v2486
    %2577 = vst.msk [vmem:[#allocation3 + $0x130] sm:$0xff] %vm964, %v2488
    %2578 = vst.msk [vmem:[#allocation3 + $0x138] sm:$0xff] %vm964, %v2490
    %2579 = vst.msk [vmem:[#allocation3 + $0x140] sm:$0xff] %vm964, %v2492
    %2580 = vst.msk [vmem:[#allocation3 + $0x148] sm:$0xff] %vm964, %v2494
    %2581 = vst.msk [vmem:[#allocation3 + $0x150] sm:$0xff] %vm964, %v2496
    %2582 = vst.msk [vmem:[#allocation3 + $0x158] sm:$0xff] %vm964, %v2498
    %2583 = vst.msk [vmem:[#allocation3 + $0x160] sm:$0xff] %vm964, %v2500
    %2584 = vst.msk [vmem:[#allocation3 + $0x168] sm:$0xff] %vm964, %v2502
    %2585 = vst.msk [vmem:[#allocation3 + $0x170] sm:$0xff] %vm964, %v2504
    %2586 = vst.msk [vmem:[#allocation3 + $0x178] sm:$0xff] %vm964, %v2506
    %2587 = vst.msk [vmem:[#allocation3 + $0x180] sm:$0xff] %vm964, %v2508
    %2588 = vst.msk [vmem:[#allocation3 + $0x188] sm:$0xff] %vm964, %v2510
    %2589 = vst.msk [vmem:[#allocation3 + $0x190] sm:$0xff] %vm964, %v2512
    %2590 = vst.msk [vmem:[#allocation3 + $0x198] sm:$0xff] %vm964, %v2514
    %2591 = vst.msk [vmem:[#allocation3 + $0x1a0] sm:$0xff] %vm964, %v2516
    %2592 = vst.msk [vmem:[#allocation3 + $0x1a8] sm:$0xff] %vm964, %v2518
    %2593 = vst.msk [vmem:[#allocation3 + $0x1b0] sm:$0xff] %vm964, %v2520
    %2594 = vst.msk [vmem:[#allocation3 + $0x1b8] sm:$0xff] %vm964, %v2522
    %2595 = vst.msk [vmem:[#allocation3 + $0x1c0] sm:$0xff] %vm964, %v2524
    %2596 = vst.msk [vmem:[#allocation3 + $0x1c8] sm:$0xff] %vm964, %v2526
    %2597 = vst.msk [vmem:[#allocation3 + $0x1d0] sm:$0xff] %vm964, %v2528
    %2598 = vst.msk [vmem:[#allocation3 + $0x1d8] sm:$0xff] %vm964, %v2530
    %2599 = vst.msk [vmem:[#allocation3 + $0x1e0] sm:$0xff] %vm964, %v2532
    %2600 = vst.msk [vmem:[#allocation3 + $0x1e8] sm:$0xff] %vm964, %v2534
    %2601 = vst.msk [vmem:[#allocation3 + $0x1f0] sm:$0xff] %vm964, %v2536
    %2602 = vst.msk [vmem:[#allocation3 + $0x1f8] sm:$0xff] %vm964, %v2538
    %v2603 = vld [vmem:[%s215 + $0x1] sm:$0xff]
    %v2604 = vld [vmem:[%s215 + $0x9] sm:$0xff]
    %v2605 = vld [vmem:[%s215 + $0x19] sm:$0xff]
    %v2606 = vld [vmem:[%s215 + $0x21] sm:$0xff]
    %v2607 = vld [vmem:[%s215 + $0x31] sm:$0xff]
    %v2608 = vld [vmem:[%s215 + $0x39] sm:$0xff]
    %v2609 = vld [vmem:[%s215 + $0x49] sm:$0xff]
    %v2610 = vld [vmem:[%s215 + $0x51] sm:$0xff]
    %v2611 = vld [vmem:[%s215 + $0x61] sm:$0xff]
    %v2612 = vld [vmem:[%s215 + $0x69] sm:$0xff]
    %v2613 = vld [vmem:[%s215 + $0x79] sm:$0xff]
    %v2614 = vld [vmem:[%s215 + $0x81] sm:$0xff]
    %v2615 = vld [vmem:[%s215 + $0x91] sm:$0xff]
    %v2616 = vld [vmem:[%s215 + $0x99] sm:$0xff]
    %v2617 = vld [vmem:[%s215 + $0xa9] sm:$0xff]
    %v2618 = vld [vmem:[%s215 + $0xb1] sm:$0xff]
    %v2619 = vld [vmem:[%s215 + $0xc1] sm:$0xff]
    %v2620 = vld [vmem:[%s215 + $0xc9] sm:$0xff]
    %v2621 = vld [vmem:[%s215 + $0xd9] sm:$0xff]
    %v2622 = vld [vmem:[%s215 + $0xe1] sm:$0xff]
    %v2623 = vld [vmem:[%s215 + $0xf1] sm:$0xff]
    %v2624 = vld [vmem:[%s215 + $0xf9] sm:$0xff]
    %v2625 = vld [vmem:[%s215 + $0x109] sm:$0xff]
    %v2626 = vld [vmem:[%s215 + $0x111] sm:$0xff]
    %v2627 = vld [vmem:[%s215 + $0x121] sm:$0xff]
    %v2628 = vld [vmem:[%s215 + $0x129] sm:$0xff]
    %v2629 = vld [vmem:[%s215 + $0x139] sm:$0xff]
    %v2630 = vld [vmem:[%s215 + $0x141] sm:$0xff]
    %v2631 = vld [vmem:[%s215 + $0x151] sm:$0xff]
    %v2632 = vld [vmem:[%s215 + $0x159] sm:$0xff]
    %v2633 = vld [vmem:[%s215 + $0x169] sm:$0xff]
    %v2634 = vld [vmem:[%s215 + $0x171] sm:$0xff]
    %2667 = vrot.lane.b32.xlu0 %v2603, 16
    %v2668 = vpop.permute.xlu0 %2667
    %2669 = vrot.lane.b32.xlu0 %v2604, 16
    %v2670 = vpop.permute.xlu0 %2669
    %2671 = vrot.lane.b32.xlu0 %v2605, 16
    %v2672 = vpop.permute.xlu0 %2671
    %2673 = vrot.lane.b32.xlu0 %v2606, 16
    %v2674 = vpop.permute.xlu0 %2673
    %2675 = vrot.lane.b32.xlu0 %v2607, 16
    %v2676 = vpop.permute.xlu0 %2675
    %2677 = vrot.lane.b32.xlu0 %v2608, 16
    %v2678 = vpop.permute.xlu0 %2677
    %2679 = vrot.lane.b32.xlu0 %v2609, 16
    %v2680 = vpop.permute.xlu0 %2679
    %2681 = vrot.lane.b32.xlu0 %v2610, 16
    %v2682 = vpop.permute.xlu0 %2681
    %2683 = vrot.lane.b32.xlu0 %v2611, 16
    %v2684 = vpop.permute.xlu0 %2683
    %2685 = vrot.lane.b32.xlu0 %v2612, 16
    %v2686 = vpop.permute.xlu0 %2685
    %2687 = vrot.lane.b32.xlu0 %v2613, 16
    %v2688 = vpop.permute.xlu0 %2687
    %2689 = vrot.lane.b32.xlu0 %v2614, 16
    %v2690 = vpop.permute.xlu0 %2689
    %2691 = vrot.lane.b32.xlu0 %v2615, 16
    %v2692 = vpop.permute.xlu0 %2691
    %2693 = vrot.lane.b32.xlu0 %v2616, 16
    %v2694 = vpop.permute.xlu0 %2693
    %2695 = vrot.lane.b32.xlu0 %v2617, 16
    %v2696 = vpop.permute.xlu0 %2695
    %2697 = vrot.lane.b32.xlu0 %v2618, 16
    %v2698 = vpop.permute.xlu0 %2697
    %2699 = vrot.lane.b32.xlu0 %v2619, 16
    %v2700 = vpop.permute.xlu0 %2699
    %2701 = vrot.lane.b32.xlu0 %v2620, 16
    %v2702 = vpop.permute.xlu0 %2701
    %2703 = vrot.lane.b32.xlu0 %v2621, 16
    %v2704 = vpop.permute.xlu0 %2703
    %2705 = vrot.lane.b32.xlu0 %v2622, 16
    %v2706 = vpop.permute.xlu0 %2705
    %2707 = vrot.lane.b32.xlu0 %v2623, 16
    %v2708 = vpop.permute.xlu0 %2707
    %2709 = vrot.lane.b32.xlu0 %v2624, 16
    %v2710 = vpop.permute.xlu0 %2709
    %2711 = vrot.lane.b32.xlu0 %v2625, 16
    %v2712 = vpop.permute.xlu0 %2711
    %2713 = vrot.lane.b32.xlu0 %v2626, 16
    %v2714 = vpop.permute.xlu0 %2713
    %2715 = vrot.lane.b32.xlu0 %v2627, 16
    %v2716 = vpop.permute.xlu0 %2715
    %2717 = vrot.lane.b32.xlu0 %v2628, 16
    %v2718 = vpop.permute.xlu0 %2717
    %2719 = vrot.lane.b32.xlu0 %v2629, 16
    %v2720 = vpop.permute.xlu0 %2719
    %2721 = vrot.lane.b32.xlu0 %v2630, 16
    %v2722 = vpop.permute.xlu0 %2721
    %2723 = vrot.lane.b32.xlu0 %v2631, 16
    %v2724 = vpop.permute.xlu0 %2723
    %2725 = vrot.lane.b32.xlu0 %v2632, 16
    %v2726 = vpop.permute.xlu0 %2725
    %2727 = vrot.lane.b32.xlu0 %v2633, 16
    %v2728 = vpop.permute.xlu0 %2727
    %2729 = vrot.lane.b32.xlu0 %v2634, 16
    %v2730 = vpop.permute.xlu0 %2729
    %2763 = vst.msk [vmem:[#allocation3 + $0x100] sm:$0xff] %vm1157, %v2668
    %2764 = vst.msk [vmem:[#allocation3 + $0x108] sm:$0xff] %vm1157, %v2670
    %2765 = vst.msk [vmem:[#allocation3 + $0x110] sm:$0xff] %vm1157, %v2672
    %2766 = vst.msk [vmem:[#allocation3 + $0x118] sm:$0xff] %vm1157, %v2674
    %2767 = vst.msk [vmem:[#allocation3 + $0x120] sm:$0xff] %vm1157, %v2676
    %2768 = vst.msk [vmem:[#allocation3 + $0x128] sm:$0xff] %vm1157, %v2678
    %2769 = vst.msk [vmem:[#allocation3 + $0x130] sm:$0xff] %vm1157, %v2680
    %2770 = vst.msk [vmem:[#allocation3 + $0x138] sm:$0xff] %vm1157, %v2682
    %2771 = vst.msk [vmem:[#allocation3 + $0x140] sm:$0xff] %vm1157, %v2684
    %2772 = vst.msk [vmem:[#allocation3 + $0x148] sm:$0xff] %vm1157, %v2686
    %2773 = vst.msk [vmem:[#allocation3 + $0x150] sm:$0xff] %vm1157, %v2688
    %2774 = vst.msk [vmem:[#allocation3 + $0x158] sm:$0xff] %vm1157, %v2690
    %2775 = vst.msk [vmem:[#allocation3 + $0x160] sm:$0xff] %vm1157, %v2692
    %2776 = vst.msk [vmem:[#allocation3 + $0x168] sm:$0xff] %vm1157, %v2694
    %2777 = vst.msk [vmem:[#allocation3 + $0x170] sm:$0xff] %vm1157, %v2696
    %2778 = vst.msk [vmem:[#allocation3 + $0x178] sm:$0xff] %vm1157, %v2698
    %2779 = vst.msk [vmem:[#allocation3 + $0x180] sm:$0xff] %vm1157, %v2700
    %2780 = vst.msk [vmem:[#allocation3 + $0x188] sm:$0xff] %vm1157, %v2702
    %2781 = vst.msk [vmem:[#allocation3 + $0x190] sm:$0xff] %vm1157, %v2704
    %2782 = vst.msk [vmem:[#allocation3 + $0x198] sm:$0xff] %vm1157, %v2706
    %2783 = vst.msk [vmem:[#allocation3 + $0x1a0] sm:$0xff] %vm1157, %v2708
    %2784 = vst.msk [vmem:[#allocation3 + $0x1a8] sm:$0xff] %vm1157, %v2710
    %2785 = vst.msk [vmem:[#allocation3 + $0x1b0] sm:$0xff] %vm1157, %v2712
    %2786 = vst.msk [vmem:[#allocation3 + $0x1b8] sm:$0xff] %vm1157, %v2714
    %2787 = vst.msk [vmem:[#allocation3 + $0x1c0] sm:$0xff] %vm1157, %v2716
    %2788 = vst.msk [vmem:[#allocation3 + $0x1c8] sm:$0xff] %vm1157, %v2718
    %2789 = vst.msk [vmem:[#allocation3 + $0x1d0] sm:$0xff] %vm1157, %v2720
    %2790 = vst.msk [vmem:[#allocation3 + $0x1d8] sm:$0xff] %vm1157, %v2722
    %2791 = vst.msk [vmem:[#allocation3 + $0x1e0] sm:$0xff] %vm1157, %v2724
    %2792 = vst.msk [vmem:[#allocation3 + $0x1e8] sm:$0xff] %vm1157, %v2726
    %2793 = vst.msk [vmem:[#allocation3 + $0x1f0] sm:$0xff] %vm1157, %v2728
    %2794 = vst.msk [vmem:[#allocation3 + $0x1f8] sm:$0xff] %vm1157, %v2730
    %v2795 = vld [vmem:[%s215 + $0x2] sm:$0xff]
    %v2796 = vld [vmem:[%s215 + $0xa] sm:$0xff]
    %v2797 = vld [vmem:[%s215 + $0x1a] sm:$0xff]
    %v2798 = vld [vmem:[%s215 + $0x22] sm:$0xff]
    %v2799 = vld [vmem:[%s215 + $0x32] sm:$0xff]
    %v2800 = vld [vmem:[%s215 + $0x3a] sm:$0xff]
    %v2801 = vld [vmem:[%s215 + $0x4a] sm:$0xff]
    %v2802 = vld [vmem:[%s215 + $0x52] sm:$0xff]
    %v2803 = vld [vmem:[%s215 + $0x62] sm:$0xff]
    %v2804 = vld [vmem:[%s215 + $0x6a] sm:$0xff]
    %v2805 = vld [vmem:[%s215 + $0x7a] sm:$0xff]
    %v2806 = vld [vmem:[%s215 + $0x82] sm:$0xff]
    %v2807 = vld [vmem:[%s215 + $0x92] sm:$0xff]
    %v2808 = vld [vmem:[%s215 + $0x9a] sm:$0xff]
    %v2809 = vld [vmem:[%s215 + $0xaa] sm:$0xff]
    %v2810 = vld [vmem:[%s215 + $0xb2] sm:$0xff]
    %v2811 = vld [vmem:[%s215 + $0xc2] sm:$0xff]
    %v2812 = vld [vmem:[%s215 + $0xca] sm:$0xff]
    %v2813 = vld [vmem:[%s215 + $0xda] sm:$0xff]
    %v2814 = vld [vmem:[%s215 + $0xe2] sm:$0xff]
    %v2815 = vld [vmem:[%s215 + $0xf2] sm:$0xff]
    %v2816 = vld [vmem:[%s215 + $0xfa] sm:$0xff]
    %v2817 = vld [vmem:[%s215 + $0x10a] sm:$0xff]
    %v2818 = vld [vmem:[%s215 + $0x112] sm:$0xff]
    %v2819 = vld [vmem:[%s215 + $0x122] sm:$0xff]
    %v2820 = vld [vmem:[%s215 + $0x12a] sm:$0xff]
    %v2821 = vld [vmem:[%s215 + $0x13a] sm:$0xff]
    %v2822 = vld [vmem:[%s215 + $0x142] sm:$0xff]
    %v2823 = vld [vmem:[%s215 + $0x152] sm:$0xff]
    %v2824 = vld [vmem:[%s215 + $0x15a] sm:$0xff]
    %v2825 = vld [vmem:[%s215 + $0x16a] sm:$0xff]
    %v2826 = vld [vmem:[%s215 + $0x172] sm:$0xff]
    %2859 = vrot.lane.b32.xlu0 %v2795, 20
    %v2860 = vpop.permute.xlu0 %2859
    %2861 = vrot.lane.b32.xlu0 %v2796, 20
    %v2862 = vpop.permute.xlu0 %2861
    %2863 = vrot.lane.b32.xlu0 %v2797, 20
    %v2864 = vpop.permute.xlu0 %2863
    %2865 = vrot.lane.b32.xlu0 %v2798, 20
    %v2866 = vpop.permute.xlu0 %2865
    %2867 = vrot.lane.b32.xlu0 %v2799, 20
    %v2868 = vpop.permute.xlu0 %2867
    %2869 = vrot.lane.b32.xlu0 %v2800, 20
    %v2870 = vpop.permute.xlu0 %2869
    %2871 = vrot.lane.b32.xlu0 %v2801, 20
    %v2872 = vpop.permute.xlu0 %2871
    %2873 = vrot.lane.b32.xlu0 %v2802, 20
    %v2874 = vpop.permute.xlu0 %2873
    %2875 = vrot.lane.b32.xlu0 %v2803, 20
    %v2876 = vpop.permute.xlu0 %2875
    %2877 = vrot.lane.b32.xlu0 %v2804, 20
    %v2878 = vpop.permute.xlu0 %2877
    %2879 = vrot.lane.b32.xlu0 %v2805, 20
    %v2880 = vpop.permute.xlu0 %2879
    %2881 = vrot.lane.b32.xlu0 %v2806, 20
    %v2882 = vpop.permute.xlu0 %2881
    %2883 = vrot.lane.b32.xlu0 %v2807, 20
    %v2884 = vpop.permute.xlu0 %2883
    %2885 = vrot.lane.b32.xlu0 %v2808, 20
    %v2886 = vpop.permute.xlu0 %2885
    %2887 = vrot.lane.b32.xlu0 %v2809, 20
    %v2888 = vpop.permute.xlu0 %2887
    %2889 = vrot.lane.b32.xlu0 %v2810, 20
    %v2890 = vpop.permute.xlu0 %2889
    %2891 = vrot.lane.b32.xlu0 %v2811, 20
    %v2892 = vpop.permute.xlu0 %2891
    %2893 = vrot.lane.b32.xlu0 %v2812, 20
    %v2894 = vpop.permute.xlu0 %2893
    %2895 = vrot.lane.b32.xlu0 %v2813, 20
    %v2896 = vpop.permute.xlu0 %2895
    %2897 = vrot.lane.b32.xlu0 %v2814, 20
    %v2898 = vpop.permute.xlu0 %2897
    %2899 = vrot.lane.b32.xlu0 %v2815, 20
    %v2900 = vpop.permute.xlu0 %2899
    %2901 = vrot.lane.b32.xlu0 %v2816, 20
    %v2902 = vpop.permute.xlu0 %2901
    %2903 = vrot.lane.b32.xlu0 %v2817, 20
    %v2904 = vpop.permute.xlu0 %2903
    %2905 = vrot.lane.b32.xlu0 %v2818, 20
    %v2906 = vpop.permute.xlu0 %2905
    %2907 = vrot.lane.b32.xlu0 %v2819, 20
    %v2908 = vpop.permute.xlu0 %2907
    %2909 = vrot.lane.b32.xlu0 %v2820, 20
    %v2910 = vpop.permute.xlu0 %2909
    %2911 = vrot.lane.b32.xlu0 %v2821, 20
    %v2912 = vpop.permute.xlu0 %2911
    %2913 = vrot.lane.b32.xlu0 %v2822, 20
    %v2914 = vpop.permute.xlu0 %2913
    %2915 = vrot.lane.b32.xlu0 %v2823, 20
    %v2916 = vpop.permute.xlu0 %2915
    %2917 = vrot.lane.b32.xlu0 %v2824, 20
    %v2918 = vpop.permute.xlu0 %2917
    %2919 = vrot.lane.b32.xlu0 %v2825, 20
    %v2920 = vpop.permute.xlu0 %2919
    %2921 = vrot.lane.b32.xlu0 %v2826, 20
    %v2922 = vpop.permute.xlu0 %2921
    %2955 = vst.msk [vmem:[#allocation3 + $0x100] sm:$0xff] %vm1350, %v2860
    %2956 = vst.msk [vmem:[#allocation3 + $0x108] sm:$0xff] %vm1350, %v2862
    %2957 = vst.msk [vmem:[#allocation3 + $0x110] sm:$0xff] %vm1350, %v2864
    %2958 = vst.msk [vmem:[#allocation3 + $0x118] sm:$0xff] %vm1350, %v2866
    %2959 = vst.msk [vmem:[#allocation3 + $0x120] sm:$0xff] %vm1350, %v2868
    %2960 = vst.msk [vmem:[#allocation3 + $0x128] sm:$0xff] %vm1350, %v2870
    %2961 = vst.msk [vmem:[#allocation3 + $0x130] sm:$0xff] %vm1350, %v2872
    %2962 = vst.msk [vmem:[#allocation3 + $0x138] sm:$0xff] %vm1350, %v2874
    %2963 = vst.msk [vmem:[#allocation3 + $0x140] sm:$0xff] %vm1350, %v2876
    %2964 = vst.msk [vmem:[#allocation3 + $0x148] sm:$0xff] %vm1350, %v2878
    %2965 = vst.msk [vmem:[#allocation3 + $0x150] sm:$0xff] %vm1350, %v2880
    %2966 = vst.msk [vmem:[#allocation3 + $0x158] sm:$0xff] %vm1350, %v2882
    %2967 = vst.msk [vmem:[#allocation3 + $0x160] sm:$0xff] %vm1350, %v2884
    %2968 = vst.msk [vmem:[#allocation3 + $0x168] sm:$0xff] %vm1350, %v2886
    %2969 = vst.msk [vmem:[#allocation3 + $0x170] sm:$0xff] %vm1350, %v2888
    %2970 = vst.msk [vmem:[#allocation3 + $0x178] sm:$0xff] %vm1350, %v2890
    %2971 = vst.msk [vmem:[#allocation3 + $0x180] sm:$0xff] %vm1350, %v2892
    %2972 = vst.msk [vmem:[#allocation3 + $0x188] sm:$0xff] %vm1350, %v2894
    %2973 = vst.msk [vmem:[#allocation3 + $0x190] sm:$0xff] %vm1350, %v2896
    %2974 = vst.msk [vmem:[#allocation3 + $0x198] sm:$0xff] %vm1350, %v2898
    %2975 = vst.msk [vmem:[#allocation3 + $0x1a0] sm:$0xff] %vm1350, %v2900
    %2976 = vst.msk [vmem:[#allocation3 + $0x1a8] sm:$0xff] %vm1350, %v2902
    %2977 = vst.msk [vmem:[#allocation3 + $0x1b0] sm:$0xff] %vm1350, %v2904
    %2978 = vst.msk [vmem:[#allocation3 + $0x1b8] sm:$0xff] %vm1350, %v2906
    %2979 = vst.msk [vmem:[#allocation3 + $0x1c0] sm:$0xff] %vm1350, %v2908
    %2980 = vst.msk [vmem:[#allocation3 + $0x1c8] sm:$0xff] %vm1350, %v2910
    %2981 = vst.msk [vmem:[#allocation3 + $0x1d0] sm:$0xff] %vm1350, %v2912
    %2982 = vst.msk [vmem:[#allocation3 + $0x1d8] sm:$0xff] %vm1350, %v2914
    %2983 = vst.msk [vmem:[#allocation3 + $0x1e0] sm:$0xff] %vm1350, %v2916
    %2984 = vst.msk [vmem:[#allocation3 + $0x1e8] sm:$0xff] %vm1350, %v2918
    %2985 = vst.msk [vmem:[#allocation3 + $0x1f0] sm:$0xff] %vm1350, %v2920
    %2986 = vst.msk [vmem:[#allocation3 + $0x1f8] sm:$0xff] %vm1350, %v2922
    %s2987 = scalar_lea.vmem [#allocation2], 480
    %v2988 = vld [vmem:[%s2987] sm:$0xff]
    %v2989 = vld [vmem:[%s2987 + $0x8] sm:$0xff]
    %v2990 = vld [vmem:[%s2987 + $0x18] sm:$0xff]
    %v2991 = vld [vmem:[%s2987 + $0x20] sm:$0xff]
    %v2992 = vld [vmem:[%s2987 + $0x30] sm:$0xff]
    %v2993 = vld [vmem:[%s2987 + $0x38] sm:$0xff]
    %v2994 = vld [vmem:[%s2987 + $0x48] sm:$0xff]
    %v2995 = vld [vmem:[%s2987 + $0x50] sm:$0xff]
    %v2996 = vld [vmem:[%s2987 + $0x60] sm:$0xff]
    %v2997 = vld [vmem:[%s2987 + $0x68] sm:$0xff]
    %v2998 = vld [vmem:[%s2987 + $0x78] sm:$0xff]
    %v2999 = vld [vmem:[%s2987 + $0x80] sm:$0xff]
    %v3000 = vld [vmem:[%s2987 + $0x90] sm:$0xff]
    %v3001 = vld [vmem:[%s2987 + $0x98] sm:$0xff]
    %v3002 = vld [vmem:[%s2987 + $0xa8] sm:$0xff]
    %v3003 = vld [vmem:[%s2987 + $0xb0] sm:$0xff]
    %v3004 = vld [vmem:[%s2987 + $0xc0] sm:$0xff]
    %v3005 = vld [vmem:[%s2987 + $0xc8] sm:$0xff]
    %v3006 = vld [vmem:[%s2987 + $0xd8] sm:$0xff]
    %v3007 = vld [vmem:[%s2987 + $0xe0] sm:$0xff]
    %v3008 = vld [vmem:[%s2987 + $0xf0] sm:$0xff]
    %v3009 = vld [vmem:[%s2987 + $0xf8] sm:$0xff]
    %v3010 = vld [vmem:[%s2987 + $0x108] sm:$0xff]
    %v3011 = vld [vmem:[%s2987 + $0x110] sm:$0xff]
    %v3012 = vld [vmem:[%s2987 + $0x120] sm:$0xff]
    %v3013 = vld [vmem:[%s2987 + $0x128] sm:$0xff]
    %v3014 = vld [vmem:[%s2987 + $0x138] sm:$0xff]
    %v3015 = vld [vmem:[%s2987 + $0x140] sm:$0xff]
    %v3016 = vld [vmem:[%s2987 + $0x150] sm:$0xff]
    %v3017 = vld [vmem:[%s2987 + $0x158] sm:$0xff]
    %v3018 = vld [vmem:[%s2987 + $0x168] sm:$0xff]
    %v3019 = vld [vmem:[%s2987 + $0x170] sm:$0xff]
    %3052 = vrot.lane.b32.xlu0 %v2988, 24
    %v3053 = vpop.permute.xlu0 %3052
    %3054 = vrot.lane.b32.xlu0 %v2989, 24
    %v3055 = vpop.permute.xlu0 %3054
    %3056 = vrot.lane.b32.xlu0 %v2990, 24
    %v3057 = vpop.permute.xlu0 %3056
    %3058 = vrot.lane.b32.xlu0 %v2991, 24
    %v3059 = vpop.permute.xlu0 %3058
    %3060 = vrot.lane.b32.xlu0 %v2992, 24
    %v3061 = vpop.permute.xlu0 %3060
    %3062 = vrot.lane.b32.xlu0 %v2993, 24
    %v3063 = vpop.permute.xlu0 %3062
    %3064 = vrot.lane.b32.xlu0 %v2994, 24
    %v3065 = vpop.permute.xlu0 %3064
    %3066 = vrot.lane.b32.xlu0 %v2995, 24
    %v3067 = vpop.permute.xlu0 %3066
    %3068 = vrot.lane.b32.xlu0 %v2996, 24
    %v3069 = vpop.permute.xlu0 %3068
    %3070 = vrot.lane.b32.xlu0 %v2997, 24
    %v3071 = vpop.permute.xlu0 %3070
    %3072 = vrot.lane.b32.xlu0 %v2998, 24
    %v3073 = vpop.permute.xlu0 %3072
    %3074 = vrot.lane.b32.xlu0 %v2999, 24
    %v3075 = vpop.permute.xlu0 %3074
    %3076 = vrot.lane.b32.xlu0 %v3000, 24
    %v3077 = vpop.permute.xlu0 %3076
    %3078 = vrot.lane.b32.xlu0 %v3001, 24
    %v3079 = vpop.permute.xlu0 %3078
    %3080 = vrot.lane.b32.xlu0 %v3002, 24
    %v3081 = vpop.permute.xlu0 %3080
    %3082 = vrot.lane.b32.xlu0 %v3003, 24
    %v3083 = vpop.permute.xlu0 %3082
    %3084 = vrot.lane.b32.xlu0 %v3004, 24
    %v3085 = vpop.permute.xlu0 %3084
    %3086 = vrot.lane.b32.xlu0 %v3005, 24
    %v3087 = vpop.permute.xlu0 %3086
    %3088 = vrot.lane.b32.xlu0 %v3006, 24
    %v3089 = vpop.permute.xlu0 %3088
    %3090 = vrot.lane.b32.xlu0 %v3007, 24
    %v3091 = vpop.permute.xlu0 %3090
    %3092 = vrot.lane.b32.xlu0 %v3008, 24
    %v3093 = vpop.permute.xlu0 %3092
    %3094 = vrot.lane.b32.xlu0 %v3009, 24
    %v3095 = vpop.permute.xlu0 %3094
    %3096 = vrot.lane.b32.xlu0 %v3010, 24
    %v3097 = vpop.permute.xlu0 %3096
    %3098 = vrot.lane.b32.xlu0 %v3011, 24
    %v3099 = vpop.permute.xlu0 %3098
    %3100 = vrot.lane.b32.xlu0 %v3012, 24
    %v3101 = vpop.permute.xlu0 %3100
    %3102 = vrot.lane.b32.xlu0 %v3013, 24
    %v3103 = vpop.permute.xlu0 %3102
    %3104 = vrot.lane.b32.xlu0 %v3014, 24
    %v3105 = vpop.permute.xlu0 %3104
    %3106 = vrot.lane.b32.xlu0 %v3015, 24
    %v3107 = vpop.permute.xlu0 %3106
    %3108 = vrot.lane.b32.xlu0 %v3016, 24
    %v3109 = vpop.permute.xlu0 %3108
    %3110 = vrot.lane.b32.xlu0 %v3017, 24
    %v3111 = vpop.permute.xlu0 %3110
    %3112 = vrot.lane.b32.xlu0 %v3018, 24
    %v3113 = vpop.permute.xlu0 %3112
    %3114 = vrot.lane.b32.xlu0 %v3019, 24
    %v3115 = vpop.permute.xlu0 %3114
    %3148 = vst.msk [vmem:[#allocation3 + $0x100] sm:$0xff] %vm1544, %v3053
    %3149 = vst.msk [vmem:[#allocation3 + $0x108] sm:$0xff] %vm1544, %v3055
    %3150 = vst.msk [vmem:[#allocation3 + $0x110] sm:$0xff] %vm1544, %v3057
    %3151 = vst.msk [vmem:[#allocation3 + $0x118] sm:$0xff] %vm1544, %v3059
    %3152 = vst.msk [vmem:[#allocation3 + $0x120] sm:$0xff] %vm1544, %v3061
    %3153 = vst.msk [vmem:[#allocation3 + $0x128] sm:$0xff] %vm1544, %v3063
    %3154 = vst.msk [vmem:[#allocation3 + $0x130] sm:$0xff] %vm1544, %v3065
    %3155 = vst.msk [vmem:[#allocation3 + $0x138] sm:$0xff] %vm1544, %v3067
    %3156 = vst.msk [vmem:[#allocation3 + $0x140] sm:$0xff] %vm1544, %v3069
    %3157 = vst.msk [vmem:[#allocation3 + $0x148] sm:$0xff] %vm1544, %v3071
    %3158 = vst.msk [vmem:[#allocation3 + $0x150] sm:$0xff] %vm1544, %v3073
    %3159 = vst.msk [vmem:[#allocation3 + $0x158] sm:$0xff] %vm1544, %v3075
    %3160 = vst.msk [vmem:[#allocation3 + $0x160] sm:$0xff] %vm1544, %v3077
    %3161 = vst.msk [vmem:[#allocation3 + $0x168] sm:$0xff] %vm1544, %v3079
    %3162 = vst.msk [vmem:[#allocation3 + $0x170] sm:$0xff] %vm1544, %v3081
    %3163 = vst.msk [vmem:[#allocation3 + $0x178] sm:$0xff] %vm1544, %v3083
    %3164 = vst.msk [vmem:[#allocation3 + $0x180] sm:$0xff] %vm1544, %v3085
    %3165 = vst.msk [vmem:[#allocation3 + $0x188] sm:$0xff] %vm1544, %v3087
    %3166 = vst.msk [vmem:[#allocation3 + $0x190] sm:$0xff] %vm1544, %v3089
    %3167 = vst.msk [vmem:[#allocation3 + $0x198] sm:$0xff] %vm1544, %v3091
    %3168 = vst.msk [vmem:[#allocation3 + $0x1a0] sm:$0xff] %vm1544, %v3093
    %3169 = vst.msk [vmem:[#allocation3 + $0x1a8] sm:$0xff] %vm1544, %v3095
    %3170 = vst.msk [vmem:[#allocation3 + $0x1b0] sm:$0xff] %vm1544, %v3097
    %3171 = vst.msk [vmem:[#allocation3 + $0x1b8] sm:$0xff] %vm1544, %v3099
    %3172 = vst.msk [vmem:[#allocation3 + $0x1c0] sm:$0xff] %vm1544, %v3101
    %3173 = vst.msk [vmem:[#allocation3 + $0x1c8] sm:$0xff] %vm1544, %v3103
    %3174 = vst.msk [vmem:[#allocation3 + $0x1d0] sm:$0xff] %vm1544, %v3105
    %3175 = vst.msk [vmem:[#allocation3 + $0x1d8] sm:$0xff] %vm1544, %v3107
    %3176 = vst.msk [vmem:[#allocation3 + $0x1e0] sm:$0xff] %vm1544, %v3109
    %3177 = vst.msk [vmem:[#allocation3 + $0x1e8] sm:$0xff] %vm1544, %v3111
    %3178 = vst.msk [vmem:[#allocation3 + $0x1f0] sm:$0xff] %vm1544, %v3113
    %3179 = vst.msk [vmem:[#allocation3 + $0x1f8] sm:$0xff] %vm1544, %v3115
    %v3180 = vld [vmem:[%s2987 + $0x1] sm:$0xff]
    %v3181 = vld [vmem:[%s2987 + $0x9] sm:$0xff]
    %v3182 = vld [vmem:[%s2987 + $0x19] sm:$0xff]
    %v3183 = vld [vmem:[%s2987 + $0x21] sm:$0xff]
    %v3184 = vld [vmem:[%s2987 + $0x31] sm:$0xff]
    %v3185 = vld [vmem:[%s2987 + $0x39] sm:$0xff]
    %v3186 = vld [vmem:[%s2987 + $0x49] sm:$0xff]
    %v3187 = vld [vmem:[%s2987 + $0x51] sm:$0xff]
    %v3188 = vld [vmem:[%s2987 + $0x61] sm:$0xff]
    %v3189 = vld [vmem:[%s2987 + $0x69] sm:$0xff]
    %v3190 = vld [vmem:[%s2987 + $0x79] sm:$0xff]
    %v3191 = vld [vmem:[%s2987 + $0x81] sm:$0xff]
    %v3192 = vld [vmem:[%s2987 + $0x91] sm:$0xff]
    %v3193 = vld [vmem:[%s2987 + $0x99] sm:$0xff]
    %v3194 = vld [vmem:[%s2987 + $0xa9] sm:$0xff]
    %v3195 = vld [vmem:[%s2987 + $0xb1] sm:$0xff]
    %v3196 = vld [vmem:[%s2987 + $0xc1] sm:$0xff]
    %v3197 = vld [vmem:[%s2987 + $0xc9] sm:$0xff]
    %v3198 = vld [vmem:[%s2987 + $0xd9] sm:$0xff]
    %v3199 = vld [vmem:[%s2987 + $0xe1] sm:$0xff]
    %v3200 = vld [vmem:[%s2987 + $0xf1] sm:$0xff]
    %v3201 = vld [vmem:[%s2987 + $0xf9] sm:$0xff]
    %v3202 = vld [vmem:[%s2987 + $0x109] sm:$0xff]
    %v3203 = vld [vmem:[%s2987 + $0x111] sm:$0xff]
    %v3204 = vld [vmem:[%s2987 + $0x121] sm:$0xff]
    %v3205 = vld [vmem:[%s2987 + $0x129] sm:$0xff]
    %v3206 = vld [vmem:[%s2987 + $0x139] sm:$0xff]
    %v3207 = vld [vmem:[%s2987 + $0x141] sm:$0xff]
    %v3208 = vld [vmem:[%s2987 + $0x151] sm:$0xff]
    %v3209 = vld [vmem:[%s2987 + $0x159] sm:$0xff]
    %v3210 = vld [vmem:[%s2987 + $0x169] sm:$0xff]
    %v3211 = vld [vmem:[%s2987 + $0x171] sm:$0xff]
    %3244 = vrot.lane.b32.xlu0 %v3180, 28
    %v3245 = vpop.permute.xlu0 %3244
    %3246 = vrot.lane.b32.xlu0 %v3181, 28
    %v3247 = vpop.permute.xlu0 %3246
    %3248 = vrot.lane.b32.xlu0 %v3182, 28
    %v3249 = vpop.permute.xlu0 %3248
    %3250 = vrot.lane.b32.xlu0 %v3183, 28
    %v3251 = vpop.permute.xlu0 %3250
    %3252 = vrot.lane.b32.xlu0 %v3184, 28
    %v3253 = vpop.permute.xlu0 %3252
    %3254 = vrot.lane.b32.xlu0 %v3185, 28
    %v3255 = vpop.permute.xlu0 %3254
    %3256 = vrot.lane.b32.xlu0 %v3186, 28
    %v3257 = vpop.permute.xlu0 %3256
    %3258 = vrot.lane.b32.xlu0 %v3187, 28
    %v3259 = vpop.permute.xlu0 %3258
    %3260 = vrot.lane.b32.xlu0 %v3188, 28
    %v3261 = vpop.permute.xlu0 %3260
    %3262 = vrot.lane.b32.xlu0 %v3189, 28
    %v3263 = vpop.permute.xlu0 %3262
    %3264 = vrot.lane.b32.xlu0 %v3190, 28
    %v3265 = vpop.permute.xlu0 %3264
    %3266 = vrot.lane.b32.xlu0 %v3191, 28
    %v3267 = vpop.permute.xlu0 %3266
    %3268 = vrot.lane.b32.xlu0 %v3192, 28
    %v3269 = vpop.permute.xlu0 %3268
    %3270 = vrot.lane.b32.xlu0 %v3193, 28
    %v3271 = vpop.permute.xlu0 %3270
    %3272 = vrot.lane.b32.xlu0 %v3194, 28
    %v3273 = vpop.permute.xlu0 %3272
    %3274 = vrot.lane.b32.xlu0 %v3195, 28
    %v3275 = vpop.permute.xlu0 %3274
    %3276 = vrot.lane.b32.xlu0 %v3196, 28
    %v3277 = vpop.permute.xlu0 %3276
    %3278 = vrot.lane.b32.xlu0 %v3197, 28
    %v3279 = vpop.permute.xlu0 %3278
    %3280 = vrot.lane.b32.xlu0 %v3198, 28
    %v3281 = vpop.permute.xlu0 %3280
    %3282 = vrot.lane.b32.xlu0 %v3199, 28
    %v3283 = vpop.permute.xlu0 %3282
    %3284 = vrot.lane.b32.xlu0 %v3200, 28
    %v3285 = vpop.permute.xlu0 %3284
    %3286 = vrot.lane.b32.xlu0 %v3201, 28
    %v3287 = vpop.permute.xlu0 %3286
    %3288 = vrot.lane.b32.xlu0 %v3202, 28
    %v3289 = vpop.permute.xlu0 %3288
    %3290 = vrot.lane.b32.xlu0 %v3203, 28
    %v3291 = vpop.permute.xlu0 %3290
    %3292 = vrot.lane.b32.xlu0 %v3204, 28
    %v3293 = vpop.permute.xlu0 %3292
    %3294 = vrot.lane.b32.xlu0 %v3205, 28
    %v3295 = vpop.permute.xlu0 %3294
    %3296 = vrot.lane.b32.xlu0 %v3206, 28
    %v3297 = vpop.permute.xlu0 %3296
    %3298 = vrot.lane.b32.xlu0 %v3207, 28
    %v3299 = vpop.permute.xlu0 %3298
    %3300 = vrot.lane.b32.xlu0 %v3208, 28
    %v3301 = vpop.permute.xlu0 %3300
    %3302 = vrot.lane.b32.xlu0 %v3209, 28
    %v3303 = vpop.permute.xlu0 %3302
    %3304 = vrot.lane.b32.xlu0 %v3210, 28
    %v3305 = vpop.permute.xlu0 %3304
    %3306 = vrot.lane.b32.xlu0 %v3211, 28
    %v3307 = vpop.permute.xlu0 %3306
    %3340 = vst.msk [vmem:[#allocation3 + $0x100] sm:$0xff] %vm1737, %v3245
    %3341 = vst.msk [vmem:[#allocation3 + $0x108] sm:$0xff] %vm1737, %v3247
    %3342 = vst.msk [vmem:[#allocation3 + $0x110] sm:$0xff] %vm1737, %v3249
    %3343 = vst.msk [vmem:[#allocation3 + $0x118] sm:$0xff] %vm1737, %v3251
    %3344 = vst.msk [vmem:[#allocation3 + $0x120] sm:$0xff] %vm1737, %v3253
    %3345 = vst.msk [vmem:[#allocation3 + $0x128] sm:$0xff] %vm1737, %v3255
    %3346 = vst.msk [vmem:[#allocation3 + $0x130] sm:$0xff] %vm1737, %v3257
    %3347 = vst.msk [vmem:[#allocation3 + $0x138] sm:$0xff] %vm1737, %v3259
    %3348 = vst.msk [vmem:[#allocation3 + $0x140] sm:$0xff] %vm1737, %v3261
    %3349 = vst.msk [vmem:[#allocation3 + $0x148] sm:$0xff] %vm1737, %v3263
    %3350 = vst.msk [vmem:[#allocation3 + $0x150] sm:$0xff] %vm1737, %v3265
    %3351 = vst.msk [vmem:[#allocation3 + $0x158] sm:$0xff] %vm1737, %v3267
    %3352 = vst.msk [vmem:[#allocation3 + $0x160] sm:$0xff] %vm1737, %v3269
    %3353 = vst.msk [vmem:[#allocation3 + $0x168] sm:$0xff] %vm1737, %v3271
    %3354 = vst.msk [vmem:[#allocation3 + $0x170] sm:$0xff] %vm1737, %v3273
    %3355 = vst.msk [vmem:[#allocation3 + $0x178] sm:$0xff] %vm1737, %v3275
    %3356 = vst.msk [vmem:[#allocation3 + $0x180] sm:$0xff] %vm1737, %v3277
    %3357 = vst.msk [vmem:[#allocation3 + $0x188] sm:$0xff] %vm1737, %v3279
    %3358 = vst.msk [vmem:[#allocation3 + $0x190] sm:$0xff] %vm1737, %v3281
    %3359 = vst.msk [vmem:[#allocation3 + $0x198] sm:$0xff] %vm1737, %v3283
    %3360 = vst.msk [vmem:[#allocation3 + $0x1a0] sm:$0xff] %vm1737, %v3285
    %3361 = vst.msk [vmem:[#allocation3 + $0x1a8] sm:$0xff] %vm1737, %v3287
    %3362 = vst.msk [vmem:[#allocation3 + $0x1b0] sm:$0xff] %vm1737, %v3289
    %3363 = vst.msk [vmem:[#allocation3 + $0x1b8] sm:$0xff] %vm1737, %v3291
    %3364 = vst.msk [vmem:[#allocation3 + $0x1c0] sm:$0xff] %vm1737, %v3293
    %3365 = vst.msk [vmem:[#allocation3 + $0x1c8] sm:$0xff] %vm1737, %v3295
    %3366 = vst.msk [vmem:[#allocation3 + $0x1d0] sm:$0xff] %vm1737, %v3297
    %3367 = vst.msk [vmem:[#allocation3 + $0x1d8] sm:$0xff] %vm1737, %v3299
    %3368 = vst.msk [vmem:[#allocation3 + $0x1e0] sm:$0xff] %vm1737, %v3301
    %3369 = vst.msk [vmem:[#allocation3 + $0x1e8] sm:$0xff] %vm1737, %v3303
    %3370 = vst.msk [vmem:[#allocation3 + $0x1f0] sm:$0xff] %vm1737, %v3305
    %3371 = vst.msk [vmem:[#allocation3 + $0x1f8] sm:$0xff] %vm1737, %v3307
    %v3372 = vld [vmem:[%s2987 + $0x2] sm:$0xff]
    %v3373 = vld [vmem:[%s2987 + $0xa] sm:$0xff]
    %v3374 = vld [vmem:[%s2987 + $0x1a] sm:$0xff]
    %v3375 = vld [vmem:[%s2987 + $0x22] sm:$0xff]
    %v3376 = vld [vmem:[%s2987 + $0x32] sm:$0xff]
    %v3377 = vld [vmem:[%s2987 + $0x3a] sm:$0xff]
    %v3378 = vld [vmem:[%s2987 + $0x4a] sm:$0xff]
    %v3379 = vld [vmem:[%s2987 + $0x52] sm:$0xff]
    %v3380 = vld [vmem:[%s2987 + $0x62] sm:$0xff]
    %v3381 = vld [vmem:[%s2987 + $0x6a] sm:$0xff]
    %v3382 = vld [vmem:[%s2987 + $0x7a] sm:$0xff]
    %v3383 = vld [vmem:[%s2987 + $0x82] sm:$0xff]
    %v3384 = vld [vmem:[%s2987 + $0x92] sm:$0xff]
    %v3385 = vld [vmem:[%s2987 + $0x9a] sm:$0xff]
    %v3386 = vld [vmem:[%s2987 + $0xaa] sm:$0xff]
    %v3387 = vld [vmem:[%s2987 + $0xb2] sm:$0xff]
    %v3388 = vld [vmem:[%s2987 + $0xc2] sm:$0xff]
    %v3389 = vld [vmem:[%s2987 + $0xca] sm:$0xff]
    %v3390 = vld [vmem:[%s2987 + $0xda] sm:$0xff]
    %v3391 = vld [vmem:[%s2987 + $0xe2] sm:$0xff]
    %v3392 = vld [vmem:[%s2987 + $0xf2] sm:$0xff]
    %v3393 = vld [vmem:[%s2987 + $0xfa] sm:$0xff]
    %v3394 = vld [vmem:[%s2987 + $0x10a] sm:$0xff]
    %v3395 = vld [vmem:[%s2987 + $0x112] sm:$0xff]
    %v3396 = vld [vmem:[%s2987 + $0x122] sm:$0xff]
    %v3397 = vld [vmem:[%s2987 + $0x12a] sm:$0xff]
    %v3398 = vld [vmem:[%s2987 + $0x13a] sm:$0xff]
    %v3399 = vld [vmem:[%s2987 + $0x142] sm:$0xff]
    %v3400 = vld [vmem:[%s2987 + $0x152] sm:$0xff]
    %v3401 = vld [vmem:[%s2987 + $0x15a] sm:$0xff]
    %v3402 = vld [vmem:[%s2987 + $0x16a] sm:$0xff]
    %v3403 = vld [vmem:[%s2987 + $0x172] sm:$0xff]
    %3436 = vrot.lane.b32.xlu0 %v3372, 32
    %v3437 = vpop.permute.xlu0 %3436
    %3438 = vrot.lane.b32.xlu0 %v3373, 32
    %v3439 = vpop.permute.xlu0 %3438
    %3440 = vrot.lane.b32.xlu0 %v3374, 32
    %v3441 = vpop.permute.xlu0 %3440
    %3442 = vrot.lane.b32.xlu0 %v3375, 32
    %v3443 = vpop.permute.xlu0 %3442
    %3444 = vrot.lane.b32.xlu0 %v3376, 32
    %v3445 = vpop.permute.xlu0 %3444
    %3446 = vrot.lane.b32.xlu0 %v3377, 32
    %v3447 = vpop.permute.xlu0 %3446
    %3448 = vrot.lane.b32.xlu0 %v3378, 32
    %v3449 = vpop.permute.xlu0 %3448
    %3450 = vrot.lane.b32.xlu0 %v3379, 32
    %v3451 = vpop.permute.xlu0 %3450
    %3452 = vrot.lane.b32.xlu0 %v3380, 32
    %v3453 = vpop.permute.xlu0 %3452
    %3454 = vrot.lane.b32.xlu0 %v3381, 32
    %v3455 = vpop.permute.xlu0 %3454
    %3456 = vrot.lane.b32.xlu0 %v3382, 32
    %v3457 = vpop.permute.xlu0 %3456
    %3458 = vrot.lane.b32.xlu0 %v3383, 32
    %v3459 = vpop.permute.xlu0 %3458
    %3460 = vrot.lane.b32.xlu0 %v3384, 32
    %v3461 = vpop.permute.xlu0 %3460
    %3462 = vrot.lane.b32.xlu0 %v3385, 32
    %v3463 = vpop.permute.xlu0 %3462
    %3464 = vrot.lane.b32.xlu0 %v3386, 32
    %v3465 = vpop.permute.xlu0 %3464
    %3466 = vrot.lane.b32.xlu0 %v3387, 32
    %v3467 = vpop.permute.xlu0 %3466
    %3468 = vrot.lane.b32.xlu0 %v3388, 32
    %v3469 = vpop.permute.xlu0 %3468
    %3470 = vrot.lane.b32.xlu0 %v3389, 32
    %v3471 = vpop.permute.xlu0 %3470
    %3472 = vrot.lane.b32.xlu0 %v3390, 32
    %v3473 = vpop.permute.xlu0 %3472
    %3474 = vrot.lane.b32.xlu0 %v3391, 32
    %v3475 = vpop.permute.xlu0 %3474
    %3476 = vrot.lane.b32.xlu0 %v3392, 32
    %v3477 = vpop.permute.xlu0 %3476
    %3478 = vrot.lane.b32.xlu0 %v3393, 32
    %v3479 = vpop.permute.xlu0 %3478
    %3480 = vrot.lane.b32.xlu0 %v3394, 32
    %v3481 = vpop.permute.xlu0 %3480
    %3482 = vrot.lane.b32.xlu0 %v3395, 32
    %v3483 = vpop.permute.xlu0 %3482
    %3484 = vrot.lane.b32.xlu0 %v3396, 32
    %v3485 = vpop.permute.xlu0 %3484
    %3486 = vrot.lane.b32.xlu0 %v3397, 32
    %v3487 = vpop.permute.xlu0 %3486
    %3488 = vrot.lane.b32.xlu0 %v3398, 32
    %v3489 = vpop.permute.xlu0 %3488
    %3490 = vrot.lane.b32.xlu0 %v3399, 32
    %v3491 = vpop.permute.xlu0 %3490
    %3492 = vrot.lane.b32.xlu0 %v3400, 32
    %v3493 = vpop.permute.xlu0 %3492
    %3494 = vrot.lane.b32.xlu0 %v3401, 32
    %v3495 = vpop.permute.xlu0 %3494
    %3496 = vrot.lane.b32.xlu0 %v3402, 32
    %v3497 = vpop.permute.xlu0 %3496
    %3498 = vrot.lane.b32.xlu0 %v3403, 32
    %v3499 = vpop.permute.xlu0 %3498
    %3532 = vst.msk [vmem:[#allocation3 + $0x100] sm:$0xff] %vm1930, %v3437
    %3533 = vst.msk [vmem:[#allocation3 + $0x108] sm:$0xff] %vm1930, %v3439
    %3534 = vst.msk [vmem:[#allocation3 + $0x110] sm:$0xff] %vm1930, %v3441
    %3535 = vst.msk [vmem:[#allocation3 + $0x118] sm:$0xff] %vm1930, %v3443
    %3536 = vst.msk [vmem:[#allocation3 + $0x120] sm:$0xff] %vm1930, %v3445
    %3537 = vst.msk [vmem:[#allocation3 + $0x128] sm:$0xff] %vm1930, %v3447
    %3538 = vst.msk [vmem:[#allocation3 + $0x130] sm:$0xff] %vm1930, %v3449
    %3539 = vst.msk [vmem:[#allocation3 + $0x138] sm:$0xff] %vm1930, %v3451
    %3540 = vst.msk [vmem:[#allocation3 + $0x140] sm:$0xff] %vm1930, %v3453
    %3541 = vst.msk [vmem:[#allocation3 + $0x148] sm:$0xff] %vm1930, %v3455
    %3542 = vst.msk [vmem:[#allocation3 + $0x150] sm:$0xff] %vm1930, %v3457
    %3543 = vst.msk [vmem:[#allocation3 + $0x158] sm:$0xff] %vm1930, %v3459
    %3544 = vst.msk [vmem:[#allocation3 + $0x160] sm:$0xff] %vm1930, %v3461
    %3545 = vst.msk [vmem:[#allocation3 + $0x168] sm:$0xff] %vm1930, %v3463
    %3546 = vst.msk [vmem:[#allocation3 + $0x170] sm:$0xff] %vm1930, %v3465
    %3547 = vst.msk [vmem:[#allocation3 + $0x178] sm:$0xff] %vm1930, %v3467
    %3548 = vst.msk [vmem:[#allocation3 + $0x180] sm:$0xff] %vm1930, %v3469
    %3549 = vst.msk [vmem:[#allocation3 + $0x188] sm:$0xff] %vm1930, %v3471
    %3550 = vst.msk [vmem:[#allocation3 + $0x190] sm:$0xff] %vm1930, %v3473
    %3551 = vst.msk [vmem:[#allocation3 + $0x198] sm:$0xff] %vm1930, %v3475
    %3552 = vst.msk [vmem:[#allocation3 + $0x1a0] sm:$0xff] %vm1930, %v3477
    %3553 = vst.msk [vmem:[#allocation3 + $0x1a8] sm:$0xff] %vm1930, %v3479
    %3554 = vst.msk [vmem:[#allocation3 + $0x1b0] sm:$0xff] %vm1930, %v3481
    %3555 = vst.msk [vmem:[#allocation3 + $0x1b8] sm:$0xff] %vm1930, %v3483
    %3556 = vst.msk [vmem:[#allocation3 + $0x1c0] sm:$0xff] %vm1930, %v3485
    %3557 = vst.msk [vmem:[#allocation3 + $0x1c8] sm:$0xff] %vm1930, %v3487
    %3558 = vst.msk [vmem:[#allocation3 + $0x1d0] sm:$0xff] %vm1930, %v3489
    %3559 = vst.msk [vmem:[#allocation3 + $0x1d8] sm:$0xff] %vm1930, %v3491
    %3560 = vst.msk [vmem:[#allocation3 + $0x1e0] sm:$0xff] %vm1930, %v3493
    %3561 = vst.msk [vmem:[#allocation3 + $0x1e8] sm:$0xff] %vm1930, %v3495
    %3562 = vst.msk [vmem:[#allocation3 + $0x1f0] sm:$0xff] %vm1930, %v3497
    %3563 = vst.msk [vmem:[#allocation3 + $0x1f8] sm:$0xff] %vm1930, %v3499
    %v3564 = vld [vmem:[#allocation3] sm:$0xff]
    %v3565 = vld [vmem:[#allocation3 + $0x8] sm:$0xff]
    %v3566 = vld [vmem:[#allocation3 + $0x10] sm:$0xff]
    %v3567 = vld [vmem:[#allocation3 + $0x18] sm:$0xff]
    %v3568 = vld [vmem:[#allocation3 + $0x20] sm:$0xff]
    %v3569 = vld [vmem:[#allocation3 + $0x28] sm:$0xff]
    %v3570 = vld [vmem:[#allocation3 + $0x30] sm:$0xff]
    %v3571 = vld [vmem:[#allocation3 + $0x38] sm:$0xff]
    %v3572 = vld [vmem:[#allocation3 + $0x40] sm:$0xff]
    %v3573 = vld [vmem:[#allocation3 + $0x48] sm:$0xff]
    %v3574 = vld [vmem:[#allocation3 + $0x50] sm:$0xff]
    %v3575 = vld [vmem:[#allocation3 + $0x58] sm:$0xff]
    %v3576 = vld [vmem:[#allocation3 + $0x60] sm:$0xff]
    %v3577 = vld [vmem:[#allocation3 + $0x68] sm:$0xff]
    %v3578 = vld [vmem:[#allocation3 + $0x70] sm:$0xff]
    %v3579 = vld [vmem:[#allocation3 + $0x78] sm:$0xff]
    %v3580 = vld [vmem:[#allocation3 + $0x80] sm:$0xff]
    %v3581 = vld [vmem:[#allocation3 + $0x88] sm:$0xff]
    %v3582 = vld [vmem:[#allocation3 + $0x90] sm:$0xff]
    %v3583 = vld [vmem:[#allocation3 + $0x98] sm:$0xff]
    %v3584 = vld [vmem:[#allocation3 + $0xa0] sm:$0xff]
    %v3585 = vld [vmem:[#allocation3 + $0xa8] sm:$0xff]
    %v3586 = vld [vmem:[#allocation3 + $0xb0] sm:$0xff]
    %v3587 = vld [vmem:[#allocation3 + $0xb8] sm:$0xff]
    %v3588 = vld [vmem:[#allocation3 + $0xc0] sm:$0xff]
    %v3589 = vld [vmem:[#allocation3 + $0xc8] sm:$0xff]
    %v3590 = vld [vmem:[#allocation3 + $0xd0] sm:$0xff]
    %v3591 = vld [vmem:[#allocation3 + $0xd8] sm:$0xff]
    %v3592 = vld [vmem:[#allocation3 + $0xe0] sm:$0xff]
    %v3593 = vld [vmem:[#allocation3 + $0xe8] sm:$0xff]
    %v3594 = vld [vmem:[#allocation3 + $0xf0] sm:$0xff]
    %v3595 = vld [vmem:[#allocation3 + $0xf8] sm:$0xff]
    %v3596 = vld [vmem:[#allocation3 + $0x100] sm:$0xff]
    %v3597 = vld [vmem:[#allocation3 + $0x108] sm:$0xff]
    %v3598 = vld [vmem:[#allocation3 + $0x110] sm:$0xff]
    %v3599 = vld [vmem:[#allocation3 + $0x118] sm:$0xff]
    %v3600 = vld [vmem:[#allocation3 + $0x120] sm:$0xff]
    %v3601 = vld [vmem:[#allocation3 + $0x128] sm:$0xff]
    %v3602 = vld [vmem:[#allocation3 + $0x130] sm:$0xff]
    %v3603 = vld [vmem:[#allocation3 + $0x138] sm:$0xff]
    %v3604 = vld [vmem:[#allocation3 + $0x140] sm:$0xff]
    %v3605 = vld [vmem:[#allocation3 + $0x148] sm:$0xff]
    %v3606 = vld [vmem:[#allocation3 + $0x150] sm:$0xff]
    %v3607 = vld [vmem:[#allocation3 + $0x158] sm:$0xff]
    %v3608 = vld [vmem:[#allocation3 + $0x160] sm:$0xff]
    %v3609 = vld [vmem:[#allocation3 + $0x168] sm:$0xff]
    %v3610 = vld [vmem:[#allocation3 + $0x170] sm:$0xff]
    %v3611 = vld [vmem:[#allocation3 + $0x178] sm:$0xff]
    %v3612 = vld [vmem:[#allocation3 + $0x180] sm:$0xff]
    %v3613 = vld [vmem:[#allocation3 + $0x188] sm:$0xff]
    %v3614 = vld [vmem:[#allocation3 + $0x190] sm:$0xff]
    %v3615 = vld [vmem:[#allocation3 + $0x198] sm:$0xff]
    %v3616 = vld [vmem:[#allocation3 + $0x1a0] sm:$0xff]
    %v3617 = vld [vmem:[#allocation3 + $0x1a8] sm:$0xff]
    %v3618 = vld [vmem:[#allocation3 + $0x1b0] sm:$0xff]
    %v3619 = vld [vmem:[#allocation3 + $0x1b8] sm:$0xff]
    %v3620 = vld [vmem:[#allocation3 + $0x1c0] sm:$0xff]
    %v3621 = vld [vmem:[#allocation3 + $0x1c8] sm:$0xff]
    %v3622 = vld [vmem:[#allocation3 + $0x1d0] sm:$0xff]
    %v3623 = vld [vmem:[#allocation3 + $0x1d8] sm:$0xff]
    %v3624 = vld [vmem:[#allocation3 + $0x1e0] sm:$0xff]
    %v3625 = vld [vmem:[#allocation3 + $0x1e8] sm:$0xff]
    %v3626 = vld [vmem:[#allocation3 + $0x1f0] sm:$0xff]
    %v3627 = vld [vmem:[#allocation3 + $0x1f8] sm:$0xff]
    %v3628 = vld [vmem:[#allocation6] sm:$0xff]
    %v3629 = vld [vmem:[#allocation6 + $0x8] sm:$0xff]
    %v3630 = vld [vmem:[#allocation6 + $0x10] sm:$0xff]
    %v3631 = vld [vmem:[#allocation6 + $0x18] sm:$0xff]
    %v3632 = vld [vmem:[#allocation6 + $0x20] sm:$0xf]
    %v3633 = vld [vmem:[#allocation8] sm:$0x1]
    %v3635 = vlaneseq
    %v3636 = vshrl.u32 %v3635, 7
    %v3637 = vsub.s32 0, %v3636
    %v3638 = vrot.slane %v3633, %v3637
    %vm3640 = vcmask 293888
    %v3642 = vsel %vm3640, %v3564, 0
    %v3645 = vsel %vm3640, %v3565, 0
    %v3648 = vsel %vm3640, %v3566, 0
    %v3651 = vsel %vm3640, %v3567, 0
    %v3654 = vsel %vm3640, %v3568, 0
    %v3657 = vsel %vm3640, %v3569, 0
    %v3660 = vsel %vm3640, %v3570, 0
    %v3663 = vsel %vm3640, %v3571, 0
    %v3666 = vsel %vm3640, %v3572, 0
    %v3669 = vsel %vm3640, %v3573, 0
    %v3672 = vsel %vm3640, %v3574, 0
    %v3675 = vsel %vm3640, %v3575, 0
    %v3678 = vsel %vm3640, %v3576, 0
    %v3681 = vsel %vm3640, %v3577, 0
    %v3684 = vsel %vm3640, %v3578, 0
    %v3687 = vsel %vm3640, %v3579, 0
    %v3690 = vsel %vm3640, %v3580, 0
    %v3693 = vsel %vm3640, %v3581, 0
    %v3696 = vsel %vm3640, %v3582, 0
    %v3699 = vsel %vm3640, %v3583, 0
    %v3702 = vsel %vm3640, %v3584, 0
    %v3705 = vsel %vm3640, %v3585, 0
    %v3708 = vsel %vm3640, %v3586, 0
    %v3711 = vsel %vm3640, %v3587, 0
    %v3714 = vsel %vm3640, %v3588, 0
    %v3717 = vsel %vm3640, %v3589, 0
    %v3720 = vsel %vm3640, %v3590, 0
    %v3723 = vsel %vm3640, %v3591, 0
    %v3726 = vsel %vm3640, %v3592, 0
    %v3729 = vsel %vm3640, %v3593, 0
    %v3732 = vsel %vm3640, %v3594, 0
    %v3735 = vsel %vm3640, %v3595, 0
    %v3738 = vsel %vm3640, %v3596, 0
    %v3741 = vsel %vm3640, %v3597, 0
    %v3744 = vsel %vm3640, %v3598, 0
    %v3747 = vsel %vm3640, %v3599, 0
    %v3750 = vsel %vm3640, %v3600, 0
    %v3753 = vsel %vm3640, %v3601, 0
    %v3756 = vsel %vm3640, %v3602, 0
    %v3759 = vsel %vm3640, %v3603, 0
    %v3762 = vsel %vm3640, %v3604, 0
    %v3765 = vsel %vm3640, %v3605, 0
    %v3768 = vsel %vm3640, %v3606, 0
    %v3771 = vsel %vm3640, %v3607, 0
    %v3774 = vsel %vm3640, %v3608, 0
    %v3777 = vsel %vm3640, %v3609, 0
    %v3780 = vsel %vm3640, %v3610, 0
    %v3783 = vsel %vm3640, %v3611, 0
    %v3786 = vsel %vm3640, %v3612, 0
    %v3789 = vsel %vm3640, %v3613, 0
    %v3792 = vsel %vm3640, %v3614, 0
    %v3795 = vsel %vm3640, %v3615, 0
    %v3798 = vsel %vm3640, %v3616, 0
    %v3801 = vsel %vm3640, %v3617, 0
    %v3804 = vsel %vm3640, %v3618, 0
    %v3807 = vsel %vm3640, %v3619, 0
    %v3810 = vsel %vm3640, %v3620, 0
    %v3813 = vsel %vm3640, %v3621, 0
    %v3816 = vsel %vm3640, %v3622, 0
    %v3819 = vsel %vm3640, %v3623, 0
    %v3822 = vsel %vm3640, %v3624, 0
    %v3825 = vsel %vm3640, %v3625, 0
    %v3828 = vsel %vm3640, %v3626, 0
    %v3831 = vsel %vm3640, %v3627, 0
    %vm3833 = vcmask 1043456
    %v3835 = vsel %vm3833, %v3632, 0
    %3837 = vmatprep.subr.mxu0 0.0
    %3838 = vmatpush1.msra.mxu0 0.0
    %3839 = vmatprep.subr.mxu0 0.0
    %3840 = vmatpush1.msra.mxu0 0.0
    %3841 = vmatprep.subr.mxu0 0.0
    %3842 = vmatpush1.msra.mxu0 0.0
    %3843 = vmatprep.subr.mxu0 0.0
    %3844 = vmatpush1.msra.mxu0 0.0
    %3845 = vmatprep.subr.mxu0 0.0
    %3846 = vmatpush1.msra.mxu0 0.0
    %3847 = vmatprep.subr.mxu0 0.0
    %3848 = vmatpush1.msra.mxu0 0.0
    %3849 = vmatprep.subr.mxu0 0.0
    %3850 = vmatpush1.msra.mxu0 0.0
    %3851 = vmatprep.subr.mxu0 0.0
    %3852 = vmatpush1.msra.mxu0 0.0
    %3853 = vmatprep.subr.mxu0 0.0
    %3854 = vmatpush1.msra.mxu0 0.0
    %3855 = vmatprep.subr.mxu0 0.0
    %3856 = vmatpush1.msra.mxu0 0.0
    %3857 = vmatprep.subr.mxu0 0.0
    %3858 = vmatpush1.msra.mxu0 0.0
    %3859 = vmatprep.subr.mxu0 0.0
    %3860 = vmatpush1.msra.mxu0 %v3835
    %3861 = vmatprep.subr.mxu0 0.0
    %3862 = vmatpush1.msra.mxu0 %v3631
    %3863 = vmatprep.subr.mxu0 0.0
    %3864 = vmatpush1.msra.mxu0 %v3630
    %3865 = vmatprep.subr.mxu0 0.0
    %3866 = vmatpush1.msra.mxu0 %v3629
    %3867 = vmatprep.subr.mxu0 0.0
    %3868 = vmatpush1.msra.mxu0 %v3628
    %3869 = vmatprep.subr.mxu0 0.0
    %3870 = vmatpush2.msra.mxu0 0.0
    %3871 = vmatprep.subr.mxu0 0.0
    %3872 = vmatpush2.msra.mxu0 0.0
    %3873 = vmatprep.subr.mxu0 0.0
    %3874 = vmatpush2.msra.mxu0 0.0
    %3875 = vmatprep.subr.mxu0 0.0
    %3876 = vmatpush2.msra.mxu0 0.0
    %3877 = vmatprep.subr.mxu0 0.0
    %3878 = vmatpush2.msra.mxu0 0.0
    %3879 = vmatprep.subr.mxu0 0.0
    %3880 = vmatpush2.msra.mxu0 0.0
    %3881 = vmatprep.subr.mxu0 0.0
    %3882 = vmatpush2.msra.mxu0 0.0
    %3883 = vmatprep.subr.mxu0 0.0
    %3884 = vmatpush2.msra.mxu0 0.0
    %3885 = vmatprep.subr.mxu0 0.0
    %3886 = vmatpush2.msra.mxu0 0.0
    %3887 = vmatprep.subr.mxu0 0.0
    %3888 = vmatpush2.msra.mxu0 0.0
    %3889 = vmatprep.subr.mxu0 0.0
    %3890 = vmatpush2.msra.mxu0 0.0
    %3891 = vmatprep.subr.mxu0 0.0
    %3892 = vmatpush2.msra.mxu0 0.0
    %3893 = vmatprep.subr.mxu0 0.0
    %3894 = vmatpush2.msra.mxu0 0.0
    %3895 = vmatprep.subr.mxu0 0.0
    %3896 = vmatpush2.msra.mxu0 0.0
    %3897 = vmatprep.subr.mxu0 0.0
    %3898 = vmatpush2.msra.mxu0 0.0
    %3899 = vmatprep.subr.mxu0 0.0
    %3900 = vmatpush2.msra.mxu0 0.0
    %3901 = vmatprep.mubr.f32.mxu0 0.0
    %3902 = vmatmul.mubr.f32.gmra.mxu0 %v3642
    %v3903 = vpop.f32.mrf.mxu0
    %v3904 = vadd.f32 %v3638, %v3903
    %v3905 = vpop.f32.mrf.mxu0
    %3906 = vmatprep.mubr.f32.mxu0 0.0
    %3907 = vmatmul.mubr.f32.gmra.mxu0 %v3645
    %v3908 = vpop.f32.mrf.mxu0
    %v3909 = vadd.f32 %v3638, %v3908
    %v3910 = vpop.f32.mrf.mxu0
    %3911 = vmatprep.mubr.f32.mxu0 0.0
    %3912 = vmatmul.mubr.f32.gmra.mxu0 %v3648
    %v3913 = vpop.f32.mrf.mxu0
    %v3914 = vadd.f32 %v3638, %v3913
    %v3915 = vpop.f32.mrf.mxu0
    %3916 = vmatprep.mubr.f32.mxu0 0.0
    %3917 = vmatmul.mubr.f32.gmra.mxu0 %v3651
    %v3918 = vpop.f32.mrf.mxu0
    %v3919 = vadd.f32 %v3638, %v3918
    %v3920 = vpop.f32.mrf.mxu0
    %3921 = vmatprep.mubr.f32.mxu0 0.0
    %3922 = vmatmul.mubr.f32.gmra.mxu0 %v3654
    %v3923 = vpop.f32.mrf.mxu0
    %v3924 = vadd.f32 %v3638, %v3923
    %v3925 = vpop.f32.mrf.mxu0
    %3926 = vmatprep.mubr.f32.mxu0 0.0
    %3927 = vmatmul.mubr.f32.gmra.mxu0 %v3657
    %v3928 = vpop.f32.mrf.mxu0
    %v3929 = vadd.f32 %v3638, %v3928
    %v3930 = vpop.f32.mrf.mxu0
    %3931 = vmatprep.mubr.f32.mxu0 0.0
    %3932 = vmatmul.mubr.f32.gmra.mxu0 %v3660
    %v3933 = vpop.f32.mrf.mxu0
    %v3934 = vadd.f32 %v3638, %v3933
    %v3935 = vpop.f32.mrf.mxu0
    %3936 = vmatprep.mubr.f32.mxu0 0.0
    %3937 = vmatmul.mubr.f32.gmra.mxu0 %v3663
    %v3938 = vpop.f32.mrf.mxu0
    %v3939 = vadd.f32 %v3638, %v3938
    %v3940 = vpop.f32.mrf.mxu0
    %3941 = vmatprep.mubr.f32.mxu0 0.0
    %3942 = vmatmul.mubr.f32.gmra.mxu0 %v3666
    %v3943 = vpop.f32.mrf.mxu0
    %v3944 = vadd.f32 %v3638, %v3943
    %v3945 = vpop.f32.mrf.mxu0
    %3946 = vmatprep.mubr.f32.mxu0 0.0
    %3947 = vmatmul.mubr.f32.gmra.mxu0 %v3669
    %v3948 = vpop.f32.mrf.mxu0
    %v3949 = vadd.f32 %v3638, %v3948
    %v3950 = vpop.f32.mrf.mxu0
    %3951 = vmatprep.mubr.f32.mxu0 0.0
    %3952 = vmatmul.mubr.f32.gmra.mxu0 %v3672
    %v3953 = vpop.f32.mrf.mxu0
    %v3954 = vadd.f32 %v3638, %v3953
    %v3955 = vpop.f32.mrf.mxu0
    %3956 = vmatprep.mubr.f32.mxu0 0.0
    %3957 = vmatmul.mubr.f32.gmra.mxu0 %v3675
    %v3958 = vpop.f32.mrf.mxu0
    %v3959 = vadd.f32 %v3638, %v3958
    %v3960 = vpop.f32.mrf.mxu0
    %3961 = vmatprep.mubr.f32.mxu0 0.0
    %3962 = vmatmul.mubr.f32.gmra.mxu0 %v3678
    %v3963 = vpop.f32.mrf.mxu0
    %v3964 = vadd.f32 %v3638, %v3963
    %v3965 = vpop.f32.mrf.mxu0
    %3966 = vmatprep.mubr.f32.mxu0 0.0
    %3967 = vmatmul.mubr.f32.gmra.mxu0 %v3681
    %v3968 = vpop.f32.mrf.mxu0
    %v3969 = vadd.f32 %v3638, %v3968
    %v3970 = vpop.f32.mrf.mxu0
    %3971 = vmatprep.mubr.f32.mxu0 0.0
    %3972 = vmatmul.mubr.f32.gmra.mxu0 %v3684
    %v3973 = vpop.f32.mrf.mxu0
    %v3974 = vadd.f32 %v3638, %v3973
    %v3975 = vpop.f32.mrf.mxu0
    %3976 = vmatprep.mubr.f32.mxu0 0.0
    %3977 = vmatmul.mubr.f32.gmra.mxu0 %v3687
    %v3978 = vpop.f32.mrf.mxu0
    %v3979 = vadd.f32 %v3638, %v3978
    %v3980 = vpop.f32.mrf.mxu0
    %3981 = vmatprep.mubr.f32.mxu0 0.0
    %3982 = vmatmul.mubr.f32.gmra.mxu0 %v3690
    %v3983 = vpop.f32.mrf.mxu0
    %v3984 = vadd.f32 %v3638, %v3983
    %v3985 = vpop.f32.mrf.mxu0
    %3986 = vmatprep.mubr.f32.mxu0 0.0
    %3987 = vmatmul.mubr.f32.gmra.mxu0 %v3693
    %v3988 = vpop.f32.mrf.mxu0
    %v3989 = vadd.f32 %v3638, %v3988
    %v3990 = vpop.f32.mrf.mxu0
    %3991 = vmatprep.mubr.f32.mxu0 0.0
    %3992 = vmatmul.mubr.f32.gmra.mxu0 %v3696
    %v3993 = vpop.f32.mrf.mxu0
    %v3994 = vadd.f32 %v3638, %v3993
    %v3995 = vpop.f32.mrf.mxu0
    %3996 = vmatprep.mubr.f32.mxu0 0.0
    %3997 = vmatmul.mubr.f32.gmra.mxu0 %v3699
    %v3998 = vpop.f32.mrf.mxu0
    %v3999 = vadd.f32 %v3638, %v3998
    %v4000 = vpop.f32.mrf.mxu0
    %4001 = vmatprep.mubr.f32.mxu0 0.0
    %4002 = vmatmul.mubr.f32.gmra.mxu0 %v3702
    %v4003 = vpop.f32.mrf.mxu0
    %v4004 = vadd.f32 %v3638, %v4003
    %v4005 = vpop.f32.mrf.mxu0
    %4006 = vmatprep.mubr.f32.mxu0 0.0
    %4007 = vmatmul.mubr.f32.gmra.mxu0 %v3705
    %v4008 = vpop.f32.mrf.mxu0
    %v4009 = vadd.f32 %v3638, %v4008
    %v4010 = vpop.f32.mrf.mxu0
    %4011 = vmatprep.mubr.f32.mxu0 0.0
    %4012 = vmatmul.mubr.f32.gmra.mxu0 %v3708
    %v4013 = vpop.f32.mrf.mxu0
    %v4014 = vadd.f32 %v3638, %v4013
    %v4015 = vpop.f32.mrf.mxu0
    %4016 = vmatprep.mubr.f32.mxu0 0.0
    %4017 = vmatmul.mubr.f32.gmra.mxu0 %v3711
    %v4018 = vpop.f32.mrf.mxu0
    %v4019 = vadd.f32 %v3638, %v4018
    %v4020 = vpop.f32.mrf.mxu0
    %4021 = vmatprep.mubr.f32.mxu0 0.0
    %4022 = vmatmul.mubr.f32.gmra.mxu0 %v3714
    %v4023 = vpop.f32.mrf.mxu0
    %v4024 = vadd.f32 %v3638, %v4023
    %v4025 = vpop.f32.mrf.mxu0
    %4026 = vmatprep.mubr.f32.mxu0 0.0
    %4027 = vmatmul.mubr.f32.gmra.mxu0 %v3717
    %v4028 = vpop.f32.mrf.mxu0
    %v4029 = vadd.f32 %v3638, %v4028
    %v4030 = vpop.f32.mrf.mxu0
    %4031 = vmatprep.mubr.f32.mxu0 0.0
    %4032 = vmatmul.mubr.f32.gmra.mxu0 %v3720
    %v4033 = vpop.f32.mrf.mxu0
    %v4034 = vadd.f32 %v3638, %v4033
    %v4035 = vpop.f32.mrf.mxu0
    %4036 = vmatprep.mubr.f32.mxu0 0.0
    %4037 = vmatmul.mubr.f32.gmra.mxu0 %v3723
    %v4038 = vpop.f32.mrf.mxu0
    %v4039 = vadd.f32 %v3638, %v4038
    %v4040 = vpop.f32.mrf.mxu0
    %4041 = vmatprep.mubr.f32.mxu0 0.0
    %4042 = vmatmul.mubr.f32.gmra.mxu0 %v3726
    %v4043 = vpop.f32.mrf.mxu0
    %v4044 = vadd.f32 %v3638, %v4043
    %v4045 = vpop.f32.mrf.mxu0
    %4046 = vmatprep.mubr.f32.mxu0 0.0
    %4047 = vmatmul.mubr.f32.gmra.mxu0 %v3729
    %v4048 = vpop.f32.mrf.mxu0
    %v4049 = vadd.f32 %v3638, %v4048
    %v4050 = vpop.f32.mrf.mxu0
    %4051 = vmatprep.mubr.f32.mxu0 0.0
    %4052 = vmatmul.mubr.f32.gmra.mxu0 %v3732
    %v4053 = vpop.f32.mrf.mxu0
    %v4054 = vadd.f32 %v3638, %v4053
    %v4055 = vpop.f32.mrf.mxu0
    %4056 = vmatprep.mubr.f32.mxu0 0.0
    %4057 = vmatmul.mubr.f32.gmra.mxu0 %v3735
    %v4058 = vpop.f32.mrf.mxu0
    %v4059 = vadd.f32 %v3638, %v4058
    %v4060 = vpop.f32.mrf.mxu0
    %4061 = vmatprep.mubr.f32.mxu0 0.0
    %4062 = vmatmul.mubr.f32.gmra.mxu0 %v3738
    %v4063 = vpop.f32.mrf.mxu0
    %v4064 = vadd.f32 %v3638, %v4063
    %v4065 = vpop.f32.mrf.mxu0
    %4066 = vmatprep.mubr.f32.mxu0 0.0
    %4067 = vmatmul.mubr.f32.gmra.mxu0 %v3741
    %v4068 = vpop.f32.mrf.mxu0
    %v4069 = vadd.f32 %v3638, %v4068
    %v4070 = vpop.f32.mrf.mxu0
    %4071 = vmatprep.mubr.f32.mxu0 0.0
    %4072 = vmatmul.mubr.f32.gmra.mxu0 %v3744
    %v4073 = vpop.f32.mrf.mxu0
    %v4074 = vadd.f32 %v3638, %v4073
    %v4075 = vpop.f32.mrf.mxu0
    %4076 = vmatprep.mubr.f32.mxu0 0.0
    %4077 = vmatmul.mubr.f32.gmra.mxu0 %v3747
    %v4078 = vpop.f32.mrf.mxu0
    %v4079 = vadd.f32 %v3638, %v4078
    %v4080 = vpop.f32.mrf.mxu0
    %4081 = vmatprep.mubr.f32.mxu0 0.0
    %4082 = vmatmul.mubr.f32.gmra.mxu0 %v3750
    %v4083 = vpop.f32.mrf.mxu0
    %v4084 = vadd.f32 %v3638, %v4083
    %v4085 = vpop.f32.mrf.mxu0
    %4086 = vmatprep.mubr.f32.mxu0 0.0
    %4087 = vmatmul.mubr.f32.gmra.mxu0 %v3753
    %v4088 = vpop.f32.mrf.mxu0
    %v4089 = vadd.f32 %v3638, %v4088
    %v4090 = vpop.f32.mrf.mxu0
    %4091 = vmatprep.mubr.f32.mxu0 0.0
    %4092 = vmatmul.mubr.f32.gmra.mxu0 %v3756
    %v4093 = vpop.f32.mrf.mxu0
    %v4094 = vadd.f32 %v3638, %v4093
    %v4095 = vpop.f32.mrf.mxu0
    %4096 = vmatprep.mubr.f32.mxu0 0.0
    %4097 = vmatmul.mubr.f32.gmra.mxu0 %v3759
    %v4098 = vpop.f32.mrf.mxu0
    %v4099 = vadd.f32 %v3638, %v4098
    %v4100 = vpop.f32.mrf.mxu0
    %4101 = vmatprep.mubr.f32.mxu0 0.0
    %4102 = vmatmul.mubr.f32.gmra.mxu0 %v3762
    %v4103 = vpop.f32.mrf.mxu0
    %v4104 = vadd.f32 %v3638, %v4103
    %v4105 = vpop.f32.mrf.mxu0
    %4106 = vmatprep.mubr.f32.mxu0 0.0
    %4107 = vmatmul.mubr.f32.gmra.mxu0 %v3765
    %v4108 = vpop.f32.mrf.mxu0
    %v4109 = vadd.f32 %v3638, %v4108
    %v4110 = vpop.f32.mrf.mxu0
    %4111 = vmatprep.mubr.f32.mxu0 0.0
    %4112 = vmatmul.mubr.f32.gmra.mxu0 %v3768
    %v4113 = vpop.f32.mrf.mxu0
    %v4114 = vadd.f32 %v3638, %v4113
    %v4115 = vpop.f32.mrf.mxu0
    %4116 = vmatprep.mubr.f32.mxu0 0.0
    %4117 = vmatmul.mubr.f32.gmra.mxu0 %v3771
    %v4118 = vpop.f32.mrf.mxu0
    %v4119 = vadd.f32 %v3638, %v4118
    %v4120 = vpop.f32.mrf.mxu0
    %4121 = vmatprep.mubr.f32.mxu0 0.0
    %4122 = vmatmul.mubr.f32.gmra.mxu0 %v3774
    %v4123 = vpop.f32.mrf.mxu0
    %v4124 = vadd.f32 %v3638, %v4123
    %v4125 = vpop.f32.mrf.mxu0
    %4126 = vmatprep.mubr.f32.mxu0 0.0
    %4127 = vmatmul.mubr.f32.gmra.mxu0 %v3777
    %v4128 = vpop.f32.mrf.mxu0
    %v4129 = vadd.f32 %v3638, %v4128
    %v4130 = vpop.f32.mrf.mxu0
    %4131 = vmatprep.mubr.f32.mxu0 0.0
    %4132 = vmatmul.mubr.f32.gmra.mxu0 %v3780
    %v4133 = vpop.f32.mrf.mxu0
    %v4134 = vadd.f32 %v3638, %v4133
    %v4135 = vpop.f32.mrf.mxu0
    %4136 = vmatprep.mubr.f32.mxu0 0.0
    %4137 = vmatmul.mubr.f32.gmra.mxu0 %v3783
    %v4138 = vpop.f32.mrf.mxu0
    %v4139 = vadd.f32 %v3638, %v4138
    %v4140 = vpop.f32.mrf.mxu0
    %4141 = vmatprep.mubr.f32.mxu0 0.0
    %4142 = vmatmul.mubr.f32.gmra.mxu0 %v3786
    %v4143 = vpop.f32.mrf.mxu0
    %v4144 = vadd.f32 %v3638, %v4143
    %v4145 = vpop.f32.mrf.mxu0
    %4146 = vmatprep.mubr.f32.mxu0 0.0
    %4147 = vmatmul.mubr.f32.gmra.mxu0 %v3789
    %v4148 = vpop.f32.mrf.mxu0
    %v4149 = vadd.f32 %v3638, %v4148
    %v4150 = vpop.f32.mrf.mxu0
    %4151 = vmatprep.mubr.f32.mxu0 0.0
    %4152 = vmatmul.mubr.f32.gmra.mxu0 %v3792
    %v4153 = vpop.f32.mrf.mxu0
    %v4154 = vadd.f32 %v3638, %v4153
    %v4155 = vpop.f32.mrf.mxu0
    %4156 = vmatprep.mubr.f32.mxu0 0.0
    %4157 = vmatmul.mubr.f32.gmra.mxu0 %v3795
    %v4158 = vpop.f32.mrf.mxu0
    %v4159 = vadd.f32 %v3638, %v4158
    %v4160 = vpop.f32.mrf.mxu0
    %4161 = vmatprep.mubr.f32.mxu0 0.0
    %4162 = vmatmul.mubr.f32.gmra.mxu0 %v3798
    %v4163 = vpop.f32.mrf.mxu0
    %v4164 = vadd.f32 %v3638, %v4163
    %v4165 = vpop.f32.mrf.mxu0
    %4166 = vmatprep.mubr.f32.mxu0 0.0
    %4167 = vmatmul.mubr.f32.gmra.mxu0 %v3801
    %v4168 = vpop.f32.mrf.mxu0
    %v4169 = vadd.f32 %v3638, %v4168
    %v4170 = vpop.f32.mrf.mxu0
    %4171 = vmatprep.mubr.f32.mxu0 0.0
    %4172 = vmatmul.mubr.f32.gmra.mxu0 %v3804
    %v4173 = vpop.f32.mrf.mxu0
    %v4174 = vadd.f32 %v3638, %v4173
    %v4175 = vpop.f32.mrf.mxu0
    %4176 = vmatprep.mubr.f32.mxu0 0.0
    %4177 = vmatmul.mubr.f32.gmra.mxu0 %v3807
    %v4178 = vpop.f32.mrf.mxu0
    %v4179 = vadd.f32 %v3638, %v4178
    %v4180 = vpop.f32.mrf.mxu0
    %4181 = vmatprep.mubr.f32.mxu0 0.0
    %4182 = vmatmul.mubr.f32.gmra.mxu0 %v3810
    %v4183 = vpop.f32.mrf.mxu0
    %v4184 = vadd.f32 %v3638, %v4183
    %v4185 = vpop.f32.mrf.mxu0
    %4186 = vmatprep.mubr.f32.mxu0 0.0
    %4187 = vmatmul.mubr.f32.gmra.mxu0 %v3813
    %v4188 = vpop.f32.mrf.mxu0
    %v4189 = vadd.f32 %v3638, %v4188
    %v4190 = vpop.f32.mrf.mxu0
    %4191 = vmatprep.mubr.f32.mxu0 0.0
    %4192 = vmatmul.mubr.f32.gmra.mxu0 %v3816
    %v4193 = vpop.f32.mrf.mxu0
    %v4194 = vadd.f32 %v3638, %v4193
    %v4195 = vpop.f32.mrf.mxu0
    %4196 = vmatprep.mubr.f32.mxu0 0.0
    %4197 = vmatmul.mubr.f32.gmra.mxu0 %v3819
    %v4198 = vpop.f32.mrf.mxu0
    %v4199 = vadd.f32 %v3638, %v4198
    %v4200 = vpop.f32.mrf.mxu0
    %4201 = vmatprep.mubr.f32.mxu0 0.0
    %4202 = vmatmul.mubr.f32.gmra.mxu0 %v3822
    %v4203 = vpop.f32.mrf.mxu0
    %v4204 = vadd.f32 %v3638, %v4203
    %v4205 = vpop.f32.mrf.mxu0
    %4206 = vmatprep.mubr.f32.mxu0 0.0
    %4207 = vmatmul.mubr.f32.gmra.mxu0 %v3825
    %v4208 = vpop.f32.mrf.mxu0
    %v4209 = vadd.f32 %v3638, %v4208
    %v4210 = vpop.f32.mrf.mxu0
    %4211 = vmatprep.mubr.f32.mxu0 0.0
    %4212 = vmatmul.mubr.f32.gmra.mxu0 %v3828
    %v4213 = vpop.f32.mrf.mxu0
    %v4214 = vadd.f32 %v3638, %v4213
    %v4215 = vpop.f32.mrf.mxu0
    %4216 = vmatprep.mubr.f32.mxu0 0.0
    %4217 = vmatmul.mubr.f32.gmra.mxu0 %v3831
    %v4218 = vpop.f32.mrf.mxu0
    %v4219 = vadd.f32 %v3638, %v4218
    %v4220 = vpop.f32.mrf.mxu0
    %4221 = vdwg.mxu0
    %v4222 = vmax.f32 %v3904, 0.0
    %v4223 = vmax.f32 %v3909, 0.0
    %v4224 = vmax.f32 %v3914, 0.0
    %v4225 = vmax.f32 %v3919, 0.0
    %v4226 = vmax.f32 %v3924, 0.0
    %v4227 = vmax.f32 %v3929, 0.0
    %v4228 = vmax.f32 %v3934, 0.0
    %v4229 = vmax.f32 %v3939, 0.0
    %v4230 = vmax.f32 %v3944, 0.0
    %v4231 = vmax.f32 %v3949, 0.0
    %v4232 = vmax.f32 %v3954, 0.0
    %v4233 = vmax.f32 %v3959, 0.0
    %v4234 = vmax.f32 %v3964, 0.0
    %v4235 = vmax.f32 %v3969, 0.0
    %v4236 = vmax.f32 %v3974, 0.0
    %v4237 = vmax.f32 %v3979, 0.0
    %v4238 = vmax.f32 %v3984, 0.0
    %v4239 = vmax.f32 %v3989, 0.0
    %v4240 = vmax.f32 %v3994, 0.0
    %v4241 = vmax.f32 %v3999, 0.0
    %v4242 = vmax.f32 %v4004, 0.0
    %v4243 = vmax.f32 %v4009, 0.0
    %v4244 = vmax.f32 %v4014, 0.0
    %v4245 = vmax.f32 %v4019, 0.0
    %v4246 = vmax.f32 %v4024, 0.0
    %v4247 = vmax.f32 %v4029, 0.0
    %v4248 = vmax.f32 %v4034, 0.0
    %v4249 = vmax.f32 %v4039, 0.0
    %v4250 = vmax.f32 %v4044, 0.0
    %v4251 = vmax.f32 %v4049, 0.0
    %v4252 = vmax.f32 %v4054, 0.0
    %v4253 = vmax.f32 %v4059, 0.0
    %v4254 = vmax.f32 %v4064, 0.0
    %v4255 = vmax.f32 %v4069, 0.0
    %v4256 = vmax.f32 %v4074, 0.0
    %v4257 = vmax.f32 %v4079, 0.0
    %v4258 = vmax.f32 %v4084, 0.0
    %v4259 = vmax.f32 %v4089, 0.0
    %v4260 = vmax.f32 %v4094, 0.0
    %v4261 = vmax.f32 %v4099, 0.0
    %v4262 = vmax.f32 %v4104, 0.0
    %v4263 = vmax.f32 %v4109, 0.0
    %v4264 = vmax.f32 %v4114, 0.0
    %v4265 = vmax.f32 %v4119, 0.0
    %v4266 = vmax.f32 %v4124, 0.0
    %v4267 = vmax.f32 %v4129, 0.0
    %v4268 = vmax.f32 %v4134, 0.0
    %v4269 = vmax.f32 %v4139, 0.0
    %v4270 = vmax.f32 %v4144, 0.0
    %v4271 = vmax.f32 %v4149, 0.0
    %v4272 = vmax.f32 %v4154, 0.0
    %v4273 = vmax.f32 %v4159, 0.0
    %v4274 = vmax.f32 %v4164, 0.0
    %v4275 = vmax.f32 %v4169, 0.0
    %v4276 = vmax.f32 %v4174, 0.0
    %v4277 = vmax.f32 %v4179, 0.0
    %v4278 = vmax.f32 %v4184, 0.0
    %v4279 = vmax.f32 %v4189, 0.0
    %v4280 = vmax.f32 %v4194, 0.0
    %v4281 = vmax.f32 %v4199, 0.0
    %v4282 = vmax.f32 %v4204, 0.0
    %v4283 = vmax.f32 %v4209, 0.0
    %v4284 = vmax.f32 %v4214, 0.0
    %v4285 = vmax.f32 %v4219, 0.0
    %4286 = vst.msk [vmem:[%s173 + $0x1] sm:$0xff] %vm164, %v4222
    %4287 = vst.msk [vmem:[%s173 + $0x9] sm:$0xff] %vm164, %v4223
    %4288 = vst.msk [vmem:[%s173 + $0x19] sm:$0xff] %vm164, %v4224
    %4289 = vst.msk [vmem:[%s173 + $0x21] sm:$0xff] %vm164, %v4225
    %4290 = vst.msk [vmem:[%s173 + $0x31] sm:$0xff] %vm164, %v4226
    %4291 = vst.msk [vmem:[%s173 + $0x39] sm:$0xff] %vm164, %v4227
    %4292 = vst.msk [vmem:[%s173 + $0x49] sm:$0xff] %vm164, %v4228
    %4293 = vst.msk [vmem:[%s173 + $0x51] sm:$0xff] %vm164, %v4229
    %4294 = vst.msk [vmem:[%s173 + $0x61] sm:$0xff] %vm164, %v4230
    %4295 = vst.msk [vmem:[%s173 + $0x69] sm:$0xff] %vm164, %v4231
    %4296 = vst.msk [vmem:[%s173 + $0x79] sm:$0xff] %vm164, %v4232
    %4297 = vst.msk [vmem:[%s173 + $0x81] sm:$0xff] %vm164, %v4233
    %4298 = vst.msk [vmem:[%s173 + $0x91] sm:$0xff] %vm164, %v4234
    %4299 = vst.msk [vmem:[%s173 + $0x99] sm:$0xff] %vm164, %v4235
    %4300 = vst.msk [vmem:[%s173 + $0xa9] sm:$0xff] %vm164, %v4236
    %4301 = vst.msk [vmem:[%s173 + $0xb1] sm:$0xff] %vm164, %v4237
    %4302 = vst.msk [vmem:[%s173 + $0xc1] sm:$0xff] %vm164, %v4238
    %4303 = vst.msk [vmem:[%s173 + $0xc9] sm:$0xff] %vm164, %v4239
    %4304 = vst.msk [vmem:[%s173 + $0xd9] sm:$0xff] %vm164, %v4240
    %4305 = vst.msk [vmem:[%s173 + $0xe1] sm:$0xff] %vm164, %v4241
    %4306 = vst.msk [vmem:[%s173 + $0xf1] sm:$0xff] %vm164, %v4242
    %4307 = vst.msk [vmem:[%s173 + $0xf9] sm:$0xff] %vm164, %v4243
    %4308 = vst.msk [vmem:[%s173 + $0x109] sm:$0xff] %vm164, %v4244
    %4309 = vst.msk [vmem:[%s173 + $0x111] sm:$0xff] %vm164, %v4245
    %4310 = vst.msk [vmem:[%s173 + $0x121] sm:$0xff] %vm164, %v4246
    %4311 = vst.msk [vmem:[%s173 + $0x129] sm:$0xff] %vm164, %v4247
    %4312 = vst.msk [vmem:[%s173 + $0x139] sm:$0xff] %vm164, %v4248
    %4313 = vst.msk [vmem:[%s173 + $0x141] sm:$0xff] %vm164, %v4249
    %4314 = vst.msk [vmem:[%s173 + $0x151] sm:$0xff] %vm164, %v4250
    %4315 = vst.msk [vmem:[%s173 + $0x159] sm:$0xff] %vm164, %v4251
    %4316 = vst.msk [vmem:[%s173 + $0x169] sm:$0xff] %vm164, %v4252
    %4317 = vst.msk [vmem:[%s173 + $0x171] sm:$0xff] %vm164, %v4253
    %4318 = vst.msk [vmem:[%s321 + $0x1] sm:$0xff] %vm164, %v4254
    %4319 = vst.msk [vmem:[%s321 + $0x9] sm:$0xff] %vm164, %v4255
    %4320 = vst.msk [vmem:[%s321 + $0x19] sm:$0xff] %vm164, %v4256
    %4321 = vst.msk [vmem:[%s321 + $0x21] sm:$0xff] %vm164, %v4257
    %4322 = vst.msk [vmem:[%s321 + $0x31] sm:$0xff] %vm164, %v4258
    %4323 = vst.msk [vmem:[%s321 + $0x39] sm:$0xff] %vm164, %v4259
    %4324 = vst.msk [vmem:[%s321 + $0x49] sm:$0xff] %vm164, %v4260
    %4325 = vst.msk [vmem:[%s321 + $0x51] sm:$0xff] %vm164, %v4261
    %4326 = vst.msk [vmem:[%s321 + $0x61] sm:$0xff] %vm164, %v4262
    %4327 = vst.msk [vmem:[%s321 + $0x69] sm:$0xff] %vm164, %v4263
    %4328 = vst.msk [vmem:[%s321 + $0x79] sm:$0xff] %vm164, %v4264
    %4329 = vst.msk [vmem:[%s321 + $0x81] sm:$0xff] %vm164, %v4265
    %4330 = vst.msk [vmem:[%s321 + $0x91] sm:$0xff] %vm164, %v4266
    %4331 = vst.msk [vmem:[%s321 + $0x99] sm:$0xff] %vm164, %v4267
    %4332 = vst.msk [vmem:[%s321 + $0xa9] sm:$0xff] %vm164, %v4268
    %4333 = vst.msk [vmem:[%s321 + $0xb1] sm:$0xff] %vm164, %v4269
    %4334 = vst.msk [vmem:[%s321 + $0xc1] sm:$0xff] %vm164, %v4270
    %4335 = vst.msk [vmem:[%s321 + $0xc9] sm:$0xff] %vm164, %v4271
    %4336 = vst.msk [vmem:[%s321 + $0xd9] sm:$0xff] %vm164, %v4272
    %4337 = vst.msk [vmem:[%s321 + $0xe1] sm:$0xff] %vm164, %v4273
    %4338 = vst.msk [vmem:[%s321 + $0xf1] sm:$0xff] %vm164, %v4274
    %4339 = vst.msk [vmem:[%s321 + $0xf9] sm:$0xff] %vm164, %v4275
    %4340 = vst.msk [vmem:[%s321 + $0x109] sm:$0xff] %vm164, %v4276
    %4341 = vst.msk [vmem:[%s321 + $0x111] sm:$0xff] %vm164, %v4277
    %4342 = vst.msk [vmem:[%s321 + $0x121] sm:$0xff] %vm164, %v4278
    %4343 = vst.msk [vmem:[%s321 + $0x129] sm:$0xff] %vm164, %v4279
    %4344 = vst.msk [vmem:[%s321 + $0x139] sm:$0xff] %vm164, %v4280
    %4345 = vst.msk [vmem:[%s321 + $0x141] sm:$0xff] %vm164, %v4281
    %4346 = vst.msk [vmem:[%s321 + $0x151] sm:$0xff] %vm164, %v4282
    %4347 = vst.msk [vmem:[%s321 + $0x159] sm:$0xff] %vm164, %v4283
    %4348 = vst.msk [vmem:[%s321 + $0x169] sm:$0xff] %vm164, %v4284
    %4349 = vst.msk [vmem:[%s321 + $0x171] sm:$0xff] %vm164, %v4285
    %v4350 = vld [vmem:[#allocation4] sm:$0xff]
    %v4351 = vld [vmem:[#allocation4 + $0x8] sm:$0xff]
    %v4352 = vld [vmem:[#allocation4 + $0x18] sm:$0xff]
    %v4353 = vld [vmem:[#allocation4 + $0x20] sm:$0xff]
    %v4354 = vld [vmem:[#allocation4 + $0x30] sm:$0xff]
    %v4355 = vld [vmem:[#allocation4 + $0x38] sm:$0xff]
    %v4356 = vld [vmem:[#allocation4 + $0x48] sm:$0xff]
    %v4357 = vld [vmem:[#allocation4 + $0x50] sm:$0xff]
    %v4358 = vld [vmem:[#allocation4 + $0x60] sm:$0xff]
    %v4359 = vld [vmem:[#allocation4 + $0x68] sm:$0xff]
    %v4360 = vld [vmem:[#allocation4 + $0x78] sm:$0xff]
    %v4361 = vld [vmem:[#allocation4 + $0x80] sm:$0xff]
    %v4362 = vld [vmem:[#allocation4 + $0x90] sm:$0xff]
    %v4363 = vld [vmem:[#allocation4 + $0x98] sm:$0xff]
    %v4364 = vld [vmem:[#allocation4 + $0xa8] sm:$0xff]
    %v4365 = vld [vmem:[#allocation4 + $0xb0] sm:$0xff]
    %v4366 = vld [vmem:[#allocation4 + $0xc0] sm:$0xff]
    %v4367 = vld [vmem:[#allocation4 + $0xc8] sm:$0xff]
    %v4368 = vld [vmem:[#allocation4 + $0xd8] sm:$0xff]
    %v4369 = vld [vmem:[#allocation4 + $0xe0] sm:$0xff]
    %v4370 = vld [vmem:[#allocation4 + $0xf0] sm:$0xff]
    %v4371 = vld [vmem:[#allocation4 + $0xf8] sm:$0xff]
    %v4372 = vld [vmem:[#allocation4 + $0x108] sm:$0xff]
    %v4373 = vld [vmem:[#allocation4 + $0x110] sm:$0xff]
    %v4374 = vld [vmem:[#allocation4 + $0x120] sm:$0xff]
    %v4375 = vld [vmem:[#allocation4 + $0x128] sm:$0xff]
    %v4376 = vld [vmem:[#allocation4 + $0x138] sm:$0xff]
    %v4377 = vld [vmem:[#allocation4 + $0x140] sm:$0xff]
    %v4378 = vld [vmem:[#allocation4 + $0x150] sm:$0xff]
    %v4379 = vld [vmem:[#allocation4 + $0x158] sm:$0xff]
    %v4380 = vld [vmem:[#allocation4 + $0x168] sm:$0xff]
    %v4381 = vld [vmem:[#allocation4 + $0x170] sm:$0xff]
    %4382 = vst.msk [vmem:[#allocation5] sm:$0xff] %vm164, %v4350
    %4383 = vst.msk [vmem:[#allocation5 + $0x8] sm:$0xff] %vm164, %v4351
    %4384 = vst.msk [vmem:[#allocation5 + $0x10] sm:$0xff] %vm164, %v4352
    %4385 = vst.msk [vmem:[#allocation5 + $0x18] sm:$0xff] %vm164, %v4353
    %4386 = vst.msk [vmem:[#allocation5 + $0x20] sm:$0xff] %vm164, %v4354
    %4387 = vst.msk [vmem:[#allocation5 + $0x28] sm:$0xff] %vm164, %v4355
    %4388 = vst.msk [vmem:[#allocation5 + $0x30] sm:$0xff] %vm164, %v4356
    %4389 = vst.msk [vmem:[#allocation5 + $0x38] sm:$0xff] %vm164, %v4357
    %4390 = vst.msk [vmem:[#allocation5 + $0x40] sm:$0xff] %vm164, %v4358
    %4391 = vst.msk [vmem:[#allocation5 + $0x48] sm:$0xff] %vm164, %v4359
    %4392 = vst.msk [vmem:[#allocation5 + $0x50] sm:$0xff] %vm164, %v4360
    %4393 = vst.msk [vmem:[#allocation5 + $0x58] sm:$0xff] %vm164, %v4361
    %4394 = vst.msk [vmem:[#allocation5 + $0x60] sm:$0xff] %vm164, %v4362
    %4395 = vst.msk [vmem:[#allocation5 + $0x68] sm:$0xff] %vm164, %v4363
    %4396 = vst.msk [vmem:[#allocation5 + $0x70] sm:$0xff] %vm164, %v4364
    %4397 = vst.msk [vmem:[#allocation5 + $0x78] sm:$0xff] %vm164, %v4365
    %4398 = vst.msk [vmem:[#allocation5 + $0x80] sm:$0xff] %vm164, %v4366
    %4399 = vst.msk [vmem:[#allocation5 + $0x88] sm:$0xff] %vm164, %v4367
    %4400 = vst.msk [vmem:[#allocation5 + $0x90] sm:$0xff] %vm164, %v4368
    %4401 = vst.msk [vmem:[#allocation5 + $0x98] sm:$0xff] %vm164, %v4369
    %4402 = vst.msk [vmem:[#allocation5 + $0xa0] sm:$0xff] %vm164, %v4370
    %4403 = vst.msk [vmem:[#allocation5 + $0xa8] sm:$0xff] %vm164, %v4371
    %4404 = vst.msk [vmem:[#allocation5 + $0xb0] sm:$0xff] %vm164, %v4372
    %4405 = vst.msk [vmem:[#allocation5 + $0xb8] sm:$0xff] %vm164, %v4373
    %4406 = vst.msk [vmem:[#allocation5 + $0xc0] sm:$0xff] %vm164, %v4374
    %4407 = vst.msk [vmem:[#allocation5 + $0xc8] sm:$0xff] %vm164, %v4375
    %4408 = vst.msk [vmem:[#allocation5 + $0xd0] sm:$0xff] %vm164, %v4376
    %4409 = vst.msk [vmem:[#allocation5 + $0xd8] sm:$0xff] %vm164, %v4377
    %4410 = vst.msk [vmem:[#allocation5 + $0xe0] sm:$0xff] %vm164, %v4378
    %4411 = vst.msk [vmem:[#allocation5 + $0xe8] sm:$0xff] %vm164, %v4379
    %4412 = vst.msk [vmem:[#allocation5 + $0xf0] sm:$0xff] %vm164, %v4380
    %4413 = vst.msk [vmem:[#allocation5 + $0xf8] sm:$0xff] %vm164, %v4381
    %v4414 = vld [vmem:[#allocation4 + $0x1] sm:$0xff]
    %v4415 = vld [vmem:[#allocation4 + $0x9] sm:$0xff]
    %v4416 = vld [vmem:[#allocation4 + $0x19] sm:$0xff]
    %v4417 = vld [vmem:[#allocation4 + $0x21] sm:$0xff]
    %v4418 = vld [vmem:[#allocation4 + $0x31] sm:$0xff]
    %v4419 = vld [vmem:[#allocation4 + $0x39] sm:$0xff]
    %v4420 = vld [vmem:[#allocation4 + $0x49] sm:$0xff]
    %v4421 = vld [vmem:[#allocation4 + $0x51] sm:$0xff]
    %v4422 = vld [vmem:[#allocation4 + $0x61] sm:$0xff]
    %v4423 = vld [vmem:[#allocation4 + $0x69] sm:$0xff]
    %v4424 = vld [vmem:[#allocation4 + $0x79] sm:$0xff]
    %v4425 = vld [vmem:[#allocation4 + $0x81] sm:$0xff]
    %v4426 = vld [vmem:[#allocation4 + $0x91] sm:$0xff]
    %v4427 = vld [vmem:[#allocation4 + $0x99] sm:$0xff]
    %v4428 = vld [vmem:[#allocation4 + $0xa9] sm:$0xff]
    %v4429 = vld [vmem:[#allocation4 + $0xb1] sm:$0xff]
    %v4430 = vld [vmem:[#allocation4 + $0xc1] sm:$0xff]
    %v4431 = vld [vmem:[#allocation4 + $0xc9] sm:$0xff]
    %v4432 = vld [vmem:[#allocation4 + $0xd9] sm:$0xff]
    %v4433 = vld [vmem:[#allocation4 + $0xe1] sm:$0xff]
    %v4434 = vld [vmem:[#allocation4 + $0xf1] sm:$0xff]
    %v4435 = vld [vmem:[#allocation4 + $0xf9] sm:$0xff]
    %v4436 = vld [vmem:[#allocation4 + $0x109] sm:$0xff]
    %v4437 = vld [vmem:[#allocation4 + $0x111] sm:$0xff]
    %v4438 = vld [vmem:[#allocation4 + $0x121] sm:$0xff]
    %v4439 = vld [vmem:[#allocation4 + $0x129] sm:$0xff]
    %v4440 = vld [vmem:[#allocation4 + $0x139] sm:$0xff]
    %v4441 = vld [vmem:[#allocation4 + $0x141] sm:$0xff]
    %v4442 = vld [vmem:[#allocation4 + $0x151] sm:$0xff]
    %v4443 = vld [vmem:[#allocation4 + $0x159] sm:$0xff]
    %v4444 = vld [vmem:[#allocation4 + $0x169] sm:$0xff]
    %v4445 = vld [vmem:[#allocation4 + $0x171] sm:$0xff]
    %4478 = vrot.lane.b32.xlu0 %v4414, 8
    %v4479 = vpop.permute.xlu0 %4478
    %4480 = vrot.lane.b32.xlu0 %v4415, 8
    %v4481 = vpop.permute.xlu0 %4480
    %4482 = vrot.lane.b32.xlu0 %v4416, 8
    %v4483 = vpop.permute.xlu0 %4482
    %4484 = vrot.lane.b32.xlu0 %v4417, 8
    %v4485 = vpop.permute.xlu0 %4484
    %4486 = vrot.lane.b32.xlu0 %v4418, 8
    %v4487 = vpop.permute.xlu0 %4486
    %4488 = vrot.lane.b32.xlu0 %v4419, 8
    %v4489 = vpop.permute.xlu0 %4488
    %4490 = vrot.lane.b32.xlu0 %v4420, 8
    %v4491 = vpop.permute.xlu0 %4490
    %4492 = vrot.lane.b32.xlu0 %v4421, 8
    %v4493 = vpop.permute.xlu0 %4492
    %4494 = vrot.lane.b32.xlu0 %v4422, 8
    %v4495 = vpop.permute.xlu0 %4494
    %4496 = vrot.lane.b32.xlu0 %v4423, 8
    %v4497 = vpop.permute.xlu0 %4496
    %4498 = vrot.lane.b32.xlu0 %v4424, 8
    %v4499 = vpop.permute.xlu0 %4498
    %4500 = vrot.lane.b32.xlu0 %v4425, 8
    %v4501 = vpop.permute.xlu0 %4500
    %4502 = vrot.lane.b32.xlu0 %v4426, 8
    %v4503 = vpop.permute.xlu0 %4502
    %4504 = vrot.lane.b32.xlu0 %v4427, 8
    %v4505 = vpop.permute.xlu0 %4504
    %4506 = vrot.lane.b32.xlu0 %v4428, 8
    %v4507 = vpop.permute.xlu0 %4506
    %4508 = vrot.lane.b32.xlu0 %v4429, 8
    %v4509 = vpop.permute.xlu0 %4508
    %4510 = vrot.lane.b32.xlu0 %v4430, 8
    %v4511 = vpop.permute.xlu0 %4510
    %4512 = vrot.lane.b32.xlu0 %v4431, 8
    %v4513 = vpop.permute.xlu0 %4512
    %4514 = vrot.lane.b32.xlu0 %v4432, 8
    %v4515 = vpop.permute.xlu0 %4514
    %4516 = vrot.lane.b32.xlu0 %v4433, 8
    %v4517 = vpop.permute.xlu0 %4516
    %4518 = vrot.lane.b32.xlu0 %v4434, 8
    %v4519 = vpop.permute.xlu0 %4518
    %4520 = vrot.lane.b32.xlu0 %v4435, 8
    %v4521 = vpop.permute.xlu0 %4520
    %4522 = vrot.lane.b32.xlu0 %v4436, 8
    %v4523 = vpop.permute.xlu0 %4522
    %4524 = vrot.lane.b32.xlu0 %v4437, 8
    %v4525 = vpop.permute.xlu0 %4524
    %4526 = vrot.lane.b32.xlu0 %v4438, 8
    %v4527 = vpop.permute.xlu0 %4526
    %4528 = vrot.lane.b32.xlu0 %v4439, 8
    %v4529 = vpop.permute.xlu0 %4528
    %4530 = vrot.lane.b32.xlu0 %v4440, 8
    %v4531 = vpop.permute.xlu0 %4530
    %4532 = vrot.lane.b32.xlu0 %v4441, 8
    %v4533 = vpop.permute.xlu0 %4532
    %4534 = vrot.lane.b32.xlu0 %v4442, 8
    %v4535 = vpop.permute.xlu0 %4534
    %4536 = vrot.lane.b32.xlu0 %v4443, 8
    %v4537 = vpop.permute.xlu0 %4536
    %4538 = vrot.lane.b32.xlu0 %v4444, 8
    %v4539 = vpop.permute.xlu0 %4538
    %4540 = vrot.lane.b32.xlu0 %v4445, 8
    %v4541 = vpop.permute.xlu0 %4540
    %vm4574 = vcmask 130112
    %4575 = vst.msk [vmem:[#allocation5] sm:$0xff] %vm4574, %v4479
    %4576 = vst.msk [vmem:[#allocation5 + $0x8] sm:$0xff] %vm4574, %v4481
    %4577 = vst.msk [vmem:[#allocation5 + $0x10] sm:$0xff] %vm4574, %v4483
    %4578 = vst.msk [vmem:[#allocation5 + $0x18] sm:$0xff] %vm4574, %v4485
    %4579 = vst.msk [vmem:[#allocation5 + $0x20] sm:$0xff] %vm4574, %v4487
    %4580 = vst.msk [vmem:[#allocation5 + $0x28] sm:$0xff] %vm4574, %v4489
    %4581 = vst.msk [vmem:[#allocation5 + $0x30] sm:$0xff] %vm4574, %v4491
    %4582 = vst.msk [vmem:[#allocation5 + $0x38] sm:$0xff] %vm4574, %v4493
    %4583 = vst.msk [vmem:[#allocation5 + $0x40] sm:$0xff] %vm4574, %v4495
    %4584 = vst.msk [vmem:[#allocation5 + $0x48] sm:$0xff] %vm4574, %v4497
    %4585 = vst.msk [vmem:[#allocation5 + $0x50] sm:$0xff] %vm4574, %v4499
    %4586 = vst.msk [vmem:[#allocation5 + $0x58] sm:$0xff] %vm4574, %v4501
    %4587 = vst.msk [vmem:[#allocation5 + $0x60] sm:$0xff] %vm4574, %v4503
    %4588 = vst.msk [vmem:[#allocation5 + $0x68] sm:$0xff] %vm4574, %v4505
    %4589 = vst.msk [vmem:[#allocation5 + $0x70] sm:$0xff] %vm4574, %v4507
    %4590 = vst.msk [vmem:[#allocation5 + $0x78] sm:$0xff] %vm4574, %v4509
    %4591 = vst.msk [vmem:[#allocation5 + $0x80] sm:$0xff] %vm4574, %v4511
    %4592 = vst.msk [vmem:[#allocation5 + $0x88] sm:$0xff] %vm4574, %v4513
    %4593 = vst.msk [vmem:[#allocation5 + $0x90] sm:$0xff] %vm4574, %v4515
    %4594 = vst.msk [vmem:[#allocation5 + $0x98] sm:$0xff] %vm4574, %v4517
    %4595 = vst.msk [vmem:[#allocation5 + $0xa0] sm:$0xff] %vm4574, %v4519
    %4596 = vst.msk [vmem:[#allocation5 + $0xa8] sm:$0xff] %vm4574, %v4521
    %4597 = vst.msk [vmem:[#allocation5 + $0xb0] sm:$0xff] %vm4574, %v4523
    %4598 = vst.msk [vmem:[#allocation5 + $0xb8] sm:$0xff] %vm4574, %v4525
    %4599 = vst.msk [vmem:[#allocation5 + $0xc0] sm:$0xff] %vm4574, %v4527
    %4600 = vst.msk [vmem:[#allocation5 + $0xc8] sm:$0xff] %vm4574, %v4529
    %4601 = vst.msk [vmem:[#allocation5 + $0xd0] sm:$0xff] %vm4574, %v4531
    %4602 = vst.msk [vmem:[#allocation5 + $0xd8] sm:$0xff] %vm4574, %v4533
    %4603 = vst.msk [vmem:[#allocation5 + $0xe0] sm:$0xff] %vm4574, %v4535
    %4604 = vst.msk [vmem:[#allocation5 + $0xe8] sm:$0xff] %vm4574, %v4537
    %4605 = vst.msk [vmem:[#allocation5 + $0xf0] sm:$0xff] %vm4574, %v4539
    %4606 = vst.msk [vmem:[#allocation5 + $0xf8] sm:$0xff] %vm4574, %v4541
    %v4607 = vld [vmem:[#allocation4 + $0x2] sm:$0xff]
    %v4608 = vld [vmem:[#allocation4 + $0xa] sm:$0xff]
    %v4609 = vld [vmem:[#allocation4 + $0x1a] sm:$0xff]
    %v4610 = vld [vmem:[#allocation4 + $0x22] sm:$0xff]
    %v4611 = vld [vmem:[#allocation4 + $0x32] sm:$0xff]
    %v4612 = vld [vmem:[#allocation4 + $0x3a] sm:$0xff]
    %v4613 = vld [vmem:[#allocation4 + $0x4a] sm:$0xff]
    %v4614 = vld [vmem:[#allocation4 + $0x52] sm:$0xff]
    %v4615 = vld [vmem:[#allocation4 + $0x62] sm:$0xff]
    %v4616 = vld [vmem:[#allocation4 + $0x6a] sm:$0xff]
    %v4617 = vld [vmem:[#allocation4 + $0x7a] sm:$0xff]
    %v4618 = vld [vmem:[#allocation4 + $0x82] sm:$0xff]
    %v4619 = vld [vmem:[#allocation4 + $0x92] sm:$0xff]
    %v4620 = vld [vmem:[#allocation4 + $0x9a] sm:$0xff]
    %v4621 = vld [vmem:[#allocation4 + $0xaa] sm:$0xff]
    %v4622 = vld [vmem:[#allocation4 + $0xb2] sm:$0xff]
    %v4623 = vld [vmem:[#allocation4 + $0xc2] sm:$0xff]
    %v4624 = vld [vmem:[#allocation4 + $0xca] sm:$0xff]
    %v4625 = vld [vmem:[#allocation4 + $0xda] sm:$0xff]
    %v4626 = vld [vmem:[#allocation4 + $0xe2] sm:$0xff]
    %v4627 = vld [vmem:[#allocation4 + $0xf2] sm:$0xff]
    %v4628 = vld [vmem:[#allocation4 + $0xfa] sm:$0xff]
    %v4629 = vld [vmem:[#allocation4 + $0x10a] sm:$0xff]
    %v4630 = vld [vmem:[#allocation4 + $0x112] sm:$0xff]
    %v4631 = vld [vmem:[#allocation4 + $0x122] sm:$0xff]
    %v4632 = vld [vmem:[#allocation4 + $0x12a] sm:$0xff]
    %v4633 = vld [vmem:[#allocation4 + $0x13a] sm:$0xff]
    %v4634 = vld [vmem:[#allocation4 + $0x142] sm:$0xff]
    %v4635 = vld [vmem:[#allocation4 + $0x152] sm:$0xff]
    %v4636 = vld [vmem:[#allocation4 + $0x15a] sm:$0xff]
    %v4637 = vld [vmem:[#allocation4 + $0x16a] sm:$0xff]
    %v4638 = vld [vmem:[#allocation4 + $0x172] sm:$0xff]
    %4671 = vrot.lane.b32.xlu0 %v4607, 16
    %v4672 = vpop.permute.xlu0 %4671
    %4673 = vrot.lane.b32.xlu0 %v4608, 16
    %v4674 = vpop.permute.xlu0 %4673
    %4675 = vrot.lane.b32.xlu0 %v4609, 16
    %v4676 = vpop.permute.xlu0 %4675
    %4677 = vrot.lane.b32.xlu0 %v4610, 16
    %v4678 = vpop.permute.xlu0 %4677
    %4679 = vrot.lane.b32.xlu0 %v4611, 16
    %v4680 = vpop.permute.xlu0 %4679
    %4681 = vrot.lane.b32.xlu0 %v4612, 16
    %v4682 = vpop.permute.xlu0 %4681
    %4683 = vrot.lane.b32.xlu0 %v4613, 16
    %v4684 = vpop.permute.xlu0 %4683
    %4685 = vrot.lane.b32.xlu0 %v4614, 16
    %v4686 = vpop.permute.xlu0 %4685
    %4687 = vrot.lane.b32.xlu0 %v4615, 16
    %v4688 = vpop.permute.xlu0 %4687
    %4689 = vrot.lane.b32.xlu0 %v4616, 16
    %v4690 = vpop.permute.xlu0 %4689
    %4691 = vrot.lane.b32.xlu0 %v4617, 16
    %v4692 = vpop.permute.xlu0 %4691
    %4693 = vrot.lane.b32.xlu0 %v4618, 16
    %v4694 = vpop.permute.xlu0 %4693
    %4695 = vrot.lane.b32.xlu0 %v4619, 16
    %v4696 = vpop.permute.xlu0 %4695
    %4697 = vrot.lane.b32.xlu0 %v4620, 16
    %v4698 = vpop.permute.xlu0 %4697
    %4699 = vrot.lane.b32.xlu0 %v4621, 16
    %v4700 = vpop.permute.xlu0 %4699
    %4701 = vrot.lane.b32.xlu0 %v4622, 16
    %v4702 = vpop.permute.xlu0 %4701
    %4703 = vrot.lane.b32.xlu0 %v4623, 16
    %v4704 = vpop.permute.xlu0 %4703
    %4705 = vrot.lane.b32.xlu0 %v4624, 16
    %v4706 = vpop.permute.xlu0 %4705
    %4707 = vrot.lane.b32.xlu0 %v4625, 16
    %v4708 = vpop.permute.xlu0 %4707
    %4709 = vrot.lane.b32.xlu0 %v4626, 16
    %v4710 = vpop.permute.xlu0 %4709
    %4711 = vrot.lane.b32.xlu0 %v4627, 16
    %v4712 = vpop.permute.xlu0 %4711
    %4713 = vrot.lane.b32.xlu0 %v4628, 16
    %v4714 = vpop.permute.xlu0 %4713
    %4715 = vrot.lane.b32.xlu0 %v4629, 16
    %v4716 = vpop.permute.xlu0 %4715
    %4717 = vrot.lane.b32.xlu0 %v4630, 16
    %v4718 = vpop.permute.xlu0 %4717
    %4719 = vrot.lane.b32.xlu0 %v4631, 16
    %v4720 = vpop.permute.xlu0 %4719
    %4721 = vrot.lane.b32.xlu0 %v4632, 16
    %v4722 = vpop.permute.xlu0 %4721
    %4723 = vrot.lane.b32.xlu0 %v4633, 16
    %v4724 = vpop.permute.xlu0 %4723
    %4725 = vrot.lane.b32.xlu0 %v4634, 16
    %v4726 = vpop.permute.xlu0 %4725
    %4727 = vrot.lane.b32.xlu0 %v4635, 16
    %v4728 = vpop.permute.xlu0 %4727
    %4729 = vrot.lane.b32.xlu0 %v4636, 16
    %v4730 = vpop.permute.xlu0 %4729
    %4731 = vrot.lane.b32.xlu0 %v4637, 16
    %v4732 = vpop.permute.xlu0 %4731
    %4733 = vrot.lane.b32.xlu0 %v4638, 16
    %v4734 = vpop.permute.xlu0 %4733
    %vm4767 = vcmask 195712
    %4768 = vst.msk [vmem:[#allocation5] sm:$0xff] %vm4767, %v4672
    %4769 = vst.msk [vmem:[#allocation5 + $0x8] sm:$0xff] %vm4767, %v4674
    %4770 = vst.msk [vmem:[#allocation5 + $0x10] sm:$0xff] %vm4767, %v4676
    %4771 = vst.msk [vmem:[#allocation5 + $0x18] sm:$0xff] %vm4767, %v4678
    %4772 = vst.msk [vmem:[#allocation5 + $0x20] sm:$0xff] %vm4767, %v4680
    %4773 = vst.msk [vmem:[#allocation5 + $0x28] sm:$0xff] %vm4767, %v4682
    %4774 = vst.msk [vmem:[#allocation5 + $0x30] sm:$0xff] %vm4767, %v4684
    %4775 = vst.msk [vmem:[#allocation5 + $0x38] sm:$0xff] %vm4767, %v4686
    %4776 = vst.msk [vmem:[#allocation5 + $0x40] sm:$0xff] %vm4767, %v4688
    %4777 = vst.msk [vmem:[#allocation5 + $0x48] sm:$0xff] %vm4767, %v4690
    %4778 = vst.msk [vmem:[#allocation5 + $0x50] sm:$0xff] %vm4767, %v4692
    %4779 = vst.msk [vmem:[#allocation5 + $0x58] sm:$0xff] %vm4767, %v4694
    %4780 = vst.msk [vmem:[#allocation5 + $0x60] sm:$0xff] %vm4767, %v4696
    %4781 = vst.msk [vmem:[#allocation5 + $0x68] sm:$0xff] %vm4767, %v4698
    %4782 = vst.msk [vmem:[#allocation5 + $0x70] sm:$0xff] %vm4767, %v4700
    %4783 = vst.msk [vmem:[#allocation5 + $0x78] sm:$0xff] %vm4767, %v4702
    %4784 = vst.msk [vmem:[#allocation5 + $0x80] sm:$0xff] %vm4767, %v4704
    %4785 = vst.msk [vmem:[#allocation5 + $0x88] sm:$0xff] %vm4767, %v4706
    %4786 = vst.msk [vmem:[#allocation5 + $0x90] sm:$0xff] %vm4767, %v4708
    %4787 = vst.msk [vmem:[#allocation5 + $0x98] sm:$0xff] %vm4767, %v4710
    %4788 = vst.msk [vmem:[#allocation5 + $0xa0] sm:$0xff] %vm4767, %v4712
    %4789 = vst.msk [vmem:[#allocation5 + $0xa8] sm:$0xff] %vm4767, %v4714
    %4790 = vst.msk [vmem:[#allocation5 + $0xb0] sm:$0xff] %vm4767, %v4716
    %4791 = vst.msk [vmem:[#allocation5 + $0xb8] sm:$0xff] %vm4767, %v4718
    %4792 = vst.msk [vmem:[#allocation5 + $0xc0] sm:$0xff] %vm4767, %v4720
    %4793 = vst.msk [vmem:[#allocation5 + $0xc8] sm:$0xff] %vm4767, %v4722
    %4794 = vst.msk [vmem:[#allocation5 + $0xd0] sm:$0xff] %vm4767, %v4724
    %4795 = vst.msk [vmem:[#allocation5 + $0xd8] sm:$0xff] %vm4767, %v4726
    %4796 = vst.msk [vmem:[#allocation5 + $0xe0] sm:$0xff] %vm4767, %v4728
    %4797 = vst.msk [vmem:[#allocation5 + $0xe8] sm:$0xff] %vm4767, %v4730
    %4798 = vst.msk [vmem:[#allocation5 + $0xf0] sm:$0xff] %vm4767, %v4732
    %4799 = vst.msk [vmem:[#allocation5 + $0xf8] sm:$0xff] %vm4767, %v4734
    %v4800 = vld [vmem:[%s173] sm:$0xff]
    %v4801 = vld [vmem:[%s173 + $0x8] sm:$0xff]
    %v4802 = vld [vmem:[%s173 + $0x18] sm:$0xff]
    %v4803 = vld [vmem:[%s173 + $0x20] sm:$0xff]
    %v4804 = vld [vmem:[%s173 + $0x30] sm:$0xff]
    %v4805 = vld [vmem:[%s173 + $0x38] sm:$0xff]
    %v4806 = vld [vmem:[%s173 + $0x48] sm:$0xff]
    %v4807 = vld [vmem:[%s173 + $0x50] sm:$0xff]
    %v4808 = vld [vmem:[%s173 + $0x60] sm:$0xff]
    %v4809 = vld [vmem:[%s173 + $0x68] sm:$0xff]
    %v4810 = vld [vmem:[%s173 + $0x78] sm:$0xff]
    %v4811 = vld [vmem:[%s173 + $0x80] sm:$0xff]
    %v4812 = vld [vmem:[%s173 + $0x90] sm:$0xff]
    %v4813 = vld [vmem:[%s173 + $0x98] sm:$0xff]
    %v4814 = vld [vmem:[%s173 + $0xa8] sm:$0xff]
    %v4815 = vld [vmem:[%s173 + $0xb0] sm:$0xff]
    %v4816 = vld [vmem:[%s173 + $0xc0] sm:$0xff]
    %v4817 = vld [vmem:[%s173 + $0xc8] sm:$0xff]
    %v4818 = vld [vmem:[%s173 + $0xd8] sm:$0xff]
    %v4819 = vld [vmem:[%s173 + $0xe0] sm:$0xff]
    %v4820 = vld [vmem:[%s173 + $0xf0] sm:$0xff]
    %v4821 = vld [vmem:[%s173 + $0xf8] sm:$0xff]
    %v4822 = vld [vmem:[%s173 + $0x108] sm:$0xff]
    %v4823 = vld [vmem:[%s173 + $0x110] sm:$0xff]
    %v4824 = vld [vmem:[%s173 + $0x120] sm:$0xff]
    %v4825 = vld [vmem:[%s173 + $0x128] sm:$0xff]
    %v4826 = vld [vmem:[%s173 + $0x138] sm:$0xff]
    %v4827 = vld [vmem:[%s173 + $0x140] sm:$0xff]
    %v4828 = vld [vmem:[%s173 + $0x150] sm:$0xff]
    %v4829 = vld [vmem:[%s173 + $0x158] sm:$0xff]
    %v4830 = vld [vmem:[%s173 + $0x168] sm:$0xff]
    %v4831 = vld [vmem:[%s173 + $0x170] sm:$0xff]
    %4864 = vrot.lane.b32.xlu0 %v4800, 24
    %v4865 = vpop.permute.xlu0 %4864
    %4866 = vrot.lane.b32.xlu0 %v4801, 24
    %v4867 = vpop.permute.xlu0 %4866
    %4868 = vrot.lane.b32.xlu0 %v4802, 24
    %v4869 = vpop.permute.xlu0 %4868
    %4870 = vrot.lane.b32.xlu0 %v4803, 24
    %v4871 = vpop.permute.xlu0 %4870
    %4872 = vrot.lane.b32.xlu0 %v4804, 24
    %v4873 = vpop.permute.xlu0 %4872
    %4874 = vrot.lane.b32.xlu0 %v4805, 24
    %v4875 = vpop.permute.xlu0 %4874
    %4876 = vrot.lane.b32.xlu0 %v4806, 24
    %v4877 = vpop.permute.xlu0 %4876
    %4878 = vrot.lane.b32.xlu0 %v4807, 24
    %v4879 = vpop.permute.xlu0 %4878
    %4880 = vrot.lane.b32.xlu0 %v4808, 24
    %v4881 = vpop.permute.xlu0 %4880
    %4882 = vrot.lane.b32.xlu0 %v4809, 24
    %v4883 = vpop.permute.xlu0 %4882
    %4884 = vrot.lane.b32.xlu0 %v4810, 24
    %v4885 = vpop.permute.xlu0 %4884
    %4886 = vrot.lane.b32.xlu0 %v4811, 24
    %v4887 = vpop.permute.xlu0 %4886
    %4888 = vrot.lane.b32.xlu0 %v4812, 24
    %v4889 = vpop.permute.xlu0 %4888
    %4890 = vrot.lane.b32.xlu0 %v4813, 24
    %v4891 = vpop.permute.xlu0 %4890
    %4892 = vrot.lane.b32.xlu0 %v4814, 24
    %v4893 = vpop.permute.xlu0 %4892
    %4894 = vrot.lane.b32.xlu0 %v4815, 24
    %v4895 = vpop.permute.xlu0 %4894
    %4896 = vrot.lane.b32.xlu0 %v4816, 24
    %v4897 = vpop.permute.xlu0 %4896
    %4898 = vrot.lane.b32.xlu0 %v4817, 24
    %v4899 = vpop.permute.xlu0 %4898
    %4900 = vrot.lane.b32.xlu0 %v4818, 24
    %v4901 = vpop.permute.xlu0 %4900
    %4902 = vrot.lane.b32.xlu0 %v4819, 24
    %v4903 = vpop.permute.xlu0 %4902
    %4904 = vrot.lane.b32.xlu0 %v4820, 24
    %v4905 = vpop.permute.xlu0 %4904
    %4906 = vrot.lane.b32.xlu0 %v4821, 24
    %v4907 = vpop.permute.xlu0 %4906
    %4908 = vrot.lane.b32.xlu0 %v4822, 24
    %v4909 = vpop.permute.xlu0 %4908
    %4910 = vrot.lane.b32.xlu0 %v4823, 24
    %v4911 = vpop.permute.xlu0 %4910
    %4912 = vrot.lane.b32.xlu0 %v4824, 24
    %v4913 = vpop.permute.xlu0 %4912
    %4914 = vrot.lane.b32.xlu0 %v4825, 24
    %v4915 = vpop.permute.xlu0 %4914
    %4916 = vrot.lane.b32.xlu0 %v4826, 24
    %v4917 = vpop.permute.xlu0 %4916
    %4918 = vrot.lane.b32.xlu0 %v4827, 24
    %v4919 = vpop.permute.xlu0 %4918
    %4920 = vrot.lane.b32.xlu0 %v4828, 24
    %v4921 = vpop.permute.xlu0 %4920
    %4922 = vrot.lane.b32.xlu0 %v4829, 24
    %v4923 = vpop.permute.xlu0 %4922
    %4924 = vrot.lane.b32.xlu0 %v4830, 24
    %v4925 = vpop.permute.xlu0 %4924
    %4926 = vrot.lane.b32.xlu0 %v4831, 24
    %v4927 = vpop.permute.xlu0 %4926
    %vm4960 = vcmask 261312
    %4961 = vst.msk [vmem:[#allocation5] sm:$0xff] %vm4960, %v4865
    %4962 = vst.msk [vmem:[#allocation5 + $0x8] sm:$0xff] %vm4960, %v4867
    %4963 = vst.msk [vmem:[#allocation5 + $0x10] sm:$0xff] %vm4960, %v4869
    %4964 = vst.msk [vmem:[#allocation5 + $0x18] sm:$0xff] %vm4960, %v4871
    %4965 = vst.msk [vmem:[#allocation5 + $0x20] sm:$0xff] %vm4960, %v4873
    %4966 = vst.msk [vmem:[#allocation5 + $0x28] sm:$0xff] %vm4960, %v4875
    %4967 = vst.msk [vmem:[#allocation5 + $0x30] sm:$0xff] %vm4960, %v4877
    %4968 = vst.msk [vmem:[#allocation5 + $0x38] sm:$0xff] %vm4960, %v4879
    %4969 = vst.msk [vmem:[#allocation5 + $0x40] sm:$0xff] %vm4960, %v4881
    %4970 = vst.msk [vmem:[#allocation5 + $0x48] sm:$0xff] %vm4960, %v4883
    %4971 = vst.msk [vmem:[#allocation5 + $0x50] sm:$0xff] %vm4960, %v4885
    %4972 = vst.msk [vmem:[#allocation5 + $0x58] sm:$0xff] %vm4960, %v4887
    %4973 = vst.msk [vmem:[#allocation5 + $0x60] sm:$0xff] %vm4960, %v4889
    %4974 = vst.msk [vmem:[#allocation5 + $0x68] sm:$0xff] %vm4960, %v4891
    %4975 = vst.msk [vmem:[#allocation5 + $0x70] sm:$0xff] %vm4960, %v4893
    %4976 = vst.msk [vmem:[#allocation5 + $0x78] sm:$0xff] %vm4960, %v4895
    %4977 = vst.msk [vmem:[#allocation5 + $0x80] sm:$0xff] %vm4960, %v4897
    %4978 = vst.msk [vmem:[#allocation5 + $0x88] sm:$0xff] %vm4960, %v4899
    %4979 = vst.msk [vmem:[#allocation5 + $0x90] sm:$0xff] %vm4960, %v4901
    %4980 = vst.msk [vmem:[#allocation5 + $0x98] sm:$0xff] %vm4960, %v4903
    %4981 = vst.msk [vmem:[#allocation5 + $0xa0] sm:$0xff] %vm4960, %v4905
    %4982 = vst.msk [vmem:[#allocation5 + $0xa8] sm:$0xff] %vm4960, %v4907
    %4983 = vst.msk [vmem:[#allocation5 + $0xb0] sm:$0xff] %vm4960, %v4909
    %4984 = vst.msk [vmem:[#allocation5 + $0xb8] sm:$0xff] %vm4960, %v4911
    %4985 = vst.msk [vmem:[#allocation5 + $0xc0] sm:$0xff] %vm4960, %v4913
    %4986 = vst.msk [vmem:[#allocation5 + $0xc8] sm:$0xff] %vm4960, %v4915
    %4987 = vst.msk [vmem:[#allocation5 + $0xd0] sm:$0xff] %vm4960, %v4917
    %4988 = vst.msk [vmem:[#allocation5 + $0xd8] sm:$0xff] %vm4960, %v4919
    %4989 = vst.msk [vmem:[#allocation5 + $0xe0] sm:$0xff] %vm4960, %v4921
    %4990 = vst.msk [vmem:[#allocation5 + $0xe8] sm:$0xff] %vm4960, %v4923
    %4991 = vst.msk [vmem:[#allocation5 + $0xf0] sm:$0xff] %vm4960, %v4925
    %4992 = vst.msk [vmem:[#allocation5 + $0xf8] sm:$0xff] %vm4960, %v4927
    %v4993 = vld [vmem:[%s173 + $0x1] sm:$0xff]
    %v4994 = vld [vmem:[%s173 + $0x9] sm:$0xff]
    %v4995 = vld [vmem:[%s173 + $0x19] sm:$0xff]
    %v4996 = vld [vmem:[%s173 + $0x21] sm:$0xff]
    %v4997 = vld [vmem:[%s173 + $0x31] sm:$0xff]
    %v4998 = vld [vmem:[%s173 + $0x39] sm:$0xff]
    %v4999 = vld [vmem:[%s173 + $0x49] sm:$0xff]
    %v5000 = vld [vmem:[%s173 + $0x51] sm:$0xff]
    %v5001 = vld [vmem:[%s173 + $0x61] sm:$0xff]
    %v5002 = vld [vmem:[%s173 + $0x69] sm:$0xff]
    %v5003 = vld [vmem:[%s173 + $0x79] sm:$0xff]
    %v5004 = vld [vmem:[%s173 + $0x81] sm:$0xff]
    %v5005 = vld [vmem:[%s173 + $0x91] sm:$0xff]
    %v5006 = vld [vmem:[%s173 + $0x99] sm:$0xff]
    %v5007 = vld [vmem:[%s173 + $0xa9] sm:$0xff]
    %v5008 = vld [vmem:[%s173 + $0xb1] sm:$0xff]
    %v5009 = vld [vmem:[%s173 + $0xc1] sm:$0xff]
    %v5010 = vld [vmem:[%s173 + $0xc9] sm:$0xff]
    %v5011 = vld [vmem:[%s173 + $0xd9] sm:$0xff]
    %v5012 = vld [vmem:[%s173 + $0xe1] sm:$0xff]
    %v5013 = vld [vmem:[%s173 + $0xf1] sm:$0xff]
    %v5014 = vld [vmem:[%s173 + $0xf9] sm:$0xff]
    %v5015 = vld [vmem:[%s173 + $0x109] sm:$0xff]
    %v5016 = vld [vmem:[%s173 + $0x111] sm:$0xff]
    %v5017 = vld [vmem:[%s173 + $0x121] sm:$0xff]
    %v5018 = vld [vmem:[%s173 + $0x129] sm:$0xff]
    %v5019 = vld [vmem:[%s173 + $0x139] sm:$0xff]
    %v5020 = vld [vmem:[%s173 + $0x141] sm:$0xff]
    %v5021 = vld [vmem:[%s173 + $0x151] sm:$0xff]
    %v5022 = vld [vmem:[%s173 + $0x159] sm:$0xff]
    %v5023 = vld [vmem:[%s173 + $0x169] sm:$0xff]
    %v5024 = vld [vmem:[%s173 + $0x171] sm:$0xff]
    %5057 = vrot.lane.b32.xlu0 %v4993, 32
    %v5058 = vpop.permute.xlu0 %5057
    %5059 = vrot.lane.b32.xlu0 %v4994, 32
    %v5060 = vpop.permute.xlu0 %5059
    %5061 = vrot.lane.b32.xlu0 %v4995, 32
    %v5062 = vpop.permute.xlu0 %5061
    %5063 = vrot.lane.b32.xlu0 %v4996, 32
    %v5064 = vpop.permute.xlu0 %5063
    %5065 = vrot.lane.b32.xlu0 %v4997, 32
    %v5066 = vpop.permute.xlu0 %5065
    %5067 = vrot.lane.b32.xlu0 %v4998, 32
    %v5068 = vpop.permute.xlu0 %5067
    %5069 = vrot.lane.b32.xlu0 %v4999, 32
    %v5070 = vpop.permute.xlu0 %5069
    %5071 = vrot.lane.b32.xlu0 %v5000, 32
    %v5072 = vpop.permute.xlu0 %5071
    %5073 = vrot.lane.b32.xlu0 %v5001, 32
    %v5074 = vpop.permute.xlu0 %5073
    %5075 = vrot.lane.b32.xlu0 %v5002, 32
    %v5076 = vpop.permute.xlu0 %5075
    %5077 = vrot.lane.b32.xlu0 %v5003, 32
    %v5078 = vpop.permute.xlu0 %5077
    %5079 = vrot.lane.b32.xlu0 %v5004, 32
    %v5080 = vpop.permute.xlu0 %5079
    %5081 = vrot.lane.b32.xlu0 %v5005, 32
    %v5082 = vpop.permute.xlu0 %5081
    %5083 = vrot.lane.b32.xlu0 %v5006, 32
    %v5084 = vpop.permute.xlu0 %5083
    %5085 = vrot.lane.b32.xlu0 %v5007, 32
    %v5086 = vpop.permute.xlu0 %5085
    %5087 = vrot.lane.b32.xlu0 %v5008, 32
    %v5088 = vpop.permute.xlu0 %5087
    %5089 = vrot.lane.b32.xlu0 %v5009, 32
    %v5090 = vpop.permute.xlu0 %5089
    %5091 = vrot.lane.b32.xlu0 %v5010, 32
    %v5092 = vpop.permute.xlu0 %5091
    %5093 = vrot.lane.b32.xlu0 %v5011, 32
    %v5094 = vpop.permute.xlu0 %5093
    %5095 = vrot.lane.b32.xlu0 %v5012, 32
    %v5096 = vpop.permute.xlu0 %5095
    %5097 = vrot.lane.b32.xlu0 %v5013, 32
    %v5098 = vpop.permute.xlu0 %5097
    %5099 = vrot.lane.b32.xlu0 %v5014, 32
    %v5100 = vpop.permute.xlu0 %5099
    %5101 = vrot.lane.b32.xlu0 %v5015, 32
    %v5102 = vpop.permute.xlu0 %5101
    %5103 = vrot.lane.b32.xlu0 %v5016, 32
    %v5104 = vpop.permute.xlu0 %5103
    %5105 = vrot.lane.b32.xlu0 %v5017, 32
    %v5106 = vpop.permute.xlu0 %5105
    %5107 = vrot.lane.b32.xlu0 %v5018, 32
    %v5108 = vpop.permute.xlu0 %5107
    %5109 = vrot.lane.b32.xlu0 %v5019, 32
    %v5110 = vpop.permute.xlu0 %5109
    %5111 = vrot.lane.b32.xlu0 %v5020, 32
    %v5112 = vpop.permute.xlu0 %5111
    %5113 = vrot.lane.b32.xlu0 %v5021, 32
    %v5114 = vpop.permute.xlu0 %5113
    %5115 = vrot.lane.b32.xlu0 %v5022, 32
    %v5116 = vpop.permute.xlu0 %5115
    %5117 = vrot.lane.b32.xlu0 %v5023, 32
    %v5118 = vpop.permute.xlu0 %5117
    %5119 = vrot.lane.b32.xlu0 %v5024, 32
    %v5120 = vpop.permute.xlu0 %5119
    %vm5153 = vcmask 326912
    %5154 = vst.msk [vmem:[#allocation5] sm:$0xff] %vm5153, %v5058
    %5155 = vst.msk [vmem:[#allocation5 + $0x8] sm:$0xff] %vm5153, %v5060
    %5156 = vst.msk [vmem:[#allocation5 + $0x10] sm:$0xff] %vm5153, %v5062
    %5157 = vst.msk [vmem:[#allocation5 + $0x18] sm:$0xff] %vm5153, %v5064
    %5158 = vst.msk [vmem:[#allocation5 + $0x20] sm:$0xff] %vm5153, %v5066
    %5159 = vst.msk [vmem:[#allocation5 + $0x28] sm:$0xff] %vm5153, %v5068
    %5160 = vst.msk [vmem:[#allocation5 + $0x30] sm:$0xff] %vm5153, %v5070
    %5161 = vst.msk [vmem:[#allocation5 + $0x38] sm:$0xff] %vm5153, %v5072
    %5162 = vst.msk [vmem:[#allocation5 + $0x40] sm:$0xff] %vm5153, %v5074
    %5163 = vst.msk [vmem:[#allocation5 + $0x48] sm:$0xff] %vm5153, %v5076
    %5164 = vst.msk [vmem:[#allocation5 + $0x50] sm:$0xff] %vm5153, %v5078
    %5165 = vst.msk [vmem:[#allocation5 + $0x58] sm:$0xff] %vm5153, %v5080
    %5166 = vst.msk [vmem:[#allocation5 + $0x60] sm:$0xff] %vm5153, %v5082
    %5167 = vst.msk [vmem:[#allocation5 + $0x68] sm:$0xff] %vm5153, %v5084
    %5168 = vst.msk [vmem:[#allocation5 + $0x70] sm:$0xff] %vm5153, %v5086
    %5169 = vst.msk [vmem:[#allocation5 + $0x78] sm:$0xff] %vm5153, %v5088
    %5170 = vst.msk [vmem:[#allocation5 + $0x80] sm:$0xff] %vm5153, %v5090
    %5171 = vst.msk [vmem:[#allocation5 + $0x88] sm:$0xff] %vm5153, %v5092
    %5172 = vst.msk [vmem:[#allocation5 + $0x90] sm:$0xff] %vm5153, %v5094
    %5173 = vst.msk [vmem:[#allocation5 + $0x98] sm:$0xff] %vm5153, %v5096
    %5174 = vst.msk [vmem:[#allocation5 + $0xa0] sm:$0xff] %vm5153, %v5098
    %5175 = vst.msk [vmem:[#allocation5 + $0xa8] sm:$0xff] %vm5153, %v5100
    %5176 = vst.msk [vmem:[#allocation5 + $0xb0] sm:$0xff] %vm5153, %v5102
    %5177 = vst.msk [vmem:[#allocation5 + $0xb8] sm:$0xff] %vm5153, %v5104
    %5178 = vst.msk [vmem:[#allocation5 + $0xc0] sm:$0xff] %vm5153, %v5106
    %5179 = vst.msk [vmem:[#allocation5 + $0xc8] sm:$0xff] %vm5153, %v5108
    %5180 = vst.msk [vmem:[#allocation5 + $0xd0] sm:$0xff] %vm5153, %v5110
    %5181 = vst.msk [vmem:[#allocation5 + $0xd8] sm:$0xff] %vm5153, %v5112
    %5182 = vst.msk [vmem:[#allocation5 + $0xe0] sm:$0xff] %vm5153, %v5114
    %5183 = vst.msk [vmem:[#allocation5 + $0xe8] sm:$0xff] %vm5153, %v5116
    %5184 = vst.msk [vmem:[#allocation5 + $0xf0] sm:$0xff] %vm5153, %v5118
    %5185 = vst.msk [vmem:[#allocation5 + $0xf8] sm:$0xff] %vm5153, %v5120
    %v5186 = vld [vmem:[%s173 + $0x2] sm:$0xff]
    %v5187 = vld [vmem:[%s173 + $0xa] sm:$0xff]
    %v5188 = vld [vmem:[%s173 + $0x1a] sm:$0xff]
    %v5189 = vld [vmem:[%s173 + $0x22] sm:$0xff]
    %v5190 = vld [vmem:[%s173 + $0x32] sm:$0xff]
    %v5191 = vld [vmem:[%s173 + $0x3a] sm:$0xff]
    %v5192 = vld [vmem:[%s173 + $0x4a] sm:$0xff]
    %v5193 = vld [vmem:[%s173 + $0x52] sm:$0xff]
    %v5194 = vld [vmem:[%s173 + $0x62] sm:$0xff]
    %v5195 = vld [vmem:[%s173 + $0x6a] sm:$0xff]
    %v5196 = vld [vmem:[%s173 + $0x7a] sm:$0xff]
    %v5197 = vld [vmem:[%s173 + $0x82] sm:$0xff]
    %v5198 = vld [vmem:[%s173 + $0x92] sm:$0xff]
    %v5199 = vld [vmem:[%s173 + $0x9a] sm:$0xff]
    %v5200 = vld [vmem:[%s173 + $0xaa] sm:$0xff]
    %v5201 = vld [vmem:[%s173 + $0xb2] sm:$0xff]
    %v5202 = vld [vmem:[%s173 + $0xc2] sm:$0xff]
    %v5203 = vld [vmem:[%s173 + $0xca] sm:$0xff]
    %v5204 = vld [vmem:[%s173 + $0xda] sm:$0xff]
    %v5205 = vld [vmem:[%s173 + $0xe2] sm:$0xff]
    %v5206 = vld [vmem:[%s173 + $0xf2] sm:$0xff]
    %v5207 = vld [vmem:[%s173 + $0xfa] sm:$0xff]
    %v5208 = vld [vmem:[%s173 + $0x10a] sm:$0xff]
    %v5209 = vld [vmem:[%s173 + $0x112] sm:$0xff]
    %v5210 = vld [vmem:[%s173 + $0x122] sm:$0xff]
    %v5211 = vld [vmem:[%s173 + $0x12a] sm:$0xff]
    %v5212 = vld [vmem:[%s173 + $0x13a] sm:$0xff]
    %v5213 = vld [vmem:[%s173 + $0x142] sm:$0xff]
    %v5214 = vld [vmem:[%s173 + $0x152] sm:$0xff]
    %v5215 = vld [vmem:[%s173 + $0x15a] sm:$0xff]
    %v5216 = vld [vmem:[%s173 + $0x16a] sm:$0xff]
    %v5217 = vld [vmem:[%s173 + $0x172] sm:$0xff]
    %5250 = vrot.lane.b32.xlu0 %v5186, 40
    %v5251 = vpop.permute.xlu0 %5250
    %5252 = vrot.lane.b32.xlu0 %v5187, 40
    %v5253 = vpop.permute.xlu0 %5252
    %5254 = vrot.lane.b32.xlu0 %v5188, 40
    %v5255 = vpop.permute.xlu0 %5254
    %5256 = vrot.lane.b32.xlu0 %v5189, 40
    %v5257 = vpop.permute.xlu0 %5256
    %5258 = vrot.lane.b32.xlu0 %v5190, 40
    %v5259 = vpop.permute.xlu0 %5258
    %5260 = vrot.lane.b32.xlu0 %v5191, 40
    %v5261 = vpop.permute.xlu0 %5260
    %5262 = vrot.lane.b32.xlu0 %v5192, 40
    %v5263 = vpop.permute.xlu0 %5262
    %5264 = vrot.lane.b32.xlu0 %v5193, 40
    %v5265 = vpop.permute.xlu0 %5264
    %5266 = vrot.lane.b32.xlu0 %v5194, 40
    %v5267 = vpop.permute.xlu0 %5266
    %5268 = vrot.lane.b32.xlu0 %v5195, 40
    %v5269 = vpop.permute.xlu0 %5268
    %5270 = vrot.lane.b32.xlu0 %v5196, 40
    %v5271 = vpop.permute.xlu0 %5270
    %5272 = vrot.lane.b32.xlu0 %v5197, 40
    %v5273 = vpop.permute.xlu0 %5272
    %5274 = vrot.lane.b32.xlu0 %v5198, 40
    %v5275 = vpop.permute.xlu0 %5274
    %5276 = vrot.lane.b32.xlu0 %v5199, 40
    %v5277 = vpop.permute.xlu0 %5276
    %5278 = vrot.lane.b32.xlu0 %v5200, 40
    %v5279 = vpop.permute.xlu0 %5278
    %5280 = vrot.lane.b32.xlu0 %v5201, 40
    %v5281 = vpop.permute.xlu0 %5280
    %5282 = vrot.lane.b32.xlu0 %v5202, 40
    %v5283 = vpop.permute.xlu0 %5282
    %5284 = vrot.lane.b32.xlu0 %v5203, 40
    %v5285 = vpop.permute.xlu0 %5284
    %5286 = vrot.lane.b32.xlu0 %v5204, 40
    %v5287 = vpop.permute.xlu0 %5286
    %5288 = vrot.lane.b32.xlu0 %v5205, 40
    %v5289 = vpop.permute.xlu0 %5288
    %5290 = vrot.lane.b32.xlu0 %v5206, 40
    %v5291 = vpop.permute.xlu0 %5290
    %5292 = vrot.lane.b32.xlu0 %v5207, 40
    %v5293 = vpop.permute.xlu0 %5292
    %5294 = vrot.lane.b32.xlu0 %v5208, 40
    %v5295 = vpop.permute.xlu0 %5294
    %5296 = vrot.lane.b32.xlu0 %v5209, 40
    %v5297 = vpop.permute.xlu0 %5296
    %5298 = vrot.lane.b32.xlu0 %v5210, 40
    %v5299 = vpop.permute.xlu0 %5298
    %5300 = vrot.lane.b32.xlu0 %v5211, 40
    %v5301 = vpop.permute.xlu0 %5300
    %5302 = vrot.lane.b32.xlu0 %v5212, 40
    %v5303 = vpop.permute.xlu0 %5302
    %5304 = vrot.lane.b32.xlu0 %v5213, 40
    %v5305 = vpop.permute.xlu0 %5304
    %5306 = vrot.lane.b32.xlu0 %v5214, 40
    %v5307 = vpop.permute.xlu0 %5306
    %5308 = vrot.lane.b32.xlu0 %v5215, 40
    %v5309 = vpop.permute.xlu0 %5308
    %5310 = vrot.lane.b32.xlu0 %v5216, 40
    %v5311 = vpop.permute.xlu0 %5310
    %5312 = vrot.lane.b32.xlu0 %v5217, 40
    %v5313 = vpop.permute.xlu0 %5312
    %vm5346 = vcmask 392512
    %5347 = vst.msk [vmem:[#allocation5] sm:$0xff] %vm5346, %v5251
    %5348 = vst.msk [vmem:[#allocation5 + $0x8] sm:$0xff] %vm5346, %v5253
    %5349 = vst.msk [vmem:[#allocation5 + $0x10] sm:$0xff] %vm5346, %v5255
    %5350 = vst.msk [vmem:[#allocation5 + $0x18] sm:$0xff] %vm5346, %v5257
    %5351 = vst.msk [vmem:[#allocation5 + $0x20] sm:$0xff] %vm5346, %v5259
    %5352 = vst.msk [vmem:[#allocation5 + $0x28] sm:$0xff] %vm5346, %v5261
    %5353 = vst.msk [vmem:[#allocation5 + $0x30] sm:$0xff] %vm5346, %v5263
    %5354 = vst.msk [vmem:[#allocation5 + $0x38] sm:$0xff] %vm5346, %v5265
    %5355 = vst.msk [vmem:[#allocation5 + $0x40] sm:$0xff] %vm5346, %v5267
    %5356 = vst.msk [vmem:[#allocation5 + $0x48] sm:$0xff] %vm5346, %v5269
    %5357 = vst.msk [vmem:[#allocation5 + $0x50] sm:$0xff] %vm5346, %v5271
    %5358 = vst.msk [vmem:[#allocation5 + $0x58] sm:$0xff] %vm5346, %v5273
    %5359 = vst.msk [vmem:[#allocation5 + $0x60] sm:$0xff] %vm5346, %v5275
    %5360 = vst.msk [vmem:[#allocation5 + $0x68] sm:$0xff] %vm5346, %v5277
    %5361 = vst.msk [vmem:[#allocation5 + $0x70] sm:$0xff] %vm5346, %v5279
    %5362 = vst.msk [vmem:[#allocation5 + $0x78] sm:$0xff] %vm5346, %v5281
    %5363 = vst.msk [vmem:[#allocation5 + $0x80] sm:$0xff] %vm5346, %v5283
    %5364 = vst.msk [vmem:[#allocation5 + $0x88] sm:$0xff] %vm5346, %v5285
    %5365 = vst.msk [vmem:[#allocation5 + $0x90] sm:$0xff] %vm5346, %v5287
    %5366 = vst.msk [vmem:[#allocation5 + $0x98] sm:$0xff] %vm5346, %v5289
    %5367 = vst.msk [vmem:[#allocation5 + $0xa0] sm:$0xff] %vm5346, %v5291
    %5368 = vst.msk [vmem:[#allocation5 + $0xa8] sm:$0xff] %vm5346, %v5293
    %5369 = vst.msk [vmem:[#allocation5 + $0xb0] sm:$0xff] %vm5346, %v5295
    %5370 = vst.msk [vmem:[#allocation5 + $0xb8] sm:$0xff] %vm5346, %v5297
    %5371 = vst.msk [vmem:[#allocation5 + $0xc0] sm:$0xff] %vm5346, %v5299
    %5372 = vst.msk [vmem:[#allocation5 + $0xc8] sm:$0xff] %vm5346, %v5301
    %5373 = vst.msk [vmem:[#allocation5 + $0xd0] sm:$0xff] %vm5346, %v5303
    %5374 = vst.msk [vmem:[#allocation5 + $0xd8] sm:$0xff] %vm5346, %v5305
    %5375 = vst.msk [vmem:[#allocation5 + $0xe0] sm:$0xff] %vm5346, %v5307
    %5376 = vst.msk [vmem:[#allocation5 + $0xe8] sm:$0xff] %vm5346, %v5309
    %5377 = vst.msk [vmem:[#allocation5 + $0xf0] sm:$0xff] %vm5346, %v5311
    %5378 = vst.msk [vmem:[#allocation5 + $0xf8] sm:$0xff] %vm5346, %v5313
    %s5379 = scalar_lea.vmem [#allocation4], 48
    %v5380 = vld [vmem:[%s5379] sm:$0xff]
    %v5381 = vld [vmem:[%s5379 + $0x8] sm:$0xff]
    %v5382 = vld [vmem:[%s5379 + $0x18] sm:$0xff]
    %v5383 = vld [vmem:[%s5379 + $0x20] sm:$0xff]
    %v5384 = vld [vmem:[%s5379 + $0x30] sm:$0xff]
    %v5385 = vld [vmem:[%s5379 + $0x38] sm:$0xff]
    %v5386 = vld [vmem:[%s5379 + $0x48] sm:$0xff]
    %v5387 = vld [vmem:[%s5379 + $0x50] sm:$0xff]
    %v5388 = vld [vmem:[%s5379 + $0x60] sm:$0xff]
    %v5389 = vld [vmem:[%s5379 + $0x68] sm:$0xff]
    %v5390 = vld [vmem:[%s5379 + $0x78] sm:$0xff]
    %v5391 = vld [vmem:[%s5379 + $0x80] sm:$0xff]
    %v5392 = vld [vmem:[%s5379 + $0x90] sm:$0xff]
    %v5393 = vld [vmem:[%s5379 + $0x98] sm:$0xff]
    %v5394 = vld [vmem:[%s5379 + $0xa8] sm:$0xff]
    %v5395 = vld [vmem:[%s5379 + $0xb0] sm:$0xff]
    %v5396 = vld [vmem:[%s5379 + $0xc0] sm:$0xff]
    %v5397 = vld [vmem:[%s5379 + $0xc8] sm:$0xff]
    %v5398 = vld [vmem:[%s5379 + $0xd8] sm:$0xff]
    %v5399 = vld [vmem:[%s5379 + $0xe0] sm:$0xff]
    %v5400 = vld [vmem:[%s5379 + $0xf0] sm:$0xff]
    %v5401 = vld [vmem:[%s5379 + $0xf8] sm:$0xff]
    %v5402 = vld [vmem:[%s5379 + $0x108] sm:$0xff]
    %v5403 = vld [vmem:[%s5379 + $0x110] sm:$0xff]
    %v5404 = vld [vmem:[%s5379 + $0x120] sm:$0xff]
    %v5405 = vld [vmem:[%s5379 + $0x128] sm:$0xff]
    %v5406 = vld [vmem:[%s5379 + $0x138] sm:$0xff]
    %v5407 = vld [vmem:[%s5379 + $0x140] sm:$0xff]
    %v5408 = vld [vmem:[%s5379 + $0x150] sm:$0xff]
    %v5409 = vld [vmem:[%s5379 + $0x158] sm:$0xff]
    %v5410 = vld [vmem:[%s5379 + $0x168] sm:$0xff]
    %v5411 = vld [vmem:[%s5379 + $0x170] sm:$0xff]
    %5444 = vrot.lane.b32.xlu0 %v5380, 48
    %v5445 = vpop.permute.xlu0 %5444
    %5446 = vrot.lane.b32.xlu0 %v5381, 48
    %v5447 = vpop.permute.xlu0 %5446
    %5448 = vrot.lane.b32.xlu0 %v5382, 48
    %v5449 = vpop.permute.xlu0 %5448
    %5450 = vrot.lane.b32.xlu0 %v5383, 48
    %v5451 = vpop.permute.xlu0 %5450
    %5452 = vrot.lane.b32.xlu0 %v5384, 48
    %v5453 = vpop.permute.xlu0 %5452
    %5454 = vrot.lane.b32.xlu0 %v5385, 48
    %v5455 = vpop.permute.xlu0 %5454
    %5456 = vrot.lane.b32.xlu0 %v5386, 48
    %v5457 = vpop.permute.xlu0 %5456
    %5458 = vrot.lane.b32.xlu0 %v5387, 48
    %v5459 = vpop.permute.xlu0 %5458
    %5460 = vrot.lane.b32.xlu0 %v5388, 48
    %v5461 = vpop.permute.xlu0 %5460
    %5462 = vrot.lane.b32.xlu0 %v5389, 48
    %v5463 = vpop.permute.xlu0 %5462
    %5464 = vrot.lane.b32.xlu0 %v5390, 48
    %v5465 = vpop.permute.xlu0 %5464
    %5466 = vrot.lane.b32.xlu0 %v5391, 48
    %v5467 = vpop.permute.xlu0 %5466
    %5468 = vrot.lane.b32.xlu0 %v5392, 48
    %v5469 = vpop.permute.xlu0 %5468
    %5470 = vrot.lane.b32.xlu0 %v5393, 48
    %v5471 = vpop.permute.xlu0 %5470
    %5472 = vrot.lane.b32.xlu0 %v5394, 48
    %v5473 = vpop.permute.xlu0 %5472
    %5474 = vrot.lane.b32.xlu0 %v5395, 48
    %v5475 = vpop.permute.xlu0 %5474
    %5476 = vrot.lane.b32.xlu0 %v5396, 48
    %v5477 = vpop.permute.xlu0 %5476
    %5478 = vrot.lane.b32.xlu0 %v5397, 48
    %v5479 = vpop.permute.xlu0 %5478
    %5480 = vrot.lane.b32.xlu0 %v5398, 48
    %v5481 = vpop.permute.xlu0 %5480
    %5482 = vrot.lane.b32.xlu0 %v5399, 48
    %v5483 = vpop.permute.xlu0 %5482
    %5484 = vrot.lane.b32.xlu0 %v5400, 48
    %v5485 = vpop.permute.xlu0 %5484
    %5486 = vrot.lane.b32.xlu0 %v5401, 48
    %v5487 = vpop.permute.xlu0 %5486
    %5488 = vrot.lane.b32.xlu0 %v5402, 48
    %v5489 = vpop.permute.xlu0 %5488
    %5490 = vrot.lane.b32.xlu0 %v5403, 48
    %v5491 = vpop.permute.xlu0 %5490
    %5492 = vrot.lane.b32.xlu0 %v5404, 48
    %v5493 = vpop.permute.xlu0 %5492
    %5494 = vrot.lane.b32.xlu0 %v5405, 48
    %v5495 = vpop.permute.xlu0 %5494
    %5496 = vrot.lane.b32.xlu0 %v5406, 48
    %v5497 = vpop.permute.xlu0 %5496
    %5498 = vrot.lane.b32.xlu0 %v5407, 48
    %v5499 = vpop.permute.xlu0 %5498
    %5500 = vrot.lane.b32.xlu0 %v5408, 48
    %v5501 = vpop.permute.xlu0 %5500
    %5502 = vrot.lane.b32.xlu0 %v5409, 48
    %v5503 = vpop.permute.xlu0 %5502
    %5504 = vrot.lane.b32.xlu0 %v5410, 48
    %v5505 = vpop.permute.xlu0 %5504
    %5506 = vrot.lane.b32.xlu0 %v5411, 48
    %v5507 = vpop.permute.xlu0 %5506
    %vm5540 = vcmask 458112
    %5541 = vst.msk [vmem:[#allocation5] sm:$0xff] %vm5540, %v5445
    %5542 = vst.msk [vmem:[#allocation5 + $0x8] sm:$0xff] %vm5540, %v5447
    %5543 = vst.msk [vmem:[#allocation5 + $0x10] sm:$0xff] %vm5540, %v5449
    %5544 = vst.msk [vmem:[#allocation5 + $0x18] sm:$0xff] %vm5540, %v5451
    %5545 = vst.msk [vmem:[#allocation5 + $0x20] sm:$0xff] %vm5540, %v5453
    %5546 = vst.msk [vmem:[#allocation5 + $0x28] sm:$0xff] %vm5540, %v5455
    %5547 = vst.msk [vmem:[#allocation5 + $0x30] sm:$0xff] %vm5540, %v5457
    %5548 = vst.msk [vmem:[#allocation5 + $0x38] sm:$0xff] %vm5540, %v5459
    %5549 = vst.msk [vmem:[#allocation5 + $0x40] sm:$0xff] %vm5540, %v5461
    %5550 = vst.msk [vmem:[#allocation5 + $0x48] sm:$0xff] %vm5540, %v5463
    %5551 = vst.msk [vmem:[#allocation5 + $0x50] sm:$0xff] %vm5540, %v5465
    %5552 = vst.msk [vmem:[#allocation5 + $0x58] sm:$0xff] %vm5540, %v5467
    %5553 = vst.msk [vmem:[#allocation5 + $0x60] sm:$0xff] %vm5540, %v5469
    %5554 = vst.msk [vmem:[#allocation5 + $0x68] sm:$0xff] %vm5540, %v5471
    %5555 = vst.msk [vmem:[#allocation5 + $0x70] sm:$0xff] %vm5540, %v5473
    %5556 = vst.msk [vmem:[#allocation5 + $0x78] sm:$0xff] %vm5540, %v5475
    %5557 = vst.msk [vmem:[#allocation5 + $0x80] sm:$0xff] %vm5540, %v5477
    %5558 = vst.msk [vmem:[#allocation5 + $0x88] sm:$0xff] %vm5540, %v5479
    %5559 = vst.msk [vmem:[#allocation5 + $0x90] sm:$0xff] %vm5540, %v5481
    %5560 = vst.msk [vmem:[#allocation5 + $0x98] sm:$0xff] %vm5540, %v5483
    %5561 = vst.msk [vmem:[#allocation5 + $0xa0] sm:$0xff] %vm5540, %v5485
    %5562 = vst.msk [vmem:[#allocation5 + $0xa8] sm:$0xff] %vm5540, %v5487
    %5563 = vst.msk [vmem:[#allocation5 + $0xb0] sm:$0xff] %vm5540, %v5489
    %5564 = vst.msk [vmem:[#allocation5 + $0xb8] sm:$0xff] %vm5540, %v5491
    %5565 = vst.msk [vmem:[#allocation5 + $0xc0] sm:$0xff] %vm5540, %v5493
    %5566 = vst.msk [vmem:[#allocation5 + $0xc8] sm:$0xff] %vm5540, %v5495
    %5567 = vst.msk [vmem:[#allocation5 + $0xd0] sm:$0xff] %vm5540, %v5497
    %5568 = vst.msk [vmem:[#allocation5 + $0xd8] sm:$0xff] %vm5540, %v5499
    %5569 = vst.msk [vmem:[#allocation5 + $0xe0] sm:$0xff] %vm5540, %v5501
    %5570 = vst.msk [vmem:[#allocation5 + $0xe8] sm:$0xff] %vm5540, %v5503
    %5571 = vst.msk [vmem:[#allocation5 + $0xf0] sm:$0xff] %vm5540, %v5505
    %5572 = vst.msk [vmem:[#allocation5 + $0xf8] sm:$0xff] %vm5540, %v5507
    %v5573 = vld [vmem:[%s5379 + $0x1] sm:$0xff]
    %v5574 = vld [vmem:[%s5379 + $0x9] sm:$0xff]
    %v5575 = vld [vmem:[%s5379 + $0x19] sm:$0xff]
    %v5576 = vld [vmem:[%s5379 + $0x21] sm:$0xff]
    %v5577 = vld [vmem:[%s5379 + $0x31] sm:$0xff]
    %v5578 = vld [vmem:[%s5379 + $0x39] sm:$0xff]
    %v5579 = vld [vmem:[%s5379 + $0x49] sm:$0xff]
    %v5580 = vld [vmem:[%s5379 + $0x51] sm:$0xff]
    %v5581 = vld [vmem:[%s5379 + $0x61] sm:$0xff]
    %v5582 = vld [vmem:[%s5379 + $0x69] sm:$0xff]
    %v5583 = vld [vmem:[%s5379 + $0x79] sm:$0xff]
    %v5584 = vld [vmem:[%s5379 + $0x81] sm:$0xff]
    %v5585 = vld [vmem:[%s5379 + $0x91] sm:$0xff]
    %v5586 = vld [vmem:[%s5379 + $0x99] sm:$0xff]
    %v5587 = vld [vmem:[%s5379 + $0xa9] sm:$0xff]
    %v5588 = vld [vmem:[%s5379 + $0xb1] sm:$0xff]
    %v5589 = vld [vmem:[%s5379 + $0xc1] sm:$0xff]
    %v5590 = vld [vmem:[%s5379 + $0xc9] sm:$0xff]
    %v5591 = vld [vmem:[%s5379 + $0xd9] sm:$0xff]
    %v5592 = vld [vmem:[%s5379 + $0xe1] sm:$0xff]
    %v5593 = vld [vmem:[%s5379 + $0xf1] sm:$0xff]
    %v5594 = vld [vmem:[%s5379 + $0xf9] sm:$0xff]
    %v5595 = vld [vmem:[%s5379 + $0x109] sm:$0xff]
    %v5596 = vld [vmem:[%s5379 + $0x111] sm:$0xff]
    %v5597 = vld [vmem:[%s5379 + $0x121] sm:$0xff]
    %v5598 = vld [vmem:[%s5379 + $0x129] sm:$0xff]
    %v5599 = vld [vmem:[%s5379 + $0x139] sm:$0xff]
    %v5600 = vld [vmem:[%s5379 + $0x141] sm:$0xff]
    %v5601 = vld [vmem:[%s5379 + $0x151] sm:$0xff]
    %v5602 = vld [vmem:[%s5379 + $0x159] sm:$0xff]
    %v5603 = vld [vmem:[%s5379 + $0x169] sm:$0xff]
    %v5604 = vld [vmem:[%s5379 + $0x171] sm:$0xff]
    %5637 = vrot.lane.b32.xlu0 %v5573, 56
    %v5638 = vpop.permute.xlu0 %5637
    %5639 = vrot.lane.b32.xlu0 %v5574, 56
    %v5640 = vpop.permute.xlu0 %5639
    %5641 = vrot.lane.b32.xlu0 %v5575, 56
    %v5642 = vpop.permute.xlu0 %5641
    %5643 = vrot.lane.b32.xlu0 %v5576, 56
    %v5644 = vpop.permute.xlu0 %5643
    %5645 = vrot.lane.b32.xlu0 %v5577, 56
    %v5646 = vpop.permute.xlu0 %5645
    %5647 = vrot.lane.b32.xlu0 %v5578, 56
    %v5648 = vpop.permute.xlu0 %5647
    %5649 = vrot.lane.b32.xlu0 %v5579, 56
    %v5650 = vpop.permute.xlu0 %5649
    %5651 = vrot.lane.b32.xlu0 %v5580, 56
    %v5652 = vpop.permute.xlu0 %5651
    %5653 = vrot.lane.b32.xlu0 %v5581, 56
    %v5654 = vpop.permute.xlu0 %5653
    %5655 = vrot.lane.b32.xlu0 %v5582, 56
    %v5656 = vpop.permute.xlu0 %5655
    %5657 = vrot.lane.b32.xlu0 %v5583, 56
    %v5658 = vpop.permute.xlu0 %5657
    %5659 = vrot.lane.b32.xlu0 %v5584, 56
    %v5660 = vpop.permute.xlu0 %5659
    %5661 = vrot.lane.b32.xlu0 %v5585, 56
    %v5662 = vpop.permute.xlu0 %5661
    %5663 = vrot.lane.b32.xlu0 %v5586, 56
    %v5664 = vpop.permute.xlu0 %5663
    %5665 = vrot.lane.b32.xlu0 %v5587, 56
    %v5666 = vpop.permute.xlu0 %5665
    %5667 = vrot.lane.b32.xlu0 %v5588, 56
    %v5668 = vpop.permute.xlu0 %5667
    %5669 = vrot.lane.b32.xlu0 %v5589, 56
    %v5670 = vpop.permute.xlu0 %5669
    %5671 = vrot.lane.b32.xlu0 %v5590, 56
    %v5672 = vpop.permute.xlu0 %5671
    %5673 = vrot.lane.b32.xlu0 %v5591, 56
    %v5674 = vpop.permute.xlu0 %5673
    %5675 = vrot.lane.b32.xlu0 %v5592, 56
    %v5676 = vpop.permute.xlu0 %5675
    %5677 = vrot.lane.b32.xlu0 %v5593, 56
    %v5678 = vpop.permute.xlu0 %5677
    %5679 = vrot.lane.b32.xlu0 %v5594, 56
    %v5680 = vpop.permute.xlu0 %5679
    %5681 = vrot.lane.b32.xlu0 %v5595, 56
    %v5682 = vpop.permute.xlu0 %5681
    %5683 = vrot.lane.b32.xlu0 %v5596, 56
    %v5684 = vpop.permute.xlu0 %5683
    %5685 = vrot.lane.b32.xlu0 %v5597, 56
    %v5686 = vpop.permute.xlu0 %5685
    %5687 = vrot.lane.b32.xlu0 %v5598, 56
    %v5688 = vpop.permute.xlu0 %5687
    %5689 = vrot.lane.b32.xlu0 %v5599, 56
    %v5690 = vpop.permute.xlu0 %5689
    %5691 = vrot.lane.b32.xlu0 %v5600, 56
    %v5692 = vpop.permute.xlu0 %5691
    %5693 = vrot.lane.b32.xlu0 %v5601, 56
    %v5694 = vpop.permute.xlu0 %5693
    %5695 = vrot.lane.b32.xlu0 %v5602, 56
    %v5696 = vpop.permute.xlu0 %5695
    %5697 = vrot.lane.b32.xlu0 %v5603, 56
    %v5698 = vpop.permute.xlu0 %5697
    %5699 = vrot.lane.b32.xlu0 %v5604, 56
    %v5700 = vpop.permute.xlu0 %5699
    %vm5733 = vcmask 523712
    %5734 = vst.msk [vmem:[#allocation5] sm:$0xff] %vm5733, %v5638
    %5735 = vst.msk [vmem:[#allocation5 + $0x8] sm:$0xff] %vm5733, %v5640
    %5736 = vst.msk [vmem:[#allocation5 + $0x10] sm:$0xff] %vm5733, %v5642
    %5737 = vst.msk [vmem:[#allocation5 + $0x18] sm:$0xff] %vm5733, %v5644
    %5738 = vst.msk [vmem:[#allocation5 + $0x20] sm:$0xff] %vm5733, %v5646
    %5739 = vst.msk [vmem:[#allocation5 + $0x28] sm:$0xff] %vm5733, %v5648
    %5740 = vst.msk [vmem:[#allocation5 + $0x30] sm:$0xff] %vm5733, %v5650
    %5741 = vst.msk [vmem:[#allocation5 + $0x38] sm:$0xff] %vm5733, %v5652
    %5742 = vst.msk [vmem:[#allocation5 + $0x40] sm:$0xff] %vm5733, %v5654
    %5743 = vst.msk [vmem:[#allocation5 + $0x48] sm:$0xff] %vm5733, %v5656
    %5744 = vst.msk [vmem:[#allocation5 + $0x50] sm:$0xff] %vm5733, %v5658
    %5745 = vst.msk [vmem:[#allocation5 + $0x58] sm:$0xff] %vm5733, %v5660
    %5746 = vst.msk [vmem:[#allocation5 + $0x60] sm:$0xff] %vm5733, %v5662
    %5747 = vst.msk [vmem:[#allocation5 + $0x68] sm:$0xff] %vm5733, %v5664
    %5748 = vst.msk [vmem:[#allocation5 + $0x70] sm:$0xff] %vm5733, %v5666
    %5749 = vst.msk [vmem:[#allocation5 + $0x78] sm:$0xff] %vm5733, %v5668
    %5750 = vst.msk [vmem:[#allocation5 + $0x80] sm:$0xff] %vm5733, %v5670
    %5751 = vst.msk [vmem:[#allocation5 + $0x88] sm:$0xff] %vm5733, %v5672
    %5752 = vst.msk [vmem:[#allocation5 + $0x90] sm:$0xff] %vm5733, %v5674
    %5753 = vst.msk [vmem:[#allocation5 + $0x98] sm:$0xff] %vm5733, %v5676
    %5754 = vst.msk [vmem:[#allocation5 + $0xa0] sm:$0xff] %vm5733, %v5678
    %5755 = vst.msk [vmem:[#allocation5 + $0xa8] sm:$0xff] %vm5733, %v5680
    %5756 = vst.msk [vmem:[#allocation5 + $0xb0] sm:$0xff] %vm5733, %v5682
    %5757 = vst.msk [vmem:[#allocation5 + $0xb8] sm:$0xff] %vm5733, %v5684
    %5758 = vst.msk [vmem:[#allocation5 + $0xc0] sm:$0xff] %vm5733, %v5686
    %5759 = vst.msk [vmem:[#allocation5 + $0xc8] sm:$0xff] %vm5733, %v5688
    %5760 = vst.msk [vmem:[#allocation5 + $0xd0] sm:$0xff] %vm5733, %v5690
    %5761 = vst.msk [vmem:[#allocation5 + $0xd8] sm:$0xff] %vm5733, %v5692
    %5762 = vst.msk [vmem:[#allocation5 + $0xe0] sm:$0xff] %vm5733, %v5694
    %5763 = vst.msk [vmem:[#allocation5 + $0xe8] sm:$0xff] %vm5733, %v5696
    %5764 = vst.msk [vmem:[#allocation5 + $0xf0] sm:$0xff] %vm5733, %v5698
    %5765 = vst.msk [vmem:[#allocation5 + $0xf8] sm:$0xff] %vm5733, %v5700
    %v5766 = vld [vmem:[%s5379 + $0x2] sm:$0xff]
    %v5767 = vld [vmem:[%s5379 + $0xa] sm:$0xff]
    %v5768 = vld [vmem:[%s5379 + $0x1a] sm:$0xff]
    %v5769 = vld [vmem:[%s5379 + $0x22] sm:$0xff]
    %v5770 = vld [vmem:[%s5379 + $0x32] sm:$0xff]
    %v5771 = vld [vmem:[%s5379 + $0x3a] sm:$0xff]
    %v5772 = vld [vmem:[%s5379 + $0x4a] sm:$0xff]
    %v5773 = vld [vmem:[%s5379 + $0x52] sm:$0xff]
    %v5774 = vld [vmem:[%s5379 + $0x62] sm:$0xff]
    %v5775 = vld [vmem:[%s5379 + $0x6a] sm:$0xff]
    %v5776 = vld [vmem:[%s5379 + $0x7a] sm:$0xff]
    %v5777 = vld [vmem:[%s5379 + $0x82] sm:$0xff]
    %v5778 = vld [vmem:[%s5379 + $0x92] sm:$0xff]
    %v5779 = vld [vmem:[%s5379 + $0x9a] sm:$0xff]
    %v5780 = vld [vmem:[%s5379 + $0xaa] sm:$0xff]
    %v5781 = vld [vmem:[%s5379 + $0xb2] sm:$0xff]
    %v5782 = vld [vmem:[%s5379 + $0xc2] sm:$0xff]
    %v5783 = vld [vmem:[%s5379 + $0xca] sm:$0xff]
    %v5784 = vld [vmem:[%s5379 + $0xda] sm:$0xff]
    %v5785 = vld [vmem:[%s5379 + $0xe2] sm:$0xff]
    %v5786 = vld [vmem:[%s5379 + $0xf2] sm:$0xff]
    %v5787 = vld [vmem:[%s5379 + $0xfa] sm:$0xff]
    %v5788 = vld [vmem:[%s5379 + $0x10a] sm:$0xff]
    %v5789 = vld [vmem:[%s5379 + $0x112] sm:$0xff]
    %v5790 = vld [vmem:[%s5379 + $0x122] sm:$0xff]
    %v5791 = vld [vmem:[%s5379 + $0x12a] sm:$0xff]
    %v5792 = vld [vmem:[%s5379 + $0x13a] sm:$0xff]
    %v5793 = vld [vmem:[%s5379 + $0x142] sm:$0xff]
    %v5794 = vld [vmem:[%s5379 + $0x152] sm:$0xff]
    %v5795 = vld [vmem:[%s5379 + $0x15a] sm:$0xff]
    %v5796 = vld [vmem:[%s5379 + $0x16a] sm:$0xff]
    %v5797 = vld [vmem:[%s5379 + $0x172] sm:$0xff]
    %5830 = vrot.lane.b32.xlu0 %v5766, 64
    %v5831 = vpop.permute.xlu0 %5830
    %5832 = vrot.lane.b32.xlu0 %v5767, 64
    %v5833 = vpop.permute.xlu0 %5832
    %5834 = vrot.lane.b32.xlu0 %v5768, 64
    %v5835 = vpop.permute.xlu0 %5834
    %5836 = vrot.lane.b32.xlu0 %v5769, 64
    %v5837 = vpop.permute.xlu0 %5836
    %5838 = vrot.lane.b32.xlu0 %v5770, 64
    %v5839 = vpop.permute.xlu0 %5838
    %5840 = vrot.lane.b32.xlu0 %v5771, 64
    %v5841 = vpop.permute.xlu0 %5840
    %5842 = vrot.lane.b32.xlu0 %v5772, 64
    %v5843 = vpop.permute.xlu0 %5842
    %5844 = vrot.lane.b32.xlu0 %v5773, 64
    %v5845 = vpop.permute.xlu0 %5844
    %5846 = vrot.lane.b32.xlu0 %v5774, 64
    %v5847 = vpop.permute.xlu0 %5846
    %5848 = vrot.lane.b32.xlu0 %v5775, 64
    %v5849 = vpop.permute.xlu0 %5848
    %5850 = vrot.lane.b32.xlu0 %v5776, 64
    %v5851 = vpop.permute.xlu0 %5850
    %5852 = vrot.lane.b32.xlu0 %v5777, 64
    %v5853 = vpop.permute.xlu0 %5852
    %5854 = vrot.lane.b32.xlu0 %v5778, 64
    %v5855 = vpop.permute.xlu0 %5854
    %5856 = vrot.lane.b32.xlu0 %v5779, 64
    %v5857 = vpop.permute.xlu0 %5856
    %5858 = vrot.lane.b32.xlu0 %v5780, 64
    %v5859 = vpop.permute.xlu0 %5858
    %5860 = vrot.lane.b32.xlu0 %v5781, 64
    %v5861 = vpop.permute.xlu0 %5860
    %5862 = vrot.lane.b32.xlu0 %v5782, 64
    %v5863 = vpop.permute.xlu0 %5862
    %5864 = vrot.lane.b32.xlu0 %v5783, 64
    %v5865 = vpop.permute.xlu0 %5864
    %5866 = vrot.lane.b32.xlu0 %v5784, 64
    %v5867 = vpop.permute.xlu0 %5866
    %5868 = vrot.lane.b32.xlu0 %v5785, 64
    %v5869 = vpop.permute.xlu0 %5868
    %5870 = vrot.lane.b32.xlu0 %v5786, 64
    %v5871 = vpop.permute.xlu0 %5870
    %5872 = vrot.lane.b32.xlu0 %v5787, 64
    %v5873 = vpop.permute.xlu0 %5872
    %5874 = vrot.lane.b32.xlu0 %v5788, 64
    %v5875 = vpop.permute.xlu0 %5874
    %5876 = vrot.lane.b32.xlu0 %v5789, 64
    %v5877 = vpop.permute.xlu0 %5876
    %5878 = vrot.lane.b32.xlu0 %v5790, 64
    %v5879 = vpop.permute.xlu0 %5878
    %5880 = vrot.lane.b32.xlu0 %v5791, 64
    %v5881 = vpop.permute.xlu0 %5880
    %5882 = vrot.lane.b32.xlu0 %v5792, 64
    %v5883 = vpop.permute.xlu0 %5882
    %5884 = vrot.lane.b32.xlu0 %v5793, 64
    %v5885 = vpop.permute.xlu0 %5884
    %5886 = vrot.lane.b32.xlu0 %v5794, 64
    %v5887 = vpop.permute.xlu0 %5886
    %5888 = vrot.lane.b32.xlu0 %v5795, 64
    %v5889 = vpop.permute.xlu0 %5888
    %5890 = vrot.lane.b32.xlu0 %v5796, 64
    %v5891 = vpop.permute.xlu0 %5890
    %5892 = vrot.lane.b32.xlu0 %v5797, 64
    %v5893 = vpop.permute.xlu0 %5892
    %vm5926 = vcmask 589312
    %5927 = vst.msk [vmem:[#allocation5] sm:$0xff] %vm5926, %v5831
    %5928 = vst.msk [vmem:[#allocation5 + $0x8] sm:$0xff] %vm5926, %v5833
    %5929 = vst.msk [vmem:[#allocation5 + $0x10] sm:$0xff] %vm5926, %v5835
    %5930 = vst.msk [vmem:[#allocation5 + $0x18] sm:$0xff] %vm5926, %v5837
    %5931 = vst.msk [vmem:[#allocation5 + $0x20] sm:$0xff] %vm5926, %v5839
    %5932 = vst.msk [vmem:[#allocation5 + $0x28] sm:$0xff] %vm5926, %v5841
    %5933 = vst.msk [vmem:[#allocation5 + $0x30] sm:$0xff] %vm5926, %v5843
    %5934 = vst.msk [vmem:[#allocation5 + $0x38] sm:$0xff] %vm5926, %v5845
    %5935 = vst.msk [vmem:[#allocation5 + $0x40] sm:$0xff] %vm5926, %v5847
    %5936 = vst.msk [vmem:[#allocation5 + $0x48] sm:$0xff] %vm5926, %v5849
    %5937 = vst.msk [vmem:[#allocation5 + $0x50] sm:$0xff] %vm5926, %v5851
    %5938 = vst.msk [vmem:[#allocation5 + $0x58] sm:$0xff] %vm5926, %v5853
    %5939 = vst.msk [vmem:[#allocation5 + $0x60] sm:$0xff] %vm5926, %v5855
    %5940 = vst.msk [vmem:[#allocation5 + $0x68] sm:$0xff] %vm5926, %v5857
    %5941 = vst.msk [vmem:[#allocation5 + $0x70] sm:$0xff] %vm5926, %v5859
    %5942 = vst.msk [vmem:[#allocation5 + $0x78] sm:$0xff] %vm5926, %v5861
    %5943 = vst.msk [vmem:[#allocation5 + $0x80] sm:$0xff] %vm5926, %v5863
    %5944 = vst.msk [vmem:[#allocation5 + $0x88] sm:$0xff] %vm5926, %v5865
    %5945 = vst.msk [vmem:[#allocation5 + $0x90] sm:$0xff] %vm5926, %v5867
    %5946 = vst.msk [vmem:[#allocation5 + $0x98] sm:$0xff] %vm5926, %v5869
    %5947 = vst.msk [vmem:[#allocation5 + $0xa0] sm:$0xff] %vm5926, %v5871
    %5948 = vst.msk [vmem:[#allocation5 + $0xa8] sm:$0xff] %vm5926, %v5873
    %5949 = vst.msk [vmem:[#allocation5 + $0xb0] sm:$0xff] %vm5926, %v5875
    %5950 = vst.msk [vmem:[#allocation5 + $0xb8] sm:$0xff] %vm5926, %v5877
    %5951 = vst.msk [vmem:[#allocation5 + $0xc0] sm:$0xff] %vm5926, %v5879
    %5952 = vst.msk [vmem:[#allocation5 + $0xc8] sm:$0xff] %vm5926, %v5881
    %5953 = vst.msk [vmem:[#allocation5 + $0xd0] sm:$0xff] %vm5926, %v5883
    %5954 = vst.msk [vmem:[#allocation5 + $0xd8] sm:$0xff] %vm5926, %v5885
    %5955 = vst.msk [vmem:[#allocation5 + $0xe0] sm:$0xff] %vm5926, %v5887
    %5956 = vst.msk [vmem:[#allocation5 + $0xe8] sm:$0xff] %vm5926, %v5889
    %5957 = vst.msk [vmem:[#allocation5 + $0xf0] sm:$0xff] %vm5926, %v5891
    %5958 = vst.msk [vmem:[#allocation5 + $0xf8] sm:$0xff] %vm5926, %v5893
    %v5959 = vld [vmem:[%s313] sm:$0xff]
    %v5960 = vld [vmem:[%s313 + $0x8] sm:$0xff]
    %v5961 = vld [vmem:[%s313 + $0x18] sm:$0xff]
    %v5962 = vld [vmem:[%s313 + $0x20] sm:$0xff]
    %v5963 = vld [vmem:[%s313 + $0x30] sm:$0xff]
    %v5964 = vld [vmem:[%s313 + $0x38] sm:$0xff]
    %v5965 = vld [vmem:[%s313 + $0x48] sm:$0xff]
    %v5966 = vld [vmem:[%s313 + $0x50] sm:$0xff]
    %v5967 = vld [vmem:[%s313 + $0x60] sm:$0xff]
    %v5968 = vld [vmem:[%s313 + $0x68] sm:$0xff]
    %v5969 = vld [vmem:[%s313 + $0x78] sm:$0xff]
    %v5970 = vld [vmem:[%s313 + $0x80] sm:$0xff]
    %v5971 = vld [vmem:[%s313 + $0x90] sm:$0xff]
    %v5972 = vld [vmem:[%s313 + $0x98] sm:$0xff]
    %v5973 = vld [vmem:[%s313 + $0xa8] sm:$0xff]
    %v5974 = vld [vmem:[%s313 + $0xb0] sm:$0xff]
    %v5975 = vld [vmem:[%s313 + $0xc0] sm:$0xff]
    %v5976 = vld [vmem:[%s313 + $0xc8] sm:$0xff]
    %v5977 = vld [vmem:[%s313 + $0xd8] sm:$0xff]
    %v5978 = vld [vmem:[%s313 + $0xe0] sm:$0xff]
    %v5979 = vld [vmem:[%s313 + $0xf0] sm:$0xff]
    %v5980 = vld [vmem:[%s313 + $0xf8] sm:$0xff]
    %v5981 = vld [vmem:[%s313 + $0x108] sm:$0xff]
    %v5982 = vld [vmem:[%s313 + $0x110] sm:$0xff]
    %v5983 = vld [vmem:[%s313 + $0x120] sm:$0xff]
    %v5984 = vld [vmem:[%s313 + $0x128] sm:$0xff]
    %v5985 = vld [vmem:[%s313 + $0x138] sm:$0xff]
    %v5986 = vld [vmem:[%s313 + $0x140] sm:$0xff]
    %v5987 = vld [vmem:[%s313 + $0x150] sm:$0xff]
    %v5988 = vld [vmem:[%s313 + $0x158] sm:$0xff]
    %v5989 = vld [vmem:[%s313 + $0x168] sm:$0xff]
    %v5990 = vld [vmem:[%s313 + $0x170] sm:$0xff]
    %5991 = vst.msk [vmem:[#allocation5 + $0x100] sm:$0xff] %vm164, %v5959
    %5992 = vst.msk [vmem:[#allocation5 + $0x108] sm:$0xff] %vm164, %v5960
    %5993 = vst.msk [vmem:[#allocation5 + $0x110] sm:$0xff] %vm164, %v5961
    %5994 = vst.msk [vmem:[#allocation5 + $0x118] sm:$0xff] %vm164, %v5962
    %5995 = vst.msk [vmem:[#allocation5 + $0x120] sm:$0xff] %vm164, %v5963
    %5996 = vst.msk [vmem:[#allocation5 + $0x128] sm:$0xff] %vm164, %v5964
    %5997 = vst.msk [vmem:[#allocation5 + $0x130] sm:$0xff] %vm164, %v5965
    %5998 = vst.msk [vmem:[#allocation5 + $0x138] sm:$0xff] %vm164, %v5966
    %5999 = vst.msk [vmem:[#allocation5 + $0x140] sm:$0xff] %vm164, %v5967
    %6000 = vst.msk [vmem:[#allocation5 + $0x148] sm:$0xff] %vm164, %v5968
    %6001 = vst.msk [vmem:[#allocation5 + $0x150] sm:$0xff] %vm164, %v5969
    %6002 = vst.msk [vmem:[#allocation5 + $0x158] sm:$0xff] %vm164, %v5970
    %6003 = vst.msk [vmem:[#allocation5 + $0x160] sm:$0xff] %vm164, %v5971
    %6004 = vst.msk [vmem:[#allocation5 + $0x168] sm:$0xff] %vm164, %v5972
    %6005 = vst.msk [vmem:[#allocation5 + $0x170] sm:$0xff] %vm164, %v5973
    %6006 = vst.msk [vmem:[#allocation5 + $0x178] sm:$0xff] %vm164, %v5974
    %6007 = vst.msk [vmem:[#allocation5 + $0x180] sm:$0xff] %vm164, %v5975
    %6008 = vst.msk [vmem:[#allocation5 + $0x188] sm:$0xff] %vm164, %v5976
    %6009 = vst.msk [vmem:[#allocation5 + $0x190] sm:$0xff] %vm164, %v5977
    %6010 = vst.msk [vmem:[#allocation5 + $0x198] sm:$0xff] %vm164, %v5978
    %6011 = vst.msk [vmem:[#allocation5 + $0x1a0] sm:$0xff] %vm164, %v5979
    %6012 = vst.msk [vmem:[#allocation5 + $0x1a8] sm:$0xff] %vm164, %v5980
    %6013 = vst.msk [vmem:[#allocation5 + $0x1b0] sm:$0xff] %vm164, %v5981
    %6014 = vst.msk [vmem:[#allocation5 + $0x1b8] sm:$0xff] %vm164, %v5982
    %6015 = vst.msk [vmem:[#allocation5 + $0x1c0] sm:$0xff] %vm164, %v5983
    %6016 = vst.msk [vmem:[#allocation5 + $0x1c8] sm:$0xff] %vm164, %v5984
    %6017 = vst.msk [vmem:[#allocation5 + $0x1d0] sm:$0xff] %vm164, %v5985
    %6018 = vst.msk [vmem:[#allocation5 + $0x1d8] sm:$0xff] %vm164, %v5986
    %6019 = vst.msk [vmem:[#allocation5 + $0x1e0] sm:$0xff] %vm164, %v5987
    %6020 = vst.msk [vmem:[#allocation5 + $0x1e8] sm:$0xff] %vm164, %v5988
    %6021 = vst.msk [vmem:[#allocation5 + $0x1f0] sm:$0xff] %vm164, %v5989
    %6022 = vst.msk [vmem:[#allocation5 + $0x1f8] sm:$0xff] %vm164, %v5990
    %v6023 = vld [vmem:[%s313 + $0x1] sm:$0xff]
    %v6024 = vld [vmem:[%s313 + $0x9] sm:$0xff]
    %v6025 = vld [vmem:[%s313 + $0x19] sm:$0xff]
    %v6026 = vld [vmem:[%s313 + $0x21] sm:$0xff]
    %v6027 = vld [vmem:[%s313 + $0x31] sm:$0xff]
    %v6028 = vld [vmem:[%s313 + $0x39] sm:$0xff]
    %v6029 = vld [vmem:[%s313 + $0x49] sm:$0xff]
    %v6030 = vld [vmem:[%s313 + $0x51] sm:$0xff]
    %v6031 = vld [vmem:[%s313 + $0x61] sm:$0xff]
    %v6032 = vld [vmem:[%s313 + $0x69] sm:$0xff]
    %v6033 = vld [vmem:[%s313 + $0x79] sm:$0xff]
    %v6034 = vld [vmem:[%s313 + $0x81] sm:$0xff]
    %v6035 = vld [vmem:[%s313 + $0x91] sm:$0xff]
    %v6036 = vld [vmem:[%s313 + $0x99] sm:$0xff]
    %v6037 = vld [vmem:[%s313 + $0xa9] sm:$0xff]
    %v6038 = vld [vmem:[%s313 + $0xb1] sm:$0xff]
    %v6039 = vld [vmem:[%s313 + $0xc1] sm:$0xff]
    %v6040 = vld [vmem:[%s313 + $0xc9] sm:$0xff]
    %v6041 = vld [vmem:[%s313 + $0xd9] sm:$0xff]
    %v6042 = vld [vmem:[%s313 + $0xe1] sm:$0xff]
    %v6043 = vld [vmem:[%s313 + $0xf1] sm:$0xff]
    %v6044 = vld [vmem:[%s313 + $0xf9] sm:$0xff]
    %v6045 = vld [vmem:[%s313 + $0x109] sm:$0xff]
    %v6046 = vld [vmem:[%s313 + $0x111] sm:$0xff]
    %v6047 = vld [vmem:[%s313 + $0x121] sm:$0xff]
    %v6048 = vld [vmem:[%s313 + $0x129] sm:$0xff]
    %v6049 = vld [vmem:[%s313 + $0x139] sm:$0xff]
    %v6050 = vld [vmem:[%s313 + $0x141] sm:$0xff]
    %v6051 = vld [vmem:[%s313 + $0x151] sm:$0xff]
    %v6052 = vld [vmem:[%s313 + $0x159] sm:$0xff]
    %v6053 = vld [vmem:[%s313 + $0x169] sm:$0xff]
    %v6054 = vld [vmem:[%s313 + $0x171] sm:$0xff]
    %6087 = vrot.lane.b32.xlu0 %v6023, 8
    %v6088 = vpop.permute.xlu0 %6087
    %6089 = vrot.lane.b32.xlu0 %v6024, 8
    %v6090 = vpop.permute.xlu0 %6089
    %6091 = vrot.lane.b32.xlu0 %v6025, 8
    %v6092 = vpop.permute.xlu0 %6091
    %6093 = vrot.lane.b32.xlu0 %v6026, 8
    %v6094 = vpop.permute.xlu0 %6093
    %6095 = vrot.lane.b32.xlu0 %v6027, 8
    %v6096 = vpop.permute.xlu0 %6095
    %6097 = vrot.lane.b32.xlu0 %v6028, 8
    %v6098 = vpop.permute.xlu0 %6097
    %6099 = vrot.lane.b32.xlu0 %v6029, 8
    %v6100 = vpop.permute.xlu0 %6099
    %6101 = vrot.lane.b32.xlu0 %v6030, 8
    %v6102 = vpop.permute.xlu0 %6101
    %6103 = vrot.lane.b32.xlu0 %v6031, 8
    %v6104 = vpop.permute.xlu0 %6103
    %6105 = vrot.lane.b32.xlu0 %v6032, 8
    %v6106 = vpop.permute.xlu0 %6105
    %6107 = vrot.lane.b32.xlu0 %v6033, 8
    %v6108 = vpop.permute.xlu0 %6107
    %6109 = vrot.lane.b32.xlu0 %v6034, 8
    %v6110 = vpop.permute.xlu0 %6109
    %6111 = vrot.lane.b32.xlu0 %v6035, 8
    %v6112 = vpop.permute.xlu0 %6111
    %6113 = vrot.lane.b32.xlu0 %v6036, 8
    %v6114 = vpop.permute.xlu0 %6113
    %6115 = vrot.lane.b32.xlu0 %v6037, 8
    %v6116 = vpop.permute.xlu0 %6115
    %6117 = vrot.lane.b32.xlu0 %v6038, 8
    %v6118 = vpop.permute.xlu0 %6117
    %6119 = vrot.lane.b32.xlu0 %v6039, 8
    %v6120 = vpop.permute.xlu0 %6119
    %6121 = vrot.lane.b32.xlu0 %v6040, 8
    %v6122 = vpop.permute.xlu0 %6121
    %6123 = vrot.lane.b32.xlu0 %v6041, 8
    %v6124 = vpop.permute.xlu0 %6123
    %6125 = vrot.lane.b32.xlu0 %v6042, 8
    %v6126 = vpop.permute.xlu0 %6125
    %6127 = vrot.lane.b32.xlu0 %v6043, 8
    %v6128 = vpop.permute.xlu0 %6127
    %6129 = vrot.lane.b32.xlu0 %v6044, 8
    %v6130 = vpop.permute.xlu0 %6129
    %6131 = vrot.lane.b32.xlu0 %v6045, 8
    %v6132 = vpop.permute.xlu0 %6131
    %6133 = vrot.lane.b32.xlu0 %v6046, 8
    %v6134 = vpop.permute.xlu0 %6133
    %6135 = vrot.lane.b32.xlu0 %v6047, 8
    %v6136 = vpop.permute.xlu0 %6135
    %6137 = vrot.lane.b32.xlu0 %v6048, 8
    %v6138 = vpop.permute.xlu0 %6137
    %6139 = vrot.lane.b32.xlu0 %v6049, 8
    %v6140 = vpop.permute.xlu0 %6139
    %6141 = vrot.lane.b32.xlu0 %v6050, 8
    %v6142 = vpop.permute.xlu0 %6141
    %6143 = vrot.lane.b32.xlu0 %v6051, 8
    %v6144 = vpop.permute.xlu0 %6143
    %6145 = vrot.lane.b32.xlu0 %v6052, 8
    %v6146 = vpop.permute.xlu0 %6145
    %6147 = vrot.lane.b32.xlu0 %v6053, 8
    %v6148 = vpop.permute.xlu0 %6147
    %6149 = vrot.lane.b32.xlu0 %v6054, 8
    %v6150 = vpop.permute.xlu0 %6149
    %6183 = vst.msk [vmem:[#allocation5 + $0x100] sm:$0xff] %vm4574, %v6088
    %6184 = vst.msk [vmem:[#allocation5 + $0x108] sm:$0xff] %vm4574, %v6090
    %6185 = vst.msk [vmem:[#allocation5 + $0x110] sm:$0xff] %vm4574, %v6092
    %6186 = vst.msk [vmem:[#allocation5 + $0x118] sm:$0xff] %vm4574, %v6094
    %6187 = vst.msk [vmem:[#allocation5 + $0x120] sm:$0xff] %vm4574, %v6096
    %6188 = vst.msk [vmem:[#allocation5 + $0x128] sm:$0xff] %vm4574, %v6098
    %6189 = vst.msk [vmem:[#allocation5 + $0x130] sm:$0xff] %vm4574, %v6100
    %6190 = vst.msk [vmem:[#allocation5 + $0x138] sm:$0xff] %vm4574, %v6102
    %6191 = vst.msk [vmem:[#allocation5 + $0x140] sm:$0xff] %vm4574, %v6104
    %6192 = vst.msk [vmem:[#allocation5 + $0x148] sm:$0xff] %vm4574, %v6106
    %6193 = vst.msk [vmem:[#allocation5 + $0x150] sm:$0xff] %vm4574, %v6108
    %6194 = vst.msk [vmem:[#allocation5 + $0x158] sm:$0xff] %vm4574, %v6110
    %6195 = vst.msk [vmem:[#allocation5 + $0x160] sm:$0xff] %vm4574, %v6112
    %6196 = vst.msk [vmem:[#allocation5 + $0x168] sm:$0xff] %vm4574, %v6114
    %6197 = vst.msk [vmem:[#allocation5 + $0x170] sm:$0xff] %vm4574, %v6116
    %6198 = vst.msk [vmem:[#allocation5 + $0x178] sm:$0xff] %vm4574, %v6118
    %6199 = vst.msk [vmem:[#allocation5 + $0x180] sm:$0xff] %vm4574, %v6120
    %6200 = vst.msk [vmem:[#allocation5 + $0x188] sm:$0xff] %vm4574, %v6122
    %6201 = vst.msk [vmem:[#allocation5 + $0x190] sm:$0xff] %vm4574, %v6124
    %6202 = vst.msk [vmem:[#allocation5 + $0x198] sm:$0xff] %vm4574, %v6126
    %6203 = vst.msk [vmem:[#allocation5 + $0x1a0] sm:$0xff] %vm4574, %v6128
    %6204 = vst.msk [vmem:[#allocation5 + $0x1a8] sm:$0xff] %vm4574, %v6130
    %6205 = vst.msk [vmem:[#allocation5 + $0x1b0] sm:$0xff] %vm4574, %v6132
    %6206 = vst.msk [vmem:[#allocation5 + $0x1b8] sm:$0xff] %vm4574, %v6134
    %6207 = vst.msk [vmem:[#allocation5 + $0x1c0] sm:$0xff] %vm4574, %v6136
    %6208 = vst.msk [vmem:[#allocation5 + $0x1c8] sm:$0xff] %vm4574, %v6138
    %6209 = vst.msk [vmem:[#allocation5 + $0x1d0] sm:$0xff] %vm4574, %v6140
    %6210 = vst.msk [vmem:[#allocation5 + $0x1d8] sm:$0xff] %vm4574, %v6142
    %6211 = vst.msk [vmem:[#allocation5 + $0x1e0] sm:$0xff] %vm4574, %v6144
    %6212 = vst.msk [vmem:[#allocation5 + $0x1e8] sm:$0xff] %vm4574, %v6146
    %6213 = vst.msk [vmem:[#allocation5 + $0x1f0] sm:$0xff] %vm4574, %v6148
    %6214 = vst.msk [vmem:[#allocation5 + $0x1f8] sm:$0xff] %vm4574, %v6150
    %v6215 = vld [vmem:[%s313 + $0x2] sm:$0xff]
    %v6216 = vld [vmem:[%s313 + $0xa] sm:$0xff]
    %v6217 = vld [vmem:[%s313 + $0x1a] sm:$0xff]
    %v6218 = vld [vmem:[%s313 + $0x22] sm:$0xff]
    %v6219 = vld [vmem:[%s313 + $0x32] sm:$0xff]
    %v6220 = vld [vmem:[%s313 + $0x3a] sm:$0xff]
    %v6221 = vld [vmem:[%s313 + $0x4a] sm:$0xff]
    %v6222 = vld [vmem:[%s313 + $0x52] sm:$0xff]
    %v6223 = vld [vmem:[%s313 + $0x62] sm:$0xff]
    %v6224 = vld [vmem:[%s313 + $0x6a] sm:$0xff]
    %v6225 = vld [vmem:[%s313 + $0x7a] sm:$0xff]
    %v6226 = vld [vmem:[%s313 + $0x82] sm:$0xff]
    %v6227 = vld [vmem:[%s313 + $0x92] sm:$0xff]
    %v6228 = vld [vmem:[%s313 + $0x9a] sm:$0xff]
    %v6229 = vld [vmem:[%s313 + $0xaa] sm:$0xff]
    %v6230 = vld [vmem:[%s313 + $0xb2] sm:$0xff]
    %v6231 = vld [vmem:[%s313 + $0xc2] sm:$0xff]
    %v6232 = vld [vmem:[%s313 + $0xca] sm:$0xff]
    %v6233 = vld [vmem:[%s313 + $0xda] sm:$0xff]
    %v6234 = vld [vmem:[%s313 + $0xe2] sm:$0xff]
    %v6235 = vld [vmem:[%s313 + $0xf2] sm:$0xff]
    %v6236 = vld [vmem:[%s313 + $0xfa] sm:$0xff]
    %v6237 = vld [vmem:[%s313 + $0x10a] sm:$0xff]
    %v6238 = vld [vmem:[%s313 + $0x112] sm:$0xff]
    %v6239 = vld [vmem:[%s313 + $0x122] sm:$0xff]
    %v6240 = vld [vmem:[%s313 + $0x12a] sm:$0xff]
    %v6241 = vld [vmem:[%s313 + $0x13a] sm:$0xff]
    %v6242 = vld [vmem:[%s313 + $0x142] sm:$0xff]
    %v6243 = vld [vmem:[%s313 + $0x152] sm:$0xff]
    %v6244 = vld [vmem:[%s313 + $0x15a] sm:$0xff]
    %v6245 = vld [vmem:[%s313 + $0x16a] sm:$0xff]
    %v6246 = vld [vmem:[%s313 + $0x172] sm:$0xff]
    %6279 = vrot.lane.b32.xlu0 %v6215, 16
    %v6280 = vpop.permute.xlu0 %6279
    %6281 = vrot.lane.b32.xlu0 %v6216, 16
    %v6282 = vpop.permute.xlu0 %6281
    %6283 = vrot.lane.b32.xlu0 %v6217, 16
    %v6284 = vpop.permute.xlu0 %6283
    %6285 = vrot.lane.b32.xlu0 %v6218, 16
    %v6286 = vpop.permute.xlu0 %6285
    %6287 = vrot.lane.b32.xlu0 %v6219, 16
    %v6288 = vpop.permute.xlu0 %6287
    %6289 = vrot.lane.b32.xlu0 %v6220, 16
    %v6290 = vpop.permute.xlu0 %6289
    %6291 = vrot.lane.b32.xlu0 %v6221, 16
    %v6292 = vpop.permute.xlu0 %6291
    %6293 = vrot.lane.b32.xlu0 %v6222, 16
    %v6294 = vpop.permute.xlu0 %6293
    %6295 = vrot.lane.b32.xlu0 %v6223, 16
    %v6296 = vpop.permute.xlu0 %6295
    %6297 = vrot.lane.b32.xlu0 %v6224, 16
    %v6298 = vpop.permute.xlu0 %6297
    %6299 = vrot.lane.b32.xlu0 %v6225, 16
    %v6300 = vpop.permute.xlu0 %6299
    %6301 = vrot.lane.b32.xlu0 %v6226, 16
    %v6302 = vpop.permute.xlu0 %6301
    %6303 = vrot.lane.b32.xlu0 %v6227, 16
    %v6304 = vpop.permute.xlu0 %6303
    %6305 = vrot.lane.b32.xlu0 %v6228, 16
    %v6306 = vpop.permute.xlu0 %6305
    %6307 = vrot.lane.b32.xlu0 %v6229, 16
    %v6308 = vpop.permute.xlu0 %6307
    %6309 = vrot.lane.b32.xlu0 %v6230, 16
    %v6310 = vpop.permute.xlu0 %6309
    %6311 = vrot.lane.b32.xlu0 %v6231, 16
    %v6312 = vpop.permute.xlu0 %6311
    %6313 = vrot.lane.b32.xlu0 %v6232, 16
    %v6314 = vpop.permute.xlu0 %6313
    %6315 = vrot.lane.b32.xlu0 %v6233, 16
    %v6316 = vpop.permute.xlu0 %6315
    %6317 = vrot.lane.b32.xlu0 %v6234, 16
    %v6318 = vpop.permute.xlu0 %6317
    %6319 = vrot.lane.b32.xlu0 %v6235, 16
    %v6320 = vpop.permute.xlu0 %6319
    %6321 = vrot.lane.b32.xlu0 %v6236, 16
    %v6322 = vpop.permute.xlu0 %6321
    %6323 = vrot.lane.b32.xlu0 %v6237, 16
    %v6324 = vpop.permute.xlu0 %6323
    %6325 = vrot.lane.b32.xlu0 %v6238, 16
    %v6326 = vpop.permute.xlu0 %6325
    %6327 = vrot.lane.b32.xlu0 %v6239, 16
    %v6328 = vpop.permute.xlu0 %6327
    %6329 = vrot.lane.b32.xlu0 %v6240, 16
    %v6330 = vpop.permute.xlu0 %6329
    %6331 = vrot.lane.b32.xlu0 %v6241, 16
    %v6332 = vpop.permute.xlu0 %6331
    %6333 = vrot.lane.b32.xlu0 %v6242, 16
    %v6334 = vpop.permute.xlu0 %6333
    %6335 = vrot.lane.b32.xlu0 %v6243, 16
    %v6336 = vpop.permute.xlu0 %6335
    %6337 = vrot.lane.b32.xlu0 %v6244, 16
    %v6338 = vpop.permute.xlu0 %6337
    %6339 = vrot.lane.b32.xlu0 %v6245, 16
    %v6340 = vpop.permute.xlu0 %6339
    %6341 = vrot.lane.b32.xlu0 %v6246, 16
    %v6342 = vpop.permute.xlu0 %6341
    %6375 = vst.msk [vmem:[#allocation5 + $0x100] sm:$0xff] %vm4767, %v6280
    %6376 = vst.msk [vmem:[#allocation5 + $0x108] sm:$0xff] %vm4767, %v6282
    %6377 = vst.msk [vmem:[#allocation5 + $0x110] sm:$0xff] %vm4767, %v6284
    %6378 = vst.msk [vmem:[#allocation5 + $0x118] sm:$0xff] %vm4767, %v6286
    %6379 = vst.msk [vmem:[#allocation5 + $0x120] sm:$0xff] %vm4767, %v6288
    %6380 = vst.msk [vmem:[#allocation5 + $0x128] sm:$0xff] %vm4767, %v6290
    %6381 = vst.msk [vmem:[#allocation5 + $0x130] sm:$0xff] %vm4767, %v6292
    %6382 = vst.msk [vmem:[#allocation5 + $0x138] sm:$0xff] %vm4767, %v6294
    %6383 = vst.msk [vmem:[#allocation5 + $0x140] sm:$0xff] %vm4767, %v6296
    %6384 = vst.msk [vmem:[#allocation5 + $0x148] sm:$0xff] %vm4767, %v6298
    %6385 = vst.msk [vmem:[#allocation5 + $0x150] sm:$0xff] %vm4767, %v6300
    %6386 = vst.msk [vmem:[#allocation5 + $0x158] sm:$0xff] %vm4767, %v6302
    %6387 = vst.msk [vmem:[#allocation5 + $0x160] sm:$0xff] %vm4767, %v6304
    %6388 = vst.msk [vmem:[#allocation5 + $0x168] sm:$0xff] %vm4767, %v6306
    %6389 = vst.msk [vmem:[#allocation5 + $0x170] sm:$0xff] %vm4767, %v6308
    %6390 = vst.msk [vmem:[#allocation5 + $0x178] sm:$0xff] %vm4767, %v6310
    %6391 = vst.msk [vmem:[#allocation5 + $0x180] sm:$0xff] %vm4767, %v6312
    %6392 = vst.msk [vmem:[#allocation5 + $0x188] sm:$0xff] %vm4767, %v6314
    %6393 = vst.msk [vmem:[#allocation5 + $0x190] sm:$0xff] %vm4767, %v6316
    %6394 = vst.msk [vmem:[#allocation5 + $0x198] sm:$0xff] %vm4767, %v6318
    %6395 = vst.msk [vmem:[#allocation5 + $0x1a0] sm:$0xff] %vm4767, %v6320
    %6396 = vst.msk [vmem:[#allocation5 + $0x1a8] sm:$0xff] %vm4767, %v6322
    %6397 = vst.msk [vmem:[#allocation5 + $0x1b0] sm:$0xff] %vm4767, %v6324
    %6398 = vst.msk [vmem:[#allocation5 + $0x1b8] sm:$0xff] %vm4767, %v6326
    %6399 = vst.msk [vmem:[#allocation5 + $0x1c0] sm:$0xff] %vm4767, %v6328
    %6400 = vst.msk [vmem:[#allocation5 + $0x1c8] sm:$0xff] %vm4767, %v6330
    %6401 = vst.msk [vmem:[#allocation5 + $0x1d0] sm:$0xff] %vm4767, %v6332
    %6402 = vst.msk [vmem:[#allocation5 + $0x1d8] sm:$0xff] %vm4767, %v6334
    %6403 = vst.msk [vmem:[#allocation5 + $0x1e0] sm:$0xff] %vm4767, %v6336
    %6404 = vst.msk [vmem:[#allocation5 + $0x1e8] sm:$0xff] %vm4767, %v6338
    %6405 = vst.msk [vmem:[#allocation5 + $0x1f0] sm:$0xff] %vm4767, %v6340
    %6406 = vst.msk [vmem:[#allocation5 + $0x1f8] sm:$0xff] %vm4767, %v6342
    %v6407 = vld [vmem:[%s321] sm:$0xff]
    %v6408 = vld [vmem:[%s321 + $0x8] sm:$0xff]
    %v6409 = vld [vmem:[%s321 + $0x18] sm:$0xff]
    %v6410 = vld [vmem:[%s321 + $0x20] sm:$0xff]
    %v6411 = vld [vmem:[%s321 + $0x30] sm:$0xff]
    %v6412 = vld [vmem:[%s321 + $0x38] sm:$0xff]
    %v6413 = vld [vmem:[%s321 + $0x48] sm:$0xff]
    %v6414 = vld [vmem:[%s321 + $0x50] sm:$0xff]
    %v6415 = vld [vmem:[%s321 + $0x60] sm:$0xff]
    %v6416 = vld [vmem:[%s321 + $0x68] sm:$0xff]
    %v6417 = vld [vmem:[%s321 + $0x78] sm:$0xff]
    %v6418 = vld [vmem:[%s321 + $0x80] sm:$0xff]
    %v6419 = vld [vmem:[%s321 + $0x90] sm:$0xff]
    %v6420 = vld [vmem:[%s321 + $0x98] sm:$0xff]
    %v6421 = vld [vmem:[%s321 + $0xa8] sm:$0xff]
    %v6422 = vld [vmem:[%s321 + $0xb0] sm:$0xff]
    %v6423 = vld [vmem:[%s321 + $0xc0] sm:$0xff]
    %v6424 = vld [vmem:[%s321 + $0xc8] sm:$0xff]
    %v6425 = vld [vmem:[%s321 + $0xd8] sm:$0xff]
    %v6426 = vld [vmem:[%s321 + $0xe0] sm:$0xff]
    %v6427 = vld [vmem:[%s321 + $0xf0] sm:$0xff]
    %v6428 = vld [vmem:[%s321 + $0xf8] sm:$0xff]
    %v6429 = vld [vmem:[%s321 + $0x108] sm:$0xff]
    %v6430 = vld [vmem:[%s321 + $0x110] sm:$0xff]
    %v6431 = vld [vmem:[%s321 + $0x120] sm:$0xff]
    %v6432 = vld [vmem:[%s321 + $0x128] sm:$0xff]
    %v6433 = vld [vmem:[%s321 + $0x138] sm:$0xff]
    %v6434 = vld [vmem:[%s321 + $0x140] sm:$0xff]
    %v6435 = vld [vmem:[%s321 + $0x150] sm:$0xff]
    %v6436 = vld [vmem:[%s321 + $0x158] sm:$0xff]
    %v6437 = vld [vmem:[%s321 + $0x168] sm:$0xff]
    %v6438 = vld [vmem:[%s321 + $0x170] sm:$0xff]
    %6471 = vrot.lane.b32.xlu0 %v6407, 24
    %v6472 = vpop.permute.xlu0 %6471
    %6473 = vrot.lane.b32.xlu0 %v6408, 24
    %v6474 = vpop.permute.xlu0 %6473
    %6475 = vrot.lane.b32.xlu0 %v6409, 24
    %v6476 = vpop.permute.xlu0 %6475
    %6477 = vrot.lane.b32.xlu0 %v6410, 24
    %v6478 = vpop.permute.xlu0 %6477
    %6479 = vrot.lane.b32.xlu0 %v6411, 24
    %v6480 = vpop.permute.xlu0 %6479
    %6481 = vrot.lane.b32.xlu0 %v6412, 24
    %v6482 = vpop.permute.xlu0 %6481
    %6483 = vrot.lane.b32.xlu0 %v6413, 24
    %v6484 = vpop.permute.xlu0 %6483
    %6485 = vrot.lane.b32.xlu0 %v6414, 24
    %v6486 = vpop.permute.xlu0 %6485
    %6487 = vrot.lane.b32.xlu0 %v6415, 24
    %v6488 = vpop.permute.xlu0 %6487
    %6489 = vrot.lane.b32.xlu0 %v6416, 24
    %v6490 = vpop.permute.xlu0 %6489
    %6491 = vrot.lane.b32.xlu0 %v6417, 24
    %v6492 = vpop.permute.xlu0 %6491
    %6493 = vrot.lane.b32.xlu0 %v6418, 24
    %v6494 = vpop.permute.xlu0 %6493
    %6495 = vrot.lane.b32.xlu0 %v6419, 24
    %v6496 = vpop.permute.xlu0 %6495
    %6497 = vrot.lane.b32.xlu0 %v6420, 24
    %v6498 = vpop.permute.xlu0 %6497
    %6499 = vrot.lane.b32.xlu0 %v6421, 24
    %v6500 = vpop.permute.xlu0 %6499
    %6501 = vrot.lane.b32.xlu0 %v6422, 24
    %v6502 = vpop.permute.xlu0 %6501
    %6503 = vrot.lane.b32.xlu0 %v6423, 24
    %v6504 = vpop.permute.xlu0 %6503
    %6505 = vrot.lane.b32.xlu0 %v6424, 24
    %v6506 = vpop.permute.xlu0 %6505
    %6507 = vrot.lane.b32.xlu0 %v6425, 24
    %v6508 = vpop.permute.xlu0 %6507
    %6509 = vrot.lane.b32.xlu0 %v6426, 24
    %v6510 = vpop.permute.xlu0 %6509
    %6511 = vrot.lane.b32.xlu0 %v6427, 24
    %v6512 = vpop.permute.xlu0 %6511
    %6513 = vrot.lane.b32.xlu0 %v6428, 24
    %v6514 = vpop.permute.xlu0 %6513
    %6515 = vrot.lane.b32.xlu0 %v6429, 24
    %v6516 = vpop.permute.xlu0 %6515
    %6517 = vrot.lane.b32.xlu0 %v6430, 24
    %v6518 = vpop.permute.xlu0 %6517
    %6519 = vrot.lane.b32.xlu0 %v6431, 24
    %v6520 = vpop.permute.xlu0 %6519
    %6521 = vrot.lane.b32.xlu0 %v6432, 24
    %v6522 = vpop.permute.xlu0 %6521
    %6523 = vrot.lane.b32.xlu0 %v6433, 24
    %v6524 = vpop.permute.xlu0 %6523
    %6525 = vrot.lane.b32.xlu0 %v6434, 24
    %v6526 = vpop.permute.xlu0 %6525
    %6527 = vrot.lane.b32.xlu0 %v6435, 24
    %v6528 = vpop.permute.xlu0 %6527
    %6529 = vrot.lane.b32.xlu0 %v6436, 24
    %v6530 = vpop.permute.xlu0 %6529
    %6531 = vrot.lane.b32.xlu0 %v6437, 24
    %v6532 = vpop.permute.xlu0 %6531
    %6533 = vrot.lane.b32.xlu0 %v6438, 24
    %v6534 = vpop.permute.xlu0 %6533
    %6567 = vst.msk [vmem:[#allocation5 + $0x100] sm:$0xff] %vm4960, %v6472
    %6568 = vst.msk [vmem:[#allocation5 + $0x108] sm:$0xff] %vm4960, %v6474
    %6569 = vst.msk [vmem:[#allocation5 + $0x110] sm:$0xff] %vm4960, %v6476
    %6570 = vst.msk [vmem:[#allocation5 + $0x118] sm:$0xff] %vm4960, %v6478
    %6571 = vst.msk [vmem:[#allocation5 + $0x120] sm:$0xff] %vm4960, %v6480
    %6572 = vst.msk [vmem:[#allocation5 + $0x128] sm:$0xff] %vm4960, %v6482
    %6573 = vst.msk [vmem:[#allocation5 + $0x130] sm:$0xff] %vm4960, %v6484
    %6574 = vst.msk [vmem:[#allocation5 + $0x138] sm:$0xff] %vm4960, %v6486
    %6575 = vst.msk [vmem:[#allocation5 + $0x140] sm:$0xff] %vm4960, %v6488
    %6576 = vst.msk [vmem:[#allocation5 + $0x148] sm:$0xff] %vm4960, %v6490
    %6577 = vst.msk [vmem:[#allocation5 + $0x150] sm:$0xff] %vm4960, %v6492
    %6578 = vst.msk [vmem:[#allocation5 + $0x158] sm:$0xff] %vm4960, %v6494
    %6579 = vst.msk [vmem:[#allocation5 + $0x160] sm:$0xff] %vm4960, %v6496
    %6580 = vst.msk [vmem:[#allocation5 + $0x168] sm:$0xff] %vm4960, %v6498
    %6581 = vst.msk [vmem:[#allocation5 + $0x170] sm:$0xff] %vm4960, %v6500
    %6582 = vst.msk [vmem:[#allocation5 + $0x178] sm:$0xff] %vm4960, %v6502
    %6583 = vst.msk [vmem:[#allocation5 + $0x180] sm:$0xff] %vm4960, %v6504
    %6584 = vst.msk [vmem:[#allocation5 + $0x188] sm:$0xff] %vm4960, %v6506
    %6585 = vst.msk [vmem:[#allocation5 + $0x190] sm:$0xff] %vm4960, %v6508
    %6586 = vst.msk [vmem:[#allocation5 + $0x198] sm:$0xff] %vm4960, %v6510
    %6587 = vst.msk [vmem:[#allocation5 + $0x1a0] sm:$0xff] %vm4960, %v6512
    %6588 = vst.msk [vmem:[#allocation5 + $0x1a8] sm:$0xff] %vm4960, %v6514
    %6589 = vst.msk [vmem:[#allocation5 + $0x1b0] sm:$0xff] %vm4960, %v6516
    %6590 = vst.msk [vmem:[#allocation5 + $0x1b8] sm:$0xff] %vm4960, %v6518
    %6591 = vst.msk [vmem:[#allocation5 + $0x1c0] sm:$0xff] %vm4960, %v6520
    %6592 = vst.msk [vmem:[#allocation5 + $0x1c8] sm:$0xff] %vm4960, %v6522
    %6593 = vst.msk [vmem:[#allocation5 + $0x1d0] sm:$0xff] %vm4960, %v6524
    %6594 = vst.msk [vmem:[#allocation5 + $0x1d8] sm:$0xff] %vm4960, %v6526
    %6595 = vst.msk [vmem:[#allocation5 + $0x1e0] sm:$0xff] %vm4960, %v6528
    %6596 = vst.msk [vmem:[#allocation5 + $0x1e8] sm:$0xff] %vm4960, %v6530
    %6597 = vst.msk [vmem:[#allocation5 + $0x1f0] sm:$0xff] %vm4960, %v6532
    %6598 = vst.msk [vmem:[#allocation5 + $0x1f8] sm:$0xff] %vm4960, %v6534
    %v6599 = vld [vmem:[%s321 + $0x1] sm:$0xff]
    %v6600 = vld [vmem:[%s321 + $0x9] sm:$0xff]
    %v6601 = vld [vmem:[%s321 + $0x19] sm:$0xff]
    %v6602 = vld [vmem:[%s321 + $0x21] sm:$0xff]
    %v6603 = vld [vmem:[%s321 + $0x31] sm:$0xff]
    %v6604 = vld [vmem:[%s321 + $0x39] sm:$0xff]
    %v6605 = vld [vmem:[%s321 + $0x49] sm:$0xff]
    %v6606 = vld [vmem:[%s321 + $0x51] sm:$0xff]
    %v6607 = vld [vmem:[%s321 + $0x61] sm:$0xff]
    %v6608 = vld [vmem:[%s321 + $0x69] sm:$0xff]
    %v6609 = vld [vmem:[%s321 + $0x79] sm:$0xff]
    %v6610 = vld [vmem:[%s321 + $0x81] sm:$0xff]
    %v6611 = vld [vmem:[%s321 + $0x91] sm:$0xff]
    %v6612 = vld [vmem:[%s321 + $0x99] sm:$0xff]
    %v6613 = vld [vmem:[%s321 + $0xa9] sm:$0xff]
    %v6614 = vld [vmem:[%s321 + $0xb1] sm:$0xff]
    %v6615 = vld [vmem:[%s321 + $0xc1] sm:$0xff]
    %v6616 = vld [vmem:[%s321 + $0xc9] sm:$0xff]
    %v6617 = vld [vmem:[%s321 + $0xd9] sm:$0xff]
    %v6618 = vld [vmem:[%s321 + $0xe1] sm:$0xff]
    %v6619 = vld [vmem:[%s321 + $0xf1] sm:$0xff]
    %v6620 = vld [vmem:[%s321 + $0xf9] sm:$0xff]
    %v6621 = vld [vmem:[%s321 + $0x109] sm:$0xff]
    %v6622 = vld [vmem:[%s321 + $0x111] sm:$0xff]
    %v6623 = vld [vmem:[%s321 + $0x121] sm:$0xff]
    %v6624 = vld [vmem:[%s321 + $0x129] sm:$0xff]
    %v6625 = vld [vmem:[%s321 + $0x139] sm:$0xff]
    %v6626 = vld [vmem:[%s321 + $0x141] sm:$0xff]
    %v6627 = vld [vmem:[%s321 + $0x151] sm:$0xff]
    %v6628 = vld [vmem:[%s321 + $0x159] sm:$0xff]
    %v6629 = vld [vmem:[%s321 + $0x169] sm:$0xff]
    %v6630 = vld [vmem:[%s321 + $0x171] sm:$0xff]
    %6663 = vrot.lane.b32.xlu0 %v6599, 32
    %v6664 = vpop.permute.xlu0 %6663
    %6665 = vrot.lane.b32.xlu0 %v6600, 32
    %v6666 = vpop.permute.xlu0 %6665
    %6667 = vrot.lane.b32.xlu0 %v6601, 32
    %v6668 = vpop.permute.xlu0 %6667
    %6669 = vrot.lane.b32.xlu0 %v6602, 32
    %v6670 = vpop.permute.xlu0 %6669
    %6671 = vrot.lane.b32.xlu0 %v6603, 32
    %v6672 = vpop.permute.xlu0 %6671
    %6673 = vrot.lane.b32.xlu0 %v6604, 32
    %v6674 = vpop.permute.xlu0 %6673
    %6675 = vrot.lane.b32.xlu0 %v6605, 32
    %v6676 = vpop.permute.xlu0 %6675
    %6677 = vrot.lane.b32.xlu0 %v6606, 32
    %v6678 = vpop.permute.xlu0 %6677
    %6679 = vrot.lane.b32.xlu0 %v6607, 32
    %v6680 = vpop.permute.xlu0 %6679
    %6681 = vrot.lane.b32.xlu0 %v6608, 32
    %v6682 = vpop.permute.xlu0 %6681
    %6683 = vrot.lane.b32.xlu0 %v6609, 32
    %v6684 = vpop.permute.xlu0 %6683
    %6685 = vrot.lane.b32.xlu0 %v6610, 32
    %v6686 = vpop.permute.xlu0 %6685
    %6687 = vrot.lane.b32.xlu0 %v6611, 32
    %v6688 = vpop.permute.xlu0 %6687
    %6689 = vrot.lane.b32.xlu0 %v6612, 32
    %v6690 = vpop.permute.xlu0 %6689
    %6691 = vrot.lane.b32.xlu0 %v6613, 32
    %v6692 = vpop.permute.xlu0 %6691
    %6693 = vrot.lane.b32.xlu0 %v6614, 32
    %v6694 = vpop.permute.xlu0 %6693
    %6695 = vrot.lane.b32.xlu0 %v6615, 32
    %v6696 = vpop.permute.xlu0 %6695
    %6697 = vrot.lane.b32.xlu0 %v6616, 32
    %v6698 = vpop.permute.xlu0 %6697
    %6699 = vrot.lane.b32.xlu0 %v6617, 32
    %v6700 = vpop.permute.xlu0 %6699
    %6701 = vrot.lane.b32.xlu0 %v6618, 32
    %v6702 = vpop.permute.xlu0 %6701
    %6703 = vrot.lane.b32.xlu0 %v6619, 32
    %v6704 = vpop.permute.xlu0 %6703
    %6705 = vrot.lane.b32.xlu0 %v6620, 32
    %v6706 = vpop.permute.xlu0 %6705
    %6707 = vrot.lane.b32.xlu0 %v6621, 32
    %v6708 = vpop.permute.xlu0 %6707
    %6709 = vrot.lane.b32.xlu0 %v6622, 32
    %v6710 = vpop.permute.xlu0 %6709
    %6711 = vrot.lane.b32.xlu0 %v6623, 32
    %v6712 = vpop.permute.xlu0 %6711
    %6713 = vrot.lane.b32.xlu0 %v6624, 32
    %v6714 = vpop.permute.xlu0 %6713
    %6715 = vrot.lane.b32.xlu0 %v6625, 32
    %v6716 = vpop.permute.xlu0 %6715
    %6717 = vrot.lane.b32.xlu0 %v6626, 32
    %v6718 = vpop.permute.xlu0 %6717
    %6719 = vrot.lane.b32.xlu0 %v6627, 32
    %v6720 = vpop.permute.xlu0 %6719
    %6721 = vrot.lane.b32.xlu0 %v6628, 32
    %v6722 = vpop.permute.xlu0 %6721
    %6723 = vrot.lane.b32.xlu0 %v6629, 32
    %v6724 = vpop.permute.xlu0 %6723
    %6725 = vrot.lane.b32.xlu0 %v6630, 32
    %v6726 = vpop.permute.xlu0 %6725
    %6759 = vst.msk [vmem:[#allocation5 + $0x100] sm:$0xff] %vm5153, %v6664
    %6760 = vst.msk [vmem:[#allocation5 + $0x108] sm:$0xff] %vm5153, %v6666
    %6761 = vst.msk [vmem:[#allocation5 + $0x110] sm:$0xff] %vm5153, %v6668
    %6762 = vst.msk [vmem:[#allocation5 + $0x118] sm:$0xff] %vm5153, %v6670
    %6763 = vst.msk [vmem:[#allocation5 + $0x120] sm:$0xff] %vm5153, %v6672
    %6764 = vst.msk [vmem:[#allocation5 + $0x128] sm:$0xff] %vm5153, %v6674
    %6765 = vst.msk [vmem:[#allocation5 + $0x130] sm:$0xff] %vm5153, %v6676
    %6766 = vst.msk [vmem:[#allocation5 + $0x138] sm:$0xff] %vm5153, %v6678
    %6767 = vst.msk [vmem:[#allocation5 + $0x140] sm:$0xff] %vm5153, %v6680
    %6768 = vst.msk [vmem:[#allocation5 + $0x148] sm:$0xff] %vm5153, %v6682
    %6769 = vst.msk [vmem:[#allocation5 + $0x150] sm:$0xff] %vm5153, %v6684
    %6770 = vst.msk [vmem:[#allocation5 + $0x158] sm:$0xff] %vm5153, %v6686
    %6771 = vst.msk [vmem:[#allocation5 + $0x160] sm:$0xff] %vm5153, %v6688
    %6772 = vst.msk [vmem:[#allocation5 + $0x168] sm:$0xff] %vm5153, %v6690
    %6773 = vst.msk [vmem:[#allocation5 + $0x170] sm:$0xff] %vm5153, %v6692
    %6774 = vst.msk [vmem:[#allocation5 + $0x178] sm:$0xff] %vm5153, %v6694
    %6775 = vst.msk [vmem:[#allocation5 + $0x180] sm:$0xff] %vm5153, %v6696
    %6776 = vst.msk [vmem:[#allocation5 + $0x188] sm:$0xff] %vm5153, %v6698
    %6777 = vst.msk [vmem:[#allocation5 + $0x190] sm:$0xff] %vm5153, %v6700
    %6778 = vst.msk [vmem:[#allocation5 + $0x198] sm:$0xff] %vm5153, %v6702
    %6779 = vst.msk [vmem:[#allocation5 + $0x1a0] sm:$0xff] %vm5153, %v6704
    %6780 = vst.msk [vmem:[#allocation5 + $0x1a8] sm:$0xff] %vm5153, %v6706
    %6781 = vst.msk [vmem:[#allocation5 + $0x1b0] sm:$0xff] %vm5153, %v6708
    %6782 = vst.msk [vmem:[#allocation5 + $0x1b8] sm:$0xff] %vm5153, %v6710
    %6783 = vst.msk [vmem:[#allocation5 + $0x1c0] sm:$0xff] %vm5153, %v6712
    %6784 = vst.msk [vmem:[#allocation5 + $0x1c8] sm:$0xff] %vm5153, %v6714
    %6785 = vst.msk [vmem:[#allocation5 + $0x1d0] sm:$0xff] %vm5153, %v6716
    %6786 = vst.msk [vmem:[#allocation5 + $0x1d8] sm:$0xff] %vm5153, %v6718
    %6787 = vst.msk [vmem:[#allocation5 + $0x1e0] sm:$0xff] %vm5153, %v6720
    %6788 = vst.msk [vmem:[#allocation5 + $0x1e8] sm:$0xff] %vm5153, %v6722
    %6789 = vst.msk [vmem:[#allocation5 + $0x1f0] sm:$0xff] %vm5153, %v6724
    %6790 = vst.msk [vmem:[#allocation5 + $0x1f8] sm:$0xff] %vm5153, %v6726
    %v6791 = vld [vmem:[%s321 + $0x2] sm:$0xff]
    %v6792 = vld [vmem:[%s321 + $0xa] sm:$0xff]
    %v6793 = vld [vmem:[%s321 + $0x1a] sm:$0xff]
    %v6794 = vld [vmem:[%s321 + $0x22] sm:$0xff]
    %v6795 = vld [vmem:[%s321 + $0x32] sm:$0xff]
    %v6796 = vld [vmem:[%s321 + $0x3a] sm:$0xff]
    %v6797 = vld [vmem:[%s321 + $0x4a] sm:$0xff]
    %v6798 = vld [vmem:[%s321 + $0x52] sm:$0xff]
    %v6799 = vld [vmem:[%s321 + $0x62] sm:$0xff]
    %v6800 = vld [vmem:[%s321 + $0x6a] sm:$0xff]
    %v6801 = vld [vmem:[%s321 + $0x7a] sm:$0xff]
    %v6802 = vld [vmem:[%s321 + $0x82] sm:$0xff]
    %v6803 = vld [vmem:[%s321 + $0x92] sm:$0xff]
    %v6804 = vld [vmem:[%s321 + $0x9a] sm:$0xff]
    %v6805 = vld [vmem:[%s321 + $0xaa] sm:$0xff]
    %v6806 = vld [vmem:[%s321 + $0xb2] sm:$0xff]
    %v6807 = vld [vmem:[%s321 + $0xc2] sm:$0xff]
    %v6808 = vld [vmem:[%s321 + $0xca] sm:$0xff]
    %v6809 = vld [vmem:[%s321 + $0xda] sm:$0xff]
    %v6810 = vld [vmem:[%s321 + $0xe2] sm:$0xff]
    %v6811 = vld [vmem:[%s321 + $0xf2] sm:$0xff]
    %v6812 = vld [vmem:[%s321 + $0xfa] sm:$0xff]
    %v6813 = vld [vmem:[%s321 + $0x10a] sm:$0xff]
    %v6814 = vld [vmem:[%s321 + $0x112] sm:$0xff]
    %v6815 = vld [vmem:[%s321 + $0x122] sm:$0xff]
    %v6816 = vld [vmem:[%s321 + $0x12a] sm:$0xff]
    %v6817 = vld [vmem:[%s321 + $0x13a] sm:$0xff]
    %v6818 = vld [vmem:[%s321 + $0x142] sm:$0xff]
    %v6819 = vld [vmem:[%s321 + $0x152] sm:$0xff]
    %v6820 = vld [vmem:[%s321 + $0x15a] sm:$0xff]
    %v6821 = vld [vmem:[%s321 + $0x16a] sm:$0xff]
    %v6822 = vld [vmem:[%s321 + $0x172] sm:$0xff]
    %6855 = vrot.lane.b32.xlu0 %v6791, 40
    %v6856 = vpop.permute.xlu0 %6855
    %6857 = vrot.lane.b32.xlu0 %v6792, 40
    %v6858 = vpop.permute.xlu0 %6857
    %6859 = vrot.lane.b32.xlu0 %v6793, 40
    %v6860 = vpop.permute.xlu0 %6859
    %6861 = vrot.lane.b32.xlu0 %v6794, 40
    %v6862 = vpop.permute.xlu0 %6861
    %6863 = vrot.lane.b32.xlu0 %v6795, 40
    %v6864 = vpop.permute.xlu0 %6863
    %6865 = vrot.lane.b32.xlu0 %v6796, 40
    %v6866 = vpop.permute.xlu0 %6865
    %6867 = vrot.lane.b32.xlu0 %v6797, 40
    %v6868 = vpop.permute.xlu0 %6867
    %6869 = vrot.lane.b32.xlu0 %v6798, 40
    %v6870 = vpop.permute.xlu0 %6869
    %6871 = vrot.lane.b32.xlu0 %v6799, 40
    %v6872 = vpop.permute.xlu0 %6871
    %6873 = vrot.lane.b32.xlu0 %v6800, 40
    %v6874 = vpop.permute.xlu0 %6873
    %6875 = vrot.lane.b32.xlu0 %v6801, 40
    %v6876 = vpop.permute.xlu0 %6875
    %6877 = vrot.lane.b32.xlu0 %v6802, 40
    %v6878 = vpop.permute.xlu0 %6877
    %6879 = vrot.lane.b32.xlu0 %v6803, 40
    %v6880 = vpop.permute.xlu0 %6879
    %6881 = vrot.lane.b32.xlu0 %v6804, 40
    %v6882 = vpop.permute.xlu0 %6881
    %6883 = vrot.lane.b32.xlu0 %v6805, 40
    %v6884 = vpop.permute.xlu0 %6883
    %6885 = vrot.lane.b32.xlu0 %v6806, 40
    %v6886 = vpop.permute.xlu0 %6885
    %6887 = vrot.lane.b32.xlu0 %v6807, 40
    %v6888 = vpop.permute.xlu0 %6887
    %6889 = vrot.lane.b32.xlu0 %v6808, 40
    %v6890 = vpop.permute.xlu0 %6889
    %6891 = vrot.lane.b32.xlu0 %v6809, 40
    %v6892 = vpop.permute.xlu0 %6891
    %6893 = vrot.lane.b32.xlu0 %v6810, 40
    %v6894 = vpop.permute.xlu0 %6893
    %6895 = vrot.lane.b32.xlu0 %v6811, 40
    %v6896 = vpop.permute.xlu0 %6895
    %6897 = vrot.lane.b32.xlu0 %v6812, 40
    %v6898 = vpop.permute.xlu0 %6897
    %6899 = vrot.lane.b32.xlu0 %v6813, 40
    %v6900 = vpop.permute.xlu0 %6899
    %6901 = vrot.lane.b32.xlu0 %v6814, 40
    %v6902 = vpop.permute.xlu0 %6901
    %6903 = vrot.lane.b32.xlu0 %v6815, 40
    %v6904 = vpop.permute.xlu0 %6903
    %6905 = vrot.lane.b32.xlu0 %v6816, 40
    %v6906 = vpop.permute.xlu0 %6905
    %6907 = vrot.lane.b32.xlu0 %v6817, 40
    %v6908 = vpop.permute.xlu0 %6907
    %6909 = vrot.lane.b32.xlu0 %v6818, 40
    %v6910 = vpop.permute.xlu0 %6909
    %6911 = vrot.lane.b32.xlu0 %v6819, 40
    %v6912 = vpop.permute.xlu0 %6911
    %6913 = vrot.lane.b32.xlu0 %v6820, 40
    %v6914 = vpop.permute.xlu0 %6913
    %6915 = vrot.lane.b32.xlu0 %v6821, 40
    %v6916 = vpop.permute.xlu0 %6915
    %6917 = vrot.lane.b32.xlu0 %v6822, 40
    %v6918 = vpop.permute.xlu0 %6917
    %6951 = vst.msk [vmem:[#allocation5 + $0x100] sm:$0xff] %vm5346, %v6856
    %6952 = vst.msk [vmem:[#allocation5 + $0x108] sm:$0xff] %vm5346, %v6858
    %6953 = vst.msk [vmem:[#allocation5 + $0x110] sm:$0xff] %vm5346, %v6860
    %6954 = vst.msk [vmem:[#allocation5 + $0x118] sm:$0xff] %vm5346, %v6862
    %6955 = vst.msk [vmem:[#allocation5 + $0x120] sm:$0xff] %vm5346, %v6864
    %6956 = vst.msk [vmem:[#allocation5 + $0x128] sm:$0xff] %vm5346, %v6866
    %6957 = vst.msk [vmem:[#allocation5 + $0x130] sm:$0xff] %vm5346, %v6868
    %6958 = vst.msk [vmem:[#allocation5 + $0x138] sm:$0xff] %vm5346, %v6870
    %6959 = vst.msk [vmem:[#allocation5 + $0x140] sm:$0xff] %vm5346, %v6872
    %6960 = vst.msk [vmem:[#allocation5 + $0x148] sm:$0xff] %vm5346, %v6874
    %6961 = vst.msk [vmem:[#allocation5 + $0x150] sm:$0xff] %vm5346, %v6876
    %6962 = vst.msk [vmem:[#allocation5 + $0x158] sm:$0xff] %vm5346, %v6878
    %6963 = vst.msk [vmem:[#allocation5 + $0x160] sm:$0xff] %vm5346, %v6880
    %6964 = vst.msk [vmem:[#allocation5 + $0x168] sm:$0xff] %vm5346, %v6882
    %6965 = vst.msk [vmem:[#allocation5 + $0x170] sm:$0xff] %vm5346, %v6884
    %6966 = vst.msk [vmem:[#allocation5 + $0x178] sm:$0xff] %vm5346, %v6886
    %6967 = vst.msk [vmem:[#allocation5 + $0x180] sm:$0xff] %vm5346, %v6888
    %6968 = vst.msk [vmem:[#allocation5 + $0x188] sm:$0xff] %vm5346, %v6890
    %6969 = vst.msk [vmem:[#allocation5 + $0x190] sm:$0xff] %vm5346, %v6892
    %6970 = vst.msk [vmem:[#allocation5 + $0x198] sm:$0xff] %vm5346, %v6894
    %6971 = vst.msk [vmem:[#allocation5 + $0x1a0] sm:$0xff] %vm5346, %v6896
    %6972 = vst.msk [vmem:[#allocation5 + $0x1a8] sm:$0xff] %vm5346, %v6898
    %6973 = vst.msk [vmem:[#allocation5 + $0x1b0] sm:$0xff] %vm5346, %v6900
    %6974 = vst.msk [vmem:[#allocation5 + $0x1b8] sm:$0xff] %vm5346, %v6902
    %6975 = vst.msk [vmem:[#allocation5 + $0x1c0] sm:$0xff] %vm5346, %v6904
    %6976 = vst.msk [vmem:[#allocation5 + $0x1c8] sm:$0xff] %vm5346, %v6906
    %6977 = vst.msk [vmem:[#allocation5 + $0x1d0] sm:$0xff] %vm5346, %v6908
    %6978 = vst.msk [vmem:[#allocation5 + $0x1d8] sm:$0xff] %vm5346, %v6910
    %6979 = vst.msk [vmem:[#allocation5 + $0x1e0] sm:$0xff] %vm5346, %v6912
    %6980 = vst.msk [vmem:[#allocation5 + $0x1e8] sm:$0xff] %vm5346, %v6914
    %6981 = vst.msk [vmem:[#allocation5 + $0x1f0] sm:$0xff] %vm5346, %v6916
    %6982 = vst.msk [vmem:[#allocation5 + $0x1f8] sm:$0xff] %vm5346, %v6918
    %s6983 = scalar_lea.vmem [#allocation4], 480
    %v6984 = vld [vmem:[%s6983] sm:$0xff]
    %v6985 = vld [vmem:[%s6983 + $0x8] sm:$0xff]
    %v6986 = vld [vmem:[%s6983 + $0x18] sm:$0xff]
    %v6987 = vld [vmem:[%s6983 + $0x20] sm:$0xff]
    %v6988 = vld [vmem:[%s6983 + $0x30] sm:$0xff]
    %v6989 = vld [vmem:[%s6983 + $0x38] sm:$0xff]
    %v6990 = vld [vmem:[%s6983 + $0x48] sm:$0xff]
    %v6991 = vld [vmem:[%s6983 + $0x50] sm:$0xff]
    %v6992 = vld [vmem:[%s6983 + $0x60] sm:$0xff]
    %v6993 = vld [vmem:[%s6983 + $0x68] sm:$0xff]
    %v6994 = vld [vmem:[%s6983 + $0x78] sm:$0xff]
    %v6995 = vld [vmem:[%s6983 + $0x80] sm:$0xff]
    %v6996 = vld [vmem:[%s6983 + $0x90] sm:$0xff]
    %v6997 = vld [vmem:[%s6983 + $0x98] sm:$0xff]
    %v6998 = vld [vmem:[%s6983 + $0xa8] sm:$0xff]
    %v6999 = vld [vmem:[%s6983 + $0xb0] sm:$0xff]
    %v7000 = vld [vmem:[%s6983 + $0xc0] sm:$0xff]
    %v7001 = vld [vmem:[%s6983 + $0xc8] sm:$0xff]
    %v7002 = vld [vmem:[%s6983 + $0xd8] sm:$0xff]
    %v7003 = vld [vmem:[%s6983 + $0xe0] sm:$0xff]
    %v7004 = vld [vmem:[%s6983 + $0xf0] sm:$0xff]
    %v7005 = vld [vmem:[%s6983 + $0xf8] sm:$0xff]
    %v7006 = vld [vmem:[%s6983 + $0x108] sm:$0xff]
    %v7007 = vld [vmem:[%s6983 + $0x110] sm:$0xff]
    %v7008 = vld [vmem:[%s6983 + $0x120] sm:$0xff]
    %v7009 = vld [vmem:[%s6983 + $0x128] sm:$0xff]
    %v7010 = vld [vmem:[%s6983 + $0x138] sm:$0xff]
    %v7011 = vld [vmem:[%s6983 + $0x140] sm:$0xff]
    %v7012 = vld [vmem:[%s6983 + $0x150] sm:$0xff]
    %v7013 = vld [vmem:[%s6983 + $0x158] sm:$0xff]
    %v7014 = vld [vmem:[%s6983 + $0x168] sm:$0xff]
    %v7015 = vld [vmem:[%s6983 + $0x170] sm:$0xff]
    %7048 = vrot.lane.b32.xlu0 %v6984, 48
    %v7049 = vpop.permute.xlu0 %7048
    %7050 = vrot.lane.b32.xlu0 %v6985, 48
    %v7051 = vpop.permute.xlu0 %7050
    %7052 = vrot.lane.b32.xlu0 %v6986, 48
    %v7053 = vpop.permute.xlu0 %7052
    %7054 = vrot.lane.b32.xlu0 %v6987, 48
    %v7055 = vpop.permute.xlu0 %7054
    %7056 = vrot.lane.b32.xlu0 %v6988, 48
    %v7057 = vpop.permute.xlu0 %7056
    %7058 = vrot.lane.b32.xlu0 %v6989, 48
    %v7059 = vpop.permute.xlu0 %7058
    %7060 = vrot.lane.b32.xlu0 %v6990, 48
    %v7061 = vpop.permute.xlu0 %7060
    %7062 = vrot.lane.b32.xlu0 %v6991, 48
    %v7063 = vpop.permute.xlu0 %7062
    %7064 = vrot.lane.b32.xlu0 %v6992, 48
    %v7065 = vpop.permute.xlu0 %7064
    %7066 = vrot.lane.b32.xlu0 %v6993, 48
    %v7067 = vpop.permute.xlu0 %7066
    %7068 = vrot.lane.b32.xlu0 %v6994, 48
    %v7069 = vpop.permute.xlu0 %7068
    %7070 = vrot.lane.b32.xlu0 %v6995, 48
    %v7071 = vpop.permute.xlu0 %7070
    %7072 = vrot.lane.b32.xlu0 %v6996, 48
    %v7073 = vpop.permute.xlu0 %7072
    %7074 = vrot.lane.b32.xlu0 %v6997, 48
    %v7075 = vpop.permute.xlu0 %7074
    %7076 = vrot.lane.b32.xlu0 %v6998, 48
    %v7077 = vpop.permute.xlu0 %7076
    %7078 = vrot.lane.b32.xlu0 %v6999, 48
    %v7079 = vpop.permute.xlu0 %7078
    %7080 = vrot.lane.b32.xlu0 %v7000, 48
    %v7081 = vpop.permute.xlu0 %7080
    %7082 = vrot.lane.b32.xlu0 %v7001, 48
    %v7083 = vpop.permute.xlu0 %7082
    %7084 = vrot.lane.b32.xlu0 %v7002, 48
    %v7085 = vpop.permute.xlu0 %7084
    %7086 = vrot.lane.b32.xlu0 %v7003, 48
    %v7087 = vpop.permute.xlu0 %7086
    %7088 = vrot.lane.b32.xlu0 %v7004, 48
    %v7089 = vpop.permute.xlu0 %7088
    %7090 = vrot.lane.b32.xlu0 %v7005, 48
    %v7091 = vpop.permute.xlu0 %7090
    %7092 = vrot.lane.b32.xlu0 %v7006, 48
    %v7093 = vpop.permute.xlu0 %7092
    %7094 = vrot.lane.b32.xlu0 %v7007, 48
    %v7095 = vpop.permute.xlu0 %7094
    %7096 = vrot.lane.b32.xlu0 %v7008, 48
    %v7097 = vpop.permute.xlu0 %7096
    %7098 = vrot.lane.b32.xlu0 %v7009, 48
    %v7099 = vpop.permute.xlu0 %7098
    %7100 = vrot.lane.b32.xlu0 %v7010, 48
    %v7101 = vpop.permute.xlu0 %7100
    %7102 = vrot.lane.b32.xlu0 %v7011, 48
    %v7103 = vpop.permute.xlu0 %7102
    %7104 = vrot.lane.b32.xlu0 %v7012, 48
    %v7105 = vpop.permute.xlu0 %7104
    %7106 = vrot.lane.b32.xlu0 %v7013, 48
    %v7107 = vpop.permute.xlu0 %7106
    %7108 = vrot.lane.b32.xlu0 %v7014, 48
    %v7109 = vpop.permute.xlu0 %7108
    %7110 = vrot.lane.b32.xlu0 %v7015, 48
    %v7111 = vpop.permute.xlu0 %7110
    %7144 = vst.msk [vmem:[#allocation5 + $0x100] sm:$0xff] %vm5540, %v7049
    %7145 = vst.msk [vmem:[#allocation5 + $0x108] sm:$0xff] %vm5540, %v7051
    %7146 = vst.msk [vmem:[#allocation5 + $0x110] sm:$0xff] %vm5540, %v7053
    %7147 = vst.msk [vmem:[#allocation5 + $0x118] sm:$0xff] %vm5540, %v7055
    %7148 = vst.msk [vmem:[#allocation5 + $0x120] sm:$0xff] %vm5540, %v7057
    %7149 = vst.msk [vmem:[#allocation5 + $0x128] sm:$0xff] %vm5540, %v7059
    %7150 = vst.msk [vmem:[#allocation5 + $0x130] sm:$0xff] %vm5540, %v7061
    %7151 = vst.msk [vmem:[#allocation5 + $0x138] sm:$0xff] %vm5540, %v7063
    %7152 = vst.msk [vmem:[#allocation5 + $0x140] sm:$0xff] %vm5540, %v7065
    %7153 = vst.msk [vmem:[#allocation5 + $0x148] sm:$0xff] %vm5540, %v7067
    %7154 = vst.msk [vmem:[#allocation5 + $0x150] sm:$0xff] %vm5540, %v7069
    %7155 = vst.msk [vmem:[#allocation5 + $0x158] sm:$0xff] %vm5540, %v7071
    %7156 = vst.msk [vmem:[#allocation5 + $0x160] sm:$0xff] %vm5540, %v7073
    %7157 = vst.msk [vmem:[#allocation5 + $0x168] sm:$0xff] %vm5540, %v7075
    %7158 = vst.msk [vmem:[#allocation5 + $0x170] sm:$0xff] %vm5540, %v7077
    %7159 = vst.msk [vmem:[#allocation5 + $0x178] sm:$0xff] %vm5540, %v7079
    %7160 = vst.msk [vmem:[#allocation5 + $0x180] sm:$0xff] %vm5540, %v7081
    %7161 = vst.msk [vmem:[#allocation5 + $0x188] sm:$0xff] %vm5540, %v7083
    %7162 = vst.msk [vmem:[#allocation5 + $0x190] sm:$0xff] %vm5540, %v7085
    %7163 = vst.msk [vmem:[#allocation5 + $0x198] sm:$0xff] %vm5540, %v7087
    %7164 = vst.msk [vmem:[#allocation5 + $0x1a0] sm:$0xff] %vm5540, %v7089
    %7165 = vst.msk [vmem:[#allocation5 + $0x1a8] sm:$0xff] %vm5540, %v7091
    %7166 = vst.msk [vmem:[#allocation5 + $0x1b0] sm:$0xff] %vm5540, %v7093
    %7167 = vst.msk [vmem:[#allocation5 + $0x1b8] sm:$0xff] %vm5540, %v7095
    %7168 = vst.msk [vmem:[#allocation5 + $0x1c0] sm:$0xff] %vm5540, %v7097
    %7169 = vst.msk [vmem:[#allocation5 + $0x1c8] sm:$0xff] %vm5540, %v7099
    %7170 = vst.msk [vmem:[#allocation5 + $0x1d0] sm:$0xff] %vm5540, %v7101
    %7171 = vst.msk [vmem:[#allocation5 + $0x1d8] sm:$0xff] %vm5540, %v7103
    %7172 = vst.msk [vmem:[#allocation5 + $0x1e0] sm:$0xff] %vm5540, %v7105
    %7173 = vst.msk [vmem:[#allocation5 + $0x1e8] sm:$0xff] %vm5540, %v7107
    %7174 = vst.msk [vmem:[#allocation5 + $0x1f0] sm:$0xff] %vm5540, %v7109
    %7175 = vst.msk [vmem:[#allocation5 + $0x1f8] sm:$0xff] %vm5540, %v7111
    %v7176 = vld [vmem:[%s6983 + $0x1] sm:$0xff]
    %v7177 = vld [vmem:[%s6983 + $0x9] sm:$0xff]
    %v7178 = vld [vmem:[%s6983 + $0x19] sm:$0xff]
    %v7179 = vld [vmem:[%s6983 + $0x21] sm:$0xff]
    %v7180 = vld [vmem:[%s6983 + $0x31] sm:$0xff]
    %v7181 = vld [vmem:[%s6983 + $0x39] sm:$0xff]
    %v7182 = vld [vmem:[%s6983 + $0x49] sm:$0xff]
    %v7183 = vld [vmem:[%s6983 + $0x51] sm:$0xff]
    %v7184 = vld [vmem:[%s6983 + $0x61] sm:$0xff]
    %v7185 = vld [vmem:[%s6983 + $0x69] sm:$0xff]
    %v7186 = vld [vmem:[%s6983 + $0x79] sm:$0xff]
    %v7187 = vld [vmem:[%s6983 + $0x81] sm:$0xff]
    %v7188 = vld [vmem:[%s6983 + $0x91] sm:$0xff]
    %v7189 = vld [vmem:[%s6983 + $0x99] sm:$0xff]
    %v7190 = vld [vmem:[%s6983 + $0xa9] sm:$0xff]
    %v7191 = vld [vmem:[%s6983 + $0xb1] sm:$0xff]
    %v7192 = vld [vmem:[%s6983 + $0xc1] sm:$0xff]
    %v7193 = vld [vmem:[%s6983 + $0xc9] sm:$0xff]
    %v7194 = vld [vmem:[%s6983 + $0xd9] sm:$0xff]
    %v7195 = vld [vmem:[%s6983 + $0xe1] sm:$0xff]
    %v7196 = vld [vmem:[%s6983 + $0xf1] sm:$0xff]
    %v7197 = vld [vmem:[%s6983 + $0xf9] sm:$0xff]
    %v7198 = vld [vmem:[%s6983 + $0x109] sm:$0xff]
    %v7199 = vld [vmem:[%s6983 + $0x111] sm:$0xff]
    %v7200 = vld [vmem:[%s6983 + $0x121] sm:$0xff]
    %v7201 = vld [vmem:[%s6983 + $0x129] sm:$0xff]
    %v7202 = vld [vmem:[%s6983 + $0x139] sm:$0xff]
    %v7203 = vld [vmem:[%s6983 + $0x141] sm:$0xff]
    %v7204 = vld [vmem:[%s6983 + $0x151] sm:$0xff]
    %v7205 = vld [vmem:[%s6983 + $0x159] sm:$0xff]
    %v7206 = vld [vmem:[%s6983 + $0x169] sm:$0xff]
    %v7207 = vld [vmem:[%s6983 + $0x171] sm:$0xff]
    %7240 = vrot.lane.b32.xlu0 %v7176, 56
    %v7241 = vpop.permute.xlu0 %7240
    %7242 = vrot.lane.b32.xlu0 %v7177, 56
    %v7243 = vpop.permute.xlu0 %7242
    %7244 = vrot.lane.b32.xlu0 %v7178, 56
    %v7245 = vpop.permute.xlu0 %7244
    %7246 = vrot.lane.b32.xlu0 %v7179, 56
    %v7247 = vpop.permute.xlu0 %7246
    %7248 = vrot.lane.b32.xlu0 %v7180, 56
    %v7249 = vpop.permute.xlu0 %7248
    %7250 = vrot.lane.b32.xlu0 %v7181, 56
    %v7251 = vpop.permute.xlu0 %7250
    %7252 = vrot.lane.b32.xlu0 %v7182, 56
    %v7253 = vpop.permute.xlu0 %7252
    %7254 = vrot.lane.b32.xlu0 %v7183, 56
    %v7255 = vpop.permute.xlu0 %7254
    %7256 = vrot.lane.b32.xlu0 %v7184, 56
    %v7257 = vpop.permute.xlu0 %7256
    %7258 = vrot.lane.b32.xlu0 %v7185, 56
    %v7259 = vpop.permute.xlu0 %7258
    %7260 = vrot.lane.b32.xlu0 %v7186, 56
    %v7261 = vpop.permute.xlu0 %7260
    %7262 = vrot.lane.b32.xlu0 %v7187, 56
    %v7263 = vpop.permute.xlu0 %7262
    %7264 = vrot.lane.b32.xlu0 %v7188, 56
    %v7265 = vpop.permute.xlu0 %7264
    %7266 = vrot.lane.b32.xlu0 %v7189, 56
    %v7267 = vpop.permute.xlu0 %7266
    %7268 = vrot.lane.b32.xlu0 %v7190, 56
    %v7269 = vpop.permute.xlu0 %7268
    %7270 = vrot.lane.b32.xlu0 %v7191, 56
    %v7271 = vpop.permute.xlu0 %7270
    %7272 = vrot.lane.b32.xlu0 %v7192, 56
    %v7273 = vpop.permute.xlu0 %7272
    %7274 = vrot.lane.b32.xlu0 %v7193, 56
    %v7275 = vpop.permute.xlu0 %7274
    %7276 = vrot.lane.b32.xlu0 %v7194, 56
    %v7277 = vpop.permute.xlu0 %7276
    %7278 = vrot.lane.b32.xlu0 %v7195, 56
    %v7279 = vpop.permute.xlu0 %7278
    %7280 = vrot.lane.b32.xlu0 %v7196, 56
    %v7281 = vpop.permute.xlu0 %7280
    %7282 = vrot.lane.b32.xlu0 %v7197, 56
    %v7283 = vpop.permute.xlu0 %7282
    %7284 = vrot.lane.b32.xlu0 %v7198, 56
    %v7285 = vpop.permute.xlu0 %7284
    %7286 = vrot.lane.b32.xlu0 %v7199, 56
    %v7287 = vpop.permute.xlu0 %7286
    %7288 = vrot.lane.b32.xlu0 %v7200, 56
    %v7289 = vpop.permute.xlu0 %7288
    %7290 = vrot.lane.b32.xlu0 %v7201, 56
    %v7291 = vpop.permute.xlu0 %7290
    %7292 = vrot.lane.b32.xlu0 %v7202, 56
    %v7293 = vpop.permute.xlu0 %7292
    %7294 = vrot.lane.b32.xlu0 %v7203, 56
    %v7295 = vpop.permute.xlu0 %7294
    %7296 = vrot.lane.b32.xlu0 %v7204, 56
    %v7297 = vpop.permute.xlu0 %7296
    %7298 = vrot.lane.b32.xlu0 %v7205, 56
    %v7299 = vpop.permute.xlu0 %7298
    %7300 = vrot.lane.b32.xlu0 %v7206, 56
    %v7301 = vpop.permute.xlu0 %7300
    %7302 = vrot.lane.b32.xlu0 %v7207, 56
    %v7303 = vpop.permute.xlu0 %7302
    %7336 = vst.msk [vmem:[#allocation5 + $0x100] sm:$0xff] %vm5733, %v7241
    %7337 = vst.msk [vmem:[#allocation5 + $0x108] sm:$0xff] %vm5733, %v7243
    %7338 = vst.msk [vmem:[#allocation5 + $0x110] sm:$0xff] %vm5733, %v7245
    %7339 = vst.msk [vmem:[#allocation5 + $0x118] sm:$0xff] %vm5733, %v7247
    %7340 = vst.msk [vmem:[#allocation5 + $0x120] sm:$0xff] %vm5733, %v7249
    %7341 = vst.msk [vmem:[#allocation5 + $0x128] sm:$0xff] %vm5733, %v7251
    %7342 = vst.msk [vmem:[#allocation5 + $0x130] sm:$0xff] %vm5733, %v7253
    %7343 = vst.msk [vmem:[#allocation5 + $0x138] sm:$0xff] %vm5733, %v7255
    %7344 = vst.msk [vmem:[#allocation5 + $0x140] sm:$0xff] %vm5733, %v7257
    %7345 = vst.msk [vmem:[#allocation5 + $0x148] sm:$0xff] %vm5733, %v7259
    %7346 = vst.msk [vmem:[#allocation5 + $0x150] sm:$0xff] %vm5733, %v7261
    %7347 = vst.msk [vmem:[#allocation5 + $0x158] sm:$0xff] %vm5733, %v7263
    %7348 = vst.msk [vmem:[#allocation5 + $0x160] sm:$0xff] %vm5733, %v7265
    %7349 = vst.msk [vmem:[#allocation5 + $0x168] sm:$0xff] %vm5733, %v7267
    %7350 = vst.msk [vmem:[#allocation5 + $0x170] sm:$0xff] %vm5733, %v7269
    %7351 = vst.msk [vmem:[#allocation5 + $0x178] sm:$0xff] %vm5733, %v7271
    %7352 = vst.msk [vmem:[#allocation5 + $0x180] sm:$0xff] %vm5733, %v7273
    %7353 = vst.msk [vmem:[#allocation5 + $0x188] sm:$0xff] %vm5733, %v7275
    %7354 = vst.msk [vmem:[#allocation5 + $0x190] sm:$0xff] %vm5733, %v7277
    %7355 = vst.msk [vmem:[#allocation5 + $0x198] sm:$0xff] %vm5733, %v7279
    %7356 = vst.msk [vmem:[#allocation5 + $0x1a0] sm:$0xff] %vm5733, %v7281
    %7357 = vst.msk [vmem:[#allocation5 + $0x1a8] sm:$0xff] %vm5733, %v7283
    %7358 = vst.msk [vmem:[#allocation5 + $0x1b0] sm:$0xff] %vm5733, %v7285
    %7359 = vst.msk [vmem:[#allocation5 + $0x1b8] sm:$0xff] %vm5733, %v7287
    %7360 = vst.msk [vmem:[#allocation5 + $0x1c0] sm:$0xff] %vm5733, %v7289
    %7361 = vst.msk [vmem:[#allocation5 + $0x1c8] sm:$0xff] %vm5733, %v7291
    %7362 = vst.msk [vmem:[#allocation5 + $0x1d0] sm:$0xff] %vm5733, %v7293
    %7363 = vst.msk [vmem:[#allocation5 + $0x1d8] sm:$0xff] %vm5733, %v7295
    %7364 = vst.msk [vmem:[#allocation5 + $0x1e0] sm:$0xff] %vm5733, %v7297
    %7365 = vst.msk [vmem:[#allocation5 + $0x1e8] sm:$0xff] %vm5733, %v7299
    %7366 = vst.msk [vmem:[#allocation5 + $0x1f0] sm:$0xff] %vm5733, %v7301
    %7367 = vst.msk [vmem:[#allocation5 + $0x1f8] sm:$0xff] %vm5733, %v7303
    %v7368 = vld [vmem:[%s6983 + $0x2] sm:$0xff]
    %v7369 = vld [vmem:[%s6983 + $0xa] sm:$0xff]
    %v7370 = vld [vmem:[%s6983 + $0x1a] sm:$0xff]
    %v7371 = vld [vmem:[%s6983 + $0x22] sm:$0xff]
    %v7372 = vld [vmem:[%s6983 + $0x32] sm:$0xff]
    %v7373 = vld [vmem:[%s6983 + $0x3a] sm:$0xff]
    %v7374 = vld [vmem:[%s6983 + $0x4a] sm:$0xff]
    %v7375 = vld [vmem:[%s6983 + $0x52] sm:$0xff]
    %v7376 = vld [vmem:[%s6983 + $0x62] sm:$0xff]
    %v7377 = vld [vmem:[%s6983 + $0x6a] sm:$0xff]
    %v7378 = vld [vmem:[%s6983 + $0x7a] sm:$0xff]
    %v7379 = vld [vmem:[%s6983 + $0x82] sm:$0xff]
    %v7380 = vld [vmem:[%s6983 + $0x92] sm:$0xff]
    %v7381 = vld [vmem:[%s6983 + $0x9a] sm:$0xff]
    %v7382 = vld [vmem:[%s6983 + $0xaa] sm:$0xff]
    %v7383 = vld [vmem:[%s6983 + $0xb2] sm:$0xff]
    %v7384 = vld [vmem:[%s6983 + $0xc2] sm:$0xff]
    %v7385 = vld [vmem:[%s6983 + $0xca] sm:$0xff]
    %v7386 = vld [vmem:[%s6983 + $0xda] sm:$0xff]
    %v7387 = vld [vmem:[%s6983 + $0xe2] sm:$0xff]
    %v7388 = vld [vmem:[%s6983 + $0xf2] sm:$0xff]
    %v7389 = vld [vmem:[%s6983 + $0xfa] sm:$0xff]
    %v7390 = vld [vmem:[%s6983 + $0x10a] sm:$0xff]
    %v7391 = vld [vmem:[%s6983 + $0x112] sm:$0xff]
    %v7392 = vld [vmem:[%s6983 + $0x122] sm:$0xff]
    %v7393 = vld [vmem:[%s6983 + $0x12a] sm:$0xff]
    %v7394 = vld [vmem:[%s6983 + $0x13a] sm:$0xff]
    %v7395 = vld [vmem:[%s6983 + $0x142] sm:$0xff]
    %v7396 = vld [vmem:[%s6983 + $0x152] sm:$0xff]
    %v7397 = vld [vmem:[%s6983 + $0x15a] sm:$0xff]
    %v7398 = vld [vmem:[%s6983 + $0x16a] sm:$0xff]
    %v7399 = vld [vmem:[%s6983 + $0x172] sm:$0xff]
    %7432 = vrot.lane.b32.xlu0 %v7368, 64
    %v7433 = vpop.permute.xlu0 %7432
    %7434 = vrot.lane.b32.xlu0 %v7369, 64
    %v7435 = vpop.permute.xlu0 %7434
    %7436 = vrot.lane.b32.xlu0 %v7370, 64
    %v7437 = vpop.permute.xlu0 %7436
    %7438 = vrot.lane.b32.xlu0 %v7371, 64
    %v7439 = vpop.permute.xlu0 %7438
    %7440 = vrot.lane.b32.xlu0 %v7372, 64
    %v7441 = vpop.permute.xlu0 %7440
    %7442 = vrot.lane.b32.xlu0 %v7373, 64
    %v7443 = vpop.permute.xlu0 %7442
    %7444 = vrot.lane.b32.xlu0 %v7374, 64
    %v7445 = vpop.permute.xlu0 %7444
    %7446 = vrot.lane.b32.xlu0 %v7375, 64
    %v7447 = vpop.permute.xlu0 %7446
    %7448 = vrot.lane.b32.xlu0 %v7376, 64
    %v7449 = vpop.permute.xlu0 %7448
    %7450 = vrot.lane.b32.xlu0 %v7377, 64
    %v7451 = vpop.permute.xlu0 %7450
    %7452 = vrot.lane.b32.xlu0 %v7378, 64
    %v7453 = vpop.permute.xlu0 %7452
    %7454 = vrot.lane.b32.xlu0 %v7379, 64
    %v7455 = vpop.permute.xlu0 %7454
    %7456 = vrot.lane.b32.xlu0 %v7380, 64
    %v7457 = vpop.permute.xlu0 %7456
    %7458 = vrot.lane.b32.xlu0 %v7381, 64
    %v7459 = vpop.permute.xlu0 %7458
    %7460 = vrot.lane.b32.xlu0 %v7382, 64
    %v7461 = vpop.permute.xlu0 %7460
    %7462 = vrot.lane.b32.xlu0 %v7383, 64
    %v7463 = vpop.permute.xlu0 %7462
    %7464 = vrot.lane.b32.xlu0 %v7384, 64
    %v7465 = vpop.permute.xlu0 %7464
    %7466 = vrot.lane.b32.xlu0 %v7385, 64
    %v7467 = vpop.permute.xlu0 %7466
    %7468 = vrot.lane.b32.xlu0 %v7386, 64
    %v7469 = vpop.permute.xlu0 %7468
    %7470 = vrot.lane.b32.xlu0 %v7387, 64
    %v7471 = vpop.permute.xlu0 %7470
    %7472 = vrot.lane.b32.xlu0 %v7388, 64
    %v7473 = vpop.permute.xlu0 %7472
    %7474 = vrot.lane.b32.xlu0 %v7389, 64
    %v7475 = vpop.permute.xlu0 %7474
    %7476 = vrot.lane.b32.xlu0 %v7390, 64
    %v7477 = vpop.permute.xlu0 %7476
    %7478 = vrot.lane.b32.xlu0 %v7391, 64
    %v7479 = vpop.permute.xlu0 %7478
    %7480 = vrot.lane.b32.xlu0 %v7392, 64
    %v7481 = vpop.permute.xlu0 %7480
    %7482 = vrot.lane.b32.xlu0 %v7393, 64
    %v7483 = vpop.permute.xlu0 %7482
    %7484 = vrot.lane.b32.xlu0 %v7394, 64
    %v7485 = vpop.permute.xlu0 %7484
    %7486 = vrot.lane.b32.xlu0 %v7395, 64
    %v7487 = vpop.permute.xlu0 %7486
    %7488 = vrot.lane.b32.xlu0 %v7396, 64
    %v7489 = vpop.permute.xlu0 %7488
    %7490 = vrot.lane.b32.xlu0 %v7397, 64
    %v7491 = vpop.permute.xlu0 %7490
    %7492 = vrot.lane.b32.xlu0 %v7398, 64
    %v7493 = vpop.permute.xlu0 %7492
    %7494 = vrot.lane.b32.xlu0 %v7399, 64
    %v7495 = vpop.permute.xlu0 %7494
    %7528 = vst.msk [vmem:[#allocation5 + $0x100] sm:$0xff] %vm5926, %v7433
    %7529 = vst.msk [vmem:[#allocation5 + $0x108] sm:$0xff] %vm5926, %v7435
    %7530 = vst.msk [vmem:[#allocation5 + $0x110] sm:$0xff] %vm5926, %v7437
    %7531 = vst.msk [vmem:[#allocation5 + $0x118] sm:$0xff] %vm5926, %v7439
    %7532 = vst.msk [vmem:[#allocation5 + $0x120] sm:$0xff] %vm5926, %v7441
    %7533 = vst.msk [vmem:[#allocation5 + $0x128] sm:$0xff] %vm5926, %v7443
    %7534 = vst.msk [vmem:[#allocation5 + $0x130] sm:$0xff] %vm5926, %v7445
    %7535 = vst.msk [vmem:[#allocation5 + $0x138] sm:$0xff] %vm5926, %v7447
    %7536 = vst.msk [vmem:[#allocation5 + $0x140] sm:$0xff] %vm5926, %v7449
    %7537 = vst.msk [vmem:[#allocation5 + $0x148] sm:$0xff] %vm5926, %v7451
    %7538 = vst.msk [vmem:[#allocation5 + $0x150] sm:$0xff] %vm5926, %v7453
    %7539 = vst.msk [vmem:[#allocation5 + $0x158] sm:$0xff] %vm5926, %v7455
    %7540 = vst.msk [vmem:[#allocation5 + $0x160] sm:$0xff] %vm5926, %v7457
    %7541 = vst.msk [vmem:[#allocation5 + $0x168] sm:$0xff] %vm5926, %v7459
    %7542 = vst.msk [vmem:[#allocation5 + $0x170] sm:$0xff] %vm5926, %v7461
    %7543 = vst.msk [vmem:[#allocation5 + $0x178] sm:$0xff] %vm5926, %v7463
    %7544 = vst.msk [vmem:[#allocation5 + $0x180] sm:$0xff] %vm5926, %v7465
    %7545 = vst.msk [vmem:[#allocation5 + $0x188] sm:$0xff] %vm5926, %v7467
    %7546 = vst.msk [vmem:[#allocation5 + $0x190] sm:$0xff] %vm5926, %v7469
    %7547 = vst.msk [vmem:[#allocation5 + $0x198] sm:$0xff] %vm5926, %v7471
    %7548 = vst.msk [vmem:[#allocation5 + $0x1a0] sm:$0xff] %vm5926, %v7473
    %7549 = vst.msk [vmem:[#allocation5 + $0x1a8] sm:$0xff] %vm5926, %v7475
    %7550 = vst.msk [vmem:[#allocation5 + $0x1b0] sm:$0xff] %vm5926, %v7477
    %7551 = vst.msk [vmem:[#allocation5 + $0x1b8] sm:$0xff] %vm5926, %v7479
    %7552 = vst.msk [vmem:[#allocation5 + $0x1c0] sm:$0xff] %vm5926, %v7481
    %7553 = vst.msk [vmem:[#allocation5 + $0x1c8] sm:$0xff] %vm5926, %v7483
    %7554 = vst.msk [vmem:[#allocation5 + $0x1d0] sm:$0xff] %vm5926, %v7485
    %7555 = vst.msk [vmem:[#allocation5 + $0x1d8] sm:$0xff] %vm5926, %v7487
    %7556 = vst.msk [vmem:[#allocation5 + $0x1e0] sm:$0xff] %vm5926, %v7489
    %7557 = vst.msk [vmem:[#allocation5 + $0x1e8] sm:$0xff] %vm5926, %v7491
    %7558 = vst.msk [vmem:[#allocation5 + $0x1f0] sm:$0xff] %vm5926, %v7493
    %7559 = vst.msk [vmem:[#allocation5 + $0x1f8] sm:$0xff] %vm5926, %v7495
    %v7560 = vld [vmem:[#allocation5] sm:$0xff]
    %v7561 = vld [vmem:[#allocation5 + $0x8] sm:$0xff]
    %v7562 = vld [vmem:[#allocation5 + $0x10] sm:$0xff]
    %v7563 = vld [vmem:[#allocation5 + $0x18] sm:$0xff]
    %v7564 = vld [vmem:[#allocation5 + $0x20] sm:$0xff]
    %v7565 = vld [vmem:[#allocation5 + $0x28] sm:$0xff]
    %v7566 = vld [vmem:[#allocation5 + $0x30] sm:$0xff]
    %v7567 = vld [vmem:[#allocation5 + $0x38] sm:$0xff]
    %v7568 = vld [vmem:[#allocation5 + $0x40] sm:$0xff]
    %v7569 = vld [vmem:[#allocation5 + $0x48] sm:$0xff]
    %v7570 = vld [vmem:[#allocation5 + $0x50] sm:$0xff]
    %v7571 = vld [vmem:[#allocation5 + $0x58] sm:$0xff]
    %v7572 = vld [vmem:[#allocation5 + $0x60] sm:$0xff]
    %v7573 = vld [vmem:[#allocation5 + $0x68] sm:$0xff]
    %v7574 = vld [vmem:[#allocation5 + $0x70] sm:$0xff]
    %v7575 = vld [vmem:[#allocation5 + $0x78] sm:$0xff]
    %v7576 = vld [vmem:[#allocation5 + $0x80] sm:$0xff]
    %v7577 = vld [vmem:[#allocation5 + $0x88] sm:$0xff]
    %v7578 = vld [vmem:[#allocation5 + $0x90] sm:$0xff]
    %v7579 = vld [vmem:[#allocation5 + $0x98] sm:$0xff]
    %v7580 = vld [vmem:[#allocation5 + $0xa0] sm:$0xff]
    %v7581 = vld [vmem:[#allocation5 + $0xa8] sm:$0xff]
    %v7582 = vld [vmem:[#allocation5 + $0xb0] sm:$0xff]
    %v7583 = vld [vmem:[#allocation5 + $0xb8] sm:$0xff]
    %v7584 = vld [vmem:[#allocation5 + $0xc0] sm:$0xff]
    %v7585 = vld [vmem:[#allocation5 + $0xc8] sm:$0xff]
    %v7586 = vld [vmem:[#allocation5 + $0xd0] sm:$0xff]
    %v7587 = vld [vmem:[#allocation5 + $0xd8] sm:$0xff]
    %v7588 = vld [vmem:[#allocation5 + $0xe0] sm:$0xff]
    %v7589 = vld [vmem:[#allocation5 + $0xe8] sm:$0xff]
    %v7590 = vld [vmem:[#allocation5 + $0xf0] sm:$0xff]
    %v7591 = vld [vmem:[#allocation5 + $0xf8] sm:$0xff]
    %v7592 = vld [vmem:[#allocation5 + $0x100] sm:$0xff]
    %v7593 = vld [vmem:[#allocation5 + $0x108] sm:$0xff]
    %v7594 = vld [vmem:[#allocation5 + $0x110] sm:$0xff]
    %v7595 = vld [vmem:[#allocation5 + $0x118] sm:$0xff]
    %v7596 = vld [vmem:[#allocation5 + $0x120] sm:$0xff]
    %v7597 = vld [vmem:[#allocation5 + $0x128] sm:$0xff]
    %v7598 = vld [vmem:[#allocation5 + $0x130] sm:$0xff]
    %v7599 = vld [vmem:[#allocation5 + $0x138] sm:$0xff]
    %v7600 = vld [vmem:[#allocation5 + $0x140] sm:$0xff]
    %v7601 = vld [vmem:[#allocation5 + $0x148] sm:$0xff]
    %v7602 = vld [vmem:[#allocation5 + $0x150] sm:$0xff]
    %v7603 = vld [vmem:[#allocation5 + $0x158] sm:$0xff]
    %v7604 = vld [vmem:[#allocation5 + $0x160] sm:$0xff]
    %v7605 = vld [vmem:[#allocation5 + $0x168] sm:$0xff]
    %v7606 = vld [vmem:[#allocation5 + $0x170] sm:$0xff]
    %v7607 = vld [vmem:[#allocation5 + $0x178] sm:$0xff]
    %v7608 = vld [vmem:[#allocation5 + $0x180] sm:$0xff]
    %v7609 = vld [vmem:[#allocation5 + $0x188] sm:$0xff]
    %v7610 = vld [vmem:[#allocation5 + $0x190] sm:$0xff]
    %v7611 = vld [vmem:[#allocation5 + $0x198] sm:$0xff]
    %v7612 = vld [vmem:[#allocation5 + $0x1a0] sm:$0xff]
    %v7613 = vld [vmem:[#allocation5 + $0x1a8] sm:$0xff]
    %v7614 = vld [vmem:[#allocation5 + $0x1b0] sm:$0xff]
    %v7615 = vld [vmem:[#allocation5 + $0x1b8] sm:$0xff]
    %v7616 = vld [vmem:[#allocation5 + $0x1c0] sm:$0xff]
    %v7617 = vld [vmem:[#allocation5 + $0x1c8] sm:$0xff]
    %v7618 = vld [vmem:[#allocation5 + $0x1d0] sm:$0xff]
    %v7619 = vld [vmem:[#allocation5 + $0x1d8] sm:$0xff]
    %v7620 = vld [vmem:[#allocation5 + $0x1e0] sm:$0xff]
    %v7621 = vld [vmem:[#allocation5 + $0x1e8] sm:$0xff]
    %v7622 = vld [vmem:[#allocation5 + $0x1f0] sm:$0xff]
    %v7623 = vld [vmem:[#allocation5 + $0x1f8] sm:$0xff]
    %v7624 = vld [vmem:[%s3] sm:$0xff]
    %v7625 = vld [vmem:[%s3 + $0x8] sm:$0xff]
    %v7626 = vld [vmem:[%s3 + $0x10] sm:$0xff]
    %v7627 = vld [vmem:[%s3 + $0x18] sm:$0xff]
    %v7628 = vld [vmem:[%s3 + $0x20] sm:$0xff]
    %v7629 = vld [vmem:[%s3 + $0x28] sm:$0xff]
    %v7630 = vld [vmem:[%s3 + $0x30] sm:$0xff]
    %v7631 = vld [vmem:[%s3 + $0x38] sm:$0xff]
    %v7632 = vld [vmem:[%s3 + $0x40] sm:$0xff]
    %v7633 = vld [vmem:[#allocation10] sm:$0x1]
    %v7635 = vlaneseq
    %v7636 = vshrl.u32 %v7635, 7
    %v7637 = vsub.s32 0, %v7636
    %v7638 = vrot.slane %v7633, %v7637
    %vm7640 = vcmask 588800
    %v7642 = vsel %vm7640, %v7560, 0
    %v7645 = vsel %vm7640, %v7561, 0
    %v7648 = vsel %vm7640, %v7562, 0
    %v7651 = vsel %vm7640, %v7563, 0
    %v7654 = vsel %vm7640, %v7564, 0
    %v7657 = vsel %vm7640, %v7565, 0
    %v7660 = vsel %vm7640, %v7566, 0
    %v7663 = vsel %vm7640, %v7567, 0
    %v7666 = vsel %vm7640, %v7568, 0
    %v7669 = vsel %vm7640, %v7569, 0
    %v7672 = vsel %vm7640, %v7570, 0
    %v7675 = vsel %vm7640, %v7571, 0
    %v7678 = vsel %vm7640, %v7572, 0
    %v7681 = vsel %vm7640, %v7573, 0
    %v7684 = vsel %vm7640, %v7574, 0
    %v7687 = vsel %vm7640, %v7575, 0
    %v7690 = vsel %vm7640, %v7576, 0
    %v7693 = vsel %vm7640, %v7577, 0
    %v7696 = vsel %vm7640, %v7578, 0
    %v7699 = vsel %vm7640, %v7579, 0
    %v7702 = vsel %vm7640, %v7580, 0
    %v7705 = vsel %vm7640, %v7581, 0
    %v7708 = vsel %vm7640, %v7582, 0
    %v7711 = vsel %vm7640, %v7583, 0
    %v7714 = vsel %vm7640, %v7584, 0
    %v7717 = vsel %vm7640, %v7585, 0
    %v7720 = vsel %vm7640, %v7586, 0
    %v7723 = vsel %vm7640, %v7587, 0
    %v7726 = vsel %vm7640, %v7588, 0
    %v7729 = vsel %vm7640, %v7589, 0
    %v7732 = vsel %vm7640, %v7590, 0
    %v7735 = vsel %vm7640, %v7591, 0
    %v7738 = vsel %vm7640, %v7592, 0
    %v7741 = vsel %vm7640, %v7593, 0
    %v7744 = vsel %vm7640, %v7594, 0
    %v7747 = vsel %vm7640, %v7595, 0
    %v7750 = vsel %vm7640, %v7596, 0
    %v7753 = vsel %vm7640, %v7597, 0
    %v7756 = vsel %vm7640, %v7598, 0
    %v7759 = vsel %vm7640, %v7599, 0
    %v7762 = vsel %vm7640, %v7600, 0
    %v7765 = vsel %vm7640, %v7601, 0
    %v7768 = vsel %vm7640, %v7602, 0
    %v7771 = vsel %vm7640, %v7603, 0
    %v7774 = vsel %vm7640, %v7604, 0
    %v7777 = vsel %vm7640, %v7605, 0
    %v7780 = vsel %vm7640, %v7606, 0
    %v7783 = vsel %vm7640, %v7607, 0
    %v7786 = vsel %vm7640, %v7608, 0
    %v7789 = vsel %vm7640, %v7609, 0
    %v7792 = vsel %vm7640, %v7610, 0
    %v7795 = vsel %vm7640, %v7611, 0
    %v7798 = vsel %vm7640, %v7612, 0
    %v7801 = vsel %vm7640, %v7613, 0
    %v7804 = vsel %vm7640, %v7614, 0
    %v7807 = vsel %vm7640, %v7615, 0
    %v7810 = vsel %vm7640, %v7616, 0
    %v7813 = vsel %vm7640, %v7617, 0
    %v7816 = vsel %vm7640, %v7618, 0
    %v7819 = vsel %vm7640, %v7619, 0
    %v7822 = vsel %vm7640, %v7620, 0
    %v7825 = vsel %vm7640, %v7621, 0
    %v7828 = vsel %vm7640, %v7622, 0
    %v7831 = vsel %vm7640, %v7623, 0
    %7833 = vmatprep.subr.mxu0 0.0
    %7834 = vmatpush1.msra.mxu0 0.0
    %7835 = vmatprep.subr.mxu0 0.0
    %7836 = vmatpush1.msra.mxu0 0.0
    %7837 = vmatprep.subr.mxu0 0.0
    %7838 = vmatpush1.msra.mxu0 0.0
    %7839 = vmatprep.subr.mxu0 0.0
    %7840 = vmatpush1.msra.mxu0 0.0
    %7841 = vmatprep.subr.mxu0 0.0
    %7842 = vmatpush1.msra.mxu0 0.0
    %7843 = vmatprep.subr.mxu0 0.0
    %7844 = vmatpush1.msra.mxu0 0.0
    %7845 = vmatprep.subr.mxu0 0.0
    %7846 = vmatpush1.msra.mxu0 0.0
    %7847 = vmatprep.subr.mxu0 0.0
    %7848 = vmatpush1.msra.mxu0 %v7632
    %7849 = vmatprep.subr.mxu0 0.0
    %7850 = vmatpush1.msra.mxu0 %v7631
    %7851 = vmatprep.subr.mxu0 0.0
    %7852 = vmatpush1.msra.mxu0 %v7630
    %7853 = vmatprep.subr.mxu0 0.0
    %7854 = vmatpush1.msra.mxu0 %v7629
    %7855 = vmatprep.subr.mxu0 0.0
    %7856 = vmatpush1.msra.mxu0 %v7628
    %7857 = vmatprep.subr.mxu0 0.0
    %7858 = vmatpush1.msra.mxu0 %v7627
    %7859 = vmatprep.subr.mxu0 0.0
    %7860 = vmatpush1.msra.mxu0 %v7626
    %7861 = vmatprep.subr.mxu0 0.0
    %7862 = vmatpush1.msra.mxu0 %v7625
    %7863 = vmatprep.subr.mxu0 0.0
    %7864 = vmatpush1.msra.mxu0 %v7624
    %7865 = vmatprep.subr.mxu0 0.0
    %7866 = vmatpush2.msra.mxu0 0.0
    %7867 = vmatprep.subr.mxu0 0.0
    %7868 = vmatpush2.msra.mxu0 0.0
    %7869 = vmatprep.subr.mxu0 0.0
    %7870 = vmatpush2.msra.mxu0 0.0
    %7871 = vmatprep.subr.mxu0 0.0
    %7872 = vmatpush2.msra.mxu0 0.0
    %7873 = vmatprep.subr.mxu0 0.0
    %7874 = vmatpush2.msra.mxu0 0.0
    %7875 = vmatprep.subr.mxu0 0.0
    %7876 = vmatpush2.msra.mxu0 0.0
    %7877 = vmatprep.subr.mxu0 0.0
    %7878 = vmatpush2.msra.mxu0 0.0
    %7879 = vmatprep.subr.mxu0 0.0
    %7880 = vmatpush2.msra.mxu0 0.0
    %7881 = vmatprep.subr.mxu0 0.0
    %7882 = vmatpush2.msra.mxu0 0.0
    %7883 = vmatprep.subr.mxu0 0.0
    %7884 = vmatpush2.msra.mxu0 0.0
    %7885 = vmatprep.subr.mxu0 0.0
    %7886 = vmatpush2.msra.mxu0 0.0
    %7887 = vmatprep.subr.mxu0 0.0
    %7888 = vmatpush2.msra.mxu0 0.0
    %7889 = vmatprep.subr.mxu0 0.0
    %7890 = vmatpush2.msra.mxu0 0.0
    %7891 = vmatprep.subr.mxu0 0.0
    %7892 = vmatpush2.msra.mxu0 0.0
    %7893 = vmatprep.subr.mxu0 0.0
    %7894 = vmatpush2.msra.mxu0 0.0
    %7895 = vmatprep.subr.mxu0 0.0
    %7896 = vmatpush2.msra.mxu0 0.0
    %7897 = vmatprep.mubr.f32.mxu0 0.0
    %7898 = vmatmul.mubr.f32.gmra.mxu0 %v7642
    %v7899 = vpop.f32.mrf.mxu0
    %v7900 = vadd.f32 %v7638, %v7899
    %v7901 = vpop.f32.mrf.mxu0
    %7902 = vmatprep.mubr.f32.mxu0 0.0
    %7903 = vmatmul.mubr.f32.gmra.mxu0 %v7645
    %v7904 = vpop.f32.mrf.mxu0
    %v7905 = vadd.f32 %v7638, %v7904
    %v7906 = vpop.f32.mrf.mxu0
    %7907 = vmatprep.mubr.f32.mxu0 0.0
    %7908 = vmatmul.mubr.f32.gmra.mxu0 %v7648
    %v7909 = vpop.f32.mrf.mxu0
    %v7910 = vadd.f32 %v7638, %v7909
    %v7911 = vpop.f32.mrf.mxu0
    %7912 = vmatprep.mubr.f32.mxu0 0.0
    %7913 = vmatmul.mubr.f32.gmra.mxu0 %v7651
    %v7914 = vpop.f32.mrf.mxu0
    %v7915 = vadd.f32 %v7638, %v7914
    %v7916 = vpop.f32.mrf.mxu0
    %7917 = vmatprep.mubr.f32.mxu0 0.0
    %7918 = vmatmul.mubr.f32.gmra.mxu0 %v7654
    %v7919 = vpop.f32.mrf.mxu0
    %v7920 = vadd.f32 %v7638, %v7919
    %v7921 = vpop.f32.mrf.mxu0
    %7922 = vmatprep.mubr.f32.mxu0 0.0
    %7923 = vmatmul.mubr.f32.gmra.mxu0 %v7657
    %v7924 = vpop.f32.mrf.mxu0
    %v7925 = vadd.f32 %v7638, %v7924
    %v7926 = vpop.f32.mrf.mxu0
    %7927 = vmatprep.mubr.f32.mxu0 0.0
    %7928 = vmatmul.mubr.f32.gmra.mxu0 %v7660
    %v7929 = vpop.f32.mrf.mxu0
    %v7930 = vadd.f32 %v7638, %v7929
    %v7931 = vpop.f32.mrf.mxu0
    %7932 = vmatprep.mubr.f32.mxu0 0.0
    %7933 = vmatmul.mubr.f32.gmra.mxu0 %v7663
    %v7934 = vpop.f32.mrf.mxu0
    %v7935 = vadd.f32 %v7638, %v7934
    %v7936 = vpop.f32.mrf.mxu0
    %7937 = vmatprep.mubr.f32.mxu0 0.0
    %7938 = vmatmul.mubr.f32.gmra.mxu0 %v7666
    %v7939 = vpop.f32.mrf.mxu0
    %v7940 = vadd.f32 %v7638, %v7939
    %v7941 = vpop.f32.mrf.mxu0
    %7942 = vmatprep.mubr.f32.mxu0 0.0
    %7943 = vmatmul.mubr.f32.gmra.mxu0 %v7669
    %v7944 = vpop.f32.mrf.mxu0
    %v7945 = vadd.f32 %v7638, %v7944
    %v7946 = vpop.f32.mrf.mxu0
    %7947 = vmatprep.mubr.f32.mxu0 0.0
    %7948 = vmatmul.mubr.f32.gmra.mxu0 %v7672
    %v7949 = vpop.f32.mrf.mxu0
    %v7950 = vadd.f32 %v7638, %v7949
    %v7951 = vpop.f32.mrf.mxu0
    %7952 = vmatprep.mubr.f32.mxu0 0.0
    %7953 = vmatmul.mubr.f32.gmra.mxu0 %v7675
    %v7954 = vpop.f32.mrf.mxu0
    %v7955 = vadd.f32 %v7638, %v7954
    %v7956 = vpop.f32.mrf.mxu0
    %7957 = vmatprep.mubr.f32.mxu0 0.0
    %7958 = vmatmul.mubr.f32.gmra.mxu0 %v7678
    %v7959 = vpop.f32.mrf.mxu0
    %v7960 = vadd.f32 %v7638, %v7959
    %v7961 = vpop.f32.mrf.mxu0
    %7962 = vmatprep.mubr.f32.mxu0 0.0
    %7963 = vmatmul.mubr.f32.gmra.mxu0 %v7681
    %v7964 = vpop.f32.mrf.mxu0
    %v7965 = vadd.f32 %v7638, %v7964
    %v7966 = vpop.f32.mrf.mxu0
    %7967 = vmatprep.mubr.f32.mxu0 0.0
    %7968 = vmatmul.mubr.f32.gmra.mxu0 %v7684
    %v7969 = vpop.f32.mrf.mxu0
    %v7970 = vadd.f32 %v7638, %v7969
    %v7971 = vpop.f32.mrf.mxu0
    %7972 = vmatprep.mubr.f32.mxu0 0.0
    %7973 = vmatmul.mubr.f32.gmra.mxu0 %v7687
    %v7974 = vpop.f32.mrf.mxu0
    %v7975 = vadd.f32 %v7638, %v7974
    %v7976 = vpop.f32.mrf.mxu0
    %7977 = vmatprep.mubr.f32.mxu0 0.0
    %7978 = vmatmul.mubr.f32.gmra.mxu0 %v7690
    %v7979 = vpop.f32.mrf.mxu0
    %v7980 = vadd.f32 %v7638, %v7979
    %v7981 = vpop.f32.mrf.mxu0
    %7982 = vmatprep.mubr.f32.mxu0 0.0
    %7983 = vmatmul.mubr.f32.gmra.mxu0 %v7693
    %v7984 = vpop.f32.mrf.mxu0
    %v7985 = vadd.f32 %v7638, %v7984
    %v7986 = vpop.f32.mrf.mxu0
    %7987 = vmatprep.mubr.f32.mxu0 0.0
    %7988 = vmatmul.mubr.f32.gmra.mxu0 %v7696
    %v7989 = vpop.f32.mrf.mxu0
    %v7990 = vadd.f32 %v7638, %v7989
    %v7991 = vpop.f32.mrf.mxu0
    %7992 = vmatprep.mubr.f32.mxu0 0.0
    %7993 = vmatmul.mubr.f32.gmra.mxu0 %v7699
    %v7994 = vpop.f32.mrf.mxu0
    %v7995 = vadd.f32 %v7638, %v7994
    %v7996 = vpop.f32.mrf.mxu0
    %7997 = vmatprep.mubr.f32.mxu0 0.0
    %7998 = vmatmul.mubr.f32.gmra.mxu0 %v7702
    %v7999 = vpop.f32.mrf.mxu0
    %v8000 = vadd.f32 %v7638, %v7999
    %v8001 = vpop.f32.mrf.mxu0
    %8002 = vmatprep.mubr.f32.mxu0 0.0
    %8003 = vmatmul.mubr.f32.gmra.mxu0 %v7705
    %v8004 = vpop.f32.mrf.mxu0
    %v8005 = vadd.f32 %v7638, %v8004
    %v8006 = vpop.f32.mrf.mxu0
    %8007 = vmatprep.mubr.f32.mxu0 0.0
    %8008 = vmatmul.mubr.f32.gmra.mxu0 %v7708
    %v8009 = vpop.f32.mrf.mxu0
    %v8010 = vadd.f32 %v7638, %v8009
    %v8011 = vpop.f32.mrf.mxu0
    %8012 = vmatprep.mubr.f32.mxu0 0.0
    %8013 = vmatmul.mubr.f32.gmra.mxu0 %v7711
    %v8014 = vpop.f32.mrf.mxu0
    %v8015 = vadd.f32 %v7638, %v8014
    %v8016 = vpop.f32.mrf.mxu0
    %8017 = vmatprep.mubr.f32.mxu0 0.0
    %8018 = vmatmul.mubr.f32.gmra.mxu0 %v7714
    %v8019 = vpop.f32.mrf.mxu0
    %v8020 = vadd.f32 %v7638, %v8019
    %v8021 = vpop.f32.mrf.mxu0
    %8022 = vmatprep.mubr.f32.mxu0 0.0
    %8023 = vmatmul.mubr.f32.gmra.mxu0 %v7717
    %v8024 = vpop.f32.mrf.mxu0
    %v8025 = vadd.f32 %v7638, %v8024
    %v8026 = vpop.f32.mrf.mxu0
    %8027 = vmatprep.mubr.f32.mxu0 0.0
    %8028 = vmatmul.mubr.f32.gmra.mxu0 %v7720
    %v8029 = vpop.f32.mrf.mxu0
    %v8030 = vadd.f32 %v7638, %v8029
    %v8031 = vpop.f32.mrf.mxu0
    %8032 = vmatprep.mubr.f32.mxu0 0.0
    %8033 = vmatmul.mubr.f32.gmra.mxu0 %v7723
    %v8034 = vpop.f32.mrf.mxu0
    %v8035 = vadd.f32 %v7638, %v8034
    %v8036 = vpop.f32.mrf.mxu0
    %8037 = vmatprep.mubr.f32.mxu0 0.0
    %8038 = vmatmul.mubr.f32.gmra.mxu0 %v7726
    %v8039 = vpop.f32.mrf.mxu0
    %v8040 = vadd.f32 %v7638, %v8039
    %v8041 = vpop.f32.mrf.mxu0
    %8042 = vmatprep.mubr.f32.mxu0 0.0
    %8043 = vmatmul.mubr.f32.gmra.mxu0 %v7729
    %v8044 = vpop.f32.mrf.mxu0
    %v8045 = vadd.f32 %v7638, %v8044
    %v8046 = vpop.f32.mrf.mxu0
    %8047 = vmatprep.mubr.f32.mxu0 0.0
    %8048 = vmatmul.mubr.f32.gmra.mxu0 %v7732
    %v8049 = vpop.f32.mrf.mxu0
    %v8050 = vadd.f32 %v7638, %v8049
    %v8051 = vpop.f32.mrf.mxu0
    %8052 = vmatprep.mubr.f32.mxu0 0.0
    %8053 = vmatmul.mubr.f32.gmra.mxu0 %v7735
    %v8054 = vpop.f32.mrf.mxu0
    %v8055 = vadd.f32 %v7638, %v8054
    %v8056 = vpop.f32.mrf.mxu0
    %8057 = vmatprep.mubr.f32.mxu0 0.0
    %8058 = vmatmul.mubr.f32.gmra.mxu0 %v7738
    %v8059 = vpop.f32.mrf.mxu0
    %v8060 = vadd.f32 %v7638, %v8059
    %v8061 = vpop.f32.mrf.mxu0
    %8062 = vmatprep.mubr.f32.mxu0 0.0
    %8063 = vmatmul.mubr.f32.gmra.mxu0 %v7741
    %v8064 = vpop.f32.mrf.mxu0
    %v8065 = vadd.f32 %v7638, %v8064
    %v8066 = vpop.f32.mrf.mxu0
    %8067 = vmatprep.mubr.f32.mxu0 0.0
    %8068 = vmatmul.mubr.f32.gmra.mxu0 %v7744
    %v8069 = vpop.f32.mrf.mxu0
    %v8070 = vadd.f32 %v7638, %v8069
    %v8071 = vpop.f32.mrf.mxu0
    %8072 = vmatprep.mubr.f32.mxu0 0.0
    %8073 = vmatmul.mubr.f32.gmra.mxu0 %v7747
    %v8074 = vpop.f32.mrf.mxu0
    %v8075 = vadd.f32 %v7638, %v8074
    %v8076 = vpop.f32.mrf.mxu0
    %8077 = vmatprep.mubr.f32.mxu0 0.0
    %8078 = vmatmul.mubr.f32.gmra.mxu0 %v7750
    %v8079 = vpop.f32.mrf.mxu0
    %v8080 = vadd.f32 %v7638, %v8079
    %v8081 = vpop.f32.mrf.mxu0
    %8082 = vmatprep.mubr.f32.mxu0 0.0
    %8083 = vmatmul.mubr.f32.gmra.mxu0 %v7753
    %v8084 = vpop.f32.mrf.mxu0
    %v8085 = vadd.f32 %v7638, %v8084
    %v8086 = vpop.f32.mrf.mxu0
    %8087 = vmatprep.mubr.f32.mxu0 0.0
    %8088 = vmatmul.mubr.f32.gmra.mxu0 %v7756
    %v8089 = vpop.f32.mrf.mxu0
    %v8090 = vadd.f32 %v7638, %v8089
    %v8091 = vpop.f32.mrf.mxu0
    %8092 = vmatprep.mubr.f32.mxu0 0.0
    %8093 = vmatmul.mubr.f32.gmra.mxu0 %v7759
    %v8094 = vpop.f32.mrf.mxu0
    %v8095 = vadd.f32 %v7638, %v8094
    %v8096 = vpop.f32.mrf.mxu0
    %8097 = vmatprep.mubr.f32.mxu0 0.0
    %8098 = vmatmul.mubr.f32.gmra.mxu0 %v7762
    %v8099 = vpop.f32.mrf.mxu0
    %v8100 = vadd.f32 %v7638, %v8099
    %v8101 = vpop.f32.mrf.mxu0
    %8102 = vmatprep.mubr.f32.mxu0 0.0
    %8103 = vmatmul.mubr.f32.gmra.mxu0 %v7765
    %v8104 = vpop.f32.mrf.mxu0
    %v8105 = vadd.f32 %v7638, %v8104
    %v8106 = vpop.f32.mrf.mxu0
    %8107 = vmatprep.mubr.f32.mxu0 0.0
    %8108 = vmatmul.mubr.f32.gmra.mxu0 %v7768
    %v8109 = vpop.f32.mrf.mxu0
    %v8110 = vadd.f32 %v7638, %v8109
    %v8111 = vpop.f32.mrf.mxu0
    %8112 = vmatprep.mubr.f32.mxu0 0.0
    %8113 = vmatmul.mubr.f32.gmra.mxu0 %v7771
    %v8114 = vpop.f32.mrf.mxu0
    %v8115 = vadd.f32 %v7638, %v8114
    %v8116 = vpop.f32.mrf.mxu0
    %8117 = vmatprep.mubr.f32.mxu0 0.0
    %8118 = vmatmul.mubr.f32.gmra.mxu0 %v7774
    %v8119 = vpop.f32.mrf.mxu0
    %v8120 = vadd.f32 %v7638, %v8119
    %v8121 = vpop.f32.mrf.mxu0
    %8122 = vmatprep.mubr.f32.mxu0 0.0
    %8123 = vmatmul.mubr.f32.gmra.mxu0 %v7777
    %v8124 = vpop.f32.mrf.mxu0
    %v8125 = vadd.f32 %v7638, %v8124
    %v8126 = vpop.f32.mrf.mxu0
    %8127 = vmatprep.mubr.f32.mxu0 0.0
    %8128 = vmatmul.mubr.f32.gmra.mxu0 %v7780
    %v8129 = vpop.f32.mrf.mxu0
    %v8130 = vadd.f32 %v7638, %v8129
    %v8131 = vpop.f32.mrf.mxu0
    %8132 = vmatprep.mubr.f32.mxu0 0.0
    %8133 = vmatmul.mubr.f32.gmra.mxu0 %v7783
    %v8134 = vpop.f32.mrf.mxu0
    %v8135 = vadd.f32 %v7638, %v8134
    %v8136 = vpop.f32.mrf.mxu0
    %8137 = vmatprep.mubr.f32.mxu0 0.0
    %8138 = vmatmul.mubr.f32.gmra.mxu0 %v7786
    %v8139 = vpop.f32.mrf.mxu0
    %v8140 = vadd.f32 %v7638, %v8139
    %v8141 = vpop.f32.mrf.mxu0
    %8142 = vmatprep.mubr.f32.mxu0 0.0
    %8143 = vmatmul.mubr.f32.gmra.mxu0 %v7789
    %v8144 = vpop.f32.mrf.mxu0
    %v8145 = vadd.f32 %v7638, %v8144
    %v8146 = vpop.f32.mrf.mxu0
    %8147 = vmatprep.mubr.f32.mxu0 0.0
    %8148 = vmatmul.mubr.f32.gmra.mxu0 %v7792
    %v8149 = vpop.f32.mrf.mxu0
    %v8150 = vadd.f32 %v7638, %v8149
    %v8151 = vpop.f32.mrf.mxu0
    %8152 = vmatprep.mubr.f32.mxu0 0.0
    %8153 = vmatmul.mubr.f32.gmra.mxu0 %v7795
    %v8154 = vpop.f32.mrf.mxu0
    %v8155 = vadd.f32 %v7638, %v8154
    %v8156 = vpop.f32.mrf.mxu0
    %8157 = vmatprep.mubr.f32.mxu0 0.0
    %8158 = vmatmul.mubr.f32.gmra.mxu0 %v7798
    %v8159 = vpop.f32.mrf.mxu0
    %v8160 = vadd.f32 %v7638, %v8159
    %v8161 = vpop.f32.mrf.mxu0
    %8162 = vmatprep.mubr.f32.mxu0 0.0
    %8163 = vmatmul.mubr.f32.gmra.mxu0 %v7801
    %v8164 = vpop.f32.mrf.mxu0
    %v8165 = vadd.f32 %v7638, %v8164
    %v8166 = vpop.f32.mrf.mxu0
    %8167 = vmatprep.mubr.f32.mxu0 0.0
    %8168 = vmatmul.mubr.f32.gmra.mxu0 %v7804
    %v8169 = vpop.f32.mrf.mxu0
    %v8170 = vadd.f32 %v7638, %v8169
    %v8171 = vpop.f32.mrf.mxu0
    %8172 = vmatprep.mubr.f32.mxu0 0.0
    %8173 = vmatmul.mubr.f32.gmra.mxu0 %v7807
    %v8174 = vpop.f32.mrf.mxu0
    %v8175 = vadd.f32 %v7638, %v8174
    %v8176 = vpop.f32.mrf.mxu0
    %8177 = vmatprep.mubr.f32.mxu0 0.0
    %8178 = vmatmul.mubr.f32.gmra.mxu0 %v7810
    %v8179 = vpop.f32.mrf.mxu0
    %v8180 = vadd.f32 %v7638, %v8179
    %v8181 = vpop.f32.mrf.mxu0
    %8182 = vmatprep.mubr.f32.mxu0 0.0
    %8183 = vmatmul.mubr.f32.gmra.mxu0 %v7813
    %v8184 = vpop.f32.mrf.mxu0
    %v8185 = vadd.f32 %v7638, %v8184
    %v8186 = vpop.f32.mrf.mxu0
    %8187 = vmatprep.mubr.f32.mxu0 0.0
    %8188 = vmatmul.mubr.f32.gmra.mxu0 %v7816
    %v8189 = vpop.f32.mrf.mxu0
    %v8190 = vadd.f32 %v7638, %v8189
    %v8191 = vpop.f32.mrf.mxu0
    %8192 = vmatprep.mubr.f32.mxu0 0.0
    %8193 = vmatmul.mubr.f32.gmra.mxu0 %v7819
    %v8194 = vpop.f32.mrf.mxu0
    %v8195 = vadd.f32 %v7638, %v8194
    %v8196 = vpop.f32.mrf.mxu0
    %8197 = vmatprep.mubr.f32.mxu0 0.0
    %8198 = vmatmul.mubr.f32.gmra.mxu0 %v7822
    %v8199 = vpop.f32.mrf.mxu0
    %v8200 = vadd.f32 %v7638, %v8199
    %v8201 = vpop.f32.mrf.mxu0
    %8202 = vmatprep.mubr.f32.mxu0 0.0
    %8203 = vmatmul.mubr.f32.gmra.mxu0 %v7825
    %v8204 = vpop.f32.mrf.mxu0
    %v8205 = vadd.f32 %v7638, %v8204
    %v8206 = vpop.f32.mrf.mxu0
    %8207 = vmatprep.mubr.f32.mxu0 0.0
    %8208 = vmatmul.mubr.f32.gmra.mxu0 %v7828
    %v8209 = vpop.f32.mrf.mxu0
    %v8210 = vadd.f32 %v7638, %v8209
    %v8211 = vpop.f32.mrf.mxu0
    %8212 = vmatprep.mubr.f32.mxu0 0.0
    %8213 = vmatmul.mubr.f32.gmra.mxu0 %v7831
    %v8214 = vpop.f32.mrf.mxu0
    %v8215 = vadd.f32 %v7638, %v8214
    %v8216 = vpop.f32.mrf.mxu0
    %8217 = vdwg.mxu0
    %8218 = vst.msk [vmem:[%s5] sm:$0xff] %vm164, %v7900
    %8219 = vst.msk [vmem:[%s5 + $0x8] sm:$0xff] %vm164, %v7905
    %8220 = vst.msk [vmem:[%s5 + $0x10] sm:$0xff] %vm164, %v7910
    %8221 = vst.msk [vmem:[%s5 + $0x18] sm:$0xff] %vm164, %v7915
    %8222 = vst.msk [vmem:[%s5 + $0x20] sm:$0xff] %vm164, %v7920
    %8223 = vst.msk [vmem:[%s5 + $0x28] sm:$0xff] %vm164, %v7925
    %8224 = vst.msk [vmem:[%s5 + $0x30] sm:$0xff] %vm164, %v7930
    %8225 = vst.msk [vmem:[%s5 + $0x38] sm:$0xff] %vm164, %v7935
    %8226 = vst.msk [vmem:[%s5 + $0x40] sm:$0xff] %vm164, %v7940
    %8227 = vst.msk [vmem:[%s5 + $0x48] sm:$0xff] %vm164, %v7945
    %8228 = vst.msk [vmem:[%s5 + $0x50] sm:$0xff] %vm164, %v7950
    %8229 = vst.msk [vmem:[%s5 + $0x58] sm:$0xff] %vm164, %v7955
    %8230 = vst.msk [vmem:[%s5 + $0x60] sm:$0xff] %vm164, %v7960
    %8231 = vst.msk [vmem:[%s5 + $0x68] sm:$0xff] %vm164, %v7965
    %8232 = vst.msk [vmem:[%s5 + $0x70] sm:$0xff] %vm164, %v7970
    %8233 = vst.msk [vmem:[%s5 + $0x78] sm:$0xff] %vm164, %v7975
    %8234 = vst.msk [vmem:[%s5 + $0x80] sm:$0xff] %vm164, %v7980
    %8235 = vst.msk [vmem:[%s5 + $0x88] sm:$0xff] %vm164, %v7985
    %8236 = vst.msk [vmem:[%s5 + $0x90] sm:$0xff] %vm164, %v7990
    %8237 = vst.msk [vmem:[%s5 + $0x98] sm:$0xff] %vm164, %v7995
    %8238 = vst.msk [vmem:[%s5 + $0xa0] sm:$0xff] %vm164, %v8000
    %8239 = vst.msk [vmem:[%s5 + $0xa8] sm:$0xff] %vm164, %v8005
    %8240 = vst.msk [vmem:[%s5 + $0xb0] sm:$0xff] %vm164, %v8010
    %8241 = vst.msk [vmem:[%s5 + $0xb8] sm:$0xff] %vm164, %v8015
    %8242 = vst.msk [vmem:[%s5 + $0xc0] sm:$0xff] %vm164, %v8020
    %8243 = vst.msk [vmem:[%s5 + $0xc8] sm:$0xff] %vm164, %v8025
    %8244 = vst.msk [vmem:[%s5 + $0xd0] sm:$0xff] %vm164, %v8030
    %8245 = vst.msk [vmem:[%s5 + $0xd8] sm:$0xff] %vm164, %v8035
    %8246 = vst.msk [vmem:[%s5 + $0xe0] sm:$0xff] %vm164, %v8040
    %8247 = vst.msk [vmem:[%s5 + $0xe8] sm:$0xff] %vm164, %v8045
    %8248 = vst.msk [vmem:[%s5 + $0xf0] sm:$0xff] %vm164, %v8050
    %8249 = vst.msk [vmem:[%s5 + $0xf8] sm:$0xff] %vm164, %v8055
    %8250 = vst.msk [vmem:[%s5 + $0x100] sm:$0xff] %vm164, %v8060
    %8251 = vst.msk [vmem:[%s5 + $0x108] sm:$0xff] %vm164, %v8065
    %8252 = vst.msk [vmem:[%s5 + $0x110] sm:$0xff] %vm164, %v8070
    %8253 = vst.msk [vmem:[%s5 + $0x118] sm:$0xff] %vm164, %v8075
    %8254 = vst.msk [vmem:[%s5 + $0x120] sm:$0xff] %vm164, %v8080
    %8255 = vst.msk [vmem:[%s5 + $0x128] sm:$0xff] %vm164, %v8085
    %8256 = vst.msk [vmem:[%s5 + $0x130] sm:$0xff] %vm164, %v8090
    %8257 = vst.msk [vmem:[%s5 + $0x138] sm:$0xff] %vm164, %v8095
    %8258 = vst.msk [vmem:[%s5 + $0x140] sm:$0xff] %vm164, %v8100
    %8259 = vst.msk [vmem:[%s5 + $0x148] sm:$0xff] %vm164, %v8105
    %8260 = vst.msk [vmem:[%s5 + $0x150] sm:$0xff] %vm164, %v8110
    %8261 = vst.msk [vmem:[%s5 + $0x158] sm:$0xff] %vm164, %v8115
    %8262 = vst.msk [vmem:[%s5 + $0x160] sm:$0xff] %vm164, %v8120
    %8263 = vst.msk [vmem:[%s5 + $0x168] sm:$0xff] %vm164, %v8125
    %8264 = vst.msk [vmem:[%s5 + $0x170] sm:$0xff] %vm164, %v8130
    %8265 = vst.msk [vmem:[%s5 + $0x178] sm:$0xff] %vm164, %v8135
    %8266 = vst.msk [vmem:[%s5 + $0x180] sm:$0xff] %vm164, %v8140
    %8267 = vst.msk [vmem:[%s5 + $0x188] sm:$0xff] %vm164, %v8145
    %8268 = vst.msk [vmem:[%s5 + $0x190] sm:$0xff] %vm164, %v8150
    %8269 = vst.msk [vmem:[%s5 + $0x198] sm:$0xff] %vm164, %v8155
    %8270 = vst.msk [vmem:[%s5 + $0x1a0] sm:$0xff] %vm164, %v8160
    %8271 = vst.msk [vmem:[%s5 + $0x1a8] sm:$0xff] %vm164, %v8165
    %8272 = vst.msk [vmem:[%s5 + $0x1b0] sm:$0xff] %vm164, %v8170
    %8273 = vst.msk [vmem:[%s5 + $0x1b8] sm:$0xff] %vm164, %v8175
    %8274 = vst.msk [vmem:[%s5 + $0x1c0] sm:$0xff] %vm164, %v8180
    %8275 = vst.msk [vmem:[%s5 + $0x1c8] sm:$0xff] %vm164, %v8185
    %8276 = vst.msk [vmem:[%s5 + $0x1d0] sm:$0xff] %vm164, %v8190
    %8277 = vst.msk [vmem:[%s5 + $0x1d8] sm:$0xff] %vm164, %v8195
    %8278 = vst.msk [vmem:[%s5 + $0x1e0] sm:$0xff] %vm164, %v8200
    %8279 = vst.msk [vmem:[%s5 + $0x1e8] sm:$0xff] %vm164, %v8205
    %8280 = vst.msk [vmem:[%s5 + $0x1f0] sm:$0xff] %vm164, %v8210
    %8281 = vst.msk [vmem:[%s5 + $0x1f8] sm:$0xff] %vm164, %v8215
    // Predicated region
    $region34: #{_lambda_.3} parent=1 // pred_check
      _
    $region35: #{_lambda_.3} parent=1 // pred_check_branch
      %8283 = sbr.rel (0) target = $region37
    $region36: #{_lambda_.3} parent=1 // pred_region
      _
    $region37: #{_lambda_.3} parent=1 // pred_fallthru
      _
    // Predicated region
    $region38: #{_lambda_.3} parent=1 // pred_check
      _
    $region39: #{_lambda_.3} parent=1 // pred_check_branch
      %8285 = sbr.rel (0) target = $region41
    $region40: #{_lambda_.3} parent=1 // pred_region
      _
    $region41: #{_lambda_.3} parent=1 // pred_fallthru
      _
    %8286 = vsyncpa [#allocation7], 1
    %8287 = vsyncpa [#allocation9], 1

</llo_original>
